<compile_context>
chip_gen: v5e
topology: v5e:2x2
jax: 0.10.0
libtpu: 0.0.40
codegen_flags: <defaults>
</compile_context>

<pallas_src>
import functools

import jax
import jax.numpy as jnp
from jax.experimental import pallas as pl
from jax.experimental.pallas import tpu as pltpu


def _round_up(x, m):
    return ((x + m - 1) // m) * m


# ----------------------------------------------------------------------------
# Fused MLP kernel:
#   x -> relu(xW1+b1) -> relu(.W2+b2) -> relu(.W3+b3) -> tanh(.W4+b4)
# Weights arrive in bf16 (MXU inputs), biases in f32, accumulation in f32.
# ----------------------------------------------------------------------------
def _fused_mlp_kernel(x_ref, w1_ref, b1_ref, w2_ref, b2_ref, w3_ref, b3_ref,
                      w4_ref, b4_ref, o_ref, *, compute_dtype):
    def layer(h, w_ref, b_ref, act):
        acc = jnp.dot(h, w_ref[...], preferred_element_type=jnp.float32)
        acc = acc + b_ref[...]          # (1, Dout) f32 broadcast over rows
        if act == "relu":
            acc = jnp.maximum(acc, 0.0)
        else:                           # "tanh"
            acc = jnp.tanh(acc)
        return acc                      # f32

    h = layer(x_ref[...], w1_ref, b1_ref, "relu")
    h = layer(h.astype(compute_dtype), w2_ref, b2_ref, "relu")
    h = layer(h.astype(compute_dtype), w3_ref, b3_ref, "relu")
    h = layer(h.astype(compute_dtype), w4_ref, b4_ref, "tanh")
    o_ref[...] = h.astype(o_ref.dtype)


# ----------------------------------------------------------------------------
# Wrapper: batch-tiled, weights resident, lane-dense (padded) output.
# ----------------------------------------------------------------------------
def fused_mlp(params, x, *, block_b=128, compute_dtype=jnp.bfloat16):
    """params: [(w, b)]*4 with w:(Din,Dout) f32, b:(Dout,) f32; x:(B,Din) f32."""
    B, Din = x.shape
    dout_final = params[-1][0].shape[1]
    dout_pad = _round_up(max(dout_final, 128), 128)

    # Batch tiling. block_b=128 fills the v5e MXU rows; use 256 on v6e/v7x for
    # large batches. Padded rows are zeros and sliced off afterwards.
    bt = min(block_b, _round_up(B, 8))
    b_pad = _round_up(B, bt)
    x_p = x if b_pad == B else jnp.pad(x, ((0, b_pad - B), (0, 0)))
    x_p = x_p.astype(compute_dtype)

    # Weights -> MXU dtype; biases stay f32; last layer padded to a lane-dense
    # 128-wide output (extra zero columns sliced off in the wrapper).
    (w1, b1), (w2, b2), (w3, b3), (w4, b4) = params
    w4 = jnp.pad(w4, ((0, 0), (0, dout_pad - dout_final)))
    b4 = jnp.pad(b4, ((0, dout_pad - dout_final),))
    ws = [w.astype(compute_dtype) for w in (w1, w2, w3, w4)]
    bs = [b.reshape(1, -1).astype(jnp.float32) for b in (b1, b2, b3, b4)]

    const = lambda i: (0, 0)            # weights/biases: same block every step
    in_specs = [pl.BlockSpec((bt, Din), lambda i: (i, 0))]
    operands = [x_p]
    for w, b in zip(ws, bs):
        in_specs += [pl.BlockSpec(w.shape, const), pl.BlockSpec(b.shape, const)]
        operands += [w, b]

    kernel = functools.partial(_fused_mlp_kernel, compute_dtype=compute_dtype)
    out = pl.pallas_call(
        kernel,
        out_shape=jax.ShapeDtypeStruct((b_pad, dout_pad), jnp.float32),
        grid=(b_pad // bt,),
        in_specs=in_specs,
        out_specs=pl.BlockSpec((bt, dout_pad), lambda i: (i, 0)),
        compiler_params=pltpu.CompilerParams(
            dimension_semantics=("parallel",)),
    )(*operands)
    return out[:B, :dout_final]


# ----------------------------------------------------------------------------
# SpectralNet in JAX / Pallas
# ----------------------------------------------------------------------------
def init_params(key, input_size, output_size):
    dims = [(input_size, 1024), (1024, 1024), (1024, 512), (512, output_size)]
    params = []
    for din, dout in dims:
        kw, kb, key = jax.random.split(key, 3)
        bound = 1.0 / jnp.sqrt(float(din))
        w = jax.random.uniform(kw, (din, dout), jnp.float32, -bound, bound)
        b = jax.random.uniform(kb, (dout,), jnp.float32, -bound, bound)
        params.append((w, b))
    return params


def make_ortho_weights(x_net):
    """sqrt(N) * inv(chol(x^T x + eps I))^T -- tiny (k x k); plain-JAX glue."""
    eps = 1e-7  # matches the PyTorch module
    n = x_net.shape[0]
    x_sym = x_net.T @ x_net
    x_sym = x_sym + eps * jnp.eye(x_sym.shape[1], dtype=x_sym.dtype)
    L = jnp.linalg.cholesky(x_sym)
    L_inv = jax.scipy.linalg.solve_triangular(
        L, jnp.eye(L.shape[0], dtype=L.dtype), lower=True)
    return (float(n) ** 0.5) * L_inv.T


def spectralnet_forward(params, x, ortho_step=True, w_ortho=None, **kw):
    x_net = fused_mlp(params, x, **kw)
    if ortho_step:
        w_ortho = make_ortho_weights(x_net)
    # (B, k) @ (k, k) with k=4 is lane-sparse and tiny: leave it to XLA; a
    # dedicated pallas_call here is pure overhead.
    # TODO(synk): at very large batch the k x k Gram could also be accumulated
    # inside the fused kernel to skip the x_net re-read; x_net must be emitted
    # anyway for y = x_net @ W_ortho, so it is computed in plain JAX here.
    y = x_net @ w_ortho
    return y, w_ortho


# ----------------------------------------------------------------------------
# Main
# ----------------------------------------------------------------------------
if __name__ == "__main__":
    key = jax.random.PRNGKey(0)
    k_in, k_par = jax.random.split(key)

    batch = 256          # small, but gives a >1-step grid with block_b=128
    input_size = 32
    output_size = 4

    x = jax.random.normal(k_in, (batch, input_size), jnp.float32)
    params = init_params(k_par, input_size, output_size)

    y, w_ortho = spectralnet_forward(params, x, ortho_step=True)
    y = jax.block_until_ready(y)

    # Correctness check vs a plain-JAX reference performing the SAME
    # bf16-input / f32-accumulate matmuls that the kernel executes.
    h = x
    acts = ["relu", "relu", "relu", "tanh"]
    for (w, b), act in zip(params, acts):
        acc = jnp.dot(h.astype(jnp.bfloat16), w.astype(jnp.bfloat16),
                      preferred_element_type=jnp.float32) + b
        h = jnp.maximum(acc, 0.0) if act == "relu" else jnp.tanh(acc)
    y_ref = h @ make_ortho_weights(h)
    assert y.shape == (batch, output_size)
    assert jnp.allclose(y, y_ref, atol=5e-3, rtol=5e-3), "mismatch vs reference"

    print("KERNEL_OK")
</pallas_src>

<mosaic_0001>
module attributes {stable_mosaic.version = 11 : i64} {
  func.func @_fused_mlp_kernel(%arg0: i32, %arg1: memref<128x32xbf16, #tpu.memory_space<vmem>>, %arg2: memref<32x1024xbf16, #tpu.memory_space<vmem>>, %arg3: memref<1x1024xf32, #tpu.memory_space<vmem>>, %arg4: memref<1024x1024xbf16, #tpu.memory_space<vmem>>, %arg5: memref<1x1024xf32, #tpu.memory_space<vmem>>, %arg6: memref<1024x512xbf16, #tpu.memory_space<vmem>>, %arg7: memref<1x512xf32, #tpu.memory_space<vmem>>, %arg8: memref<512x128xbf16, #tpu.memory_space<vmem>>, %arg9: memref<1x128xf32, #tpu.memory_space<vmem>>, %arg10: memref<128x128xf32, #tpu.memory_space<vmem>>) attributes {dimension_semantics = [#tpu.dimension_semantics<parallel>], iteration_bounds = array<i64: 2>, scalar_prefetch = 0 : i64, scratch_operands = 0 : i64, tpu.core_type = #tpu.core_type<tc>, window_params = [{transform_indices = @transform_0, window_bounds = array<i64: 128, 32>}, {pipeline_mode = #tpu.pipeline_mode<synchronous>, transform_indices = @transform_1, window_bounds = array<i64: 32, 1024>}, {pipeline_mode = #tpu.pipeline_mode<synchronous>, transform_indices = @transform_2, window_bounds = array<i64: 1, 1024>}, {pipeline_mode = #tpu.pipeline_mode<synchronous>, transform_indices = @transform_3, window_bounds = array<i64: 1024, 1024>}, {pipeline_mode = #tpu.pipeline_mode<synchronous>, transform_indices = @transform_4, window_bounds = array<i64: 1, 1024>}, {pipeline_mode = #tpu.pipeline_mode<synchronous>, transform_indices = @transform_5, window_bounds = array<i64: 1024, 512>}, {pipeline_mode = #tpu.pipeline_mode<synchronous>, transform_indices = @transform_6, window_bounds = array<i64: 1, 512>}, {pipeline_mode = #tpu.pipeline_mode<synchronous>, transform_indices = @transform_7, window_bounds = array<i64: 512, 128>}, {pipeline_mode = #tpu.pipeline_mode<synchronous>, transform_indices = @transform_8, window_bounds = array<i64: 1, 128>}, {transform_indices = @transform_9, window_bounds = array<i64: 128, 128>}]} {
    %c0 = arith.constant 0 : index
    %c0_0 = arith.constant 0 : index
    %0 = vector.load %arg1[%c0, %c0_0] : memref<128x32xbf16, #tpu.memory_space<vmem>>, vector<128x32xbf16>
    %c0_1 = arith.constant 0 : index
    %c0_2 = arith.constant 0 : index
    %1 = vector.load %arg2[%c0_1, %c0_2] : memref<32x1024xbf16, #tpu.memory_space<vmem>>, vector<32x1024xbf16>
    %cst = arith.constant dense<0.000000e+00> : vector<128x1024xf32>
    %2 = tpu.matmul %0, %1, %cst {dimension_numbers = #tpu.dot_dimension_numbers<[1], [0], [0], [1], [0, 0, 1, 1], [], []>} : vector<128x32xbf16>, vector<32x1024xbf16>, vector<128x1024xf32> -> vector<128x1024xf32>
    %c0_3 = arith.constant 0 : index
    %c0_4 = arith.constant 0 : index
    %3 = vector.load %arg3[%c0_3, %c0_4] : memref<1x1024xf32, #tpu.memory_space<vmem>>, vector<1x1024xf32>
    %4 = vector.broadcast %3 : vector<1x1024xf32> to vector<128x1024xf32>
    %5 = arith.addf %2, %4 : vector<128x1024xf32>
    %cst_5 = arith.constant 0.000000e+00 : f32
    %6 = vector.broadcast %cst_5 : f32 to vector<128x1024xf32>
    %7 = arith.maximumf %5, %6 : vector<128x1024xf32>
    %8 = arith.truncf %7 : vector<128x1024xf32> to vector<128x1024xbf16>
    %c0_6 = arith.constant 0 : index
    %c0_7 = arith.constant 0 : index
    %9 = vector.load %arg4[%c0_6, %c0_7] : memref<1024x1024xbf16, #tpu.memory_space<vmem>>, vector<1024x1024xbf16>
    %cst_8 = arith.constant dense<0.000000e+00> : vector<128x1024xf32>
    %10 = tpu.matmul %8, %9, %cst_8 {dimension_numbers = #tpu.dot_dimension_numbers<[1], [0], [0], [1], [0, 0, 1, 1], [], []>} : vector<128x1024xbf16>, vector<1024x1024xbf16>, vector<128x1024xf32> -> vector<128x1024xf32>
    %c0_9 = arith.constant 0 : index
    %c0_10 = arith.constant 0 : index
    %11 = vector.load %arg5[%c0_9, %c0_10] : memref<1x1024xf32, #tpu.memory_space<vmem>>, vector<1x1024xf32>
    %12 = vector.broadcast %11 : vector<1x1024xf32> to vector<128x1024xf32>
    %13 = arith.addf %10, %12 : vector<128x1024xf32>
    %cst_11 = arith.constant 0.000000e+00 : f32
    %14 = vector.broadcast %cst_11 : f32 to vector<128x1024xf32>
    %15 = arith.maximumf %13, %14 : vector<128x1024xf32>
    %16 = arith.truncf %15 : vector<128x1024xf32> to vector<128x1024xbf16>
    %c0_12 = arith.constant 0 : index
    %c0_13 = arith.constant 0 : index
    %17 = vector.load %arg6[%c0_12, %c0_13] : memref<1024x512xbf16, #tpu.memory_space<vmem>>, vector<1024x512xbf16>
    %cst_14 = arith.constant dense<0.000000e+00> : vector<128x512xf32>
    %18 = tpu.matmul %16, %17, %cst_14 {dimension_numbers = #tpu.dot_dimension_numbers<[1], [0], [0], [1], [0, 0, 1, 1], [], []>} : vector<128x1024xbf16>, vector<1024x512xbf16>, vector<128x512xf32> -> vector<128x512xf32>
    %c0_15 = arith.constant 0 : index
    %c0_16 = arith.constant 0 : index
    %19 = vector.load %arg7[%c0_15, %c0_16] : memref<1x512xf32, #tpu.memory_space<vmem>>, vector<1x512xf32>
    %20 = vector.broadcast %19 : vector<1x512xf32> to vector<128x512xf32>
    %21 = arith.addf %18, %20 : vector<128x512xf32>
    %cst_17 = arith.constant 0.000000e+00 : f32
    %22 = vector.broadcast %cst_17 : f32 to vector<128x512xf32>
    %23 = arith.maximumf %21, %22 : vector<128x512xf32>
    %24 = arith.truncf %23 : vector<128x512xf32> to vector<128x512xbf16>
    %c0_18 = arith.constant 0 : index
    %c0_19 = arith.constant 0 : index
    %25 = vector.load %arg8[%c0_18, %c0_19] : memref<512x128xbf16, #tpu.memory_space<vmem>>, vector<512x128xbf16>
    %cst_20 = arith.constant dense<0.000000e+00> : vector<128x128xf32>
    %26 = tpu.matmul %24, %25, %cst_20 {dimension_numbers = #tpu.dot_dimension_numbers<[1], [0], [0], [1], [0, 0, 1, 1], [], []>} : vector<128x512xbf16>, vector<512x128xbf16>, vector<128x128xf32> -> vector<128x128xf32>
    %c0_21 = arith.constant 0 : index
    %c0_22 = arith.constant 0 : index
    %27 = vector.load %arg9[%c0_21, %c0_22] : memref<1x128xf32, #tpu.memory_space<vmem>>, vector<1x128xf32>
    %28 = vector.broadcast %27 : vector<1x128xf32> to vector<128x128xf32>
    %29 = arith.addf %26, %28 : vector<128x128xf32>
    %30 = math.tanh %29 : vector<128x128xf32>
    %c0_23 = arith.constant 0 : index
    %c0_24 = arith.constant 0 : index
    %31 = vector.load %arg10[%c0_23, %c0_24] : memref<128x128xf32, #tpu.memory_space<vmem>>, vector<128x128xf32>
    tpu.vector_store %arg10[%c0_23, %c0_24], %30 {strides = array<i32>} : memref<128x128xf32, #tpu.memory_space<vmem>>, vector<128x128xf32>,
    return
  }
  func.func @transform_0(%arg0: i32) -> (i32, i32) {
    %c0_i32 = arith.constant 0 : i32
    %c0_i32_0 = arith.constant 0 : i32
    return %arg0, %c0_i32 : i32, i32
  }
  func.func @transform_1(%arg0: i32) -> (i32, i32) {
    %c0_i32 = arith.constant 0 : i32
    %c0_i32_0 = arith.constant 0 : i32
    %c0_i32_1 = arith.constant 0 : i32
    return %c0_i32, %c0_i32_0 : i32, i32
  }
  func.func @transform_2(%arg0: i32) -> (i32, i32) {
    %c0_i32 = arith.constant 0 : i32
    %c0_i32_0 = arith.constant 0 : i32
    %c0_i32_1 = arith.constant 0 : i32
    return %c0_i32, %c0_i32_0 : i32, i32
  }
  func.func @transform_3(%arg0: i32) -> (i32, i32) {
    %c0_i32 = arith.constant 0 : i32
    %c0_i32_0 = arith.constant 0 : i32
    %c0_i32_1 = arith.constant 0 : i32
    return %c0_i32, %c0_i32_0 : i32, i32
  }
  func.func @transform_4(%arg0: i32) -> (i32, i32) {
    %c0_i32 = arith.constant 0 : i32
    %c0_i32_0 = arith.constant 0 : i32
    %c0_i32_1 = arith.constant 0 : i32
    return %c0_i32, %c0_i32_0 : i32, i32
  }
  func.func @transform_5(%arg0: i32) -> (i32, i32) {
    %c0_i32 = arith.constant 0 : i32
    %c0_i32_0 = arith.constant 0 : i32
    %c0_i32_1 = arith.constant 0 : i32
    return %c0_i32, %c0_i32_0 : i32, i32
  }
  func.func @transform_6(%arg0: i32) -> (i32, i32) {
    %c0_i32 = arith.constant 0 : i32
    %c0_i32_0 = arith.constant 0 : i32
    %c0_i32_1 = arith.constant 0 : i32
    return %c0_i32, %c0_i32_0 : i32, i32
  }
  func.func @transform_7(%arg0: i32) -> (i32, i32) {
    %c0_i32 = arith.constant 0 : i32
    %c0_i32_0 = arith.constant 0 : i32
    %c0_i32_1 = arith.constant 0 : i32
    return %c0_i32, %c0_i32_0 : i32, i32
  }
  func.func @transform_8(%arg0: i32) -> (i32, i32) {
    %c0_i32 = arith.constant 0 : i32
    %c0_i32_0 = arith.constant 0 : i32
    %c0_i32_1 = arith.constant 0 : i32
    return %c0_i32, %c0_i32_0 : i32, i32
  }
  func.func @transform_9(%arg0: i32) -> (i32, i32) {
    %c0_i32 = arith.constant 0 : i32
    %c0_i32_0 = arith.constant 0 : i32
    return %arg0, %c0_i32 : i32, i32
  }
}

</mosaic_0001>

<llo_original>
// kernel: tpu_custom_call.1
$region0: #{tpu_custom_call.1}
  #allocation0 [shape = 'u32[]', space=smem, size = 0x4, offset = 0x4, fixed_abs, tag = 'smem constant byte address 0x4 - core index']
  #allocation1 [shape = 'u32[72,128]{1,0:T(1,128)}', space=vmem, size = 0x9000, scoped, tag = 'internal scratch']
  %s0 = inlined_call_operand.vmem [shape: bf16[256,32], index: 0, kind: input, shape index: {}]
  %s1 = inlined_call_operand.hbm [shape: bf16[32,1024], index: 1, kind: input, shape index: {}]
  %s2 = inlined_call_operand.hbm [shape: f32[1,1024], index: 2, kind: input, shape index: {}]
  %s3 = inlined_call_operand.hbm [shape: bf16[1024,1024], index: 3, kind: input, shape index: {}]
  %s4 = inlined_call_operand.hbm [shape: f32[1,1024], index: 4, kind: input, shape index: {}]
  %s5 = inlined_call_operand.hbm [shape: bf16[1024,512], index: 5, kind: input, shape index: {}]
  %s6 = inlined_call_operand.hbm [shape: f32[1,512], index: 6, kind: input, shape index: {}]
  %s7 = inlined_call_operand.hbm [shape: bf16[512,128], index: 7, kind: input, shape index: {}]
  %s8 = inlined_call_operand.hbm [shape: f32[1,128], index: 8, kind: input, shape index: {}]
  %s9 = inlined_call_operand.hbm [shape: f32[256,128], index: 9, kind: output, shape index: {}]
  %s10 = sld [smem:[#allocation0]]
  $region101: #{tpu_custom_call.1} parent=0
    _
  %s12 = ssub.s32 1, %s10
  %s13 = scalar_select 0, %s12, %s10
  $region1: #{tpu_custom_call.1} parent=0
    #allocation2 [shape = 'u8[65536]{0}', space=vmem, size = 0x10000, scoped, tag = 'input window, operand 1, single buffered']
    #allocation3 [shape = 's32[2]{0}', space=sflag, size = 0x8, scoped, tag = 'scoped memory for tpu_custom_call.1']
    #allocation4 [shape = 's32[2]{0}', space=sflag, size = 0x8, scoped, tag = 'scoped memory for tpu_custom_call.1']
    #allocation5 [shape = 'u8[4096]{0}', space=vmem, size = 0x1000, scoped, tag = 'input window, operand 2, single buffered']
    #allocation6 [shape = 's32[1]{0}', space=sflag, size = 0x4, scoped, tag = 'scoped memory for tpu_custom_call.1']
    #allocation7 [shape = 'u8[2097152]{0}', space=vmem, size = 0x200000, scoped, tag = 'input window, operand 3, single buffered']
    #allocation8 [shape = 'u8[4096]{0}', space=vmem, size = 0x1000, scoped, tag = 'input window, operand 4, single buffered']
    #allocation9 [shape = 's32[1]{0}', space=sflag, size = 0x4, scoped, tag = 'scoped memory for tpu_custom_call.1']
    #allocation10 [shape = 'u8[1048576]{0}', space=vmem, size = 0x100000, scoped, tag = 'input window, operand 5, single buffered']
    #allocation11 [shape = 'u8[2048]{0}', space=vmem, size = 0x800, scoped, tag = 'input window, operand 6, single buffered']
    #allocation12 [shape = 's32[1]{0}', space=sflag, size = 0x4, scoped, tag = 'scoped memory for tpu_custom_call.1']
    #allocation13 [shape = 'u8[131072]{0}', space=vmem, size = 0x20000, scoped, tag = 'input window, operand 7, single buffered']
    #allocation14 [shape = 'u8[512]{0}', space=vmem, size = 0x400, scoped, tag = 'input window, operand 8, single buffered']
    #allocation15 [shape = 's32[1]{0}', space=sflag, size = 0x4, scoped, tag = 'scoped memory for tpu_custom_call.1']
    #allocation16 [shape = 'u8[131072]{0}', space=vmem, size = 0x20000, scoped, tag = 'output window, operand 0']
    %14 = vsyncpa [#allocation3], 0
    %15 = vsyncpa [#allocation6], 0
    %16 = vsyncpa [#allocation9], 0
    %17 = vsyncpa [#allocation12], 0
    %18 = vsyncpa [#allocation15], 0
    %19 = vsyncpa [#allocation4], 0
    %s20 = scalar_lea.sflag [#allocation4], 1
    %21 = vsyncpa %s20, 0
    loop: start=0, step=1, limit=4
    $region2: #{tpu_custom_call.1} parent=1 // loop_pre_header
      _
    $region3: #{tpu_custom_call.1} parent=1 // loop_header
      %s23 = sphi 0, %s27
      %p24 = scmp.ge.s32.totalorder %s23, 4
      %s33 = sphi 0, %s35
      %s36 = sphi 0, %s33
      %s37 = sphi 0, %s36
      %s53 = sphi 0, %s37
      %s57 = sphi 0, %s57
      %s59 = sphi 0, %s57
      %s60 = sphi 0, %s59
      %s74 = sphi 0, %s60
      %s78 = sphi 0, %s78
      %s80 = sphi 0, %s78
      %s81 = sphi 0, %s80
      %s95 = sphi 0, %s81
      %s99 = sphi 0, %s99
      %s101 = sphi 0, %s99
      %s102 = sphi 0, %s101
      %s116 = sphi 0, %s102
      %s120 = sphi 0, %s120
      %s122 = sphi 0, %s120
      %s123 = sphi 0, %s122
      %s137 = sphi 0, %s123
      %s141 = sphi 0, %s141
      %s143 = sphi 0, %s141
      %s144 = sphi 0, %s143
      %s158 = sphi 0, %s144
      %s162 = sphi 0, %s162
      %s164 = sphi 0, %s162
      %s165 = sphi 0, %s164
      %s179 = sphi 0, %s165
      %s183 = sphi 0, %s183
      %s185 = sphi 0, %s183
      %s186 = sphi 0, %s185
      %s200 = sphi 0, %s186
      %s204 = sphi 0, %s204
      %s206 = sphi 0, %s204
      %s207 = sphi 0, %s206
      %s221 = sphi 0, %s207
      %s227 = sphi 0, %s229
      %s230 = sphi 0, %s227
      %s231 = sphi 0, %s230
      %s247 = sphi 0, %s231
    $region4: #{tpu_custom_call.1} parent=1 // loop_header_branch
      %26 = sbr.rel (%p24) target = $region8
    $region5: #{tpu_custom_call.1} parent=1 // loop_body
      %s28 = ssub.s32 %s23, 1
      %s29 = ssub.s32 %s23, 2
      %s30 = sadd.s32 %s23, 1
      %s31 = ssub.s32 %s23, %s30
      %p32 = scmp.eq.s32.totalorder %s31, 0
      %s34 = sadd.s32 %s33, 1
      %s35 = scalar_select %p32, %s33, %s34
      %p38 = pneg %p32
      %p39 = scmp.eq.s32.totalorder %s23, 1
      %p40 = por %p38, %p39
      %p41 = scmp.ne.s32.totalorder %s33, %s36
      %p42 = scmp.eq.s32.totalorder %s23, 0
      %p43 = por %p41, %p42
      %p44 = scmp.ne.s32.totalorder %s33, %s36
      %p45 = scmp.eq.s32.totalorder %s28, 1
      %p46 = por %p44, %p45
      %p47 = scmp.ne.s32.totalorder %s36, %s37
      %p48 = scmp.eq.s32.totalorder %s28, 0
      %p49 = por %p47, %p48
      %p50 = scmp.ne.s32.totalorder %s36, %s37
      %p51 = scmp.eq.s32.totalorder %s29, 1
      %p52 = por %p50, %p51
      %p54 = scmp.ne.s32.totalorder %s37, %s53
      %p55 = scmp.eq.s32.totalorder %s29, 0
      %p56 = por %p54, %p55
      %s58 = sadd.s32 %s57, 1
      %p61 = scmp.eq.s32.totalorder %s23, 1
      %p62 = scmp.ne.s32.totalorder %s57, %s59
      %p63 = scmp.eq.s32.totalorder %s23, 0
      %p64 = por %p62, %p63
      %p65 = scmp.ne.s32.totalorder %s57, %s59
      %p66 = scmp.eq.s32.totalorder %s28, 1
      %p67 = por %p65, %p66
      %p68 = scmp.ne.s32.totalorder %s59, %s60
      %p69 = scmp.eq.s32.totalorder %s28, 0
      %p70 = por %p68, %p69
      %p71 = scmp.ne.s32.totalorder %s59, %s60
      %p72 = scmp.eq.s32.totalorder %s29, 1
      %p73 = por %p71, %p72
      %p75 = scmp.ne.s32.totalorder %s60, %s74
      %p76 = scmp.eq.s32.totalorder %s29, 0
      %p77 = por %p75, %p76
      %s79 = sadd.s32 %s78, 1
      %p82 = scmp.eq.s32.totalorder %s23, 1
      %p83 = scmp.ne.s32.totalorder %s78, %s80
      %p84 = scmp.eq.s32.totalorder %s23, 0
      %p85 = por %p83, %p84
      %p86 = scmp.ne.s32.totalorder %s78, %s80
      %p87 = scmp.eq.s32.totalorder %s28, 1
      %p88 = por %p86, %p87
      %p89 = scmp.ne.s32.totalorder %s80, %s81
      %p90 = scmp.eq.s32.totalorder %s28, 0
      %p91 = por %p89, %p90
      %p92 = scmp.ne.s32.totalorder %s80, %s81
      %p93 = scmp.eq.s32.totalorder %s29, 1
      %p94 = por %p92, %p93
      %p96 = scmp.ne.s32.totalorder %s81, %s95
      %p97 = scmp.eq.s32.totalorder %s29, 0
      %p98 = por %p96, %p97
      %s100 = sadd.s32 %s99, 1
      %p103 = scmp.eq.s32.totalorder %s23, 1
      %p104 = scmp.ne.s32.totalorder %s99, %s101
      %p105 = scmp.eq.s32.totalorder %s23, 0
      %p106 = por %p104, %p105
      %p107 = scmp.ne.s32.totalorder %s99, %s101
      %p108 = scmp.eq.s32.totalorder %s28, 1
      %p109 = por %p107, %p108
      %p110 = scmp.ne.s32.totalorder %s101, %s102
      %p111 = scmp.eq.s32.totalorder %s28, 0
      %p112 = por %p110, %p111
      %p113 = scmp.ne.s32.totalorder %s101, %s102
      %p114 = scmp.eq.s32.totalorder %s29, 1
      %p115 = por %p113, %p114
      %p117 = scmp.ne.s32.totalorder %s102, %s116
      %p118 = scmp.eq.s32.totalorder %s29, 0
      %p119 = por %p117, %p118
      %s121 = sadd.s32 %s120, 1
      %p124 = scmp.eq.s32.totalorder %s23, 1
      %p125 = scmp.ne.s32.totalorder %s120, %s122
      %p126 = scmp.eq.s32.totalorder %s23, 0
      %p127 = por %p125, %p126
      %p128 = scmp.ne.s32.totalorder %s120, %s122
      %p129 = scmp.eq.s32.totalorder %s28, 1
      %p130 = por %p128, %p129
      %p131 = scmp.ne.s32.totalorder %s122, %s123
      %p132 = scmp.eq.s32.totalorder %s28, 0
      %p133 = por %p131, %p132
      %p134 = scmp.ne.s32.totalorder %s122, %s123
      %p135 = scmp.eq.s32.totalorder %s29, 1
      %p136 = por %p134, %p135
      %p138 = scmp.ne.s32.totalorder %s123, %s137
      %p139 = scmp.eq.s32.totalorder %s29, 0
      %p140 = por %p138, %p139
      %s142 = sadd.s32 %s141, 1
      %p145 = scmp.eq.s32.totalorder %s23, 1
      %p146 = scmp.ne.s32.totalorder %s141, %s143
      %p147 = scmp.eq.s32.totalorder %s23, 0
      %p148 = por %p146, %p147
      %p149 = scmp.ne.s32.totalorder %s141, %s143
      %p150 = scmp.eq.s32.totalorder %s28, 1
      %p151 = por %p149, %p150
      %p152 = scmp.ne.s32.totalorder %s143, %s144
      %p153 = scmp.eq.s32.totalorder %s28, 0
      %p154 = por %p152, %p153
      %p155 = scmp.ne.s32.totalorder %s143, %s144
      %p156 = scmp.eq.s32.totalorder %s29, 1
      %p157 = por %p155, %p156
      %p159 = scmp.ne.s32.totalorder %s144, %s158
      %p160 = scmp.eq.s32.totalorder %s29, 0
      %p161 = por %p159, %p160
      %s163 = sadd.s32 %s162, 1
      %p166 = scmp.eq.s32.totalorder %s23, 1
      %p167 = scmp.ne.s32.totalorder %s162, %s164
      %p168 = scmp.eq.s32.totalorder %s23, 0
      %p169 = por %p167, %p168
      %p170 = scmp.ne.s32.totalorder %s162, %s164
      %p171 = scmp.eq.s32.totalorder %s28, 1
      %p172 = por %p170, %p171
      %p173 = scmp.ne.s32.totalorder %s164, %s165
      %p174 = scmp.eq.s32.totalorder %s28, 0
      %p175 = por %p173, %p174
      %p176 = scmp.ne.s32.totalorder %s164, %s165
      %p177 = scmp.eq.s32.totalorder %s29, 1
      %p178 = por %p176, %p177
      %p180 = scmp.ne.s32.totalorder %s165, %s179
      %p181 = scmp.eq.s32.totalorder %s29, 0
      %p182 = por %p180, %p181
      %s184 = sadd.s32 %s183, 1
      %p187 = scmp.eq.s32.totalorder %s23, 1
      %p188 = scmp.ne.s32.totalorder %s183, %s185
      %p189 = scmp.eq.s32.totalorder %s23, 0
      %p190 = por %p188, %p189
      %p191 = scmp.ne.s32.totalorder %s183, %s185
      %p192 = scmp.eq.s32.totalorder %s28, 1
      %p193 = por %p191, %p192
      %p194 = scmp.ne.s32.totalorder %s185, %s186
      %p195 = scmp.eq.s32.totalorder %s28, 0
      %p196 = por %p194, %p195
      %p197 = scmp.ne.s32.totalorder %s185, %s186
      %p198 = scmp.eq.s32.totalorder %s29, 1
      %p199 = por %p197, %p198
      %p201 = scmp.ne.s32.totalorder %s186, %s200
      %p202 = scmp.eq.s32.totalorder %s29, 0
      %p203 = por %p201, %p202
      %s205 = sadd.s32 %s204, 1
      %p208 = scmp.eq.s32.totalorder %s23, 1
      %p209 = scmp.ne.s32.totalorder %s204, %s206
      %p210 = scmp.eq.s32.totalorder %s23, 0
      %p211 = por %p209, %p210
      %p212 = scmp.ne.s32.totalorder %s204, %s206
      %p213 = scmp.eq.s32.totalorder %s28, 1
      %p214 = por %p212, %p213
      %p215 = scmp.ne.s32.totalorder %s206, %s207
      %p216 = scmp.eq.s32.totalorder %s28, 0
      %p217 = por %p215, %p216
      %p218 = scmp.ne.s32.totalorder %s206, %s207
      %p219 = scmp.eq.s32.totalorder %s29, 1
      %p220 = por %p218, %p219
      %p222 = scmp.ne.s32.totalorder %s207, %s221
      %p223 = scmp.eq.s32.totalorder %s29, 0
      %p224 = por %p222, %p223
      %s225 = ssub.s32 %s23, %s30
      %p226 = scmp.eq.s32.totalorder %s225, 0
      %s228 = sadd.s32 %s227, 1
      %s229 = scalar_select %p226, %s227, %s228
      %p232 = pneg %p226
      %p233 = scmp.eq.s32.totalorder %s23, 1
      %p234 = por %p232, %p233
      %p235 = scmp.ne.s32.totalorder %s227, %s230
      %p236 = scmp.eq.s32.totalorder %s23, 0
      %p237 = por %p235, %p236
      %p238 = scmp.ne.s32.totalorder %s227, %s230
      %p239 = scmp.eq.s32.totalorder %s28, 1
      %p240 = por %p238, %p239
      %p241 = scmp.ne.s32.totalorder %s230, %s231
      %p242 = scmp.eq.s32.totalorder %s28, 0
      %p243 = por %p241, %p242
      %p244 = scmp.ne.s32.totalorder %s230, %s231
      %p245 = scmp.eq.s32.totalorder %s29, 1
      %p246 = por %p244, %p245
      %p248 = scmp.ne.s32.totalorder %s231, %s247
      %p249 = scmp.eq.s32.totalorder %s29, 0
      %p250 = por %p248, %p249
      %p251 = scmp.le.s32.totalorder 1, %s23
      %p252 = scmp.lt.s32.totalorder %s23, 3
      %p253 = pnand %p251, %p252
      %p254 = pneg %p253
      // Predicated region
      $region9: #{tpu_custom_call.1} parent=5 // pred_check
        _
      $region10: #{tpu_custom_call.1} parent=5 // pred_check_branch
        %256 = sbr.rel (%p253) target = $region12
      $region11: #{tpu_custom_call.1} parent=5 // pred_region
        %s257 = ssub.s32 %s23, 1
        // Predicated region
        $region13: #{tpu_custom_call.1} parent=11 // pred_check
          %p258 = pneg %p70
        $region14: #{tpu_custom_call.1} parent=11 // pred_check_branch
          %260 = sbr.rel (%p258) target = $region16
        $region15: #{tpu_custom_call.1} parent=11 // pred_region
          %262 = vsyncadd [#allocation3], 0
          %s263 = sshll.u32 %s1, 4
          %s264 = int_to_ptr.hbm [resolvable:$true] %s263
          %s265 = sshll.u32 [#allocation2], 4
          %s266 = int_to_ptr.vmem [resolvable:$true] %s265
          %271 = dma.hbm_to_vmem [thread:$0]  %s264, 2048, %s266, [#allocation3], 512, 512, 32
        $region16: #{tpu_custom_call.1} parent=11 // pred_fallthru
          _
        // Predicated region
        $region17: #{tpu_custom_call.1} parent=11 // pred_check
          %p272 = pneg %p91
        $region18: #{tpu_custom_call.1} parent=11 // pred_check_branch
          %274 = sbr.rel (%p272) target = $region20
        $region19: #{tpu_custom_call.1} parent=11 // pred_region
          %276 = vsyncadd [#allocation6], 0
          %s278 = sshll.u32 %s2, 4
          %s279 = int_to_ptr.hbm [resolvable:$true] %s278
          %s280 = sshll.u32 [#allocation5], 4
          %s281 = int_to_ptr.vmem [resolvable:$true] %s280
          %283 = dma.hbm_to_vmem [thread:$0]  %s279, 128, %s281, [#allocation6]
        $region20: #{tpu_custom_call.1} parent=11 // pred_fallthru
          _
        // Predicated region
        $region21: #{tpu_custom_call.1} parent=11 // pred_check
          %p284 = pneg %p112
        $region22: #{tpu_custom_call.1} parent=11 // pred_check_branch
          %286 = sbr.rel (%p284) target = $region24
        $region23: #{tpu_custom_call.1} parent=11 // pred_region
          %288 = vsyncadd [#allocation6], 0
          %s289 = sshll.u32 %s3, 4
          %s290 = int_to_ptr.hbm [resolvable:$true] %s289
          %s291 = sshll.u32 [#allocation7], 4
          %s292 = int_to_ptr.vmem [resolvable:$true] %s291
          %297 = dma.hbm_to_vmem [thread:$0]  %s290, 65536, %s292, [#allocation6], 512, 512, 32
        $region24: #{tpu_custom_call.1} parent=11 // pred_fallthru
          _
        // Predicated region
        $region25: #{tpu_custom_call.1} parent=11 // pred_check
          %p298 = pneg %p133
        $region26: #{tpu_custom_call.1} parent=11 // pred_check_branch
          %300 = sbr.rel (%p298) target = $region28
        $region27: #{tpu_custom_call.1} parent=11 // pred_region
          %302 = vsyncadd [#allocation9], 0
          %s304 = sshll.u32 %s4, 4
          %s305 = int_to_ptr.hbm [resolvable:$true] %s304
          %s306 = sshll.u32 [#allocation8], 4
          %s307 = int_to_ptr.vmem [resolvable:$true] %s306
          %309 = dma.hbm_to_vmem [thread:$0]  %s305, 128, %s307, [#allocation9]
        $region28: #{tpu_custom_call.1} parent=11 // pred_fallthru
          _
        // Predicated region
        $region29: #{tpu_custom_call.1} parent=11 // pred_check
          %p310 = pneg %p154
        $region30: #{tpu_custom_call.1} parent=11 // pred_check_branch
          %312 = sbr.rel (%p310) target = $region32
        $region31: #{tpu_custom_call.1} parent=11 // pred_region
          %314 = vsyncadd [#allocation9], 0
          %s315 = sshll.u32 %s5, 4
          %s316 = int_to_ptr.hbm [resolvable:$true] %s315
          %s317 = sshll.u32 [#allocation10], 4
          %s318 = int_to_ptr.vmem [resolvable:$true] %s317
          %323 = dma.hbm_to_vmem [thread:$0]  %s316, 32768, %s318, [#allocation9], 256, 256, 16
        $region32: #{tpu_custom_call.1} parent=11 // pred_fallthru
          _
        // Predicated region
        $region33: #{tpu_custom_call.1} parent=11 // pred_check
          %p324 = pneg %p175
        $region34: #{tpu_custom_call.1} parent=11 // pred_check_branch
          %326 = sbr.rel (%p324) target = $region36
        $region35: #{tpu_custom_call.1} parent=11 // pred_region
          %328 = vsyncadd [#allocation12], 0
          %s330 = sshll.u32 %s6, 4
          %s331 = int_to_ptr.hbm [resolvable:$true] %s330
          %s332 = sshll.u32 [#allocation11], 4
          %s333 = int_to_ptr.vmem [resolvable:$true] %s332
          %335 = dma.hbm_to_vmem [thread:$0]  %s331, 64, %s333, [#allocation12]
        $region36: #{tpu_custom_call.1} parent=11 // pred_fallthru
          _
        // Predicated region
        $region37: #{tpu_custom_call.1} parent=11 // pred_check
          %p336 = pneg %p196
        $region38: #{tpu_custom_call.1} parent=11 // pred_check_branch
          %338 = sbr.rel (%p336) target = $region40
        $region39: #{tpu_custom_call.1} parent=11 // pred_region
          %340 = vsyncadd [#allocation12], 0
          %s341 = sshll.u32 %s7, 4
          %s342 = int_to_ptr.hbm [resolvable:$true] %s341
          %s343 = sshll.u32 [#allocation13], 4
          %s344 = int_to_ptr.vmem [resolvable:$true] %s343
          %349 = dma.hbm_to_vmem [thread:$0]  %s342, 4096, %s344, [#allocation12], 64, 64, 4
        $region40: #{tpu_custom_call.1} parent=11 // pred_fallthru
          _
        // Predicated region
        $region41: #{tpu_custom_call.1} parent=11 // pred_check
          %p350 = pneg %p217
        $region42: #{tpu_custom_call.1} parent=11 // pred_check_branch
          %352 = sbr.rel (%p350) target = $region44
        $region43: #{tpu_custom_call.1} parent=11 // pred_region
          %354 = vsyncadd [#allocation15], 0
          %s356 = sshll.u32 %s8, 4
          %s357 = int_to_ptr.hbm [resolvable:$true] %s356
          %s358 = sshll.u32 [#allocation14], 4
          %s359 = int_to_ptr.vmem [resolvable:$true] %s358
          %361 = dma.hbm_to_vmem [thread:$0]  %s357, 16, %s359, [#allocation15]
        $region44: #{tpu_custom_call.1} parent=11 // pred_fallthru
          _
      $region12: #{tpu_custom_call.1} parent=5 // pred_fallthru
        _
      %p362 = scmp.lt.s32.totalorder %s23, 2
      // Predicated region
      $region45: #{tpu_custom_call.1} parent=5 // pred_check
        %p363 = pneg %p362
      $region46: #{tpu_custom_call.1} parent=5 // pred_check_branch
        %365 = sbr.rel (%p363) target = $region48
      $region47: #{tpu_custom_call.1} parent=5 // pred_region
        // Predicated region
        $region49: #{tpu_custom_call.1} parent=47 // pred_check
          %p366 = pneg %p43
        $region50: #{tpu_custom_call.1} parent=47 // pred_check_branch
          %368 = sbr.rel (%p366) target = $region52
        $region51: #{tpu_custom_call.1} parent=47 // pred_region
          %s369 = smul.u32 16, %s23
          %p370 = scmp.lt.s32.totalorder %s369, 31
          %s371 = scalar_select %p370, %s369, 31
          %s372 = smul.addr %s371, 4
          %s373 = scalar_lea.vmem %s0, %s372
          %s374 = smul.u32 16, %s23
        $region52: #{tpu_custom_call.1} parent=47 // pred_fallthru
          _
      $region48: #{tpu_custom_call.1} parent=5 // pred_fallthru
        _
      %p375 = scmp.le.s32.totalorder 1, %s23
      %p376 = scmp.lt.s32.totalorder %s23, 3
      %p377 = pnand %p375, %p376
      %p378 = pneg %p377
      // Predicated region
      $region53: #{tpu_custom_call.1} parent=5 // pred_check
        _
      $region54: #{tpu_custom_call.1} parent=5 // pred_check_branch
        %380 = sbr.rel (%p377) target = $region56
      $region55: #{tpu_custom_call.1} parent=5 // pred_region
        %s381 = ssub.s32 %s23, 1
        // Predicated region
        $region57: #{tpu_custom_call.1} parent=55 // pred_check
          %p382 = pneg %p70
        $region58: #{tpu_custom_call.1} parent=55 // pred_check_branch
          %384 = sbr.rel (%p382) target = $region60
        $region59: #{tpu_custom_call.1} parent=55 // pred_region
          %386 = dma.done [#allocation3], 2048
        $region60: #{tpu_custom_call.1} parent=55 // pred_fallthru
          _
        // Predicated region
        $region61: #{tpu_custom_call.1} parent=55 // pred_check
          %p387 = pneg %p91
        $region62: #{tpu_custom_call.1} parent=55 // pred_check_branch
          %389 = sbr.rel (%p387) target = $region64
        $region63: #{tpu_custom_call.1} parent=55 // pred_region
          %391 = dma.done [#allocation6], 128
        $region64: #{tpu_custom_call.1} parent=55 // pred_fallthru
          _
        // Predicated region
        $region65: #{tpu_custom_call.1} parent=55 // pred_check
          %p392 = pneg %p112
        $region66: #{tpu_custom_call.1} parent=55 // pred_check_branch
          %394 = sbr.rel (%p392) target = $region68
        $region67: #{tpu_custom_call.1} parent=55 // pred_region
          %396 = dma.done [#allocation6], 65536
        $region68: #{tpu_custom_call.1} parent=55 // pred_fallthru
          _
        // Predicated region
        $region69: #{tpu_custom_call.1} parent=55 // pred_check
          %p397 = pneg %p133
        $region70: #{tpu_custom_call.1} parent=55 // pred_check_branch
          %399 = sbr.rel (%p397) target = $region72
        $region71: #{tpu_custom_call.1} parent=55 // pred_region
          %401 = dma.done [#allocation9], 128
        $region72: #{tpu_custom_call.1} parent=55 // pred_fallthru
          _
        // Predicated region
        $region73: #{tpu_custom_call.1} parent=55 // pred_check
          %p402 = pneg %p154
        $region74: #{tpu_custom_call.1} parent=55 // pred_check_branch
          %404 = sbr.rel (%p402) target = $region76
        $region75: #{tpu_custom_call.1} parent=55 // pred_region
          %406 = dma.done [#allocation9], 32768
        $region76: #{tpu_custom_call.1} parent=55 // pred_fallthru
          _
        // Predicated region
        $region77: #{tpu_custom_call.1} parent=55 // pred_check
          %p407 = pneg %p175
        $region78: #{tpu_custom_call.1} parent=55 // pred_check_branch
          %409 = sbr.rel (%p407) target = $region80
        $region79: #{tpu_custom_call.1} parent=55 // pred_region
          %411 = dma.done [#allocation12], 64
        $region80: #{tpu_custom_call.1} parent=55 // pred_fallthru
          _
        // Predicated region
        $region81: #{tpu_custom_call.1} parent=55 // pred_check
          %p412 = pneg %p196
        $region82: #{tpu_custom_call.1} parent=55 // pred_check_branch
          %414 = sbr.rel (%p412) target = $region84
        $region83: #{tpu_custom_call.1} parent=55 // pred_region
          %416 = dma.done [#allocation12], 4096
        $region84: #{tpu_custom_call.1} parent=55 // pred_fallthru
          _
        // Predicated region
        $region85: #{tpu_custom_call.1} parent=55 // pred_check
          %p417 = pneg %p217
        $region86: #{tpu_custom_call.1} parent=55 // pred_check_branch
          %419 = sbr.rel (%p417) target = $region88
        $region87: #{tpu_custom_call.1} parent=55 // pred_region
          %421 = dma.done [#allocation15], 16
        $region88: #{tpu_custom_call.1} parent=55 // pred_fallthru
          _
        %s422 = smul.u32 16, %s28
        %p423 = scmp.lt.s32.totalorder %s422, 31
        %s424 = scalar_select %p423, %s422, 31
        %s425 = smul.addr %s424, 4
        %s426 = scalar_lea.vmem %s0, %s425
        %p427 = pneg %p49
        %p428 = pneg %p46
        %p429 = pneg %p70
        %p430 = pneg %p67
        %p431 = pneg %p91
        %p432 = pneg %p88
        %p433 = pneg %p112
        %p434 = pneg %p109
        %p435 = pneg %p133
        %p436 = pneg %p130
        %p437 = pneg %p154
        %p438 = pneg %p151
        %p439 = pneg %p175
        %p440 = pneg %p172
        %p441 = pneg %p196
        %p442 = pneg %p193
        %p443 = pneg %p217
        %p444 = pneg %p214
        %p445 = pneg %p243
        %p446 = pneg %p240
        %s447 = sand.u32 %s230, 1
        %s448 = scalar_lea.sflag [#allocation4], %s447
        %s449 = sand.u32 %s230, 1
        %s450 = smul.addr %s449, 128
        %s451 = scalar_lea.vmem [#allocation16], %s450
        %s452 = smul.u32 16, %s28
        %p453 = scmp.lt.s32.totalorder %s452, 31
        %s454 = scalar_select %p453, %s452, 31
        %s455 = smul.addr %s454, 4
        %s456 = scalar_lea.vmem %s0, %s455
        %s457 = smul.u32 16, %s28
        %s458 = smul.u32 16, %s28
        %v460 = vld [vmem:[%s456] sm:$0xf]
        %v461 = vld [vmem:[%s456 + $0x4] sm:$0xf]
        %v462 = vld [vmem:[%s456 + $0x8] sm:$0xf]
        %v463 = vld [vmem:[%s456 + $0xc] sm:$0xf]
        %v464 = vld [vmem:[%s456 + $0x10] sm:$0xf]
        %v465 = vld [vmem:[%s456 + $0x14] sm:$0xf]
        %v466 = vld [vmem:[%s456 + $0x18] sm:$0xf]
        %v467 = vld [vmem:[%s456 + $0x1c] sm:$0xf]
        %v468 = vld [vmem:[%s456 + $0x20] sm:$0xf]
        %v469 = vld [vmem:[%s456 + $0x24] sm:$0xf]
        %v470 = vld [vmem:[%s456 + $0x28] sm:$0xf]
        %v471 = vld [vmem:[%s456 + $0x2c] sm:$0xf]
        %v472 = vld [vmem:[%s456 + $0x30] sm:$0xf]
        %v473 = vld [vmem:[%s456 + $0x34] sm:$0xf]
        %v474 = vld [vmem:[%s456 + $0x38] sm:$0xf]
        %v475 = vld [vmem:[%s456 + $0x3c] sm:$0xf]
        %v476 = vld [vmem:[#allocation2] sm:$0xff]
        %v477 = vld [vmem:[#allocation2 + $0x8] sm:$0xff]
        %v478 = vld [vmem:[#allocation2 + $0x10] sm:$0xff]
        %v479 = vld [vmem:[#allocation2 + $0x18] sm:$0xff]
        %v480 = vld [vmem:[#allocation2 + $0x20] sm:$0xff]
        %v481 = vld [vmem:[#allocation2 + $0x28] sm:$0xff]
        %v482 = vld [vmem:[#allocation2 + $0x30] sm:$0xff]
        %v483 = vld [vmem:[#allocation2 + $0x38] sm:$0xff]
        %v484 = vld [vmem:[#allocation2 + $0x40] sm:$0xff]
        %v485 = vld [vmem:[#allocation2 + $0x48] sm:$0xff]
        %v486 = vld [vmem:[#allocation2 + $0x50] sm:$0xff]
        %v487 = vld [vmem:[#allocation2 + $0x58] sm:$0xff]
        %v488 = vld [vmem:[#allocation2 + $0x60] sm:$0xff]
        %v489 = vld [vmem:[#allocation2 + $0x68] sm:$0xff]
        %v490 = vld [vmem:[#allocation2 + $0x70] sm:$0xff]
        %v491 = vld [vmem:[#allocation2 + $0x78] sm:$0xff]
        %v492 = vld [vmem:[#allocation5] sm:$0xff]
        %v494 = vperm.slane %v492, 0
        %v495 = vperm.slane %v492, 1
        %v496 = vperm.slane %v492, 2
        %v497 = vperm.slane %v492, 3
        %v498 = vperm.slane %v492, 4
        %v499 = vperm.slane %v492, 5
        %v500 = vperm.slane %v492, 6
        %v501 = vperm.slane %v492, 7
        %v526 = vunpack.c.l.b16 %v460
        %v527 = vunpack.c.l.b16 %v461
        %v528 = vunpack.c.l.b16 %v462
        %v529 = vunpack.c.l.b16 %v463
        %v530 = vunpack.c.l.b16 %v464
        %v531 = vunpack.c.l.b16 %v465
        %v532 = vunpack.c.l.b16 %v466
        %v533 = vunpack.c.l.b16 %v467
        %v534 = vunpack.c.l.b16 %v468
        %v535 = vunpack.c.l.b16 %v469
        %v536 = vunpack.c.l.b16 %v470
        %v537 = vunpack.c.l.b16 %v471
        %v538 = vunpack.c.l.b16 %v472
        %v539 = vunpack.c.l.b16 %v473
        %v540 = vunpack.c.l.b16 %v474
        %v541 = vunpack.c.l.b16 %v475
        %v542 = vpack.c.b16 %v527, %v526
        %v543 = vpack.c.b16 %v529, %v528
        %v544 = vpack.c.b16 %v531, %v530
        %v545 = vpack.c.b16 %v533, %v532
        %v546 = vpack.c.b16 %v535, %v534
        %v547 = vpack.c.b16 %v537, %v536
        %v548 = vpack.c.b16 %v539, %v538
        %v549 = vpack.c.b16 %v541, %v540
        %v566 = vunpack.c.l.b16 %v476
        %v567 = vunpack.c.h.b16 %v476
        %v568 = vunpack.c.l.b16 %v477
        %v569 = vunpack.c.h.b16 %v477
        %v570 = vunpack.c.l.b16 %v478
        %v571 = vunpack.c.h.b16 %v478
        %v572 = vunpack.c.l.b16 %v479
        %v573 = vunpack.c.h.b16 %v479
        %v574 = vunpack.c.l.b16 %v480
        %v575 = vunpack.c.h.b16 %v480
        %v576 = vunpack.c.l.b16 %v481
        %v577 = vunpack.c.h.b16 %v481
        %v578 = vunpack.c.l.b16 %v482
        %v579 = vunpack.c.h.b16 %v482
        %v580 = vunpack.c.l.b16 %v483
        %v581 = vunpack.c.h.b16 %v483
        %v582 = vunpack.c.l.b16 %v484
        %v583 = vunpack.c.h.b16 %v484
        %v584 = vunpack.c.l.b16 %v485
        %v585 = vunpack.c.h.b16 %v485
        %v586 = vunpack.c.l.b16 %v486
        %v587 = vunpack.c.h.b16 %v486
        %v588 = vunpack.c.l.b16 %v487
        %v589 = vunpack.c.h.b16 %v487
        %v590 = vunpack.c.l.b16 %v488
        %v591 = vunpack.c.h.b16 %v488
        %v592 = vunpack.c.l.b16 %v489
        %v593 = vunpack.c.h.b16 %v489
        %v594 = vunpack.c.l.b16 %v490
        %v595 = vunpack.c.h.b16 %v490
        %v596 = vunpack.c.l.b16 %v491
        %v597 = vunpack.c.h.b16 %v491
        %v598 = vpack.c.b16 %v574, %v566
        %v599 = vpack.c.b16 %v575, %v567
        %v600 = vpack.c.b16 %v576, %v568
        %v601 = vpack.c.b16 %v577, %v569
        %v602 = vpack.c.b16 %v578, %v570
        %v603 = vpack.c.b16 %v579, %v571
        %v604 = vpack.c.b16 %v580, %v572
        %v605 = vpack.c.b16 %v581, %v573
        %v606 = vpack.c.b16 %v590, %v582
        %v607 = vpack.c.b16 %v591, %v583
        %v608 = vpack.c.b16 %v592, %v584
        %v609 = vpack.c.b16 %v593, %v585
        %v610 = vpack.c.b16 %v594, %v586
        %v611 = vpack.c.b16 %v595, %v587
        %v612 = vpack.c.b16 %v596, %v588
        %v613 = vpack.c.b16 %v597, %v589
        %vm630 = vcmask 261120
        %v632 = vsel %vm630, %v542, 0
        %v635 = vsel %vm630, %v543, 0
        %v638 = vsel %vm630, %v544, 0
        %v641 = vsel %vm630, %v545, 0
        %v644 = vsel %vm630, %v546, 0
        %v647 = vsel %vm630, %v547, 0
        %v650 = vsel %vm630, %v548, 0
        %v653 = vsel %vm630, %v549, 0
        %655 = vmatpush.bf16.msra.mxu0 0
        %656 = vmatpush.bf16.msra.mxu0 0
        %657 = vmatpush.bf16.msra.mxu0 0
        %658 = vmatpush.bf16.msra.mxu0 0
        %659 = vmatpush.bf16.msra.mxu0 0
        %660 = vmatpush.bf16.msra.mxu0 0
        %661 = vmatpush.bf16.msra.mxu0 %v606
        %662 = vmatpush.bf16.msra.mxu0 %v598
        %663 = vmatmul.bf16.gmra.mxu0 %v632
        %v664 = vpop.f32.mrf.mxu0
        %v665 = vadd.f32 %v494, %v664
        %v666 = vpop.f32.mrf.mxu0
        %v667 = vadd.f32 %v494, %v666
        %668 = vmatmul.bf16.gmra.mxu0 %v635
        %v669 = vpop.f32.mrf.mxu0
        %v670 = vadd.f32 %v494, %v669
        %v671 = vpop.f32.mrf.mxu0
        %v672 = vadd.f32 %v494, %v671
        %673 = vmatmul.bf16.gmra.mxu0 %v638
        %v674 = vpop.f32.mrf.mxu0
        %v675 = vadd.f32 %v494, %v674
        %v676 = vpop.f32.mrf.mxu0
        %v677 = vadd.f32 %v494, %v676
        %678 = vmatmul.bf16.gmra.mxu0 %v641
        %v679 = vpop.f32.mrf.mxu0
        %v680 = vadd.f32 %v494, %v679
        %v681 = vpop.f32.mrf.mxu0
        %v682 = vadd.f32 %v494, %v681
        %683 = vmatmul.bf16.gmra.mxu0 %v644
        %v684 = vpop.f32.mrf.mxu0
        %v685 = vadd.f32 %v494, %v684
        %v686 = vpop.f32.mrf.mxu0
        %v687 = vadd.f32 %v494, %v686
        %688 = vmatmul.bf16.gmra.mxu0 %v647
        %v689 = vpop.f32.mrf.mxu0
        %v690 = vadd.f32 %v494, %v689
        %v691 = vpop.f32.mrf.mxu0
        %v692 = vadd.f32 %v494, %v691
        %693 = vmatmul.bf16.gmra.mxu0 %v650
        %v694 = vpop.f32.mrf.mxu0
        %v695 = vadd.f32 %v494, %v694
        %v696 = vpop.f32.mrf.mxu0
        %v697 = vadd.f32 %v494, %v696
        %698 = vmatmul.bf16.gmra.mxu0 %v653
        %v699 = vpop.f32.mrf.mxu0
        %v700 = vadd.f32 %v494, %v699
        %v701 = vpop.f32.mrf.mxu0
        %v702 = vadd.f32 %v494, %v701
        %703 = vdwg.mxu0
        %704 = vmatpush.bf16.msra.mxu0 0
        %705 = vmatpush.bf16.msra.mxu0 0
        %706 = vmatpush.bf16.msra.mxu0 0
        %707 = vmatpush.bf16.msra.mxu0 0
        %708 = vmatpush.bf16.msra.mxu0 0
        %709 = vmatpush.bf16.msra.mxu0 0
        %710 = vmatpush.bf16.msra.mxu0 %v607
        %711 = vmatpush.bf16.msra.mxu0 %v599
        %712 = vmatmul.bf16.gmra.mxu0 %v632
        %v713 = vpop.f32.mrf.mxu0
        %v714 = vadd.f32 %v495, %v713
        %v715 = vpop.f32.mrf.mxu0
        %v716 = vadd.f32 %v495, %v715
        %717 = vmatmul.bf16.gmra.mxu0 %v635
        %v718 = vpop.f32.mrf.mxu0
        %v719 = vadd.f32 %v495, %v718
        %v720 = vpop.f32.mrf.mxu0
        %v721 = vadd.f32 %v495, %v720
        %722 = vmatmul.bf16.gmra.mxu0 %v638
        %v723 = vpop.f32.mrf.mxu0
        %v724 = vadd.f32 %v495, %v723
        %v725 = vpop.f32.mrf.mxu0
        %v726 = vadd.f32 %v495, %v725
        %727 = vmatmul.bf16.gmra.mxu0 %v641
        %v728 = vpop.f32.mrf.mxu0
        %v729 = vadd.f32 %v495, %v728
        %v730 = vpop.f32.mrf.mxu0
        %v731 = vadd.f32 %v495, %v730
        %732 = vmatmul.bf16.gmra.mxu0 %v644
        %v733 = vpop.f32.mrf.mxu0
        %v734 = vadd.f32 %v495, %v733
        %v735 = vpop.f32.mrf.mxu0
        %v736 = vadd.f32 %v495, %v735
        %737 = vmatmul.bf16.gmra.mxu0 %v647
        %v738 = vpop.f32.mrf.mxu0
        %v739 = vadd.f32 %v495, %v738
        %v740 = vpop.f32.mrf.mxu0
        %v741 = vadd.f32 %v495, %v740
        %742 = vmatmul.bf16.gmra.mxu0 %v650
        %v743 = vpop.f32.mrf.mxu0
        %v744 = vadd.f32 %v495, %v743
        %v745 = vpop.f32.mrf.mxu0
        %v746 = vadd.f32 %v495, %v745
        %747 = vmatmul.bf16.gmra.mxu0 %v653
        %v748 = vpop.f32.mrf.mxu0
        %v749 = vadd.f32 %v495, %v748
        %v750 = vpop.f32.mrf.mxu0
        %v751 = vadd.f32 %v495, %v750
        %752 = vdwg.mxu0
        %753 = vmatpush.bf16.msra.mxu0 0
        %754 = vmatpush.bf16.msra.mxu0 0
        %755 = vmatpush.bf16.msra.mxu0 0
        %756 = vmatpush.bf16.msra.mxu0 0
        %757 = vmatpush.bf16.msra.mxu0 0
        %758 = vmatpush.bf16.msra.mxu0 0
        %759 = vmatpush.bf16.msra.mxu0 %v608
        %760 = vmatpush.bf16.msra.mxu0 %v600
        %761 = vmatmul.bf16.gmra.mxu0 %v632
        %v762 = vpop.f32.mrf.mxu0
        %v763 = vadd.f32 %v496, %v762
        %v764 = vpop.f32.mrf.mxu0
        %v765 = vadd.f32 %v496, %v764
        %766 = vmatmul.bf16.gmra.mxu0 %v635
        %v767 = vpop.f32.mrf.mxu0
        %v768 = vadd.f32 %v496, %v767
        %v769 = vpop.f32.mrf.mxu0
        %v770 = vadd.f32 %v496, %v769
        %771 = vmatmul.bf16.gmra.mxu0 %v638
        %v772 = vpop.f32.mrf.mxu0
        %v773 = vadd.f32 %v496, %v772
        %v774 = vpop.f32.mrf.mxu0
        %v775 = vadd.f32 %v496, %v774
        %776 = vmatmul.bf16.gmra.mxu0 %v641
        %v777 = vpop.f32.mrf.mxu0
        %v778 = vadd.f32 %v496, %v777
        %v779 = vpop.f32.mrf.mxu0
        %v780 = vadd.f32 %v496, %v779
        %781 = vmatmul.bf16.gmra.mxu0 %v644
        %v782 = vpop.f32.mrf.mxu0
        %v783 = vadd.f32 %v496, %v782
        %v784 = vpop.f32.mrf.mxu0
        %v785 = vadd.f32 %v496, %v784
        %786 = vmatmul.bf16.gmra.mxu0 %v647
        %v787 = vpop.f32.mrf.mxu0
        %v788 = vadd.f32 %v496, %v787
        %v789 = vpop.f32.mrf.mxu0
        %v790 = vadd.f32 %v496, %v789
        %791 = vmatmul.bf16.gmra.mxu0 %v650
        %v792 = vpop.f32.mrf.mxu0
        %v793 = vadd.f32 %v496, %v792
        %v794 = vpop.f32.mrf.mxu0
        %v795 = vadd.f32 %v496, %v794
        %796 = vmatmul.bf16.gmra.mxu0 %v653
        %v797 = vpop.f32.mrf.mxu0
        %v798 = vadd.f32 %v496, %v797
        %v799 = vpop.f32.mrf.mxu0
        %v800 = vadd.f32 %v496, %v799
        %801 = vdwg.mxu0
        %802 = vmatpush.bf16.msra.mxu0 0
        %803 = vmatpush.bf16.msra.mxu0 0
        %804 = vmatpush.bf16.msra.mxu0 0
        %805 = vmatpush.bf16.msra.mxu0 0
        %806 = vmatpush.bf16.msra.mxu0 0
        %807 = vmatpush.bf16.msra.mxu0 0
        %808 = vmatpush.bf16.msra.mxu0 %v609
        %809 = vmatpush.bf16.msra.mxu0 %v601
        %810 = vmatmul.bf16.gmra.mxu0 %v632
        %v811 = vpop.f32.mrf.mxu0
        %v812 = vadd.f32 %v497, %v811
        %v813 = vpop.f32.mrf.mxu0
        %v814 = vadd.f32 %v497, %v813
        %815 = vmatmul.bf16.gmra.mxu0 %v635
        %v816 = vpop.f32.mrf.mxu0
        %v817 = vadd.f32 %v497, %v816
        %v818 = vpop.f32.mrf.mxu0
        %v819 = vadd.f32 %v497, %v818
        %820 = vmatmul.bf16.gmra.mxu0 %v638
        %v821 = vpop.f32.mrf.mxu0
        %v822 = vadd.f32 %v497, %v821
        %v823 = vpop.f32.mrf.mxu0
        %v824 = vadd.f32 %v497, %v823
        %825 = vmatmul.bf16.gmra.mxu0 %v641
        %v826 = vpop.f32.mrf.mxu0
        %v827 = vadd.f32 %v497, %v826
        %v828 = vpop.f32.mrf.mxu0
        %v829 = vadd.f32 %v497, %v828
        %830 = vmatmul.bf16.gmra.mxu0 %v644
        %v831 = vpop.f32.mrf.mxu0
        %v832 = vadd.f32 %v497, %v831
        %v833 = vpop.f32.mrf.mxu0
        %v834 = vadd.f32 %v497, %v833
        %835 = vmatmul.bf16.gmra.mxu0 %v647
        %v836 = vpop.f32.mrf.mxu0
        %v837 = vadd.f32 %v497, %v836
        %v838 = vpop.f32.mrf.mxu0
        %v839 = vadd.f32 %v497, %v838
        %840 = vmatmul.bf16.gmra.mxu0 %v650
        %v841 = vpop.f32.mrf.mxu0
        %v842 = vadd.f32 %v497, %v841
        %v843 = vpop.f32.mrf.mxu0
        %v844 = vadd.f32 %v497, %v843
        %845 = vmatmul.bf16.gmra.mxu0 %v653
        %v846 = vpop.f32.mrf.mxu0
        %v847 = vadd.f32 %v497, %v846
        %v848 = vpop.f32.mrf.mxu0
        %v849 = vadd.f32 %v497, %v848
        %850 = vdwg.mxu0
        %851 = vmatpush.bf16.msra.mxu0 0
        %852 = vmatpush.bf16.msra.mxu0 0
        %853 = vmatpush.bf16.msra.mxu0 0
        %854 = vmatpush.bf16.msra.mxu0 0
        %855 = vmatpush.bf16.msra.mxu0 0
        %856 = vmatpush.bf16.msra.mxu0 0
        %857 = vmatpush.bf16.msra.mxu0 %v610
        %858 = vmatpush.bf16.msra.mxu0 %v602
        %859 = vmatmul.bf16.gmra.mxu0 %v632
        %v860 = vpop.f32.mrf.mxu0
        %v861 = vadd.f32 %v498, %v860
        %v862 = vpop.f32.mrf.mxu0
        %v863 = vadd.f32 %v498, %v862
        %864 = vmatmul.bf16.gmra.mxu0 %v635
        %v865 = vpop.f32.mrf.mxu0
        %v866 = vadd.f32 %v498, %v865
        %v867 = vpop.f32.mrf.mxu0
        %v868 = vadd.f32 %v498, %v867
        %869 = vmatmul.bf16.gmra.mxu0 %v638
        %v870 = vpop.f32.mrf.mxu0
        %v871 = vadd.f32 %v498, %v870
        %v872 = vpop.f32.mrf.mxu0
        %v873 = vadd.f32 %v498, %v872
        %874 = vmatmul.bf16.gmra.mxu0 %v641
        %v875 = vpop.f32.mrf.mxu0
        %v876 = vadd.f32 %v498, %v875
        %v877 = vpop.f32.mrf.mxu0
        %v878 = vadd.f32 %v498, %v877
        %879 = vmatmul.bf16.gmra.mxu0 %v644
        %v880 = vpop.f32.mrf.mxu0
        %v881 = vadd.f32 %v498, %v880
        %v882 = vpop.f32.mrf.mxu0
        %v883 = vadd.f32 %v498, %v882
        %884 = vmatmul.bf16.gmra.mxu0 %v647
        %v885 = vpop.f32.mrf.mxu0
        %v886 = vadd.f32 %v498, %v885
        %v887 = vpop.f32.mrf.mxu0
        %v888 = vadd.f32 %v498, %v887
        %889 = vmatmul.bf16.gmra.mxu0 %v650
        %v890 = vpop.f32.mrf.mxu0
        %v891 = vadd.f32 %v498, %v890
        %v892 = vpop.f32.mrf.mxu0
        %v893 = vadd.f32 %v498, %v892
        %894 = vmatmul.bf16.gmra.mxu0 %v653
        %v895 = vpop.f32.mrf.mxu0
        %v896 = vadd.f32 %v498, %v895
        %v897 = vpop.f32.mrf.mxu0
        %v898 = vadd.f32 %v498, %v897
        %899 = vdwg.mxu0
        %900 = vmatpush.bf16.msra.mxu0 0
        %901 = vmatpush.bf16.msra.mxu0 0
        %902 = vmatpush.bf16.msra.mxu0 0
        %903 = vmatpush.bf16.msra.mxu0 0
        %904 = vmatpush.bf16.msra.mxu0 0
        %905 = vmatpush.bf16.msra.mxu0 0
        %906 = vmatpush.bf16.msra.mxu0 %v611
        %907 = vmatpush.bf16.msra.mxu0 %v603
        %908 = vmatmul.bf16.gmra.mxu0 %v632
        %v909 = vpop.f32.mrf.mxu0
        %v910 = vadd.f32 %v499, %v909
        %v911 = vpop.f32.mrf.mxu0
        %v912 = vadd.f32 %v499, %v911
        %913 = vmatmul.bf16.gmra.mxu0 %v635
        %v914 = vpop.f32.mrf.mxu0
        %v915 = vadd.f32 %v499, %v914
        %v916 = vpop.f32.mrf.mxu0
        %v917 = vadd.f32 %v499, %v916
        %918 = vmatmul.bf16.gmra.mxu0 %v638
        %v919 = vpop.f32.mrf.mxu0
        %v920 = vadd.f32 %v499, %v919
        %v921 = vpop.f32.mrf.mxu0
        %v922 = vadd.f32 %v499, %v921
        %923 = vmatmul.bf16.gmra.mxu0 %v641
        %v924 = vpop.f32.mrf.mxu0
        %v925 = vadd.f32 %v499, %v924
        %v926 = vpop.f32.mrf.mxu0
        %v927 = vadd.f32 %v499, %v926
        %928 = vmatmul.bf16.gmra.mxu0 %v644
        %v929 = vpop.f32.mrf.mxu0
        %v930 = vadd.f32 %v499, %v929
        %v931 = vpop.f32.mrf.mxu0
        %v932 = vadd.f32 %v499, %v931
        %933 = vmatmul.bf16.gmra.mxu0 %v647
        %v934 = vpop.f32.mrf.mxu0
        %v935 = vadd.f32 %v499, %v934
        %v936 = vpop.f32.mrf.mxu0
        %v937 = vadd.f32 %v499, %v936
        %938 = vmatmul.bf16.gmra.mxu0 %v650
        %v939 = vpop.f32.mrf.mxu0
        %v940 = vadd.f32 %v499, %v939
        %v941 = vpop.f32.mrf.mxu0
        %v942 = vadd.f32 %v499, %v941
        %943 = vmatmul.bf16.gmra.mxu0 %v653
        %v944 = vpop.f32.mrf.mxu0
        %v945 = vadd.f32 %v499, %v944
        %v946 = vpop.f32.mrf.mxu0
        %v947 = vadd.f32 %v499, %v946
        %948 = vdwg.mxu0
        %949 = vmatpush.bf16.msra.mxu0 0
        %950 = vmatpush.bf16.msra.mxu0 0
        %951 = vmatpush.bf16.msra.mxu0 0
        %952 = vmatpush.bf16.msra.mxu0 0
        %953 = vmatpush.bf16.msra.mxu0 0
        %954 = vmatpush.bf16.msra.mxu0 0
        %955 = vmatpush.bf16.msra.mxu0 %v612
        %956 = vmatpush.bf16.msra.mxu0 %v604
        %957 = vmatmul.bf16.gmra.mxu0 %v632
        %v958 = vpop.f32.mrf.mxu0
        %v959 = vadd.f32 %v500, %v958
        %v960 = vpop.f32.mrf.mxu0
        %v961 = vadd.f32 %v500, %v960
        %962 = vmatmul.bf16.gmra.mxu0 %v635
        %v963 = vpop.f32.mrf.mxu0
        %v964 = vadd.f32 %v500, %v963
        %v965 = vpop.f32.mrf.mxu0
        %v966 = vadd.f32 %v500, %v965
        %967 = vmatmul.bf16.gmra.mxu0 %v638
        %v968 = vpop.f32.mrf.mxu0
        %v969 = vadd.f32 %v500, %v968
        %v970 = vpop.f32.mrf.mxu0
        %v971 = vadd.f32 %v500, %v970
        %972 = vmatmul.bf16.gmra.mxu0 %v641
        %v973 = vpop.f32.mrf.mxu0
        %v974 = vadd.f32 %v500, %v973
        %v975 = vpop.f32.mrf.mxu0
        %v976 = vadd.f32 %v500, %v975
        %977 = vmatmul.bf16.gmra.mxu0 %v644
        %v978 = vpop.f32.mrf.mxu0
        %v979 = vadd.f32 %v500, %v978
        %v980 = vpop.f32.mrf.mxu0
        %v981 = vadd.f32 %v500, %v980
        %982 = vmatmul.bf16.gmra.mxu0 %v647
        %v983 = vpop.f32.mrf.mxu0
        %v984 = vadd.f32 %v500, %v983
        %v985 = vpop.f32.mrf.mxu0
        %v986 = vadd.f32 %v500, %v985
        %987 = vmatmul.bf16.gmra.mxu0 %v650
        %v988 = vpop.f32.mrf.mxu0
        %v989 = vadd.f32 %v500, %v988
        %v990 = vpop.f32.mrf.mxu0
        %v991 = vadd.f32 %v500, %v990
        %992 = vmatmul.bf16.gmra.mxu0 %v653
        %v993 = vpop.f32.mrf.mxu0
        %v994 = vadd.f32 %v500, %v993
        %v995 = vpop.f32.mrf.mxu0
        %v996 = vadd.f32 %v500, %v995
        %997 = vdwg.mxu0
        %998 = vmatpush.bf16.msra.mxu0 0
        %999 = vmatpush.bf16.msra.mxu0 0
        %1000 = vmatpush.bf16.msra.mxu0 0
        %1001 = vmatpush.bf16.msra.mxu0 0
        %1002 = vmatpush.bf16.msra.mxu0 0
        %1003 = vmatpush.bf16.msra.mxu0 0
        %1004 = vmatpush.bf16.msra.mxu0 %v613
        %1005 = vmatpush.bf16.msra.mxu0 %v605
        %1006 = vmatmul.bf16.gmra.mxu0 %v632
        %v1007 = vpop.f32.mrf.mxu0
        %v1008 = vadd.f32 %v501, %v1007
        %v1009 = vpop.f32.mrf.mxu0
        %v1010 = vadd.f32 %v501, %v1009
        %1011 = vmatmul.bf16.gmra.mxu0 %v635
        %v1012 = vpop.f32.mrf.mxu0
        %v1013 = vadd.f32 %v501, %v1012
        %v1014 = vpop.f32.mrf.mxu0
        %v1015 = vadd.f32 %v501, %v1014
        %1016 = vmatmul.bf16.gmra.mxu0 %v638
        %v1017 = vpop.f32.mrf.mxu0
        %v1018 = vadd.f32 %v501, %v1017
        %v1019 = vpop.f32.mrf.mxu0
        %v1020 = vadd.f32 %v501, %v1019
        %1021 = vmatmul.bf16.gmra.mxu0 %v641
        %v1022 = vpop.f32.mrf.mxu0
        %v1023 = vadd.f32 %v501, %v1022
        %v1024 = vpop.f32.mrf.mxu0
        %v1025 = vadd.f32 %v501, %v1024
        %1026 = vmatmul.bf16.gmra.mxu0 %v644
        %v1027 = vpop.f32.mrf.mxu0
        %v1028 = vadd.f32 %v501, %v1027
        %v1029 = vpop.f32.mrf.mxu0
        %v1030 = vadd.f32 %v501, %v1029
        %1031 = vmatmul.bf16.gmra.mxu0 %v647
        %v1032 = vpop.f32.mrf.mxu0
        %v1033 = vadd.f32 %v501, %v1032
        %v1034 = vpop.f32.mrf.mxu0
        %v1035 = vadd.f32 %v501, %v1034
        %1036 = vmatmul.bf16.gmra.mxu0 %v650
        %v1037 = vpop.f32.mrf.mxu0
        %v1038 = vadd.f32 %v501, %v1037
        %v1039 = vpop.f32.mrf.mxu0
        %v1040 = vadd.f32 %v501, %v1039
        %1041 = vmatmul.bf16.gmra.mxu0 %v653
        %v1042 = vpop.f32.mrf.mxu0
        %v1043 = vadd.f32 %v501, %v1042
        %v1044 = vpop.f32.mrf.mxu0
        %v1045 = vadd.f32 %v501, %v1044
        %1046 = vdwg.mxu0
        %v1047 = vmax.f32 %v665, 0.0
        %v1048 = vmax.f32 %v714, 0.0
        %v1049 = vmax.f32 %v763, 0.0
        %v1050 = vmax.f32 %v812, 0.0
        %v1051 = vmax.f32 %v861, 0.0
        %v1052 = vmax.f32 %v910, 0.0
        %v1053 = vmax.f32 %v959, 0.0
        %v1054 = vmax.f32 %v1008, 0.0
        %v1055 = vmax.f32 %v667, 0.0
        %v1056 = vmax.f32 %v716, 0.0
        %v1057 = vmax.f32 %v765, 0.0
        %v1058 = vmax.f32 %v814, 0.0
        %v1059 = vmax.f32 %v863, 0.0
        %v1060 = vmax.f32 %v912, 0.0
        %v1061 = vmax.f32 %v961, 0.0
        %v1062 = vmax.f32 %v1010, 0.0
        %v1063 = vmax.f32 %v670, 0.0
        %v1064 = vmax.f32 %v719, 0.0
        %v1065 = vmax.f32 %v768, 0.0
        %v1066 = vmax.f32 %v817, 0.0
        %v1067 = vmax.f32 %v866, 0.0
        %v1068 = vmax.f32 %v915, 0.0
        %v1069 = vmax.f32 %v964, 0.0
        %v1070 = vmax.f32 %v1013, 0.0
        %v1071 = vmax.f32 %v672, 0.0
        %v1072 = vmax.f32 %v721, 0.0
        %v1073 = vmax.f32 %v770, 0.0
        %v1074 = vmax.f32 %v819, 0.0
        %v1075 = vmax.f32 %v868, 0.0
        %v1076 = vmax.f32 %v917, 0.0
        %v1077 = vmax.f32 %v966, 0.0
        %v1078 = vmax.f32 %v1015, 0.0
        %v1079 = vmax.f32 %v675, 0.0
        %v1080 = vmax.f32 %v724, 0.0
        %v1081 = vmax.f32 %v773, 0.0
        %v1082 = vmax.f32 %v822, 0.0
        %v1083 = vmax.f32 %v871, 0.0
        %v1084 = vmax.f32 %v920, 0.0
        %v1085 = vmax.f32 %v969, 0.0
        %v1086 = vmax.f32 %v1018, 0.0
        %v1087 = vmax.f32 %v677, 0.0
        %v1088 = vmax.f32 %v726, 0.0
        %v1089 = vmax.f32 %v775, 0.0
        %v1090 = vmax.f32 %v824, 0.0
        %v1091 = vmax.f32 %v873, 0.0
        %v1092 = vmax.f32 %v922, 0.0
        %v1093 = vmax.f32 %v971, 0.0
        %v1094 = vmax.f32 %v1020, 0.0
        %v1095 = vmax.f32 %v680, 0.0
        %v1096 = vmax.f32 %v729, 0.0
        %v1097 = vmax.f32 %v778, 0.0
        %v1098 = vmax.f32 %v827, 0.0
        %v1099 = vmax.f32 %v876, 0.0
        %v1100 = vmax.f32 %v925, 0.0
        %v1101 = vmax.f32 %v974, 0.0
        %v1102 = vmax.f32 %v1023, 0.0
        %v1103 = vmax.f32 %v682, 0.0
        %v1104 = vmax.f32 %v731, 0.0
        %v1105 = vmax.f32 %v780, 0.0
        %v1106 = vmax.f32 %v829, 0.0
        %v1107 = vmax.f32 %v878, 0.0
        %v1108 = vmax.f32 %v927, 0.0
        %v1109 = vmax.f32 %v976, 0.0
        %v1110 = vmax.f32 %v1025, 0.0
        %v1111 = vmax.f32 %v685, 0.0
        %v1112 = vmax.f32 %v734, 0.0
        %v1113 = vmax.f32 %v783, 0.0
        %v1114 = vmax.f32 %v832, 0.0
        %v1115 = vmax.f32 %v881, 0.0
        %v1116 = vmax.f32 %v930, 0.0
        %v1117 = vmax.f32 %v979, 0.0
        %v1118 = vmax.f32 %v1028, 0.0
        %v1119 = vmax.f32 %v687, 0.0
        %v1120 = vmax.f32 %v736, 0.0
        %v1121 = vmax.f32 %v785, 0.0
        %v1122 = vmax.f32 %v834, 0.0
        %v1123 = vmax.f32 %v883, 0.0
        %v1124 = vmax.f32 %v932, 0.0
        %v1125 = vmax.f32 %v981, 0.0
        %v1126 = vmax.f32 %v1030, 0.0
        %v1127 = vmax.f32 %v690, 0.0
        %v1128 = vmax.f32 %v739, 0.0
        %v1129 = vmax.f32 %v788, 0.0
        %v1130 = vmax.f32 %v837, 0.0
        %v1131 = vmax.f32 %v886, 0.0
        %v1132 = vmax.f32 %v935, 0.0
        %v1133 = vmax.f32 %v984, 0.0
        %v1134 = vmax.f32 %v1033, 0.0
        %v1135 = vmax.f32 %v692, 0.0
        %v1136 = vmax.f32 %v741, 0.0
        %v1137 = vmax.f32 %v790, 0.0
        %v1138 = vmax.f32 %v839, 0.0
        %v1139 = vmax.f32 %v888, 0.0
        %v1140 = vmax.f32 %v937, 0.0
        %v1141 = vmax.f32 %v986, 0.0
        %v1142 = vmax.f32 %v1035, 0.0
        %v1143 = vmax.f32 %v695, 0.0
        %v1144 = vmax.f32 %v744, 0.0
        %v1145 = vmax.f32 %v793, 0.0
        %v1146 = vmax.f32 %v842, 0.0
        %v1147 = vmax.f32 %v891, 0.0
        %v1148 = vmax.f32 %v940, 0.0
        %v1149 = vmax.f32 %v989, 0.0
        %v1150 = vmax.f32 %v1038, 0.0
        %v1151 = vmax.f32 %v697, 0.0
        %v1152 = vmax.f32 %v746, 0.0
        %v1153 = vmax.f32 %v795, 0.0
        %v1154 = vmax.f32 %v844, 0.0
        %v1155 = vmax.f32 %v893, 0.0
        %v1156 = vmax.f32 %v942, 0.0
        %v1157 = vmax.f32 %v991, 0.0
        %v1158 = vmax.f32 %v1040, 0.0
        %v1159 = vmax.f32 %v700, 0.0
        %v1160 = vmax.f32 %v749, 0.0
        %v1161 = vmax.f32 %v798, 0.0
        %v1162 = vmax.f32 %v847, 0.0
        %v1163 = vmax.f32 %v896, 0.0
        %v1164 = vmax.f32 %v945, 0.0
        %v1165 = vmax.f32 %v994, 0.0
        %v1166 = vmax.f32 %v1043, 0.0
        %v1167 = vmax.f32 %v702, 0.0
        %v1168 = vmax.f32 %v751, 0.0
        %v1169 = vmax.f32 %v800, 0.0
        %v1170 = vmax.f32 %v849, 0.0
        %v1171 = vmax.f32 %v898, 0.0
        %v1172 = vmax.f32 %v947, 0.0
        %v1173 = vmax.f32 %v996, 0.0
        %v1174 = vmax.f32 %v1045, 0.0
        %v1175 = vpack.c.bf16 %v1055, %v1047
        %v1176 = vpack.c.bf16 %v1056, %v1048
        %v1177 = vpack.c.bf16 %v1057, %v1049
        %v1178 = vpack.c.bf16 %v1058, %v1050
        %v1179 = vpack.c.bf16 %v1059, %v1051
        %v1180 = vpack.c.bf16 %v1060, %v1052
        %v1181 = vpack.c.bf16 %v1061, %v1053
        %v1182 = vpack.c.bf16 %v1062, %v1054
        %v1183 = vpack.c.bf16 %v1071, %v1063
        %v1184 = vpack.c.bf16 %v1072, %v1064
        %v1185 = vpack.c.bf16 %v1073, %v1065
        %v1186 = vpack.c.bf16 %v1074, %v1066
        %v1187 = vpack.c.bf16 %v1075, %v1067
        %v1188 = vpack.c.bf16 %v1076, %v1068
        %v1189 = vpack.c.bf16 %v1077, %v1069
        %v1190 = vpack.c.bf16 %v1078, %v1070
        %v1191 = vpack.c.bf16 %v1087, %v1079
        %v1192 = vpack.c.bf16 %v1088, %v1080
        %v1193 = vpack.c.bf16 %v1089, %v1081
        %v1194 = vpack.c.bf16 %v1090, %v1082
        %v1195 = vpack.c.bf16 %v1091, %v1083
        %v1196 = vpack.c.bf16 %v1092, %v1084
        %v1197 = vpack.c.bf16 %v1093, %v1085
        %v1198 = vpack.c.bf16 %v1094, %v1086
        %v1199 = vpack.c.bf16 %v1103, %v1095
        %v1200 = vpack.c.bf16 %v1104, %v1096
        %v1201 = vpack.c.bf16 %v1105, %v1097
        %v1202 = vpack.c.bf16 %v1106, %v1098
        %v1203 = vpack.c.bf16 %v1107, %v1099
        %v1204 = vpack.c.bf16 %v1108, %v1100
        %v1205 = vpack.c.bf16 %v1109, %v1101
        %v1206 = vpack.c.bf16 %v1110, %v1102
        %v1207 = vpack.c.bf16 %v1119, %v1111
        %v1208 = vpack.c.bf16 %v1120, %v1112
        %v1209 = vpack.c.bf16 %v1121, %v1113
        %v1210 = vpack.c.bf16 %v1122, %v1114
        %v1211 = vpack.c.bf16 %v1123, %v1115
        %v1212 = vpack.c.bf16 %v1124, %v1116
        %v1213 = vpack.c.bf16 %v1125, %v1117
        %v1214 = vpack.c.bf16 %v1126, %v1118
        %v1215 = vpack.c.bf16 %v1135, %v1127
        %v1216 = vpack.c.bf16 %v1136, %v1128
        %v1217 = vpack.c.bf16 %v1137, %v1129
        %v1218 = vpack.c.bf16 %v1138, %v1130
        %v1219 = vpack.c.bf16 %v1139, %v1131
        %v1220 = vpack.c.bf16 %v1140, %v1132
        %v1221 = vpack.c.bf16 %v1141, %v1133
        %v1222 = vpack.c.bf16 %v1142, %v1134
        %v1223 = vpack.c.bf16 %v1151, %v1143
        %v1224 = vpack.c.bf16 %v1152, %v1144
        %v1225 = vpack.c.bf16 %v1153, %v1145
        %v1226 = vpack.c.bf16 %v1154, %v1146
        %v1227 = vpack.c.bf16 %v1155, %v1147
        %v1228 = vpack.c.bf16 %v1156, %v1148
        %v1229 = vpack.c.bf16 %v1157, %v1149
        %v1230 = vpack.c.bf16 %v1158, %v1150
        %v1231 = vpack.c.bf16 %v1167, %v1159
        %v1232 = vpack.c.bf16 %v1168, %v1160
        %v1233 = vpack.c.bf16 %v1169, %v1161
        %v1234 = vpack.c.bf16 %v1170, %v1162
        %v1235 = vpack.c.bf16 %v1171, %v1163
        %v1236 = vpack.c.bf16 %v1172, %v1164
        %v1237 = vpack.c.bf16 %v1173, %v1165
        %v1238 = vpack.c.bf16 %v1174, %v1166
        %v1239 = vld [vmem:[#allocation7] sm:$0xff]
        %v1240 = vld [vmem:[#allocation7 + $0x8] sm:$0xff]
        %v1241 = vld [vmem:[#allocation7 + $0x10] sm:$0xff]
        %v1242 = vld [vmem:[#allocation7 + $0x18] sm:$0xff]
        %v1243 = vld [vmem:[#allocation7 + $0x20] sm:$0xff]
        %v1244 = vld [vmem:[#allocation7 + $0x28] sm:$0xff]
        %v1245 = vld [vmem:[#allocation7 + $0x30] sm:$0xff]
        %v1246 = vld [vmem:[#allocation7 + $0x38] sm:$0xff]
        %v1247 = vld [vmem:[#allocation7 + $0x40] sm:$0xff]
        %v1248 = vld [vmem:[#allocation7 + $0x48] sm:$0xff]
        %v1249 = vld [vmem:[#allocation7 + $0x50] sm:$0xff]
        %v1250 = vld [vmem:[#allocation7 + $0x58] sm:$0xff]
        %v1251 = vld [vmem:[#allocation7 + $0x60] sm:$0xff]
        %v1252 = vld [vmem:[#allocation7 + $0x68] sm:$0xff]
        %v1253 = vld [vmem:[#allocation7 + $0x70] sm:$0xff]
        %v1254 = vld [vmem:[#allocation7 + $0x78] sm:$0xff]
        %v1255 = vld [vmem:[#allocation7 + $0x80] sm:$0xff]
        %v1256 = vld [vmem:[#allocation7 + $0x88] sm:$0xff]
        %v1257 = vld [vmem:[#allocation7 + $0x90] sm:$0xff]
        %v1258 = vld [vmem:[#allocation7 + $0x98] sm:$0xff]
        %v1259 = vld [vmem:[#allocation7 + $0xa0] sm:$0xff]
        %v1260 = vld [vmem:[#allocation7 + $0xa8] sm:$0xff]
        %v1261 = vld [vmem:[#allocation7 + $0xb0] sm:$0xff]
        %v1262 = vld [vmem:[#allocation7 + $0xb8] sm:$0xff]
        %v1263 = vld [vmem:[#allocation7 + $0xc0] sm:$0xff]
        %v1264 = vld [vmem:[#allocation7 + $0xc8] sm:$0xff]
        %v1265 = vld [vmem:[#allocation7 + $0xd0] sm:$0xff]
        %v1266 = vld [vmem:[#allocation7 + $0xd8] sm:$0xff]
        %v1267 = vld [vmem:[#allocation7 + $0xe0] sm:$0xff]
        %v1268 = vld [vmem:[#allocation7 + $0xe8] sm:$0xff]
        %v1269 = vld [vmem:[#allocation7 + $0xf0] sm:$0xff]
        %v1270 = vld [vmem:[#allocation7 + $0xf8] sm:$0xff]
        %v1271 = vld [vmem:[#allocation7 + $0x100] sm:$0xff]
        %v1272 = vld [vmem:[#allocation7 + $0x108] sm:$0xff]
        %v1273 = vld [vmem:[#allocation7 + $0x110] sm:$0xff]
        %v1274 = vld [vmem:[#allocation7 + $0x118] sm:$0xff]
        %v1275 = vld [vmem:[#allocation7 + $0x120] sm:$0xff]
        %v1276 = vld [vmem:[#allocation7 + $0x128] sm:$0xff]
        %v1277 = vld [vmem:[#allocation7 + $0x130] sm:$0xff]
        %v1278 = vld [vmem:[#allocation7 + $0x138] sm:$0xff]
        %v1279 = vld [vmem:[#allocation7 + $0x140] sm:$0xff]
        %v1280 = vld [vmem:[#allocation7 + $0x148] sm:$0xff]
        %v1281 = vld [vmem:[#allocation7 + $0x150] sm:$0xff]
        %v1282 = vld [vmem:[#allocation7 + $0x158] sm:$0xff]
        %v1283 = vld [vmem:[#allocation7 + $0x160] sm:$0xff]
        %v1284 = vld [vmem:[#allocation7 + $0x168] sm:$0xff]
        %v1285 = vld [vmem:[#allocation7 + $0x170] sm:$0xff]
        %v1286 = vld [vmem:[#allocation7 + $0x178] sm:$0xff]
        %v1287 = vld [vmem:[#allocation7 + $0x180] sm:$0xff]
        %v1288 = vld [vmem:[#allocation7 + $0x188] sm:$0xff]
        %v1289 = vld [vmem:[#allocation7 + $0x190] sm:$0xff]
        %v1290 = vld [vmem:[#allocation7 + $0x198] sm:$0xff]
        %v1291 = vld [vmem:[#allocation7 + $0x1a0] sm:$0xff]
        %v1292 = vld [vmem:[#allocation7 + $0x1a8] sm:$0xff]
        %v1293 = vld [vmem:[#allocation7 + $0x1b0] sm:$0xff]
        %v1294 = vld [vmem:[#allocation7 + $0x1b8] sm:$0xff]
        %v1295 = vld [vmem:[#allocation7 + $0x1c0] sm:$0xff]
        %v1296 = vld [vmem:[#allocation7 + $0x1c8] sm:$0xff]
        %v1297 = vld [vmem:[#allocation7 + $0x1d0] sm:$0xff]
        %v1298 = vld [vmem:[#allocation7 + $0x1d8] sm:$0xff]
        %v1299 = vld [vmem:[#allocation7 + $0x1e0] sm:$0xff]
        %v1300 = vld [vmem:[#allocation7 + $0x1e8] sm:$0xff]
        %v1301 = vld [vmem:[#allocation7 + $0x1f0] sm:$0xff]
        %v1302 = vld [vmem:[#allocation7 + $0x1f8] sm:$0xff]
        %v1303 = vld [vmem:[#allocation7 + $0x200] sm:$0xff]
        %v1304 = vld [vmem:[#allocation7 + $0x208] sm:$0xff]
        %v1305 = vld [vmem:[#allocation7 + $0x210] sm:$0xff]
        %v1306 = vld [vmem:[#allocation7 + $0x218] sm:$0xff]
        %v1307 = vld [vmem:[#allocation7 + $0x220] sm:$0xff]
        %v1308 = vld [vmem:[#allocation7 + $0x228] sm:$0xff]
        %v1309 = vld [vmem:[#allocation7 + $0x230] sm:$0xff]
        %v1310 = vld [vmem:[#allocation7 + $0x238] sm:$0xff]
        %v1311 = vld [vmem:[#allocation7 + $0x240] sm:$0xff]
        %v1312 = vld [vmem:[#allocation7 + $0x248] sm:$0xff]
        %v1313 = vld [vmem:[#allocation7 + $0x250] sm:$0xff]
        %v1314 = vld [vmem:[#allocation7 + $0x258] sm:$0xff]
        %v1315 = vld [vmem:[#allocation7 + $0x260] sm:$0xff]
        %v1316 = vld [vmem:[#allocation7 + $0x268] sm:$0xff]
        %v1317 = vld [vmem:[#allocation7 + $0x270] sm:$0xff]
        %v1318 = vld [vmem:[#allocation7 + $0x278] sm:$0xff]
        %v1319 = vld [vmem:[#allocation7 + $0x280] sm:$0xff]
        %v1320 = vld [vmem:[#allocation7 + $0x288] sm:$0xff]
        %v1321 = vld [vmem:[#allocation7 + $0x290] sm:$0xff]
        %v1322 = vld [vmem:[#allocation7 + $0x298] sm:$0xff]
        %v1323 = vld [vmem:[#allocation7 + $0x2a0] sm:$0xff]
        %v1324 = vld [vmem:[#allocation7 + $0x2a8] sm:$0xff]
        %v1325 = vld [vmem:[#allocation7 + $0x2b0] sm:$0xff]
        %v1326 = vld [vmem:[#allocation7 + $0x2b8] sm:$0xff]
        %v1327 = vld [vmem:[#allocation7 + $0x2c0] sm:$0xff]
        %v1328 = vld [vmem:[#allocation7 + $0x2c8] sm:$0xff]
        %v1329 = vld [vmem:[#allocation7 + $0x2d0] sm:$0xff]
        %v1330 = vld [vmem:[#allocation7 + $0x2d8] sm:$0xff]
        %v1331 = vld [vmem:[#allocation7 + $0x2e0] sm:$0xff]
        %v1332 = vld [vmem:[#allocation7 + $0x2e8] sm:$0xff]
        %v1333 = vld [vmem:[#allocation7 + $0x2f0] sm:$0xff]
        %v1334 = vld [vmem:[#allocation7 + $0x2f8] sm:$0xff]
        %v1335 = vld [vmem:[#allocation7 + $0x300] sm:$0xff]
        %v1336 = vld [vmem:[#allocation7 + $0x308] sm:$0xff]
        %v1337 = vld [vmem:[#allocation7 + $0x310] sm:$0xff]
        %v1338 = vld [vmem:[#allocation7 + $0x318] sm:$0xff]
        %v1339 = vld [vmem:[#allocation7 + $0x320] sm:$0xff]
        %v1340 = vld [vmem:[#allocation7 + $0x328] sm:$0xff]
        %v1341 = vld [vmem:[#allocation7 + $0x330] sm:$0xff]
        %v1342 = vld [vmem:[#allocation7 + $0x338] sm:$0xff]
        %v1343 = vld [vmem:[#allocation7 + $0x340] sm:$0xff]
        %v1344 = vld [vmem:[#allocation7 + $0x348] sm:$0xff]
        %v1345 = vld [vmem:[#allocation7 + $0x350] sm:$0xff]
        %v1346 = vld [vmem:[#allocation7 + $0x358] sm:$0xff]
        %v1347 = vld [vmem:[#allocation7 + $0x360] sm:$0xff]
        %v1348 = vld [vmem:[#allocation7 + $0x368] sm:$0xff]
        %v1349 = vld [vmem:[#allocation7 + $0x370] sm:$0xff]
        %v1350 = vld [vmem:[#allocation7 + $0x378] sm:$0xff]
        %v1351 = vld [vmem:[#allocation7 + $0x380] sm:$0xff]
        %v1352 = vld [vmem:[#allocation7 + $0x388] sm:$0xff]
        %v1353 = vld [vmem:[#allocation7 + $0x390] sm:$0xff]
        %v1354 = vld [vmem:[#allocation7 + $0x398] sm:$0xff]
        %v1355 = vld [vmem:[#allocation7 + $0x3a0] sm:$0xff]
        %v1356 = vld [vmem:[#allocation7 + $0x3a8] sm:$0xff]
        %v1357 = vld [vmem:[#allocation7 + $0x3b0] sm:$0xff]
        %v1358 = vld [vmem:[#allocation7 + $0x3b8] sm:$0xff]
        %v1359 = vld [vmem:[#allocation7 + $0x3c0] sm:$0xff]
        %v1360 = vld [vmem:[#allocation7 + $0x3c8] sm:$0xff]
        %v1361 = vld [vmem:[#allocation7 + $0x3d0] sm:$0xff]
        %v1362 = vld [vmem:[#allocation7 + $0x3d8] sm:$0xff]
        %v1363 = vld [vmem:[#allocation7 + $0x3e0] sm:$0xff]
        %v1364 = vld [vmem:[#allocation7 + $0x3e8] sm:$0xff]
        %v1365 = vld [vmem:[#allocation7 + $0x3f0] sm:$0xff]
        %v1366 = vld [vmem:[#allocation7 + $0x3f8] sm:$0xff]
        %v1367 = vld [vmem:[#allocation7 + $0x400] sm:$0xff]
        %v1368 = vld [vmem:[#allocation7 + $0x408] sm:$0xff]
        %v1369 = vld [vmem:[#allocation7 + $0x410] sm:$0xff]
        %v1370 = vld [vmem:[#allocation7 + $0x418] sm:$0xff]
        %v1371 = vld [vmem:[#allocation7 + $0x420] sm:$0xff]
        %v1372 = vld [vmem:[#allocation7 + $0x428] sm:$0xff]
        %v1373 = vld [vmem:[#allocation7 + $0x430] sm:$0xff]
        %v1374 = vld [vmem:[#allocation7 + $0x438] sm:$0xff]
        %v1375 = vld [vmem:[#allocation7 + $0x440] sm:$0xff]
        %v1376 = vld [vmem:[#allocation7 + $0x448] sm:$0xff]
        %v1377 = vld [vmem:[#allocation7 + $0x450] sm:$0xff]
        %v1378 = vld [vmem:[#allocation7 + $0x458] sm:$0xff]
        %v1379 = vld [vmem:[#allocation7 + $0x460] sm:$0xff]
        %v1380 = vld [vmem:[#allocation7 + $0x468] sm:$0xff]
        %v1381 = vld [vmem:[#allocation7 + $0x470] sm:$0xff]
        %v1382 = vld [vmem:[#allocation7 + $0x478] sm:$0xff]
        %v1383 = vld [vmem:[#allocation7 + $0x480] sm:$0xff]
        %v1384 = vld [vmem:[#allocation7 + $0x488] sm:$0xff]
        %v1385 = vld [vmem:[#allocation7 + $0x490] sm:$0xff]
        %v1386 = vld [vmem:[#allocation7 + $0x498] sm:$0xff]
        %v1387 = vld [vmem:[#allocation7 + $0x4a0] sm:$0xff]
        %v1388 = vld [vmem:[#allocation7 + $0x4a8] sm:$0xff]
        %v1389 = vld [vmem:[#allocation7 + $0x4b0] sm:$0xff]
        %v1390 = vld [vmem:[#allocation7 + $0x4b8] sm:$0xff]
        %v1391 = vld [vmem:[#allocation7 + $0x4c0] sm:$0xff]
        %v1392 = vld [vmem:[#allocation7 + $0x4c8] sm:$0xff]
        %v1393 = vld [vmem:[#allocation7 + $0x4d0] sm:$0xff]
        %v1394 = vld [vmem:[#allocation7 + $0x4d8] sm:$0xff]
        %v1395 = vld [vmem:[#allocation7 + $0x4e0] sm:$0xff]
        %v1396 = vld [vmem:[#allocation7 + $0x4e8] sm:$0xff]
        %v1397 = vld [vmem:[#allocation7 + $0x4f0] sm:$0xff]
        %v1398 = vld [vmem:[#allocation7 + $0x4f8] sm:$0xff]
        %v1399 = vld [vmem:[#allocation7 + $0x500] sm:$0xff]
        %v1400 = vld [vmem:[#allocation7 + $0x508] sm:$0xff]
        %v1401 = vld [vmem:[#allocation7 + $0x510] sm:$0xff]
        %v1402 = vld [vmem:[#allocation7 + $0x518] sm:$0xff]
        %v1403 = vld [vmem:[#allocation7 + $0x520] sm:$0xff]
        %v1404 = vld [vmem:[#allocation7 + $0x528] sm:$0xff]
        %v1405 = vld [vmem:[#allocation7 + $0x530] sm:$0xff]
        %v1406 = vld [vmem:[#allocation7 + $0x538] sm:$0xff]
        %v1407 = vld [vmem:[#allocation7 + $0x540] sm:$0xff]
        %v1408 = vld [vmem:[#allocation7 + $0x548] sm:$0xff]
        %v1409 = vld [vmem:[#allocation7 + $0x550] sm:$0xff]
        %v1410 = vld [vmem:[#allocation7 + $0x558] sm:$0xff]
        %v1411 = vld [vmem:[#allocation7 + $0x560] sm:$0xff]
        %v1412 = vld [vmem:[#allocation7 + $0x568] sm:$0xff]
        %v1413 = vld [vmem:[#allocation7 + $0x570] sm:$0xff]
        %v1414 = vld [vmem:[#allocation7 + $0x578] sm:$0xff]
        %v1415 = vld [vmem:[#allocation7 + $0x580] sm:$0xff]
        %v1416 = vld [vmem:[#allocation7 + $0x588] sm:$0xff]
        %v1417 = vld [vmem:[#allocation7 + $0x590] sm:$0xff]
        %v1418 = vld [vmem:[#allocation7 + $0x598] sm:$0xff]
        %v1419 = vld [vmem:[#allocation7 + $0x5a0] sm:$0xff]
        %v1420 = vld [vmem:[#allocation7 + $0x5a8] sm:$0xff]
        %v1421 = vld [vmem:[#allocation7 + $0x5b0] sm:$0xff]
        %v1422 = vld [vmem:[#allocation7 + $0x5b8] sm:$0xff]
        %v1423 = vld [vmem:[#allocation7 + $0x5c0] sm:$0xff]
        %v1424 = vld [vmem:[#allocation7 + $0x5c8] sm:$0xff]
        %v1425 = vld [vmem:[#allocation7 + $0x5d0] sm:$0xff]
        %v1426 = vld [vmem:[#allocation7 + $0x5d8] sm:$0xff]
        %v1427 = vld [vmem:[#allocation7 + $0x5e0] sm:$0xff]
        %v1428 = vld [vmem:[#allocation7 + $0x5e8] sm:$0xff]
        %v1429 = vld [vmem:[#allocation7 + $0x5f0] sm:$0xff]
        %v1430 = vld [vmem:[#allocation7 + $0x5f8] sm:$0xff]
        %v1431 = vld [vmem:[#allocation7 + $0x600] sm:$0xff]
        %v1432 = vld [vmem:[#allocation7 + $0x608] sm:$0xff]
        %v1433 = vld [vmem:[#allocation7 + $0x610] sm:$0xff]
        %v1434 = vld [vmem:[#allocation7 + $0x618] sm:$0xff]
        %v1435 = vld [vmem:[#allocation7 + $0x620] sm:$0xff]
        %v1436 = vld [vmem:[#allocation7 + $0x628] sm:$0xff]
        %v1437 = vld [vmem:[#allocation7 + $0x630] sm:$0xff]
        %v1438 = vld [vmem:[#allocation7 + $0x638] sm:$0xff]
        %v1439 = vld [vmem:[#allocation7 + $0x640] sm:$0xff]
        %v1440 = vld [vmem:[#allocation7 + $0x648] sm:$0xff]
        %v1441 = vld [vmem:[#allocation7 + $0x650] sm:$0xff]
        %v1442 = vld [vmem:[#allocation7 + $0x658] sm:$0xff]
        %v1443 = vld [vmem:[#allocation7 + $0x660] sm:$0xff]
        %v1444 = vld [vmem:[#allocation7 + $0x668] sm:$0xff]
        %v1445 = vld [vmem:[#allocation7 + $0x670] sm:$0xff]
        %v1446 = vld [vmem:[#allocation7 + $0x678] sm:$0xff]
        %v1447 = vld [vmem:[#allocation7 + $0x680] sm:$0xff]
        %v1448 = vld [vmem:[#allocation7 + $0x688] sm:$0xff]
        %v1449 = vld [vmem:[#allocation7 + $0x690] sm:$0xff]
        %v1450 = vld [vmem:[#allocation7 + $0x698] sm:$0xff]
        %v1451 = vld [vmem:[#allocation7 + $0x6a0] sm:$0xff]
        %v1452 = vld [vmem:[#allocation7 + $0x6a8] sm:$0xff]
        %v1453 = vld [vmem:[#allocation7 + $0x6b0] sm:$0xff]
        %v1454 = vld [vmem:[#allocation7 + $0x6b8] sm:$0xff]
        %v1455 = vld [vmem:[#allocation7 + $0x6c0] sm:$0xff]
        %v1456 = vld [vmem:[#allocation7 + $0x6c8] sm:$0xff]
        %v1457 = vld [vmem:[#allocation7 + $0x6d0] sm:$0xff]
        %v1458 = vld [vmem:[#allocation7 + $0x6d8] sm:$0xff]
        %v1459 = vld [vmem:[#allocation7 + $0x6e0] sm:$0xff]
        %v1460 = vld [vmem:[#allocation7 + $0x6e8] sm:$0xff]
        %v1461 = vld [vmem:[#allocation7 + $0x6f0] sm:$0xff]
        %v1462 = vld [vmem:[#allocation7 + $0x6f8] sm:$0xff]
        %v1463 = vld [vmem:[#allocation7 + $0x700] sm:$0xff]
        %v1464 = vld [vmem:[#allocation7 + $0x708] sm:$0xff]
        %v1465 = vld [vmem:[#allocation7 + $0x710] sm:$0xff]
        %v1466 = vld [vmem:[#allocation7 + $0x718] sm:$0xff]
        %v1467 = vld [vmem:[#allocation7 + $0x720] sm:$0xff]
        %v1468 = vld [vmem:[#allocation7 + $0x728] sm:$0xff]
        %v1469 = vld [vmem:[#allocation7 + $0x730] sm:$0xff]
        %v1470 = vld [vmem:[#allocation7 + $0x738] sm:$0xff]
        %v1471 = vld [vmem:[#allocation7 + $0x740] sm:$0xff]
        %v1472 = vld [vmem:[#allocation7 + $0x748] sm:$0xff]
        %v1473 = vld [vmem:[#allocation7 + $0x750] sm:$0xff]
        %v1474 = vld [vmem:[#allocation7 + $0x758] sm:$0xff]
        %v1475 = vld [vmem:[#allocation7 + $0x760] sm:$0xff]
        %v1476 = vld [vmem:[#allocation7 + $0x768] sm:$0xff]
        %v1477 = vld [vmem:[#allocation7 + $0x770] sm:$0xff]
        %v1478 = vld [vmem:[#allocation7 + $0x778] sm:$0xff]
        %v1479 = vld [vmem:[#allocation7 + $0x780] sm:$0xff]
        %v1480 = vld [vmem:[#allocation7 + $0x788] sm:$0xff]
        %v1481 = vld [vmem:[#allocation7 + $0x790] sm:$0xff]
        %v1482 = vld [vmem:[#allocation7 + $0x798] sm:$0xff]
        %v1483 = vld [vmem:[#allocation7 + $0x7a0] sm:$0xff]
        %v1484 = vld [vmem:[#allocation7 + $0x7a8] sm:$0xff]
        %v1485 = vld [vmem:[#allocation7 + $0x7b0] sm:$0xff]
        %v1486 = vld [vmem:[#allocation7 + $0x7b8] sm:$0xff]
        %v1487 = vld [vmem:[#allocation7 + $0x7c0] sm:$0xff]
        %v1488 = vld [vmem:[#allocation7 + $0x7c8] sm:$0xff]
        %v1489 = vld [vmem:[#allocation7 + $0x7d0] sm:$0xff]
        %v1490 = vld [vmem:[#allocation7 + $0x7d8] sm:$0xff]
        %v1491 = vld [vmem:[#allocation7 + $0x7e0] sm:$0xff]
        %v1492 = vld [vmem:[#allocation7 + $0x7e8] sm:$0xff]
        %v1493 = vld [vmem:[#allocation7 + $0x7f0] sm:$0xff]
        %v1494 = vld [vmem:[#allocation7 + $0x7f8] sm:$0xff]
        %v1495 = vld [vmem:[#allocation7 + $0x800] sm:$0xff]
        %v1496 = vld [vmem:[#allocation7 + $0x808] sm:$0xff]
        %v1497 = vld [vmem:[#allocation7 + $0x810] sm:$0xff]
        %v1498 = vld [vmem:[#allocation7 + $0x818] sm:$0xff]
        %v1499 = vld [vmem:[#allocation7 + $0x820] sm:$0xff]
        %v1500 = vld [vmem:[#allocation7 + $0x828] sm:$0xff]
        %v1501 = vld [vmem:[#allocation7 + $0x830] sm:$0xff]
        %v1502 = vld [vmem:[#allocation7 + $0x838] sm:$0xff]
        %v1503 = vld [vmem:[#allocation7 + $0x840] sm:$0xff]
        %v1504 = vld [vmem:[#allocation7 + $0x848] sm:$0xff]
        %v1505 = vld [vmem:[#allocation7 + $0x850] sm:$0xff]
        %v1506 = vld [vmem:[#allocation7 + $0x858] sm:$0xff]
        %v1507 = vld [vmem:[#allocation7 + $0x860] sm:$0xff]
        %v1508 = vld [vmem:[#allocation7 + $0x868] sm:$0xff]
        %v1509 = vld [vmem:[#allocation7 + $0x870] sm:$0xff]
        %v1510 = vld [vmem:[#allocation7 + $0x878] sm:$0xff]
        %v1511 = vld [vmem:[#allocation7 + $0x880] sm:$0xff]
        %v1512 = vld [vmem:[#allocation7 + $0x888] sm:$0xff]
        %v1513 = vld [vmem:[#allocation7 + $0x890] sm:$0xff]
        %v1514 = vld [vmem:[#allocation7 + $0x898] sm:$0xff]
        %v1515 = vld [vmem:[#allocation7 + $0x8a0] sm:$0xff]
        %v1516 = vld [vmem:[#allocation7 + $0x8a8] sm:$0xff]
        %v1517 = vld [vmem:[#allocation7 + $0x8b0] sm:$0xff]
        %v1518 = vld [vmem:[#allocation7 + $0x8b8] sm:$0xff]
        %v1519 = vld [vmem:[#allocation7 + $0x8c0] sm:$0xff]
        %v1520 = vld [vmem:[#allocation7 + $0x8c8] sm:$0xff]
        %v1521 = vld [vmem:[#allocation7 + $0x8d0] sm:$0xff]
        %v1522 = vld [vmem:[#allocation7 + $0x8d8] sm:$0xff]
        %v1523 = vld [vmem:[#allocation7 + $0x8e0] sm:$0xff]
        %v1524 = vld [vmem:[#allocation7 + $0x8e8] sm:$0xff]
        %v1525 = vld [vmem:[#allocation7 + $0x8f0] sm:$0xff]
        %v1526 = vld [vmem:[#allocation7 + $0x8f8] sm:$0xff]
        %v1527 = vld [vmem:[#allocation7 + $0x900] sm:$0xff]
        %v1528 = vld [vmem:[#allocation7 + $0x908] sm:$0xff]
        %v1529 = vld [vmem:[#allocation7 + $0x910] sm:$0xff]
        %v1530 = vld [vmem:[#allocation7 + $0x918] sm:$0xff]
        %v1531 = vld [vmem:[#allocation7 + $0x920] sm:$0xff]
        %v1532 = vld [vmem:[#allocation7 + $0x928] sm:$0xff]
        %v1533 = vld [vmem:[#allocation7 + $0x930] sm:$0xff]
        %v1534 = vld [vmem:[#allocation7 + $0x938] sm:$0xff]
        %v1535 = vld [vmem:[#allocation7 + $0x940] sm:$0xff]
        %v1536 = vld [vmem:[#allocation7 + $0x948] sm:$0xff]
        %v1537 = vld [vmem:[#allocation7 + $0x950] sm:$0xff]
        %v1538 = vld [vmem:[#allocation7 + $0x958] sm:$0xff]
        %v1539 = vld [vmem:[#allocation7 + $0x960] sm:$0xff]
        %v1540 = vld [vmem:[#allocation7 + $0x968] sm:$0xff]
        %v1541 = vld [vmem:[#allocation7 + $0x970] sm:$0xff]
        %v1542 = vld [vmem:[#allocation7 + $0x978] sm:$0xff]
        %v1543 = vld [vmem:[#allocation7 + $0x980] sm:$0xff]
        %v1544 = vld [vmem:[#allocation7 + $0x988] sm:$0xff]
        %v1545 = vld [vmem:[#allocation7 + $0x990] sm:$0xff]
        %v1546 = vld [vmem:[#allocation7 + $0x998] sm:$0xff]
        %v1547 = vld [vmem:[#allocation7 + $0x9a0] sm:$0xff]
        %v1548 = vld [vmem:[#allocation7 + $0x9a8] sm:$0xff]
        %v1549 = vld [vmem:[#allocation7 + $0x9b0] sm:$0xff]
        %v1550 = vld [vmem:[#allocation7 + $0x9b8] sm:$0xff]
        %v1551 = vld [vmem:[#allocation7 + $0x9c0] sm:$0xff]
        %v1552 = vld [vmem:[#allocation7 + $0x9c8] sm:$0xff]
        %v1553 = vld [vmem:[#allocation7 + $0x9d0] sm:$0xff]
        %v1554 = vld [vmem:[#allocation7 + $0x9d8] sm:$0xff]
        %v1555 = vld [vmem:[#allocation7 + $0x9e0] sm:$0xff]
        %v1556 = vld [vmem:[#allocation7 + $0x9e8] sm:$0xff]
        %v1557 = vld [vmem:[#allocation7 + $0x9f0] sm:$0xff]
        %v1558 = vld [vmem:[#allocation7 + $0x9f8] sm:$0xff]
        %v1559 = vld [vmem:[#allocation7 + $0xa00] sm:$0xff]
        %v1560 = vld [vmem:[#allocation7 + $0xa08] sm:$0xff]
        %v1561 = vld [vmem:[#allocation7 + $0xa10] sm:$0xff]
        %v1562 = vld [vmem:[#allocation7 + $0xa18] sm:$0xff]
        %v1563 = vld [vmem:[#allocation7 + $0xa20] sm:$0xff]
        %v1564 = vld [vmem:[#allocation7 + $0xa28] sm:$0xff]
        %v1565 = vld [vmem:[#allocation7 + $0xa30] sm:$0xff]
        %v1566 = vld [vmem:[#allocation7 + $0xa38] sm:$0xff]
        %v1567 = vld [vmem:[#allocation7 + $0xa40] sm:$0xff]
        %v1568 = vld [vmem:[#allocation7 + $0xa48] sm:$0xff]
        %v1569 = vld [vmem:[#allocation7 + $0xa50] sm:$0xff]
        %v1570 = vld [vmem:[#allocation7 + $0xa58] sm:$0xff]
        %v1571 = vld [vmem:[#allocation7 + $0xa60] sm:$0xff]
        %v1572 = vld [vmem:[#allocation7 + $0xa68] sm:$0xff]
        %v1573 = vld [vmem:[#allocation7 + $0xa70] sm:$0xff]
        %v1574 = vld [vmem:[#allocation7 + $0xa78] sm:$0xff]
        %v1575 = vld [vmem:[#allocation7 + $0xa80] sm:$0xff]
        %v1576 = vld [vmem:[#allocation7 + $0xa88] sm:$0xff]
        %v1577 = vld [vmem:[#allocation7 + $0xa90] sm:$0xff]
        %v1578 = vld [vmem:[#allocation7 + $0xa98] sm:$0xff]
        %v1579 = vld [vmem:[#allocation7 + $0xaa0] sm:$0xff]
        %v1580 = vld [vmem:[#allocation7 + $0xaa8] sm:$0xff]
        %v1581 = vld [vmem:[#allocation7 + $0xab0] sm:$0xff]
        %v1582 = vld [vmem:[#allocation7 + $0xab8] sm:$0xff]
        %v1583 = vld [vmem:[#allocation7 + $0xac0] sm:$0xff]
        %v1584 = vld [vmem:[#allocation7 + $0xac8] sm:$0xff]
        %v1585 = vld [vmem:[#allocation7 + $0xad0] sm:$0xff]
        %v1586 = vld [vmem:[#allocation7 + $0xad8] sm:$0xff]
        %v1587 = vld [vmem:[#allocation7 + $0xae0] sm:$0xff]
        %v1588 = vld [vmem:[#allocation7 + $0xae8] sm:$0xff]
        %v1589 = vld [vmem:[#allocation7 + $0xaf0] sm:$0xff]
        %v1590 = vld [vmem:[#allocation7 + $0xaf8] sm:$0xff]
        %v1591 = vld [vmem:[#allocation7 + $0xb00] sm:$0xff]
        %v1592 = vld [vmem:[#allocation7 + $0xb08] sm:$0xff]
        %v1593 = vld [vmem:[#allocation7 + $0xb10] sm:$0xff]
        %v1594 = vld [vmem:[#allocation7 + $0xb18] sm:$0xff]
        %v1595 = vld [vmem:[#allocation7 + $0xb20] sm:$0xff]
        %v1596 = vld [vmem:[#allocation7 + $0xb28] sm:$0xff]
        %v1597 = vld [vmem:[#allocation7 + $0xb30] sm:$0xff]
        %v1598 = vld [vmem:[#allocation7 + $0xb38] sm:$0xff]
        %v1599 = vld [vmem:[#allocation7 + $0xb40] sm:$0xff]
        %v1600 = vld [vmem:[#allocation7 + $0xb48] sm:$0xff]
        %v1601 = vld [vmem:[#allocation7 + $0xb50] sm:$0xff]
        %v1602 = vld [vmem:[#allocation7 + $0xb58] sm:$0xff]
        %v1603 = vld [vmem:[#allocation7 + $0xb60] sm:$0xff]
        %v1604 = vld [vmem:[#allocation7 + $0xb68] sm:$0xff]
        %v1605 = vld [vmem:[#allocation7 + $0xb70] sm:$0xff]
        %v1606 = vld [vmem:[#allocation7 + $0xb78] sm:$0xff]
        %v1607 = vld [vmem:[#allocation7 + $0xb80] sm:$0xff]
        %v1608 = vld [vmem:[#allocation7 + $0xb88] sm:$0xff]
        %v1609 = vld [vmem:[#allocation7 + $0xb90] sm:$0xff]
        %v1610 = vld [vmem:[#allocation7 + $0xb98] sm:$0xff]
        %v1611 = vld [vmem:[#allocation7 + $0xba0] sm:$0xff]
        %v1612 = vld [vmem:[#allocation7 + $0xba8] sm:$0xff]
        %v1613 = vld [vmem:[#allocation7 + $0xbb0] sm:$0xff]
        %v1614 = vld [vmem:[#allocation7 + $0xbb8] sm:$0xff]
        %v1615 = vld [vmem:[#allocation7 + $0xbc0] sm:$0xff]
        %v1616 = vld [vmem:[#allocation7 + $0xbc8] sm:$0xff]
        %v1617 = vld [vmem:[#allocation7 + $0xbd0] sm:$0xff]
        %v1618 = vld [vmem:[#allocation7 + $0xbd8] sm:$0xff]
        %v1619 = vld [vmem:[#allocation7 + $0xbe0] sm:$0xff]
        %v1620 = vld [vmem:[#allocation7 + $0xbe8] sm:$0xff]
        %v1621 = vld [vmem:[#allocation7 + $0xbf0] sm:$0xff]
        %v1622 = vld [vmem:[#allocation7 + $0xbf8] sm:$0xff]
        %v1623 = vld [vmem:[#allocation7 + $0xc00] sm:$0xff]
        %v1624 = vld [vmem:[#allocation7 + $0xc08] sm:$0xff]
        %v1625 = vld [vmem:[#allocation7 + $0xc10] sm:$0xff]
        %v1626 = vld [vmem:[#allocation7 + $0xc18] sm:$0xff]
        %v1627 = vld [vmem:[#allocation7 + $0xc20] sm:$0xff]
        %v1628 = vld [vmem:[#allocation7 + $0xc28] sm:$0xff]
        %v1629 = vld [vmem:[#allocation7 + $0xc30] sm:$0xff]
        %v1630 = vld [vmem:[#allocation7 + $0xc38] sm:$0xff]
        %v1631 = vld [vmem:[#allocation7 + $0xc40] sm:$0xff]
        %v1632 = vld [vmem:[#allocation7 + $0xc48] sm:$0xff]
        %v1633 = vld [vmem:[#allocation7 + $0xc50] sm:$0xff]
        %v1634 = vld [vmem:[#allocation7 + $0xc58] sm:$0xff]
        %v1635 = vld [vmem:[#allocation7 + $0xc60] sm:$0xff]
        %v1636 = vld [vmem:[#allocation7 + $0xc68] sm:$0xff]
        %v1637 = vld [vmem:[#allocation7 + $0xc70] sm:$0xff]
        %v1638 = vld [vmem:[#allocation7 + $0xc78] sm:$0xff]
        %v1639 = vld [vmem:[#allocation7 + $0xc80] sm:$0xff]
        %v1640 = vld [vmem:[#allocation7 + $0xc88] sm:$0xff]
        %v1641 = vld [vmem:[#allocation7 + $0xc90] sm:$0xff]
        %v1642 = vld [vmem:[#allocation7 + $0xc98] sm:$0xff]
        %v1643 = vld [vmem:[#allocation7 + $0xca0] sm:$0xff]
        %v1644 = vld [vmem:[#allocation7 + $0xca8] sm:$0xff]
        %v1645 = vld [vmem:[#allocation7 + $0xcb0] sm:$0xff]
        %v1646 = vld [vmem:[#allocation7 + $0xcb8] sm:$0xff]
        %v1647 = vld [vmem:[#allocation7 + $0xcc0] sm:$0xff]
        %v1648 = vld [vmem:[#allocation7 + $0xcc8] sm:$0xff]
        %v1649 = vld [vmem:[#allocation7 + $0xcd0] sm:$0xff]
        %v1650 = vld [vmem:[#allocation7 + $0xcd8] sm:$0xff]
        %v1651 = vld [vmem:[#allocation7 + $0xce0] sm:$0xff]
        %v1652 = vld [vmem:[#allocation7 + $0xce8] sm:$0xff]
        %v1653 = vld [vmem:[#allocation7 + $0xcf0] sm:$0xff]
        %v1654 = vld [vmem:[#allocation7 + $0xcf8] sm:$0xff]
        %v1655 = vld [vmem:[#allocation7 + $0xd00] sm:$0xff]
        %v1656 = vld [vmem:[#allocation7 + $0xd08] sm:$0xff]
        %v1657 = vld [vmem:[#allocation7 + $0xd10] sm:$0xff]
        %v1658 = vld [vmem:[#allocation7 + $0xd18] sm:$0xff]
        %v1659 = vld [vmem:[#allocation7 + $0xd20] sm:$0xff]
        %v1660 = vld [vmem:[#allocation7 + $0xd28] sm:$0xff]
        %v1661 = vld [vmem:[#allocation7 + $0xd30] sm:$0xff]
        %v1662 = vld [vmem:[#allocation7 + $0xd38] sm:$0xff]
        %v1663 = vld [vmem:[#allocation7 + $0xd40] sm:$0xff]
        %v1664 = vld [vmem:[#allocation7 + $0xd48] sm:$0xff]
        %v1665 = vld [vmem:[#allocation7 + $0xd50] sm:$0xff]
        %v1666 = vld [vmem:[#allocation7 + $0xd58] sm:$0xff]
        %v1667 = vld [vmem:[#allocation7 + $0xd60] sm:$0xff]
        %v1668 = vld [vmem:[#allocation7 + $0xd68] sm:$0xff]
        %v1669 = vld [vmem:[#allocation7 + $0xd70] sm:$0xff]
        %v1670 = vld [vmem:[#allocation7 + $0xd78] sm:$0xff]
        %v1671 = vld [vmem:[#allocation7 + $0xd80] sm:$0xff]
        %v1672 = vld [vmem:[#allocation7 + $0xd88] sm:$0xff]
        %v1673 = vld [vmem:[#allocation7 + $0xd90] sm:$0xff]
        %v1674 = vld [vmem:[#allocation7 + $0xd98] sm:$0xff]
        %v1675 = vld [vmem:[#allocation7 + $0xda0] sm:$0xff]
        %v1676 = vld [vmem:[#allocation7 + $0xda8] sm:$0xff]
        %v1677 = vld [vmem:[#allocation7 + $0xdb0] sm:$0xff]
        %v1678 = vld [vmem:[#allocation7 + $0xdb8] sm:$0xff]
        %v1679 = vld [vmem:[#allocation7 + $0xdc0] sm:$0xff]
        %v1680 = vld [vmem:[#allocation7 + $0xdc8] sm:$0xff]
        %v1681 = vld [vmem:[#allocation7 + $0xdd0] sm:$0xff]
        %v1682 = vld [vmem:[#allocation7 + $0xdd8] sm:$0xff]
        %v1683 = vld [vmem:[#allocation7 + $0xde0] sm:$0xff]
        %v1684 = vld [vmem:[#allocation7 + $0xde8] sm:$0xff]
        %v1685 = vld [vmem:[#allocation7 + $0xdf0] sm:$0xff]
        %v1686 = vld [vmem:[#allocation7 + $0xdf8] sm:$0xff]
        %v1687 = vld [vmem:[#allocation7 + $0xe00] sm:$0xff]
        %v1688 = vld [vmem:[#allocation7 + $0xe08] sm:$0xff]
        %v1689 = vld [vmem:[#allocation7 + $0xe10] sm:$0xff]
        %v1690 = vld [vmem:[#allocation7 + $0xe18] sm:$0xff]
        %v1691 = vld [vmem:[#allocation7 + $0xe20] sm:$0xff]
        %v1692 = vld [vmem:[#allocation7 + $0xe28] sm:$0xff]
        %v1693 = vld [vmem:[#allocation7 + $0xe30] sm:$0xff]
        %v1694 = vld [vmem:[#allocation7 + $0xe38] sm:$0xff]
        %v1695 = vld [vmem:[#allocation7 + $0xe40] sm:$0xff]
        %v1696 = vld [vmem:[#allocation7 + $0xe48] sm:$0xff]
        %v1697 = vld [vmem:[#allocation7 + $0xe50] sm:$0xff]
        %v1698 = vld [vmem:[#allocation7 + $0xe58] sm:$0xff]
        %v1699 = vld [vmem:[#allocation7 + $0xe60] sm:$0xff]
        %v1700 = vld [vmem:[#allocation7 + $0xe68] sm:$0xff]
        %v1701 = vld [vmem:[#allocation7 + $0xe70] sm:$0xff]
        %v1702 = vld [vmem:[#allocation7 + $0xe78] sm:$0xff]
        %v1703 = vld [vmem:[#allocation7 + $0xe80] sm:$0xff]
        %v1704 = vld [vmem:[#allocation7 + $0xe88] sm:$0xff]
        %v1705 = vld [vmem:[#allocation7 + $0xe90] sm:$0xff]
        %v1706 = vld [vmem:[#allocation7 + $0xe98] sm:$0xff]
        %v1707 = vld [vmem:[#allocation7 + $0xea0] sm:$0xff]
        %v1708 = vld [vmem:[#allocation7 + $0xea8] sm:$0xff]
        %v1709 = vld [vmem:[#allocation7 + $0xeb0] sm:$0xff]
        %v1710 = vld [vmem:[#allocation7 + $0xeb8] sm:$0xff]
        %v1711 = vld [vmem:[#allocation7 + $0xec0] sm:$0xff]
        %v1712 = vld [vmem:[#allocation7 + $0xec8] sm:$0xff]
        %v1713 = vld [vmem:[#allocation7 + $0xed0] sm:$0xff]
        %v1714 = vld [vmem:[#allocation7 + $0xed8] sm:$0xff]
        %v1715 = vld [vmem:[#allocation7 + $0xee0] sm:$0xff]
        %v1716 = vld [vmem:[#allocation7 + $0xee8] sm:$0xff]
        %v1717 = vld [vmem:[#allocation7 + $0xef0] sm:$0xff]
        %v1718 = vld [vmem:[#allocation7 + $0xef8] sm:$0xff]
        %v1719 = vld [vmem:[#allocation7 + $0xf00] sm:$0xff]
        %v1720 = vld [vmem:[#allocation7 + $0xf08] sm:$0xff]
        %v1721 = vld [vmem:[#allocation7 + $0xf10] sm:$0xff]
        %v1722 = vld [vmem:[#allocation7 + $0xf18] sm:$0xff]
        %v1723 = vld [vmem:[#allocation7 + $0xf20] sm:$0xff]
        %v1724 = vld [vmem:[#allocation7 + $0xf28] sm:$0xff]
        %v1725 = vld [vmem:[#allocation7 + $0xf30] sm:$0xff]
        %v1726 = vld [vmem:[#allocation7 + $0xf38] sm:$0xff]
        %v1727 = vld [vmem:[#allocation7 + $0xf40] sm:$0xff]
        %v1728 = vld [vmem:[#allocation7 + $0xf48] sm:$0xff]
        %v1729 = vld [vmem:[#allocation7 + $0xf50] sm:$0xff]
        %v1730 = vld [vmem:[#allocation7 + $0xf58] sm:$0xff]
        %v1731 = vld [vmem:[#allocation7 + $0xf60] sm:$0xff]
        %v1732 = vld [vmem:[#allocation7 + $0xf68] sm:$0xff]
        %v1733 = vld [vmem:[#allocation7 + $0xf70] sm:$0xff]
        %v1734 = vld [vmem:[#allocation7 + $0xf78] sm:$0xff]
        %v1735 = vld [vmem:[#allocation7 + $0xf80] sm:$0xff]
        %v1736 = vld [vmem:[#allocation7 + $0xf88] sm:$0xff]
        %v1737 = vld [vmem:[#allocation7 + $0xf90] sm:$0xff]
        %v1738 = vld [vmem:[#allocation7 + $0xf98] sm:$0xff]
        %v1739 = vld [vmem:[#allocation7 + $0xfa0] sm:$0xff]
        %v1740 = vld [vmem:[#allocation7 + $0xfa8] sm:$0xff]
        %v1741 = vld [vmem:[#allocation7 + $0xfb0] sm:$0xff]
        %v1742 = vld [vmem:[#allocation7 + $0xfb8] sm:$0xff]
        %v1743 = vld [vmem:[#allocation7 + $0xfc0] sm:$0xff]
        %v1744 = vld [vmem:[#allocation7 + $0xfc8] sm:$0xff]
        %v1745 = vld [vmem:[#allocation7 + $0xfd0] sm:$0xff]
        %v1746 = vld [vmem:[#allocation7 + $0xfd8] sm:$0xff]
        %v1747 = vld [vmem:[#allocation7 + $0xfe0] sm:$0xff]
        %v1748 = vld [vmem:[#allocation7 + $0xfe8] sm:$0xff]
        %v1749 = vld [vmem:[#allocation7 + $0xff0] sm:$0xff]
        %v1750 = vld [vmem:[#allocation7 + $0xff8] sm:$0xff]
        %v1751 = vld [vmem:[#allocation8] sm:$0xff]
        %v1753 = vperm.slane %v1751, 0
        %v1754 = vperm.slane %v1751, 1
        %v1755 = vperm.slane %v1751, 2
        %v1756 = vperm.slane %v1751, 3
        %v1757 = vperm.slane %v1751, 4
        %v1758 = vperm.slane %v1751, 5
        %v1759 = vperm.slane %v1751, 6
        %v1760 = vperm.slane %v1751, 7
        %v2281 = vunpack.c.l.b16 %v1239
        %v2282 = vunpack.c.h.b16 %v1239
        %v2283 = vunpack.c.l.b16 %v1240
        %v2284 = vunpack.c.h.b16 %v1240
        %v2285 = vunpack.c.l.b16 %v1241
        %v2286 = vunpack.c.h.b16 %v1241
        %v2287 = vunpack.c.l.b16 %v1242
        %v2288 = vunpack.c.h.b16 %v1242
        %v2289 = vunpack.c.l.b16 %v1243
        %v2290 = vunpack.c.h.b16 %v1243
        %v2291 = vunpack.c.l.b16 %v1244
        %v2292 = vunpack.c.h.b16 %v1244
        %v2293 = vunpack.c.l.b16 %v1245
        %v2294 = vunpack.c.h.b16 %v1245
        %v2295 = vunpack.c.l.b16 %v1246
        %v2296 = vunpack.c.h.b16 %v1246
        %v2297 = vunpack.c.l.b16 %v1247
        %v2298 = vunpack.c.h.b16 %v1247
        %v2299 = vunpack.c.l.b16 %v1248
        %v2300 = vunpack.c.h.b16 %v1248
        %v2301 = vunpack.c.l.b16 %v1249
        %v2302 = vunpack.c.h.b16 %v1249
        %v2303 = vunpack.c.l.b16 %v1250
        %v2304 = vunpack.c.h.b16 %v1250
        %v2305 = vunpack.c.l.b16 %v1251
        %v2306 = vunpack.c.h.b16 %v1251
        %v2307 = vunpack.c.l.b16 %v1252
        %v2308 = vunpack.c.h.b16 %v1252
        %v2309 = vunpack.c.l.b16 %v1253
        %v2310 = vunpack.c.h.b16 %v1253
        %v2311 = vunpack.c.l.b16 %v1254
        %v2312 = vunpack.c.h.b16 %v1254
        %v2313 = vunpack.c.l.b16 %v1255
        %v2314 = vunpack.c.h.b16 %v1255
        %v2315 = vunpack.c.l.b16 %v1256
        %v2316 = vunpack.c.h.b16 %v1256
        %v2317 = vunpack.c.l.b16 %v1257
        %v2318 = vunpack.c.h.b16 %v1257
        %v2319 = vunpack.c.l.b16 %v1258
        %v2320 = vunpack.c.h.b16 %v1258
        %v2321 = vunpack.c.l.b16 %v1259
        %v2322 = vunpack.c.h.b16 %v1259
        %v2323 = vunpack.c.l.b16 %v1260
        %v2324 = vunpack.c.h.b16 %v1260
        %v2325 = vunpack.c.l.b16 %v1261
        %v2326 = vunpack.c.h.b16 %v1261
        %v2327 = vunpack.c.l.b16 %v1262
        %v2328 = vunpack.c.h.b16 %v1262
        %v2329 = vunpack.c.l.b16 %v1263
        %v2330 = vunpack.c.h.b16 %v1263
        %v2331 = vunpack.c.l.b16 %v1264
        %v2332 = vunpack.c.h.b16 %v1264
        %v2333 = vunpack.c.l.b16 %v1265
        %v2334 = vunpack.c.h.b16 %v1265
        %v2335 = vunpack.c.l.b16 %v1266
        %v2336 = vunpack.c.h.b16 %v1266
        %v2337 = vunpack.c.l.b16 %v1267
        %v2338 = vunpack.c.h.b16 %v1267
        %v2339 = vunpack.c.l.b16 %v1268
        %v2340 = vunpack.c.h.b16 %v1268
        %v2341 = vunpack.c.l.b16 %v1269
        %v2342 = vunpack.c.h.b16 %v1269
        %v2343 = vunpack.c.l.b16 %v1270
        %v2344 = vunpack.c.h.b16 %v1270
        %v2345 = vunpack.c.l.b16 %v1271
        %v2346 = vunpack.c.h.b16 %v1271
        %v2347 = vunpack.c.l.b16 %v1272
        %v2348 = vunpack.c.h.b16 %v1272
        %v2349 = vunpack.c.l.b16 %v1273
        %v2350 = vunpack.c.h.b16 %v1273
        %v2351 = vunpack.c.l.b16 %v1274
        %v2352 = vunpack.c.h.b16 %v1274
        %v2353 = vunpack.c.l.b16 %v1275
        %v2354 = vunpack.c.h.b16 %v1275
        %v2355 = vunpack.c.l.b16 %v1276
        %v2356 = vunpack.c.h.b16 %v1276
        %v2357 = vunpack.c.l.b16 %v1277
        %v2358 = vunpack.c.h.b16 %v1277
        %v2359 = vunpack.c.l.b16 %v1278
        %v2360 = vunpack.c.h.b16 %v1278
        %v2361 = vunpack.c.l.b16 %v1279
        %v2362 = vunpack.c.h.b16 %v1279
        %v2363 = vunpack.c.l.b16 %v1280
        %v2364 = vunpack.c.h.b16 %v1280
        %v2365 = vunpack.c.l.b16 %v1281
        %v2366 = vunpack.c.h.b16 %v1281
        %v2367 = vunpack.c.l.b16 %v1282
        %v2368 = vunpack.c.h.b16 %v1282
        %v2369 = vunpack.c.l.b16 %v1283
        %v2370 = vunpack.c.h.b16 %v1283
        %v2371 = vunpack.c.l.b16 %v1284
        %v2372 = vunpack.c.h.b16 %v1284
        %v2373 = vunpack.c.l.b16 %v1285
        %v2374 = vunpack.c.h.b16 %v1285
        %v2375 = vunpack.c.l.b16 %v1286
        %v2376 = vunpack.c.h.b16 %v1286
        %v2377 = vunpack.c.l.b16 %v1287
        %v2378 = vunpack.c.h.b16 %v1287
        %v2379 = vunpack.c.l.b16 %v1288
        %v2380 = vunpack.c.h.b16 %v1288
        %v2381 = vunpack.c.l.b16 %v1289
        %v2382 = vunpack.c.h.b16 %v1289
        %v2383 = vunpack.c.l.b16 %v1290
        %v2384 = vunpack.c.h.b16 %v1290
        %v2385 = vunpack.c.l.b16 %v1291
        %v2386 = vunpack.c.h.b16 %v1291
        %v2387 = vunpack.c.l.b16 %v1292
        %v2388 = vunpack.c.h.b16 %v1292
        %v2389 = vunpack.c.l.b16 %v1293
        %v2390 = vunpack.c.h.b16 %v1293
        %v2391 = vunpack.c.l.b16 %v1294
        %v2392 = vunpack.c.h.b16 %v1294
        %v2393 = vunpack.c.l.b16 %v1295
        %v2394 = vunpack.c.h.b16 %v1295
        %v2395 = vunpack.c.l.b16 %v1296
        %v2396 = vunpack.c.h.b16 %v1296
        %v2397 = vunpack.c.l.b16 %v1297
        %v2398 = vunpack.c.h.b16 %v1297
        %v2399 = vunpack.c.l.b16 %v1298
        %v2400 = vunpack.c.h.b16 %v1298
        %v2401 = vunpack.c.l.b16 %v1299
        %v2402 = vunpack.c.h.b16 %v1299
        %v2403 = vunpack.c.l.b16 %v1300
        %v2404 = vunpack.c.h.b16 %v1300
        %v2405 = vunpack.c.l.b16 %v1301
        %v2406 = vunpack.c.h.b16 %v1301
        %v2407 = vunpack.c.l.b16 %v1302
        %v2408 = vunpack.c.h.b16 %v1302
        %v2409 = vunpack.c.l.b16 %v1303
        %v2410 = vunpack.c.h.b16 %v1303
        %v2411 = vunpack.c.l.b16 %v1304
        %v2412 = vunpack.c.h.b16 %v1304
        %v2413 = vunpack.c.l.b16 %v1305
        %v2414 = vunpack.c.h.b16 %v1305
        %v2415 = vunpack.c.l.b16 %v1306
        %v2416 = vunpack.c.h.b16 %v1306
        %v2417 = vunpack.c.l.b16 %v1307
        %v2418 = vunpack.c.h.b16 %v1307
        %v2419 = vunpack.c.l.b16 %v1308
        %v2420 = vunpack.c.h.b16 %v1308
        %v2421 = vunpack.c.l.b16 %v1309
        %v2422 = vunpack.c.h.b16 %v1309
        %v2423 = vunpack.c.l.b16 %v1310
        %v2424 = vunpack.c.h.b16 %v1310
        %v2425 = vunpack.c.l.b16 %v1311
        %v2426 = vunpack.c.h.b16 %v1311
        %v2427 = vunpack.c.l.b16 %v1312
        %v2428 = vunpack.c.h.b16 %v1312
        %v2429 = vunpack.c.l.b16 %v1313
        %v2430 = vunpack.c.h.b16 %v1313
        %v2431 = vunpack.c.l.b16 %v1314
        %v2432 = vunpack.c.h.b16 %v1314
        %v2433 = vunpack.c.l.b16 %v1315
        %v2434 = vunpack.c.h.b16 %v1315
        %v2435 = vunpack.c.l.b16 %v1316
        %v2436 = vunpack.c.h.b16 %v1316
        %v2437 = vunpack.c.l.b16 %v1317
        %v2438 = vunpack.c.h.b16 %v1317
        %v2439 = vunpack.c.l.b16 %v1318
        %v2440 = vunpack.c.h.b16 %v1318
        %v2441 = vunpack.c.l.b16 %v1319
        %v2442 = vunpack.c.h.b16 %v1319
        %v2443 = vunpack.c.l.b16 %v1320
        %v2444 = vunpack.c.h.b16 %v1320
        %v2445 = vunpack.c.l.b16 %v1321
        %v2446 = vunpack.c.h.b16 %v1321
        %v2447 = vunpack.c.l.b16 %v1322
        %v2448 = vunpack.c.h.b16 %v1322
        %v2449 = vunpack.c.l.b16 %v1323
        %v2450 = vunpack.c.h.b16 %v1323
        %v2451 = vunpack.c.l.b16 %v1324
        %v2452 = vunpack.c.h.b16 %v1324
        %v2453 = vunpack.c.l.b16 %v1325
        %v2454 = vunpack.c.h.b16 %v1325
        %v2455 = vunpack.c.l.b16 %v1326
        %v2456 = vunpack.c.h.b16 %v1326
        %v2457 = vunpack.c.l.b16 %v1327
        %v2458 = vunpack.c.h.b16 %v1327
        %v2459 = vunpack.c.l.b16 %v1328
        %v2460 = vunpack.c.h.b16 %v1328
        %v2461 = vunpack.c.l.b16 %v1329
        %v2462 = vunpack.c.h.b16 %v1329
        %v2463 = vunpack.c.l.b16 %v1330
        %v2464 = vunpack.c.h.b16 %v1330
        %v2465 = vunpack.c.l.b16 %v1331
        %v2466 = vunpack.c.h.b16 %v1331
        %v2467 = vunpack.c.l.b16 %v1332
        %v2468 = vunpack.c.h.b16 %v1332
        %v2469 = vunpack.c.l.b16 %v1333
        %v2470 = vunpack.c.h.b16 %v1333
        %v2471 = vunpack.c.l.b16 %v1334
        %v2472 = vunpack.c.h.b16 %v1334
        %v2473 = vunpack.c.l.b16 %v1335
        %v2474 = vunpack.c.h.b16 %v1335
        %v2475 = vunpack.c.l.b16 %v1336
        %v2476 = vunpack.c.h.b16 %v1336
        %v2477 = vunpack.c.l.b16 %v1337
        %v2478 = vunpack.c.h.b16 %v1337
        %v2479 = vunpack.c.l.b16 %v1338
        %v2480 = vunpack.c.h.b16 %v1338
        %v2481 = vunpack.c.l.b16 %v1339
        %v2482 = vunpack.c.h.b16 %v1339
        %v2483 = vunpack.c.l.b16 %v1340
        %v2484 = vunpack.c.h.b16 %v1340
        %v2485 = vunpack.c.l.b16 %v1341
        %v2486 = vunpack.c.h.b16 %v1341
        %v2487 = vunpack.c.l.b16 %v1342
        %v2488 = vunpack.c.h.b16 %v1342
        %v2489 = vunpack.c.l.b16 %v1343
        %v2490 = vunpack.c.h.b16 %v1343
        %v2491 = vunpack.c.l.b16 %v1344
        %v2492 = vunpack.c.h.b16 %v1344
        %v2493 = vunpack.c.l.b16 %v1345
        %v2494 = vunpack.c.h.b16 %v1345
        %v2495 = vunpack.c.l.b16 %v1346
        %v2496 = vunpack.c.h.b16 %v1346
        %v2497 = vunpack.c.l.b16 %v1347
        %v2498 = vunpack.c.h.b16 %v1347
        %v2499 = vunpack.c.l.b16 %v1348
        %v2500 = vunpack.c.h.b16 %v1348
        %v2501 = vunpack.c.l.b16 %v1349
        %v2502 = vunpack.c.h.b16 %v1349
        %v2503 = vunpack.c.l.b16 %v1350
        %v2504 = vunpack.c.h.b16 %v1350
        %v2505 = vunpack.c.l.b16 %v1351
        %v2506 = vunpack.c.h.b16 %v1351
        %v2507 = vunpack.c.l.b16 %v1352
        %v2508 = vunpack.c.h.b16 %v1352
        %v2509 = vunpack.c.l.b16 %v1353
        %v2510 = vunpack.c.h.b16 %v1353
        %v2511 = vunpack.c.l.b16 %v1354
        %v2512 = vunpack.c.h.b16 %v1354
        %v2513 = vunpack.c.l.b16 %v1355
        %v2514 = vunpack.c.h.b16 %v1355
        %v2515 = vunpack.c.l.b16 %v1356
        %v2516 = vunpack.c.h.b16 %v1356
        %v2517 = vunpack.c.l.b16 %v1357
        %v2518 = vunpack.c.h.b16 %v1357
        %v2519 = vunpack.c.l.b16 %v1358
        %v2520 = vunpack.c.h.b16 %v1358
        %v2521 = vunpack.c.l.b16 %v1359
        %v2522 = vunpack.c.h.b16 %v1359
        %v2523 = vunpack.c.l.b16 %v1360
        %v2524 = vunpack.c.h.b16 %v1360
        %v2525 = vunpack.c.l.b16 %v1361
        %v2526 = vunpack.c.h.b16 %v1361
        %v2527 = vunpack.c.l.b16 %v1362
        %v2528 = vunpack.c.h.b16 %v1362
        %v2529 = vunpack.c.l.b16 %v1363
        %v2530 = vunpack.c.h.b16 %v1363
        %v2531 = vunpack.c.l.b16 %v1364
        %v2532 = vunpack.c.h.b16 %v1364
        %v2533 = vunpack.c.l.b16 %v1365
        %v2534 = vunpack.c.h.b16 %v1365
        %v2535 = vunpack.c.l.b16 %v1366
        %v2536 = vunpack.c.h.b16 %v1366
        %v2537 = vunpack.c.l.b16 %v1367
        %v2538 = vunpack.c.h.b16 %v1367
        %v2539 = vunpack.c.l.b16 %v1368
        %v2540 = vunpack.c.h.b16 %v1368
        %v2541 = vunpack.c.l.b16 %v1369
        %v2542 = vunpack.c.h.b16 %v1369
        %v2543 = vunpack.c.l.b16 %v1370
        %v2544 = vunpack.c.h.b16 %v1370
        %v2545 = vunpack.c.l.b16 %v1371
        %v2546 = vunpack.c.h.b16 %v1371
        %v2547 = vunpack.c.l.b16 %v1372
        %v2548 = vunpack.c.h.b16 %v1372
        %v2549 = vunpack.c.l.b16 %v1373
        %v2550 = vunpack.c.h.b16 %v1373
        %v2551 = vunpack.c.l.b16 %v1374
        %v2552 = vunpack.c.h.b16 %v1374
        %v2553 = vunpack.c.l.b16 %v1375
        %v2554 = vunpack.c.h.b16 %v1375
        %v2555 = vunpack.c.l.b16 %v1376
        %v2556 = vunpack.c.h.b16 %v1376
        %v2557 = vunpack.c.l.b16 %v1377
        %v2558 = vunpack.c.h.b16 %v1377
        %v2559 = vunpack.c.l.b16 %v1378
        %v2560 = vunpack.c.h.b16 %v1378
        %v2561 = vunpack.c.l.b16 %v1379
        %v2562 = vunpack.c.h.b16 %v1379
        %v2563 = vunpack.c.l.b16 %v1380
        %v2564 = vunpack.c.h.b16 %v1380
        %v2565 = vunpack.c.l.b16 %v1381
        %v2566 = vunpack.c.h.b16 %v1381
        %v2567 = vunpack.c.l.b16 %v1382
        %v2568 = vunpack.c.h.b16 %v1382
        %v2569 = vunpack.c.l.b16 %v1383
        %v2570 = vunpack.c.h.b16 %v1383
        %v2571 = vunpack.c.l.b16 %v1384
        %v2572 = vunpack.c.h.b16 %v1384
        %v2573 = vunpack.c.l.b16 %v1385
        %v2574 = vunpack.c.h.b16 %v1385
        %v2575 = vunpack.c.l.b16 %v1386
        %v2576 = vunpack.c.h.b16 %v1386
        %v2577 = vunpack.c.l.b16 %v1387
        %v2578 = vunpack.c.h.b16 %v1387
        %v2579 = vunpack.c.l.b16 %v1388
        %v2580 = vunpack.c.h.b16 %v1388
        %v2581 = vunpack.c.l.b16 %v1389
        %v2582 = vunpack.c.h.b16 %v1389
        %v2583 = vunpack.c.l.b16 %v1390
        %v2584 = vunpack.c.h.b16 %v1390
        %v2585 = vunpack.c.l.b16 %v1391
        %v2586 = vunpack.c.h.b16 %v1391
        %v2587 = vunpack.c.l.b16 %v1392
        %v2588 = vunpack.c.h.b16 %v1392
        %v2589 = vunpack.c.l.b16 %v1393
        %v2590 = vunpack.c.h.b16 %v1393
        %v2591 = vunpack.c.l.b16 %v1394
        %v2592 = vunpack.c.h.b16 %v1394
        %v2593 = vunpack.c.l.b16 %v1395
        %v2594 = vunpack.c.h.b16 %v1395
        %v2595 = vunpack.c.l.b16 %v1396
        %v2596 = vunpack.c.h.b16 %v1396
        %v2597 = vunpack.c.l.b16 %v1397
        %v2598 = vunpack.c.h.b16 %v1397
        %v2599 = vunpack.c.l.b16 %v1398
        %v2600 = vunpack.c.h.b16 %v1398
        %v2601 = vunpack.c.l.b16 %v1399
        %v2602 = vunpack.c.h.b16 %v1399
        %v2603 = vunpack.c.l.b16 %v1400
        %v2604 = vunpack.c.h.b16 %v1400
        %v2605 = vunpack.c.l.b16 %v1401
        %v2606 = vunpack.c.h.b16 %v1401
        %v2607 = vunpack.c.l.b16 %v1402
        %v2608 = vunpack.c.h.b16 %v1402
        %v2609 = vunpack.c.l.b16 %v1403
        %v2610 = vunpack.c.h.b16 %v1403
        %v2611 = vunpack.c.l.b16 %v1404
        %v2612 = vunpack.c.h.b16 %v1404
        %v2613 = vunpack.c.l.b16 %v1405
        %v2614 = vunpack.c.h.b16 %v1405
        %v2615 = vunpack.c.l.b16 %v1406
        %v2616 = vunpack.c.h.b16 %v1406
        %v2617 = vunpack.c.l.b16 %v1407
        %v2618 = vunpack.c.h.b16 %v1407
        %v2619 = vunpack.c.l.b16 %v1408
        %v2620 = vunpack.c.h.b16 %v1408
        %v2621 = vunpack.c.l.b16 %v1409
        %v2622 = vunpack.c.h.b16 %v1409
        %v2623 = vunpack.c.l.b16 %v1410
        %v2624 = vunpack.c.h.b16 %v1410
        %v2625 = vunpack.c.l.b16 %v1411
        %v2626 = vunpack.c.h.b16 %v1411
        %v2627 = vunpack.c.l.b16 %v1412
        %v2628 = vunpack.c.h.b16 %v1412
        %v2629 = vunpack.c.l.b16 %v1413
        %v2630 = vunpack.c.h.b16 %v1413
        %v2631 = vunpack.c.l.b16 %v1414
        %v2632 = vunpack.c.h.b16 %v1414
        %v2633 = vunpack.c.l.b16 %v1415
        %v2634 = vunpack.c.h.b16 %v1415
        %v2635 = vunpack.c.l.b16 %v1416
        %v2636 = vunpack.c.h.b16 %v1416
        %v2637 = vunpack.c.l.b16 %v1417
        %v2638 = vunpack.c.h.b16 %v1417
        %v2639 = vunpack.c.l.b16 %v1418
        %v2640 = vunpack.c.h.b16 %v1418
        %v2641 = vunpack.c.l.b16 %v1419
        %v2642 = vunpack.c.h.b16 %v1419
        %v2643 = vunpack.c.l.b16 %v1420
        %v2644 = vunpack.c.h.b16 %v1420
        %v2645 = vunpack.c.l.b16 %v1421
        %v2646 = vunpack.c.h.b16 %v1421
        %v2647 = vunpack.c.l.b16 %v1422
        %v2648 = vunpack.c.h.b16 %v1422
        %v2649 = vunpack.c.l.b16 %v1423
        %v2650 = vunpack.c.h.b16 %v1423
        %v2651 = vunpack.c.l.b16 %v1424
        %v2652 = vunpack.c.h.b16 %v1424
        %v2653 = vunpack.c.l.b16 %v1425
        %v2654 = vunpack.c.h.b16 %v1425
        %v2655 = vunpack.c.l.b16 %v1426
        %v2656 = vunpack.c.h.b16 %v1426
        %v2657 = vunpack.c.l.b16 %v1427
        %v2658 = vunpack.c.h.b16 %v1427
        %v2659 = vunpack.c.l.b16 %v1428
        %v2660 = vunpack.c.h.b16 %v1428
        %v2661 = vunpack.c.l.b16 %v1429
        %v2662 = vunpack.c.h.b16 %v1429
        %v2663 = vunpack.c.l.b16 %v1430
        %v2664 = vunpack.c.h.b16 %v1430
        %v2665 = vunpack.c.l.b16 %v1431
        %v2666 = vunpack.c.h.b16 %v1431
        %v2667 = vunpack.c.l.b16 %v1432
        %v2668 = vunpack.c.h.b16 %v1432
        %v2669 = vunpack.c.l.b16 %v1433
        %v2670 = vunpack.c.h.b16 %v1433
        %v2671 = vunpack.c.l.b16 %v1434
        %v2672 = vunpack.c.h.b16 %v1434
        %v2673 = vunpack.c.l.b16 %v1435
        %v2674 = vunpack.c.h.b16 %v1435
        %v2675 = vunpack.c.l.b16 %v1436
        %v2676 = vunpack.c.h.b16 %v1436
        %v2677 = vunpack.c.l.b16 %v1437
        %v2678 = vunpack.c.h.b16 %v1437
        %v2679 = vunpack.c.l.b16 %v1438
        %v2680 = vunpack.c.h.b16 %v1438
        %v2681 = vunpack.c.l.b16 %v1439
        %v2682 = vunpack.c.h.b16 %v1439
        %v2683 = vunpack.c.l.b16 %v1440
        %v2684 = vunpack.c.h.b16 %v1440
        %v2685 = vunpack.c.l.b16 %v1441
        %v2686 = vunpack.c.h.b16 %v1441
        %v2687 = vunpack.c.l.b16 %v1442
        %v2688 = vunpack.c.h.b16 %v1442
        %v2689 = vunpack.c.l.b16 %v1443
        %v2690 = vunpack.c.h.b16 %v1443
        %v2691 = vunpack.c.l.b16 %v1444
        %v2692 = vunpack.c.h.b16 %v1444
        %v2693 = vunpack.c.l.b16 %v1445
        %v2694 = vunpack.c.h.b16 %v1445
        %v2695 = vunpack.c.l.b16 %v1446
        %v2696 = vunpack.c.h.b16 %v1446
        %v2697 = vunpack.c.l.b16 %v1447
        %v2698 = vunpack.c.h.b16 %v1447
        %v2699 = vunpack.c.l.b16 %v1448
        %v2700 = vunpack.c.h.b16 %v1448
        %v2701 = vunpack.c.l.b16 %v1449
        %v2702 = vunpack.c.h.b16 %v1449
        %v2703 = vunpack.c.l.b16 %v1450
        %v2704 = vunpack.c.h.b16 %v1450
        %v2705 = vunpack.c.l.b16 %v1451
        %v2706 = vunpack.c.h.b16 %v1451
        %v2707 = vunpack.c.l.b16 %v1452
        %v2708 = vunpack.c.h.b16 %v1452
        %v2709 = vunpack.c.l.b16 %v1453
        %v2710 = vunpack.c.h.b16 %v1453
        %v2711 = vunpack.c.l.b16 %v1454
        %v2712 = vunpack.c.h.b16 %v1454
        %v2713 = vunpack.c.l.b16 %v1455
        %v2714 = vunpack.c.h.b16 %v1455
        %v2715 = vunpack.c.l.b16 %v1456
        %v2716 = vunpack.c.h.b16 %v1456
        %v2717 = vunpack.c.l.b16 %v1457
        %v2718 = vunpack.c.h.b16 %v1457
        %v2719 = vunpack.c.l.b16 %v1458
        %v2720 = vunpack.c.h.b16 %v1458
        %v2721 = vunpack.c.l.b16 %v1459
        %v2722 = vunpack.c.h.b16 %v1459
        %v2723 = vunpack.c.l.b16 %v1460
        %v2724 = vunpack.c.h.b16 %v1460
        %v2725 = vunpack.c.l.b16 %v1461
        %v2726 = vunpack.c.h.b16 %v1461
        %v2727 = vunpack.c.l.b16 %v1462
        %v2728 = vunpack.c.h.b16 %v1462
        %v2729 = vunpack.c.l.b16 %v1463
        %v2730 = vunpack.c.h.b16 %v1463
        %v2731 = vunpack.c.l.b16 %v1464
        %v2732 = vunpack.c.h.b16 %v1464
        %v2733 = vunpack.c.l.b16 %v1465
        %v2734 = vunpack.c.h.b16 %v1465
        %v2735 = vunpack.c.l.b16 %v1466
        %v2736 = vunpack.c.h.b16 %v1466
        %v2737 = vunpack.c.l.b16 %v1467
        %v2738 = vunpack.c.h.b16 %v1467
        %v2739 = vunpack.c.l.b16 %v1468
        %v2740 = vunpack.c.h.b16 %v1468
        %v2741 = vunpack.c.l.b16 %v1469
        %v2742 = vunpack.c.h.b16 %v1469
        %v2743 = vunpack.c.l.b16 %v1470
        %v2744 = vunpack.c.h.b16 %v1470
        %v2745 = vunpack.c.l.b16 %v1471
        %v2746 = vunpack.c.h.b16 %v1471
        %v2747 = vunpack.c.l.b16 %v1472
        %v2748 = vunpack.c.h.b16 %v1472
        %v2749 = vunpack.c.l.b16 %v1473
        %v2750 = vunpack.c.h.b16 %v1473
        %v2751 = vunpack.c.l.b16 %v1474
        %v2752 = vunpack.c.h.b16 %v1474
        %v2753 = vunpack.c.l.b16 %v1475
        %v2754 = vunpack.c.h.b16 %v1475
        %v2755 = vunpack.c.l.b16 %v1476
        %v2756 = vunpack.c.h.b16 %v1476
        %v2757 = vunpack.c.l.b16 %v1477
        %v2758 = vunpack.c.h.b16 %v1477
        %v2759 = vunpack.c.l.b16 %v1478
        %v2760 = vunpack.c.h.b16 %v1478
        %v2761 = vunpack.c.l.b16 %v1479
        %v2762 = vunpack.c.h.b16 %v1479
        %v2763 = vunpack.c.l.b16 %v1480
        %v2764 = vunpack.c.h.b16 %v1480
        %v2765 = vunpack.c.l.b16 %v1481
        %v2766 = vunpack.c.h.b16 %v1481
        %v2767 = vunpack.c.l.b16 %v1482
        %v2768 = vunpack.c.h.b16 %v1482
        %v2769 = vunpack.c.l.b16 %v1483
        %v2770 = vunpack.c.h.b16 %v1483
        %v2771 = vunpack.c.l.b16 %v1484
        %v2772 = vunpack.c.h.b16 %v1484
        %v2773 = vunpack.c.l.b16 %v1485
        %v2774 = vunpack.c.h.b16 %v1485
        %v2775 = vunpack.c.l.b16 %v1486
        %v2776 = vunpack.c.h.b16 %v1486
        %v2777 = vunpack.c.l.b16 %v1487
        %v2778 = vunpack.c.h.b16 %v1487
        %v2779 = vunpack.c.l.b16 %v1488
        %v2780 = vunpack.c.h.b16 %v1488
        %v2781 = vunpack.c.l.b16 %v1489
        %v2782 = vunpack.c.h.b16 %v1489
        %v2783 = vunpack.c.l.b16 %v1490
        %v2784 = vunpack.c.h.b16 %v1490
        %v2785 = vunpack.c.l.b16 %v1491
        %v2786 = vunpack.c.h.b16 %v1491
        %v2787 = vunpack.c.l.b16 %v1492
        %v2788 = vunpack.c.h.b16 %v1492
        %v2789 = vunpack.c.l.b16 %v1493
        %v2790 = vunpack.c.h.b16 %v1493
        %v2791 = vunpack.c.l.b16 %v1494
        %v2792 = vunpack.c.h.b16 %v1494
        %v2793 = vunpack.c.l.b16 %v1495
        %v2794 = vunpack.c.h.b16 %v1495
        %v2795 = vunpack.c.l.b16 %v1496
        %v2796 = vunpack.c.h.b16 %v1496
        %v2797 = vunpack.c.l.b16 %v1497
        %v2798 = vunpack.c.h.b16 %v1497
        %v2799 = vunpack.c.l.b16 %v1498
        %v2800 = vunpack.c.h.b16 %v1498
        %v2801 = vunpack.c.l.b16 %v1499
        %v2802 = vunpack.c.h.b16 %v1499
        %v2803 = vunpack.c.l.b16 %v1500
        %v2804 = vunpack.c.h.b16 %v1500
        %v2805 = vunpack.c.l.b16 %v1501
        %v2806 = vunpack.c.h.b16 %v1501
        %v2807 = vunpack.c.l.b16 %v1502
        %v2808 = vunpack.c.h.b16 %v1502
        %v2809 = vunpack.c.l.b16 %v1503
        %v2810 = vunpack.c.h.b16 %v1503
        %v2811 = vunpack.c.l.b16 %v1504
        %v2812 = vunpack.c.h.b16 %v1504
        %v2813 = vunpack.c.l.b16 %v1505
        %v2814 = vunpack.c.h.b16 %v1505
        %v2815 = vunpack.c.l.b16 %v1506
        %v2816 = vunpack.c.h.b16 %v1506
        %v2817 = vunpack.c.l.b16 %v1507
        %v2818 = vunpack.c.h.b16 %v1507
        %v2819 = vunpack.c.l.b16 %v1508
        %v2820 = vunpack.c.h.b16 %v1508
        %v2821 = vunpack.c.l.b16 %v1509
        %v2822 = vunpack.c.h.b16 %v1509
        %v2823 = vunpack.c.l.b16 %v1510
        %v2824 = vunpack.c.h.b16 %v1510
        %v2825 = vunpack.c.l.b16 %v1511
        %v2826 = vunpack.c.h.b16 %v1511
        %v2827 = vunpack.c.l.b16 %v1512
        %v2828 = vunpack.c.h.b16 %v1512
        %v2829 = vunpack.c.l.b16 %v1513
        %v2830 = vunpack.c.h.b16 %v1513
        %v2831 = vunpack.c.l.b16 %v1514
        %v2832 = vunpack.c.h.b16 %v1514
        %v2833 = vunpack.c.l.b16 %v1515
        %v2834 = vunpack.c.h.b16 %v1515
        %v2835 = vunpack.c.l.b16 %v1516
        %v2836 = vunpack.c.h.b16 %v1516
        %v2837 = vunpack.c.l.b16 %v1517
        %v2838 = vunpack.c.h.b16 %v1517
        %v2839 = vunpack.c.l.b16 %v1518
        %v2840 = vunpack.c.h.b16 %v1518
        %v2841 = vunpack.c.l.b16 %v1519
        %v2842 = vunpack.c.h.b16 %v1519
        %v2843 = vunpack.c.l.b16 %v1520
        %v2844 = vunpack.c.h.b16 %v1520
        %v2845 = vunpack.c.l.b16 %v1521
        %v2846 = vunpack.c.h.b16 %v1521
        %v2847 = vunpack.c.l.b16 %v1522
        %v2848 = vunpack.c.h.b16 %v1522
        %v2849 = vunpack.c.l.b16 %v1523
        %v2850 = vunpack.c.h.b16 %v1523
        %v2851 = vunpack.c.l.b16 %v1524
        %v2852 = vunpack.c.h.b16 %v1524
        %v2853 = vunpack.c.l.b16 %v1525
        %v2854 = vunpack.c.h.b16 %v1525
        %v2855 = vunpack.c.l.b16 %v1526
        %v2856 = vunpack.c.h.b16 %v1526
        %v2857 = vunpack.c.l.b16 %v1527
        %v2858 = vunpack.c.h.b16 %v1527
        %v2859 = vunpack.c.l.b16 %v1528
        %v2860 = vunpack.c.h.b16 %v1528
        %v2861 = vunpack.c.l.b16 %v1529
        %v2862 = vunpack.c.h.b16 %v1529
        %v2863 = vunpack.c.l.b16 %v1530
        %v2864 = vunpack.c.h.b16 %v1530
        %v2865 = vunpack.c.l.b16 %v1531
        %v2866 = vunpack.c.h.b16 %v1531
        %v2867 = vunpack.c.l.b16 %v1532
        %v2868 = vunpack.c.h.b16 %v1532
        %v2869 = vunpack.c.l.b16 %v1533
        %v2870 = vunpack.c.h.b16 %v1533
        %v2871 = vunpack.c.l.b16 %v1534
        %v2872 = vunpack.c.h.b16 %v1534
        %v2873 = vunpack.c.l.b16 %v1535
        %v2874 = vunpack.c.h.b16 %v1535
        %v2875 = vunpack.c.l.b16 %v1536
        %v2876 = vunpack.c.h.b16 %v1536
        %v2877 = vunpack.c.l.b16 %v1537
        %v2878 = vunpack.c.h.b16 %v1537
        %v2879 = vunpack.c.l.b16 %v1538
        %v2880 = vunpack.c.h.b16 %v1538
        %v2881 = vunpack.c.l.b16 %v1539
        %v2882 = vunpack.c.h.b16 %v1539
        %v2883 = vunpack.c.l.b16 %v1540
        %v2884 = vunpack.c.h.b16 %v1540
        %v2885 = vunpack.c.l.b16 %v1541
        %v2886 = vunpack.c.h.b16 %v1541
        %v2887 = vunpack.c.l.b16 %v1542
        %v2888 = vunpack.c.h.b16 %v1542
        %v2889 = vunpack.c.l.b16 %v1543
        %v2890 = vunpack.c.h.b16 %v1543
        %v2891 = vunpack.c.l.b16 %v1544
        %v2892 = vunpack.c.h.b16 %v1544
        %v2893 = vunpack.c.l.b16 %v1545
        %v2894 = vunpack.c.h.b16 %v1545
        %v2895 = vunpack.c.l.b16 %v1546
        %v2896 = vunpack.c.h.b16 %v1546
        %v2897 = vunpack.c.l.b16 %v1547
        %v2898 = vunpack.c.h.b16 %v1547
        %v2899 = vunpack.c.l.b16 %v1548
        %v2900 = vunpack.c.h.b16 %v1548
        %v2901 = vunpack.c.l.b16 %v1549
        %v2902 = vunpack.c.h.b16 %v1549
        %v2903 = vunpack.c.l.b16 %v1550
        %v2904 = vunpack.c.h.b16 %v1550
        %v2905 = vunpack.c.l.b16 %v1551
        %v2906 = vunpack.c.h.b16 %v1551
        %v2907 = vunpack.c.l.b16 %v1552
        %v2908 = vunpack.c.h.b16 %v1552
        %v2909 = vunpack.c.l.b16 %v1553
        %v2910 = vunpack.c.h.b16 %v1553
        %v2911 = vunpack.c.l.b16 %v1554
        %v2912 = vunpack.c.h.b16 %v1554
        %v2913 = vunpack.c.l.b16 %v1555
        %v2914 = vunpack.c.h.b16 %v1555
        %v2915 = vunpack.c.l.b16 %v1556
        %v2916 = vunpack.c.h.b16 %v1556
        %v2917 = vunpack.c.l.b16 %v1557
        %v2918 = vunpack.c.h.b16 %v1557
        %v2919 = vunpack.c.l.b16 %v1558
        %v2920 = vunpack.c.h.b16 %v1558
        %v2921 = vunpack.c.l.b16 %v1559
        %v2922 = vunpack.c.h.b16 %v1559
        %v2923 = vunpack.c.l.b16 %v1560
        %v2924 = vunpack.c.h.b16 %v1560
        %v2925 = vunpack.c.l.b16 %v1561
        %v2926 = vunpack.c.h.b16 %v1561
        %v2927 = vunpack.c.l.b16 %v1562
        %v2928 = vunpack.c.h.b16 %v1562
        %v2929 = vunpack.c.l.b16 %v1563
        %v2930 = vunpack.c.h.b16 %v1563
        %v2931 = vunpack.c.l.b16 %v1564
        %v2932 = vunpack.c.h.b16 %v1564
        %v2933 = vunpack.c.l.b16 %v1565
        %v2934 = vunpack.c.h.b16 %v1565
        %v2935 = vunpack.c.l.b16 %v1566
        %v2936 = vunpack.c.h.b16 %v1566
        %v2937 = vunpack.c.l.b16 %v1567
        %v2938 = vunpack.c.h.b16 %v1567
        %v2939 = vunpack.c.l.b16 %v1568
        %v2940 = vunpack.c.h.b16 %v1568
        %v2941 = vunpack.c.l.b16 %v1569
        %v2942 = vunpack.c.h.b16 %v1569
        %v2943 = vunpack.c.l.b16 %v1570
        %v2944 = vunpack.c.h.b16 %v1570
        %v2945 = vunpack.c.l.b16 %v1571
        %v2946 = vunpack.c.h.b16 %v1571
        %v2947 = vunpack.c.l.b16 %v1572
        %v2948 = vunpack.c.h.b16 %v1572
        %v2949 = vunpack.c.l.b16 %v1573
        %v2950 = vunpack.c.h.b16 %v1573
        %v2951 = vunpack.c.l.b16 %v1574
        %v2952 = vunpack.c.h.b16 %v1574
        %v2953 = vunpack.c.l.b16 %v1575
        %v2954 = vunpack.c.h.b16 %v1575
        %v2955 = vunpack.c.l.b16 %v1576
        %v2956 = vunpack.c.h.b16 %v1576
        %v2957 = vunpack.c.l.b16 %v1577
        %v2958 = vunpack.c.h.b16 %v1577
        %v2959 = vunpack.c.l.b16 %v1578
        %v2960 = vunpack.c.h.b16 %v1578
        %v2961 = vunpack.c.l.b16 %v1579
        %v2962 = vunpack.c.h.b16 %v1579
        %v2963 = vunpack.c.l.b16 %v1580
        %v2964 = vunpack.c.h.b16 %v1580
        %v2965 = vunpack.c.l.b16 %v1581
        %v2966 = vunpack.c.h.b16 %v1581
        %v2967 = vunpack.c.l.b16 %v1582
        %v2968 = vunpack.c.h.b16 %v1582
        %v2969 = vunpack.c.l.b16 %v1583
        %v2970 = vunpack.c.h.b16 %v1583
        %v2971 = vunpack.c.l.b16 %v1584
        %v2972 = vunpack.c.h.b16 %v1584
        %v2973 = vunpack.c.l.b16 %v1585
        %v2974 = vunpack.c.h.b16 %v1585
        %v2975 = vunpack.c.l.b16 %v1586
        %v2976 = vunpack.c.h.b16 %v1586
        %v2977 = vunpack.c.l.b16 %v1587
        %v2978 = vunpack.c.h.b16 %v1587
        %v2979 = vunpack.c.l.b16 %v1588
        %v2980 = vunpack.c.h.b16 %v1588
        %v2981 = vunpack.c.l.b16 %v1589
        %v2982 = vunpack.c.h.b16 %v1589
        %v2983 = vunpack.c.l.b16 %v1590
        %v2984 = vunpack.c.h.b16 %v1590
        %v2985 = vunpack.c.l.b16 %v1591
        %v2986 = vunpack.c.h.b16 %v1591
        %v2987 = vunpack.c.l.b16 %v1592
        %v2988 = vunpack.c.h.b16 %v1592
        %v2989 = vunpack.c.l.b16 %v1593
        %v2990 = vunpack.c.h.b16 %v1593
        %v2991 = vunpack.c.l.b16 %v1594
        %v2992 = vunpack.c.h.b16 %v1594
        %v2993 = vunpack.c.l.b16 %v1595
        %v2994 = vunpack.c.h.b16 %v1595
        %v2995 = vunpack.c.l.b16 %v1596
        %v2996 = vunpack.c.h.b16 %v1596
        %v2997 = vunpack.c.l.b16 %v1597
        %v2998 = vunpack.c.h.b16 %v1597
        %v2999 = vunpack.c.l.b16 %v1598
        %v3000 = vunpack.c.h.b16 %v1598
        %v3001 = vunpack.c.l.b16 %v1599
        %v3002 = vunpack.c.h.b16 %v1599
        %v3003 = vunpack.c.l.b16 %v1600
        %v3004 = vunpack.c.h.b16 %v1600
        %v3005 = vunpack.c.l.b16 %v1601
        %v3006 = vunpack.c.h.b16 %v1601
        %v3007 = vunpack.c.l.b16 %v1602
        %v3008 = vunpack.c.h.b16 %v1602
        %v3009 = vunpack.c.l.b16 %v1603
        %v3010 = vunpack.c.h.b16 %v1603
        %v3011 = vunpack.c.l.b16 %v1604
        %v3012 = vunpack.c.h.b16 %v1604
        %v3013 = vunpack.c.l.b16 %v1605
        %v3014 = vunpack.c.h.b16 %v1605
        %v3015 = vunpack.c.l.b16 %v1606
        %v3016 = vunpack.c.h.b16 %v1606
        %v3017 = vunpack.c.l.b16 %v1607
        %v3018 = vunpack.c.h.b16 %v1607
        %v3019 = vunpack.c.l.b16 %v1608
        %v3020 = vunpack.c.h.b16 %v1608
        %v3021 = vunpack.c.l.b16 %v1609
        %v3022 = vunpack.c.h.b16 %v1609
        %v3023 = vunpack.c.l.b16 %v1610
        %v3024 = vunpack.c.h.b16 %v1610
        %v3025 = vunpack.c.l.b16 %v1611
        %v3026 = vunpack.c.h.b16 %v1611
        %v3027 = vunpack.c.l.b16 %v1612
        %v3028 = vunpack.c.h.b16 %v1612
        %v3029 = vunpack.c.l.b16 %v1613
        %v3030 = vunpack.c.h.b16 %v1613
        %v3031 = vunpack.c.l.b16 %v1614
        %v3032 = vunpack.c.h.b16 %v1614
        %v3033 = vunpack.c.l.b16 %v1615
        %v3034 = vunpack.c.h.b16 %v1615
        %v3035 = vunpack.c.l.b16 %v1616
        %v3036 = vunpack.c.h.b16 %v1616
        %v3037 = vunpack.c.l.b16 %v1617
        %v3038 = vunpack.c.h.b16 %v1617
        %v3039 = vunpack.c.l.b16 %v1618
        %v3040 = vunpack.c.h.b16 %v1618
        %v3041 = vunpack.c.l.b16 %v1619
        %v3042 = vunpack.c.h.b16 %v1619
        %v3043 = vunpack.c.l.b16 %v1620
        %v3044 = vunpack.c.h.b16 %v1620
        %v3045 = vunpack.c.l.b16 %v1621
        %v3046 = vunpack.c.h.b16 %v1621
        %v3047 = vunpack.c.l.b16 %v1622
        %v3048 = vunpack.c.h.b16 %v1622
        %v3049 = vunpack.c.l.b16 %v1623
        %v3050 = vunpack.c.h.b16 %v1623
        %v3051 = vunpack.c.l.b16 %v1624
        %v3052 = vunpack.c.h.b16 %v1624
        %v3053 = vunpack.c.l.b16 %v1625
        %v3054 = vunpack.c.h.b16 %v1625
        %v3055 = vunpack.c.l.b16 %v1626
        %v3056 = vunpack.c.h.b16 %v1626
        %v3057 = vunpack.c.l.b16 %v1627
        %v3058 = vunpack.c.h.b16 %v1627
        %v3059 = vunpack.c.l.b16 %v1628
        %v3060 = vunpack.c.h.b16 %v1628
        %v3061 = vunpack.c.l.b16 %v1629
        %v3062 = vunpack.c.h.b16 %v1629
        %v3063 = vunpack.c.l.b16 %v1630
        %v3064 = vunpack.c.h.b16 %v1630
        %v3065 = vunpack.c.l.b16 %v1631
        %v3066 = vunpack.c.h.b16 %v1631
        %v3067 = vunpack.c.l.b16 %v1632
        %v3068 = vunpack.c.h.b16 %v1632
        %v3069 = vunpack.c.l.b16 %v1633
        %v3070 = vunpack.c.h.b16 %v1633
        %v3071 = vunpack.c.l.b16 %v1634
        %v3072 = vunpack.c.h.b16 %v1634
        %v3073 = vunpack.c.l.b16 %v1635
        %v3074 = vunpack.c.h.b16 %v1635
        %v3075 = vunpack.c.l.b16 %v1636
        %v3076 = vunpack.c.h.b16 %v1636
        %v3077 = vunpack.c.l.b16 %v1637
        %v3078 = vunpack.c.h.b16 %v1637
        %v3079 = vunpack.c.l.b16 %v1638
        %v3080 = vunpack.c.h.b16 %v1638
        %v3081 = vunpack.c.l.b16 %v1639
        %v3082 = vunpack.c.h.b16 %v1639
        %v3083 = vunpack.c.l.b16 %v1640
        %v3084 = vunpack.c.h.b16 %v1640
        %v3085 = vunpack.c.l.b16 %v1641
        %v3086 = vunpack.c.h.b16 %v1641
        %v3087 = vunpack.c.l.b16 %v1642
        %v3088 = vunpack.c.h.b16 %v1642
        %v3089 = vunpack.c.l.b16 %v1643
        %v3090 = vunpack.c.h.b16 %v1643
        %v3091 = vunpack.c.l.b16 %v1644
        %v3092 = vunpack.c.h.b16 %v1644
        %v3093 = vunpack.c.l.b16 %v1645
        %v3094 = vunpack.c.h.b16 %v1645
        %v3095 = vunpack.c.l.b16 %v1646
        %v3096 = vunpack.c.h.b16 %v1646
        %v3097 = vunpack.c.l.b16 %v1647
        %v3098 = vunpack.c.h.b16 %v1647
        %v3099 = vunpack.c.l.b16 %v1648
        %v3100 = vunpack.c.h.b16 %v1648
        %v3101 = vunpack.c.l.b16 %v1649
        %v3102 = vunpack.c.h.b16 %v1649
        %v3103 = vunpack.c.l.b16 %v1650
        %v3104 = vunpack.c.h.b16 %v1650
        %v3105 = vunpack.c.l.b16 %v1651
        %v3106 = vunpack.c.h.b16 %v1651
        %v3107 = vunpack.c.l.b16 %v1652
        %v3108 = vunpack.c.h.b16 %v1652
        %v3109 = vunpack.c.l.b16 %v1653
        %v3110 = vunpack.c.h.b16 %v1653
        %v3111 = vunpack.c.l.b16 %v1654
        %v3112 = vunpack.c.h.b16 %v1654
        %v3113 = vunpack.c.l.b16 %v1655
        %v3114 = vunpack.c.h.b16 %v1655
        %v3115 = vunpack.c.l.b16 %v1656
        %v3116 = vunpack.c.h.b16 %v1656
        %v3117 = vunpack.c.l.b16 %v1657
        %v3118 = vunpack.c.h.b16 %v1657
        %v3119 = vunpack.c.l.b16 %v1658
        %v3120 = vunpack.c.h.b16 %v1658
        %v3121 = vunpack.c.l.b16 %v1659
        %v3122 = vunpack.c.h.b16 %v1659
        %v3123 = vunpack.c.l.b16 %v1660
        %v3124 = vunpack.c.h.b16 %v1660
        %v3125 = vunpack.c.l.b16 %v1661
        %v3126 = vunpack.c.h.b16 %v1661
        %v3127 = vunpack.c.l.b16 %v1662
        %v3128 = vunpack.c.h.b16 %v1662
        %v3129 = vunpack.c.l.b16 %v1663
        %v3130 = vunpack.c.h.b16 %v1663
        %v3131 = vunpack.c.l.b16 %v1664
        %v3132 = vunpack.c.h.b16 %v1664
        %v3133 = vunpack.c.l.b16 %v1665
        %v3134 = vunpack.c.h.b16 %v1665
        %v3135 = vunpack.c.l.b16 %v1666
        %v3136 = vunpack.c.h.b16 %v1666
        %v3137 = vunpack.c.l.b16 %v1667
        %v3138 = vunpack.c.h.b16 %v1667
        %v3139 = vunpack.c.l.b16 %v1668
        %v3140 = vunpack.c.h.b16 %v1668
        %v3141 = vunpack.c.l.b16 %v1669
        %v3142 = vunpack.c.h.b16 %v1669
        %v3143 = vunpack.c.l.b16 %v1670
        %v3144 = vunpack.c.h.b16 %v1670
        %v3145 = vunpack.c.l.b16 %v1671
        %v3146 = vunpack.c.h.b16 %v1671
        %v3147 = vunpack.c.l.b16 %v1672
        %v3148 = vunpack.c.h.b16 %v1672
        %v3149 = vunpack.c.l.b16 %v1673
        %v3150 = vunpack.c.h.b16 %v1673
        %v3151 = vunpack.c.l.b16 %v1674
        %v3152 = vunpack.c.h.b16 %v1674
        %v3153 = vunpack.c.l.b16 %v1675
        %v3154 = vunpack.c.h.b16 %v1675
        %v3155 = vunpack.c.l.b16 %v1676
        %v3156 = vunpack.c.h.b16 %v1676
        %v3157 = vunpack.c.l.b16 %v1677
        %v3158 = vunpack.c.h.b16 %v1677
        %v3159 = vunpack.c.l.b16 %v1678
        %v3160 = vunpack.c.h.b16 %v1678
        %v3161 = vunpack.c.l.b16 %v1679
        %v3162 = vunpack.c.h.b16 %v1679
        %v3163 = vunpack.c.l.b16 %v1680
        %v3164 = vunpack.c.h.b16 %v1680
        %v3165 = vunpack.c.l.b16 %v1681
        %v3166 = vunpack.c.h.b16 %v1681
        %v3167 = vunpack.c.l.b16 %v1682
        %v3168 = vunpack.c.h.b16 %v1682
        %v3169 = vunpack.c.l.b16 %v1683
        %v3170 = vunpack.c.h.b16 %v1683
        %v3171 = vunpack.c.l.b16 %v1684
        %v3172 = vunpack.c.h.b16 %v1684
        %v3173 = vunpack.c.l.b16 %v1685
        %v3174 = vunpack.c.h.b16 %v1685
        %v3175 = vunpack.c.l.b16 %v1686
        %v3176 = vunpack.c.h.b16 %v1686
        %v3177 = vunpack.c.l.b16 %v1687
        %v3178 = vunpack.c.h.b16 %v1687
        %v3179 = vunpack.c.l.b16 %v1688
        %v3180 = vunpack.c.h.b16 %v1688
        %v3181 = vunpack.c.l.b16 %v1689
        %v3182 = vunpack.c.h.b16 %v1689
        %v3183 = vunpack.c.l.b16 %v1690
        %v3184 = vunpack.c.h.b16 %v1690
        %v3185 = vunpack.c.l.b16 %v1691
        %v3186 = vunpack.c.h.b16 %v1691
        %v3187 = vunpack.c.l.b16 %v1692
        %v3188 = vunpack.c.h.b16 %v1692
        %v3189 = vunpack.c.l.b16 %v1693
        %v3190 = vunpack.c.h.b16 %v1693
        %v3191 = vunpack.c.l.b16 %v1694
        %v3192 = vunpack.c.h.b16 %v1694
        %v3193 = vunpack.c.l.b16 %v1695
        %v3194 = vunpack.c.h.b16 %v1695
        %v3195 = vunpack.c.l.b16 %v1696
        %v3196 = vunpack.c.h.b16 %v1696
        %v3197 = vunpack.c.l.b16 %v1697
        %v3198 = vunpack.c.h.b16 %v1697
        %v3199 = vunpack.c.l.b16 %v1698
        %v3200 = vunpack.c.h.b16 %v1698
        %v3201 = vunpack.c.l.b16 %v1699
        %v3202 = vunpack.c.h.b16 %v1699
        %v3203 = vunpack.c.l.b16 %v1700
        %v3204 = vunpack.c.h.b16 %v1700
        %v3205 = vunpack.c.l.b16 %v1701
        %v3206 = vunpack.c.h.b16 %v1701
        %v3207 = vunpack.c.l.b16 %v1702
        %v3208 = vunpack.c.h.b16 %v1702
        %v3209 = vunpack.c.l.b16 %v1703
        %v3210 = vunpack.c.h.b16 %v1703
        %v3211 = vunpack.c.l.b16 %v1704
        %v3212 = vunpack.c.h.b16 %v1704
        %v3213 = vunpack.c.l.b16 %v1705
        %v3214 = vunpack.c.h.b16 %v1705
        %v3215 = vunpack.c.l.b16 %v1706
        %v3216 = vunpack.c.h.b16 %v1706
        %v3217 = vunpack.c.l.b16 %v1707
        %v3218 = vunpack.c.h.b16 %v1707
        %v3219 = vunpack.c.l.b16 %v1708
        %v3220 = vunpack.c.h.b16 %v1708
        %v3221 = vunpack.c.l.b16 %v1709
        %v3222 = vunpack.c.h.b16 %v1709
        %v3223 = vunpack.c.l.b16 %v1710
        %v3224 = vunpack.c.h.b16 %v1710
        %v3225 = vunpack.c.l.b16 %v1711
        %v3226 = vunpack.c.h.b16 %v1711
        %v3227 = vunpack.c.l.b16 %v1712
        %v3228 = vunpack.c.h.b16 %v1712
        %v3229 = vunpack.c.l.b16 %v1713
        %v3230 = vunpack.c.h.b16 %v1713
        %v3231 = vunpack.c.l.b16 %v1714
        %v3232 = vunpack.c.h.b16 %v1714
        %v3233 = vunpack.c.l.b16 %v1715
        %v3234 = vunpack.c.h.b16 %v1715
        %v3235 = vunpack.c.l.b16 %v1716
        %v3236 = vunpack.c.h.b16 %v1716
        %v3237 = vunpack.c.l.b16 %v1717
        %v3238 = vunpack.c.h.b16 %v1717
        %v3239 = vunpack.c.l.b16 %v1718
        %v3240 = vunpack.c.h.b16 %v1718
        %v3241 = vunpack.c.l.b16 %v1719
        %v3242 = vunpack.c.h.b16 %v1719
        %v3243 = vunpack.c.l.b16 %v1720
        %v3244 = vunpack.c.h.b16 %v1720
        %v3245 = vunpack.c.l.b16 %v1721
        %v3246 = vunpack.c.h.b16 %v1721
        %v3247 = vunpack.c.l.b16 %v1722
        %v3248 = vunpack.c.h.b16 %v1722
        %v3249 = vunpack.c.l.b16 %v1723
        %v3250 = vunpack.c.h.b16 %v1723
        %v3251 = vunpack.c.l.b16 %v1724
        %v3252 = vunpack.c.h.b16 %v1724
        %v3253 = vunpack.c.l.b16 %v1725
        %v3254 = vunpack.c.h.b16 %v1725
        %v3255 = vunpack.c.l.b16 %v1726
        %v3256 = vunpack.c.h.b16 %v1726
        %v3257 = vunpack.c.l.b16 %v1727
        %v3258 = vunpack.c.h.b16 %v1727
        %v3259 = vunpack.c.l.b16 %v1728
        %v3260 = vunpack.c.h.b16 %v1728
        %v3261 = vunpack.c.l.b16 %v1729
        %v3262 = vunpack.c.h.b16 %v1729
        %v3263 = vunpack.c.l.b16 %v1730
        %v3264 = vunpack.c.h.b16 %v1730
        %v3265 = vunpack.c.l.b16 %v1731
        %v3266 = vunpack.c.h.b16 %v1731
        %v3267 = vunpack.c.l.b16 %v1732
        %v3268 = vunpack.c.h.b16 %v1732
        %v3269 = vunpack.c.l.b16 %v1733
        %v3270 = vunpack.c.h.b16 %v1733
        %v3271 = vunpack.c.l.b16 %v1734
        %v3272 = vunpack.c.h.b16 %v1734
        %v3273 = vunpack.c.l.b16 %v1735
        %v3274 = vunpack.c.h.b16 %v1735
        %v3275 = vunpack.c.l.b16 %v1736
        %v3276 = vunpack.c.h.b16 %v1736
        %v3277 = vunpack.c.l.b16 %v1737
        %v3278 = vunpack.c.h.b16 %v1737
        %v3279 = vunpack.c.l.b16 %v1738
        %v3280 = vunpack.c.h.b16 %v1738
        %v3281 = vunpack.c.l.b16 %v1739
        %v3282 = vunpack.c.h.b16 %v1739
        %v3283 = vunpack.c.l.b16 %v1740
        %v3284 = vunpack.c.h.b16 %v1740
        %v3285 = vunpack.c.l.b16 %v1741
        %v3286 = vunpack.c.h.b16 %v1741
        %v3287 = vunpack.c.l.b16 %v1742
        %v3288 = vunpack.c.h.b16 %v1742
        %v3289 = vunpack.c.l.b16 %v1743
        %v3290 = vunpack.c.h.b16 %v1743
        %v3291 = vunpack.c.l.b16 %v1744
        %v3292 = vunpack.c.h.b16 %v1744
        %v3293 = vunpack.c.l.b16 %v1745
        %v3294 = vunpack.c.h.b16 %v1745
        %v3295 = vunpack.c.l.b16 %v1746
        %v3296 = vunpack.c.h.b16 %v1746
        %v3297 = vunpack.c.l.b16 %v1747
        %v3298 = vunpack.c.h.b16 %v1747
        %v3299 = vunpack.c.l.b16 %v1748
        %v3300 = vunpack.c.h.b16 %v1748
        %v3301 = vunpack.c.l.b16 %v1749
        %v3302 = vunpack.c.h.b16 %v1749
        %v3303 = vunpack.c.l.b16 %v1750
        %v3304 = vunpack.c.h.b16 %v1750
        %v3305 = vpack.c.b16 %v2289, %v2281
        %v3306 = vpack.c.b16 %v2290, %v2282
        %v3307 = vpack.c.b16 %v2291, %v2283
        %v3308 = vpack.c.b16 %v2292, %v2284
        %v3309 = vpack.c.b16 %v2293, %v2285
        %v3310 = vpack.c.b16 %v2294, %v2286
        %v3311 = vpack.c.b16 %v2295, %v2287
        %v3312 = vpack.c.b16 %v2296, %v2288
        %v3313 = vpack.c.b16 %v2305, %v2297
        %v3314 = vpack.c.b16 %v2306, %v2298
        %v3315 = vpack.c.b16 %v2307, %v2299
        %v3316 = vpack.c.b16 %v2308, %v2300
        %v3317 = vpack.c.b16 %v2309, %v2301
        %v3318 = vpack.c.b16 %v2310, %v2302
        %v3319 = vpack.c.b16 %v2311, %v2303
        %v3320 = vpack.c.b16 %v2312, %v2304
        %v3321 = vpack.c.b16 %v2321, %v2313
        %v3322 = vpack.c.b16 %v2322, %v2314
        %v3323 = vpack.c.b16 %v2323, %v2315
        %v3324 = vpack.c.b16 %v2324, %v2316
        %v3325 = vpack.c.b16 %v2325, %v2317
        %v3326 = vpack.c.b16 %v2326, %v2318
        %v3327 = vpack.c.b16 %v2327, %v2319
        %v3328 = vpack.c.b16 %v2328, %v2320
        %v3329 = vpack.c.b16 %v2337, %v2329
        %v3330 = vpack.c.b16 %v2338, %v2330
        %v3331 = vpack.c.b16 %v2339, %v2331
        %v3332 = vpack.c.b16 %v2340, %v2332
        %v3333 = vpack.c.b16 %v2341, %v2333
        %v3334 = vpack.c.b16 %v2342, %v2334
        %v3335 = vpack.c.b16 %v2343, %v2335
        %v3336 = vpack.c.b16 %v2344, %v2336
        %v3337 = vpack.c.b16 %v2353, %v2345
        %v3338 = vpack.c.b16 %v2354, %v2346
        %v3339 = vpack.c.b16 %v2355, %v2347
        %v3340 = vpack.c.b16 %v2356, %v2348
        %v3341 = vpack.c.b16 %v2357, %v2349
        %v3342 = vpack.c.b16 %v2358, %v2350
        %v3343 = vpack.c.b16 %v2359, %v2351
        %v3344 = vpack.c.b16 %v2360, %v2352
        %v3345 = vpack.c.b16 %v2369, %v2361
        %v3346 = vpack.c.b16 %v2370, %v2362
        %v3347 = vpack.c.b16 %v2371, %v2363
        %v3348 = vpack.c.b16 %v2372, %v2364
        %v3349 = vpack.c.b16 %v2373, %v2365
        %v3350 = vpack.c.b16 %v2374, %v2366
        %v3351 = vpack.c.b16 %v2375, %v2367
        %v3352 = vpack.c.b16 %v2376, %v2368
        %v3353 = vpack.c.b16 %v2385, %v2377
        %v3354 = vpack.c.b16 %v2386, %v2378
        %v3355 = vpack.c.b16 %v2387, %v2379
        %v3356 = vpack.c.b16 %v2388, %v2380
        %v3357 = vpack.c.b16 %v2389, %v2381
        %v3358 = vpack.c.b16 %v2390, %v2382
        %v3359 = vpack.c.b16 %v2391, %v2383
        %v3360 = vpack.c.b16 %v2392, %v2384
        %v3361 = vpack.c.b16 %v2401, %v2393
        %v3362 = vpack.c.b16 %v2402, %v2394
        %v3363 = vpack.c.b16 %v2403, %v2395
        %v3364 = vpack.c.b16 %v2404, %v2396
        %v3365 = vpack.c.b16 %v2405, %v2397
        %v3366 = vpack.c.b16 %v2406, %v2398
        %v3367 = vpack.c.b16 %v2407, %v2399
        %v3368 = vpack.c.b16 %v2408, %v2400
        %v3369 = vpack.c.b16 %v2417, %v2409
        %v3370 = vpack.c.b16 %v2418, %v2410
        %v3371 = vpack.c.b16 %v2419, %v2411
        %v3372 = vpack.c.b16 %v2420, %v2412
        %v3373 = vpack.c.b16 %v2421, %v2413
        %v3374 = vpack.c.b16 %v2422, %v2414
        %v3375 = vpack.c.b16 %v2423, %v2415
        %v3376 = vpack.c.b16 %v2424, %v2416
        %v3377 = vpack.c.b16 %v2433, %v2425
        %v3378 = vpack.c.b16 %v2434, %v2426
        %v3379 = vpack.c.b16 %v2435, %v2427
        %v3380 = vpack.c.b16 %v2436, %v2428
        %v3381 = vpack.c.b16 %v2437, %v2429
        %v3382 = vpack.c.b16 %v2438, %v2430
        %v3383 = vpack.c.b16 %v2439, %v2431
        %v3384 = vpack.c.b16 %v2440, %v2432
        %v3385 = vpack.c.b16 %v2449, %v2441
        %v3386 = vpack.c.b16 %v2450, %v2442
        %v3387 = vpack.c.b16 %v2451, %v2443
        %v3388 = vpack.c.b16 %v2452, %v2444
        %v3389 = vpack.c.b16 %v2453, %v2445
        %v3390 = vpack.c.b16 %v2454, %v2446
        %v3391 = vpack.c.b16 %v2455, %v2447
        %v3392 = vpack.c.b16 %v2456, %v2448
        %v3393 = vpack.c.b16 %v2465, %v2457
        %v3394 = vpack.c.b16 %v2466, %v2458
        %v3395 = vpack.c.b16 %v2467, %v2459
        %v3396 = vpack.c.b16 %v2468, %v2460
        %v3397 = vpack.c.b16 %v2469, %v2461
        %v3398 = vpack.c.b16 %v2470, %v2462
        %v3399 = vpack.c.b16 %v2471, %v2463
        %v3400 = vpack.c.b16 %v2472, %v2464
        %v3401 = vpack.c.b16 %v2481, %v2473
        %v3402 = vpack.c.b16 %v2482, %v2474
        %v3403 = vpack.c.b16 %v2483, %v2475
        %v3404 = vpack.c.b16 %v2484, %v2476
        %v3405 = vpack.c.b16 %v2485, %v2477
        %v3406 = vpack.c.b16 %v2486, %v2478
        %v3407 = vpack.c.b16 %v2487, %v2479
        %v3408 = vpack.c.b16 %v2488, %v2480
        %v3409 = vpack.c.b16 %v2497, %v2489
        %v3410 = vpack.c.b16 %v2498, %v2490
        %v3411 = vpack.c.b16 %v2499, %v2491
        %v3412 = vpack.c.b16 %v2500, %v2492
        %v3413 = vpack.c.b16 %v2501, %v2493
        %v3414 = vpack.c.b16 %v2502, %v2494
        %v3415 = vpack.c.b16 %v2503, %v2495
        %v3416 = vpack.c.b16 %v2504, %v2496
        %v3417 = vpack.c.b16 %v2513, %v2505
        %v3418 = vpack.c.b16 %v2514, %v2506
        %v3419 = vpack.c.b16 %v2515, %v2507
        %v3420 = vpack.c.b16 %v2516, %v2508
        %v3421 = vpack.c.b16 %v2517, %v2509
        %v3422 = vpack.c.b16 %v2518, %v2510
        %v3423 = vpack.c.b16 %v2519, %v2511
        %v3424 = vpack.c.b16 %v2520, %v2512
        %v3425 = vpack.c.b16 %v2529, %v2521
        %v3426 = vpack.c.b16 %v2530, %v2522
        %v3427 = vpack.c.b16 %v2531, %v2523
        %v3428 = vpack.c.b16 %v2532, %v2524
        %v3429 = vpack.c.b16 %v2533, %v2525
        %v3430 = vpack.c.b16 %v2534, %v2526
        %v3431 = vpack.c.b16 %v2535, %v2527
        %v3432 = vpack.c.b16 %v2536, %v2528
        %v3433 = vpack.c.b16 %v2545, %v2537
        %v3434 = vpack.c.b16 %v2546, %v2538
        %v3435 = vpack.c.b16 %v2547, %v2539
        %v3436 = vpack.c.b16 %v2548, %v2540
        %v3437 = vpack.c.b16 %v2549, %v2541
        %v3438 = vpack.c.b16 %v2550, %v2542
        %v3439 = vpack.c.b16 %v2551, %v2543
        %v3440 = vpack.c.b16 %v2552, %v2544
        %v3441 = vpack.c.b16 %v2561, %v2553
        %v3442 = vpack.c.b16 %v2562, %v2554
        %v3443 = vpack.c.b16 %v2563, %v2555
        %v3444 = vpack.c.b16 %v2564, %v2556
        %v3445 = vpack.c.b16 %v2565, %v2557
        %v3446 = vpack.c.b16 %v2566, %v2558
        %v3447 = vpack.c.b16 %v2567, %v2559
        %v3448 = vpack.c.b16 %v2568, %v2560
        %v3449 = vpack.c.b16 %v2577, %v2569
        %v3450 = vpack.c.b16 %v2578, %v2570
        %v3451 = vpack.c.b16 %v2579, %v2571
        %v3452 = vpack.c.b16 %v2580, %v2572
        %v3453 = vpack.c.b16 %v2581, %v2573
        %v3454 = vpack.c.b16 %v2582, %v2574
        %v3455 = vpack.c.b16 %v2583, %v2575
        %v3456 = vpack.c.b16 %v2584, %v2576
        %v3457 = vpack.c.b16 %v2593, %v2585
        %v3458 = vpack.c.b16 %v2594, %v2586
        %v3459 = vpack.c.b16 %v2595, %v2587
        %v3460 = vpack.c.b16 %v2596, %v2588
        %v3461 = vpack.c.b16 %v2597, %v2589
        %v3462 = vpack.c.b16 %v2598, %v2590
        %v3463 = vpack.c.b16 %v2599, %v2591
        %v3464 = vpack.c.b16 %v2600, %v2592
        %v3465 = vpack.c.b16 %v2609, %v2601
        %v3466 = vpack.c.b16 %v2610, %v2602
        %v3467 = vpack.c.b16 %v2611, %v2603
        %v3468 = vpack.c.b16 %v2612, %v2604
        %v3469 = vpack.c.b16 %v2613, %v2605
        %v3470 = vpack.c.b16 %v2614, %v2606
        %v3471 = vpack.c.b16 %v2615, %v2607
        %v3472 = vpack.c.b16 %v2616, %v2608
        %v3473 = vpack.c.b16 %v2625, %v2617
        %v3474 = vpack.c.b16 %v2626, %v2618
        %v3475 = vpack.c.b16 %v2627, %v2619
        %v3476 = vpack.c.b16 %v2628, %v2620
        %v3477 = vpack.c.b16 %v2629, %v2621
        %v3478 = vpack.c.b16 %v2630, %v2622
        %v3479 = vpack.c.b16 %v2631, %v2623
        %v3480 = vpack.c.b16 %v2632, %v2624
        %v3481 = vpack.c.b16 %v2641, %v2633
        %v3482 = vpack.c.b16 %v2642, %v2634
        %v3483 = vpack.c.b16 %v2643, %v2635
        %v3484 = vpack.c.b16 %v2644, %v2636
        %v3485 = vpack.c.b16 %v2645, %v2637
        %v3486 = vpack.c.b16 %v2646, %v2638
        %v3487 = vpack.c.b16 %v2647, %v2639
        %v3488 = vpack.c.b16 %v2648, %v2640
        %v3489 = vpack.c.b16 %v2657, %v2649
        %v3490 = vpack.c.b16 %v2658, %v2650
        %v3491 = vpack.c.b16 %v2659, %v2651
        %v3492 = vpack.c.b16 %v2660, %v2652
        %v3493 = vpack.c.b16 %v2661, %v2653
        %v3494 = vpack.c.b16 %v2662, %v2654
        %v3495 = vpack.c.b16 %v2663, %v2655
        %v3496 = vpack.c.b16 %v2664, %v2656
        %v3497 = vpack.c.b16 %v2673, %v2665
        %v3498 = vpack.c.b16 %v2674, %v2666
        %v3499 = vpack.c.b16 %v2675, %v2667
        %v3500 = vpack.c.b16 %v2676, %v2668
        %v3501 = vpack.c.b16 %v2677, %v2669
        %v3502 = vpack.c.b16 %v2678, %v2670
        %v3503 = vpack.c.b16 %v2679, %v2671
        %v3504 = vpack.c.b16 %v2680, %v2672
        %v3505 = vpack.c.b16 %v2689, %v2681
        %v3506 = vpack.c.b16 %v2690, %v2682
        %v3507 = vpack.c.b16 %v2691, %v2683
        %v3508 = vpack.c.b16 %v2692, %v2684
        %v3509 = vpack.c.b16 %v2693, %v2685
        %v3510 = vpack.c.b16 %v2694, %v2686
        %v3511 = vpack.c.b16 %v2695, %v2687
        %v3512 = vpack.c.b16 %v2696, %v2688
        %v3513 = vpack.c.b16 %v2705, %v2697
        %v3514 = vpack.c.b16 %v2706, %v2698
        %v3515 = vpack.c.b16 %v2707, %v2699
        %v3516 = vpack.c.b16 %v2708, %v2700
        %v3517 = vpack.c.b16 %v2709, %v2701
        %v3518 = vpack.c.b16 %v2710, %v2702
        %v3519 = vpack.c.b16 %v2711, %v2703
        %v3520 = vpack.c.b16 %v2712, %v2704
        %v3521 = vpack.c.b16 %v2721, %v2713
        %v3522 = vpack.c.b16 %v2722, %v2714
        %v3523 = vpack.c.b16 %v2723, %v2715
        %v3524 = vpack.c.b16 %v2724, %v2716
        %v3525 = vpack.c.b16 %v2725, %v2717
        %v3526 = vpack.c.b16 %v2726, %v2718
        %v3527 = vpack.c.b16 %v2727, %v2719
        %v3528 = vpack.c.b16 %v2728, %v2720
        %v3529 = vpack.c.b16 %v2737, %v2729
        %v3530 = vpack.c.b16 %v2738, %v2730
        %v3531 = vpack.c.b16 %v2739, %v2731
        %v3532 = vpack.c.b16 %v2740, %v2732
        %v3533 = vpack.c.b16 %v2741, %v2733
        %v3534 = vpack.c.b16 %v2742, %v2734
        %v3535 = vpack.c.b16 %v2743, %v2735
        %v3536 = vpack.c.b16 %v2744, %v2736
        %v3537 = vpack.c.b16 %v2753, %v2745
        %v3538 = vpack.c.b16 %v2754, %v2746
        %v3539 = vpack.c.b16 %v2755, %v2747
        %v3540 = vpack.c.b16 %v2756, %v2748
        %v3541 = vpack.c.b16 %v2757, %v2749
        %v3542 = vpack.c.b16 %v2758, %v2750
        %v3543 = vpack.c.b16 %v2759, %v2751
        %v3544 = vpack.c.b16 %v2760, %v2752
        %v3545 = vpack.c.b16 %v2769, %v2761
        %v3546 = vpack.c.b16 %v2770, %v2762
        %v3547 = vpack.c.b16 %v2771, %v2763
        %v3548 = vpack.c.b16 %v2772, %v2764
        %v3549 = vpack.c.b16 %v2773, %v2765
        %v3550 = vpack.c.b16 %v2774, %v2766
        %v3551 = vpack.c.b16 %v2775, %v2767
        %v3552 = vpack.c.b16 %v2776, %v2768
        %v3553 = vpack.c.b16 %v2785, %v2777
        %v3554 = vpack.c.b16 %v2786, %v2778
        %v3555 = vpack.c.b16 %v2787, %v2779
        %v3556 = vpack.c.b16 %v2788, %v2780
        %v3557 = vpack.c.b16 %v2789, %v2781
        %v3558 = vpack.c.b16 %v2790, %v2782
        %v3559 = vpack.c.b16 %v2791, %v2783
        %v3560 = vpack.c.b16 %v2792, %v2784
        %v3561 = vpack.c.b16 %v2801, %v2793
        %v3562 = vpack.c.b16 %v2802, %v2794
        %v3563 = vpack.c.b16 %v2803, %v2795
        %v3564 = vpack.c.b16 %v2804, %v2796
        %v3565 = vpack.c.b16 %v2805, %v2797
        %v3566 = vpack.c.b16 %v2806, %v2798
        %v3567 = vpack.c.b16 %v2807, %v2799
        %v3568 = vpack.c.b16 %v2808, %v2800
        %v3569 = vpack.c.b16 %v2817, %v2809
        %v3570 = vpack.c.b16 %v2818, %v2810
        %v3571 = vpack.c.b16 %v2819, %v2811
        %v3572 = vpack.c.b16 %v2820, %v2812
        %v3573 = vpack.c.b16 %v2821, %v2813
        %v3574 = vpack.c.b16 %v2822, %v2814
        %v3575 = vpack.c.b16 %v2823, %v2815
        %v3576 = vpack.c.b16 %v2824, %v2816
        %v3577 = vpack.c.b16 %v2833, %v2825
        %v3578 = vpack.c.b16 %v2834, %v2826
        %v3579 = vpack.c.b16 %v2835, %v2827
        %v3580 = vpack.c.b16 %v2836, %v2828
        %v3581 = vpack.c.b16 %v2837, %v2829
        %v3582 = vpack.c.b16 %v2838, %v2830
        %v3583 = vpack.c.b16 %v2839, %v2831
        %v3584 = vpack.c.b16 %v2840, %v2832
        %v3585 = vpack.c.b16 %v2849, %v2841
        %v3586 = vpack.c.b16 %v2850, %v2842
        %v3587 = vpack.c.b16 %v2851, %v2843
        %v3588 = vpack.c.b16 %v2852, %v2844
        %v3589 = vpack.c.b16 %v2853, %v2845
        %v3590 = vpack.c.b16 %v2854, %v2846
        %v3591 = vpack.c.b16 %v2855, %v2847
        %v3592 = vpack.c.b16 %v2856, %v2848
        %v3593 = vpack.c.b16 %v2865, %v2857
        %v3594 = vpack.c.b16 %v2866, %v2858
        %v3595 = vpack.c.b16 %v2867, %v2859
        %v3596 = vpack.c.b16 %v2868, %v2860
        %v3597 = vpack.c.b16 %v2869, %v2861
        %v3598 = vpack.c.b16 %v2870, %v2862
        %v3599 = vpack.c.b16 %v2871, %v2863
        %v3600 = vpack.c.b16 %v2872, %v2864
        %v3601 = vpack.c.b16 %v2881, %v2873
        %v3602 = vpack.c.b16 %v2882, %v2874
        %v3603 = vpack.c.b16 %v2883, %v2875
        %v3604 = vpack.c.b16 %v2884, %v2876
        %v3605 = vpack.c.b16 %v2885, %v2877
        %v3606 = vpack.c.b16 %v2886, %v2878
        %v3607 = vpack.c.b16 %v2887, %v2879
        %v3608 = vpack.c.b16 %v2888, %v2880
        %v3609 = vpack.c.b16 %v2897, %v2889
        %v3610 = vpack.c.b16 %v2898, %v2890
        %v3611 = vpack.c.b16 %v2899, %v2891
        %v3612 = vpack.c.b16 %v2900, %v2892
        %v3613 = vpack.c.b16 %v2901, %v2893
        %v3614 = vpack.c.b16 %v2902, %v2894
        %v3615 = vpack.c.b16 %v2903, %v2895
        %v3616 = vpack.c.b16 %v2904, %v2896
        %v3617 = vpack.c.b16 %v2913, %v2905
        %v3618 = vpack.c.b16 %v2914, %v2906
        %v3619 = vpack.c.b16 %v2915, %v2907
        %v3620 = vpack.c.b16 %v2916, %v2908
        %v3621 = vpack.c.b16 %v2917, %v2909
        %v3622 = vpack.c.b16 %v2918, %v2910
        %v3623 = vpack.c.b16 %v2919, %v2911
        %v3624 = vpack.c.b16 %v2920, %v2912
        %v3625 = vpack.c.b16 %v2929, %v2921
        %v3626 = vpack.c.b16 %v2930, %v2922
        %v3627 = vpack.c.b16 %v2931, %v2923
        %v3628 = vpack.c.b16 %v2932, %v2924
        %v3629 = vpack.c.b16 %v2933, %v2925
        %v3630 = vpack.c.b16 %v2934, %v2926
        %v3631 = vpack.c.b16 %v2935, %v2927
        %v3632 = vpack.c.b16 %v2936, %v2928
        %v3633 = vpack.c.b16 %v2945, %v2937
        %v3634 = vpack.c.b16 %v2946, %v2938
        %v3635 = vpack.c.b16 %v2947, %v2939
        %v3636 = vpack.c.b16 %v2948, %v2940
        %v3637 = vpack.c.b16 %v2949, %v2941
        %v3638 = vpack.c.b16 %v2950, %v2942
        %v3639 = vpack.c.b16 %v2951, %v2943
        %v3640 = vpack.c.b16 %v2952, %v2944
        %v3641 = vpack.c.b16 %v2961, %v2953
        %v3642 = vpack.c.b16 %v2962, %v2954
        %v3643 = vpack.c.b16 %v2963, %v2955
        %v3644 = vpack.c.b16 %v2964, %v2956
        %v3645 = vpack.c.b16 %v2965, %v2957
        %v3646 = vpack.c.b16 %v2966, %v2958
        %v3647 = vpack.c.b16 %v2967, %v2959
        %v3648 = vpack.c.b16 %v2968, %v2960
        %v3649 = vpack.c.b16 %v2977, %v2969
        %v3650 = vpack.c.b16 %v2978, %v2970
        %v3651 = vpack.c.b16 %v2979, %v2971
        %v3652 = vpack.c.b16 %v2980, %v2972
        %v3653 = vpack.c.b16 %v2981, %v2973
        %v3654 = vpack.c.b16 %v2982, %v2974
        %v3655 = vpack.c.b16 %v2983, %v2975
        %v3656 = vpack.c.b16 %v2984, %v2976
        %v3657 = vpack.c.b16 %v2993, %v2985
        %v3658 = vpack.c.b16 %v2994, %v2986
        %v3659 = vpack.c.b16 %v2995, %v2987
        %v3660 = vpack.c.b16 %v2996, %v2988
        %v3661 = vpack.c.b16 %v2997, %v2989
        %v3662 = vpack.c.b16 %v2998, %v2990
        %v3663 = vpack.c.b16 %v2999, %v2991
        %v3664 = vpack.c.b16 %v3000, %v2992
        %v3665 = vpack.c.b16 %v3009, %v3001
        %v3666 = vpack.c.b16 %v3010, %v3002
        %v3667 = vpack.c.b16 %v3011, %v3003
        %v3668 = vpack.c.b16 %v3012, %v3004
        %v3669 = vpack.c.b16 %v3013, %v3005
        %v3670 = vpack.c.b16 %v3014, %v3006
        %v3671 = vpack.c.b16 %v3015, %v3007
        %v3672 = vpack.c.b16 %v3016, %v3008
        %v3673 = vpack.c.b16 %v3025, %v3017
        %v3674 = vpack.c.b16 %v3026, %v3018
        %v3675 = vpack.c.b16 %v3027, %v3019
        %v3676 = vpack.c.b16 %v3028, %v3020
        %v3677 = vpack.c.b16 %v3029, %v3021
        %v3678 = vpack.c.b16 %v3030, %v3022
        %v3679 = vpack.c.b16 %v3031, %v3023
        %v3680 = vpack.c.b16 %v3032, %v3024
        %v3681 = vpack.c.b16 %v3041, %v3033
        %v3682 = vpack.c.b16 %v3042, %v3034
        %v3683 = vpack.c.b16 %v3043, %v3035
        %v3684 = vpack.c.b16 %v3044, %v3036
        %v3685 = vpack.c.b16 %v3045, %v3037
        %v3686 = vpack.c.b16 %v3046, %v3038
        %v3687 = vpack.c.b16 %v3047, %v3039
        %v3688 = vpack.c.b16 %v3048, %v3040
        %v3689 = vpack.c.b16 %v3057, %v3049
        %v3690 = vpack.c.b16 %v3058, %v3050
        %v3691 = vpack.c.b16 %v3059, %v3051
        %v3692 = vpack.c.b16 %v3060, %v3052
        %v3693 = vpack.c.b16 %v3061, %v3053
        %v3694 = vpack.c.b16 %v3062, %v3054
        %v3695 = vpack.c.b16 %v3063, %v3055
        %v3696 = vpack.c.b16 %v3064, %v3056
        %v3697 = vpack.c.b16 %v3073, %v3065
        %v3698 = vpack.c.b16 %v3074, %v3066
        %v3699 = vpack.c.b16 %v3075, %v3067
        %v3700 = vpack.c.b16 %v3076, %v3068
        %v3701 = vpack.c.b16 %v3077, %v3069
        %v3702 = vpack.c.b16 %v3078, %v3070
        %v3703 = vpack.c.b16 %v3079, %v3071
        %v3704 = vpack.c.b16 %v3080, %v3072
        %v3705 = vpack.c.b16 %v3089, %v3081
        %v3706 = vpack.c.b16 %v3090, %v3082
        %v3707 = vpack.c.b16 %v3091, %v3083
        %v3708 = vpack.c.b16 %v3092, %v3084
        %v3709 = vpack.c.b16 %v3093, %v3085
        %v3710 = vpack.c.b16 %v3094, %v3086
        %v3711 = vpack.c.b16 %v3095, %v3087
        %v3712 = vpack.c.b16 %v3096, %v3088
        %v3713 = vpack.c.b16 %v3105, %v3097
        %v3714 = vpack.c.b16 %v3106, %v3098
        %v3715 = vpack.c.b16 %v3107, %v3099
        %v3716 = vpack.c.b16 %v3108, %v3100
        %v3717 = vpack.c.b16 %v3109, %v3101
        %v3718 = vpack.c.b16 %v3110, %v3102
        %v3719 = vpack.c.b16 %v3111, %v3103
        %v3720 = vpack.c.b16 %v3112, %v3104
        %v3721 = vpack.c.b16 %v3121, %v3113
        %v3722 = vpack.c.b16 %v3122, %v3114
        %v3723 = vpack.c.b16 %v3123, %v3115
        %v3724 = vpack.c.b16 %v3124, %v3116
        %v3725 = vpack.c.b16 %v3125, %v3117
        %v3726 = vpack.c.b16 %v3126, %v3118
        %v3727 = vpack.c.b16 %v3127, %v3119
        %v3728 = vpack.c.b16 %v3128, %v3120
        %v3729 = vpack.c.b16 %v3137, %v3129
        %v3730 = vpack.c.b16 %v3138, %v3130
        %v3731 = vpack.c.b16 %v3139, %v3131
        %v3732 = vpack.c.b16 %v3140, %v3132
        %v3733 = vpack.c.b16 %v3141, %v3133
        %v3734 = vpack.c.b16 %v3142, %v3134
        %v3735 = vpack.c.b16 %v3143, %v3135
        %v3736 = vpack.c.b16 %v3144, %v3136
        %v3737 = vpack.c.b16 %v3153, %v3145
        %v3738 = vpack.c.b16 %v3154, %v3146
        %v3739 = vpack.c.b16 %v3155, %v3147
        %v3740 = vpack.c.b16 %v3156, %v3148
        %v3741 = vpack.c.b16 %v3157, %v3149
        %v3742 = vpack.c.b16 %v3158, %v3150
        %v3743 = vpack.c.b16 %v3159, %v3151
        %v3744 = vpack.c.b16 %v3160, %v3152
        %v3745 = vpack.c.b16 %v3169, %v3161
        %v3746 = vpack.c.b16 %v3170, %v3162
        %v3747 = vpack.c.b16 %v3171, %v3163
        %v3748 = vpack.c.b16 %v3172, %v3164
        %v3749 = vpack.c.b16 %v3173, %v3165
        %v3750 = vpack.c.b16 %v3174, %v3166
        %v3751 = vpack.c.b16 %v3175, %v3167
        %v3752 = vpack.c.b16 %v3176, %v3168
        %v3753 = vpack.c.b16 %v3185, %v3177
        %v3754 = vpack.c.b16 %v3186, %v3178
        %v3755 = vpack.c.b16 %v3187, %v3179
        %v3756 = vpack.c.b16 %v3188, %v3180
        %v3757 = vpack.c.b16 %v3189, %v3181
        %v3758 = vpack.c.b16 %v3190, %v3182
        %v3759 = vpack.c.b16 %v3191, %v3183
        %v3760 = vpack.c.b16 %v3192, %v3184
        %v3761 = vpack.c.b16 %v3201, %v3193
        %v3762 = vpack.c.b16 %v3202, %v3194
        %v3763 = vpack.c.b16 %v3203, %v3195
        %v3764 = vpack.c.b16 %v3204, %v3196
        %v3765 = vpack.c.b16 %v3205, %v3197
        %v3766 = vpack.c.b16 %v3206, %v3198
        %v3767 = vpack.c.b16 %v3207, %v3199
        %v3768 = vpack.c.b16 %v3208, %v3200
        %v3769 = vpack.c.b16 %v3217, %v3209
        %v3770 = vpack.c.b16 %v3218, %v3210
        %v3771 = vpack.c.b16 %v3219, %v3211
        %v3772 = vpack.c.b16 %v3220, %v3212
        %v3773 = vpack.c.b16 %v3221, %v3213
        %v3774 = vpack.c.b16 %v3222, %v3214
        %v3775 = vpack.c.b16 %v3223, %v3215
        %v3776 = vpack.c.b16 %v3224, %v3216
        %v3777 = vpack.c.b16 %v3233, %v3225
        %v3778 = vpack.c.b16 %v3234, %v3226
        %v3779 = vpack.c.b16 %v3235, %v3227
        %v3780 = vpack.c.b16 %v3236, %v3228
        %v3781 = vpack.c.b16 %v3237, %v3229
        %v3782 = vpack.c.b16 %v3238, %v3230
        %v3783 = vpack.c.b16 %v3239, %v3231
        %v3784 = vpack.c.b16 %v3240, %v3232
        %v3785 = vpack.c.b16 %v3249, %v3241
        %v3786 = vpack.c.b16 %v3250, %v3242
        %v3787 = vpack.c.b16 %v3251, %v3243
        %v3788 = vpack.c.b16 %v3252, %v3244
        %v3789 = vpack.c.b16 %v3253, %v3245
        %v3790 = vpack.c.b16 %v3254, %v3246
        %v3791 = vpack.c.b16 %v3255, %v3247
        %v3792 = vpack.c.b16 %v3256, %v3248
        %v3793 = vpack.c.b16 %v3265, %v3257
        %v3794 = vpack.c.b16 %v3266, %v3258
        %v3795 = vpack.c.b16 %v3267, %v3259
        %v3796 = vpack.c.b16 %v3268, %v3260
        %v3797 = vpack.c.b16 %v3269, %v3261
        %v3798 = vpack.c.b16 %v3270, %v3262
        %v3799 = vpack.c.b16 %v3271, %v3263
        %v3800 = vpack.c.b16 %v3272, %v3264
        %v3801 = vpack.c.b16 %v3281, %v3273
        %v3802 = vpack.c.b16 %v3282, %v3274
        %v3803 = vpack.c.b16 %v3283, %v3275
        %v3804 = vpack.c.b16 %v3284, %v3276
        %v3805 = vpack.c.b16 %v3285, %v3277
        %v3806 = vpack.c.b16 %v3286, %v3278
        %v3807 = vpack.c.b16 %v3287, %v3279
        %v3808 = vpack.c.b16 %v3288, %v3280
        %v3809 = vpack.c.b16 %v3297, %v3289
        %v3810 = vpack.c.b16 %v3298, %v3290
        %v3811 = vpack.c.b16 %v3299, %v3291
        %v3812 = vpack.c.b16 %v3300, %v3292
        %v3813 = vpack.c.b16 %v3301, %v3293
        %v3814 = vpack.c.b16 %v3302, %v3294
        %v3815 = vpack.c.b16 %v3303, %v3295
        %v3816 = vpack.c.b16 %v3304, %v3296
        %4329 = vmatpush.bf16.msra.mxu0 %v3361
        %4330 = vmatpush.bf16.msra.mxu0 %v3353
        %4331 = vmatpush.bf16.msra.mxu0 %v3345
        %4332 = vmatpush.bf16.msra.mxu0 %v3337
        %4333 = vmatpush.bf16.msra.mxu0 %v3329
        %4334 = vmatpush.bf16.msra.mxu0 %v3321
        %4335 = vmatpush.bf16.msra.mxu0 %v3313
        %4336 = vmatpush.bf16.msra.mxu0 %v3305
        %4337 = vmatmul.bf16.gmra.mxu0 %v1175
        %v4338 = vpop.f32.mrf.mxu0
        %v4339 = vadd.f32 %v1753, %v4338
        %v4340 = vpop.f32.mrf.mxu0
        %v4341 = vadd.f32 %v1753, %v4340
        %4342 = vmatmul.bf16.gmra.mxu0 %v1183
        %v4343 = vpop.f32.mrf.mxu0
        %v4344 = vadd.f32 %v1753, %v4343
        %v4345 = vpop.f32.mrf.mxu0
        %v4346 = vadd.f32 %v1753, %v4345
        %4347 = vmatmul.bf16.gmra.mxu0 %v1191
        %v4348 = vpop.f32.mrf.mxu0
        %v4349 = vadd.f32 %v1753, %v4348
        %v4350 = vpop.f32.mrf.mxu0
        %v4351 = vadd.f32 %v1753, %v4350
        %4352 = vmatmul.bf16.gmra.mxu0 %v1199
        %v4353 = vpop.f32.mrf.mxu0
        %v4354 = vadd.f32 %v1753, %v4353
        %v4355 = vpop.f32.mrf.mxu0
        %v4356 = vadd.f32 %v1753, %v4355
        %4357 = vmatmul.bf16.gmra.mxu0 %v1207
        %v4358 = vpop.f32.mrf.mxu0
        %v4359 = vadd.f32 %v1753, %v4358
        %v4360 = vpop.f32.mrf.mxu0
        %v4361 = vadd.f32 %v1753, %v4360
        %4362 = vmatmul.bf16.gmra.mxu0 %v1215
        %v4363 = vpop.f32.mrf.mxu0
        %v4364 = vadd.f32 %v1753, %v4363
        %v4365 = vpop.f32.mrf.mxu0
        %v4366 = vadd.f32 %v1753, %v4365
        %4367 = vmatmul.bf16.gmra.mxu0 %v1223
        %v4368 = vpop.f32.mrf.mxu0
        %v4369 = vadd.f32 %v1753, %v4368
        %v4370 = vpop.f32.mrf.mxu0
        %v4371 = vadd.f32 %v1753, %v4370
        %4372 = vmatmul.bf16.gmra.mxu0 %v1231
        %v4373 = vpop.f32.mrf.mxu0
        %v4374 = vadd.f32 %v1753, %v4373
        %v4375 = vpop.f32.mrf.mxu0
        %v4376 = vadd.f32 %v1753, %v4375
        %4377 = vdwg.mxu0
        %4378 = vmatpush.bf16.msra.mxu0 %v3425
        %4379 = vmatpush.bf16.msra.mxu0 %v3417
        %4380 = vmatpush.bf16.msra.mxu0 %v3409
        %4381 = vmatpush.bf16.msra.mxu0 %v3401
        %4382 = vmatpush.bf16.msra.mxu0 %v3393
        %4383 = vmatpush.bf16.msra.mxu0 %v3385
        %4384 = vmatpush.bf16.msra.mxu0 %v3377
        %4385 = vmatpush.bf16.msra.mxu0 %v3369
        %4386 = vmatmul.bf16.gmra.mxu0 %v1176
        %v4387 = vpop.f32.mrf.mxu0
        %v4388 = vadd.f32 %v4339, %v4387
        %v4389 = vpop.f32.mrf.mxu0
        %v4390 = vadd.f32 %v4341, %v4389
        %4391 = vmatmul.bf16.gmra.mxu0 %v1184
        %v4392 = vpop.f32.mrf.mxu0
        %v4393 = vadd.f32 %v4344, %v4392
        %v4394 = vpop.f32.mrf.mxu0
        %v4395 = vadd.f32 %v4346, %v4394
        %4396 = vmatmul.bf16.gmra.mxu0 %v1192
        %v4397 = vpop.f32.mrf.mxu0
        %v4398 = vadd.f32 %v4349, %v4397
        %v4399 = vpop.f32.mrf.mxu0
        %v4400 = vadd.f32 %v4351, %v4399
        %4401 = vmatmul.bf16.gmra.mxu0 %v1200
        %v4402 = vpop.f32.mrf.mxu0
        %v4403 = vadd.f32 %v4354, %v4402
        %v4404 = vpop.f32.mrf.mxu0
        %v4405 = vadd.f32 %v4356, %v4404
        %4406 = vmatmul.bf16.gmra.mxu0 %v1208
        %v4407 = vpop.f32.mrf.mxu0
        %v4408 = vadd.f32 %v4359, %v4407
        %v4409 = vpop.f32.mrf.mxu0
        %v4410 = vadd.f32 %v4361, %v4409
        %4411 = vmatmul.bf16.gmra.mxu0 %v1216
        %v4412 = vpop.f32.mrf.mxu0
        %v4413 = vadd.f32 %v4364, %v4412
        %v4414 = vpop.f32.mrf.mxu0
        %v4415 = vadd.f32 %v4366, %v4414
        %4416 = vmatmul.bf16.gmra.mxu0 %v1224
        %v4417 = vpop.f32.mrf.mxu0
        %v4418 = vadd.f32 %v4369, %v4417
        %v4419 = vpop.f32.mrf.mxu0
        %v4420 = vadd.f32 %v4371, %v4419
        %4421 = vmatmul.bf16.gmra.mxu0 %v1232
        %v4422 = vpop.f32.mrf.mxu0
        %v4423 = vadd.f32 %v4374, %v4422
        %v4424 = vpop.f32.mrf.mxu0
        %v4425 = vadd.f32 %v4376, %v4424
        %4426 = vdwg.mxu0
        %4427 = vmatpush.bf16.msra.mxu0 %v3489
        %4428 = vmatpush.bf16.msra.mxu0 %v3481
        %4429 = vmatpush.bf16.msra.mxu0 %v3473
        %4430 = vmatpush.bf16.msra.mxu0 %v3465
        %4431 = vmatpush.bf16.msra.mxu0 %v3457
        %4432 = vmatpush.bf16.msra.mxu0 %v3449
        %4433 = vmatpush.bf16.msra.mxu0 %v3441
        %4434 = vmatpush.bf16.msra.mxu0 %v3433
        %4435 = vmatmul.bf16.gmra.mxu0 %v1177
        %v4436 = vpop.f32.mrf.mxu0
        %v4437 = vadd.f32 %v4388, %v4436
        %v4438 = vpop.f32.mrf.mxu0
        %v4439 = vadd.f32 %v4390, %v4438
        %4440 = vmatmul.bf16.gmra.mxu0 %v1185
        %v4441 = vpop.f32.mrf.mxu0
        %v4442 = vadd.f32 %v4393, %v4441
        %v4443 = vpop.f32.mrf.mxu0
        %v4444 = vadd.f32 %v4395, %v4443
        %4445 = vmatmul.bf16.gmra.mxu0 %v1193
        %v4446 = vpop.f32.mrf.mxu0
        %v4447 = vadd.f32 %v4398, %v4446
        %v4448 = vpop.f32.mrf.mxu0
        %v4449 = vadd.f32 %v4400, %v4448
        %4450 = vmatmul.bf16.gmra.mxu0 %v1201
        %v4451 = vpop.f32.mrf.mxu0
        %v4452 = vadd.f32 %v4403, %v4451
        %v4453 = vpop.f32.mrf.mxu0
        %v4454 = vadd.f32 %v4405, %v4453
        %4455 = vmatmul.bf16.gmra.mxu0 %v1209
        %v4456 = vpop.f32.mrf.mxu0
        %v4457 = vadd.f32 %v4408, %v4456
        %v4458 = vpop.f32.mrf.mxu0
        %v4459 = vadd.f32 %v4410, %v4458
        %4460 = vmatmul.bf16.gmra.mxu0 %v1217
        %v4461 = vpop.f32.mrf.mxu0
        %v4462 = vadd.f32 %v4413, %v4461
        %v4463 = vpop.f32.mrf.mxu0
        %v4464 = vadd.f32 %v4415, %v4463
        %4465 = vmatmul.bf16.gmra.mxu0 %v1225
        %v4466 = vpop.f32.mrf.mxu0
        %v4467 = vadd.f32 %v4418, %v4466
        %v4468 = vpop.f32.mrf.mxu0
        %v4469 = vadd.f32 %v4420, %v4468
        %4470 = vmatmul.bf16.gmra.mxu0 %v1233
        %v4471 = vpop.f32.mrf.mxu0
        %v4472 = vadd.f32 %v4423, %v4471
        %v4473 = vpop.f32.mrf.mxu0
        %v4474 = vadd.f32 %v4425, %v4473
        %4475 = vdwg.mxu0
        %4476 = vmatpush.bf16.msra.mxu0 %v3553
        %4477 = vmatpush.bf16.msra.mxu0 %v3545
        %4478 = vmatpush.bf16.msra.mxu0 %v3537
        %4479 = vmatpush.bf16.msra.mxu0 %v3529
        %4480 = vmatpush.bf16.msra.mxu0 %v3521
        %4481 = vmatpush.bf16.msra.mxu0 %v3513
        %4482 = vmatpush.bf16.msra.mxu0 %v3505
        %4483 = vmatpush.bf16.msra.mxu0 %v3497
        %4484 = vmatmul.bf16.gmra.mxu0 %v1178
        %v4485 = vpop.f32.mrf.mxu0
        %v4486 = vadd.f32 %v4437, %v4485
        %v4487 = vpop.f32.mrf.mxu0
        %v4488 = vadd.f32 %v4439, %v4487
        %4489 = vmatmul.bf16.gmra.mxu0 %v1186
        %v4490 = vpop.f32.mrf.mxu0
        %v4491 = vadd.f32 %v4442, %v4490
        %v4492 = vpop.f32.mrf.mxu0
        %v4493 = vadd.f32 %v4444, %v4492
        %4494 = vmatmul.bf16.gmra.mxu0 %v1194
        %v4495 = vpop.f32.mrf.mxu0
        %v4496 = vadd.f32 %v4447, %v4495
        %v4497 = vpop.f32.mrf.mxu0
        %v4498 = vadd.f32 %v4449, %v4497
        %4499 = vmatmul.bf16.gmra.mxu0 %v1202
        %v4500 = vpop.f32.mrf.mxu0
        %v4501 = vadd.f32 %v4452, %v4500
        %v4502 = vpop.f32.mrf.mxu0
        %v4503 = vadd.f32 %v4454, %v4502
        %4504 = vmatmul.bf16.gmra.mxu0 %v1210
        %v4505 = vpop.f32.mrf.mxu0
        %v4506 = vadd.f32 %v4457, %v4505
        %v4507 = vpop.f32.mrf.mxu0
        %v4508 = vadd.f32 %v4459, %v4507
        %4509 = vmatmul.bf16.gmra.mxu0 %v1218
        %v4510 = vpop.f32.mrf.mxu0
        %v4511 = vadd.f32 %v4462, %v4510
        %v4512 = vpop.f32.mrf.mxu0
        %v4513 = vadd.f32 %v4464, %v4512
        %4514 = vmatmul.bf16.gmra.mxu0 %v1226
        %v4515 = vpop.f32.mrf.mxu0
        %v4516 = vadd.f32 %v4467, %v4515
        %v4517 = vpop.f32.mrf.mxu0
        %v4518 = vadd.f32 %v4469, %v4517
        %4519 = vmatmul.bf16.gmra.mxu0 %v1234
        %v4520 = vpop.f32.mrf.mxu0
        %v4521 = vadd.f32 %v4472, %v4520
        %v4522 = vpop.f32.mrf.mxu0
        %v4523 = vadd.f32 %v4474, %v4522
        %4524 = vdwg.mxu0
        %4525 = vmatpush.bf16.msra.mxu0 %v3617
        %4526 = vmatpush.bf16.msra.mxu0 %v3609
        %4527 = vmatpush.bf16.msra.mxu0 %v3601
        %4528 = vmatpush.bf16.msra.mxu0 %v3593
        %4529 = vmatpush.bf16.msra.mxu0 %v3585
        %4530 = vmatpush.bf16.msra.mxu0 %v3577
        %4531 = vmatpush.bf16.msra.mxu0 %v3569
        %4532 = vmatpush.bf16.msra.mxu0 %v3561
        %4533 = vmatmul.bf16.gmra.mxu0 %v1179
        %v4534 = vpop.f32.mrf.mxu0
        %v4535 = vadd.f32 %v4486, %v4534
        %v4536 = vpop.f32.mrf.mxu0
        %v4537 = vadd.f32 %v4488, %v4536
        %4538 = vmatmul.bf16.gmra.mxu0 %v1187
        %v4539 = vpop.f32.mrf.mxu0
        %v4540 = vadd.f32 %v4491, %v4539
        %v4541 = vpop.f32.mrf.mxu0
        %v4542 = vadd.f32 %v4493, %v4541
        %4543 = vmatmul.bf16.gmra.mxu0 %v1195
        %v4544 = vpop.f32.mrf.mxu0
        %v4545 = vadd.f32 %v4496, %v4544
        %v4546 = vpop.f32.mrf.mxu0
        %v4547 = vadd.f32 %v4498, %v4546
        %4548 = vmatmul.bf16.gmra.mxu0 %v1203
        %v4549 = vpop.f32.mrf.mxu0
        %v4550 = vadd.f32 %v4501, %v4549
        %v4551 = vpop.f32.mrf.mxu0
        %v4552 = vadd.f32 %v4503, %v4551
        %4553 = vmatmul.bf16.gmra.mxu0 %v1211
        %v4554 = vpop.f32.mrf.mxu0
        %v4555 = vadd.f32 %v4506, %v4554
        %v4556 = vpop.f32.mrf.mxu0
        %v4557 = vadd.f32 %v4508, %v4556
        %4558 = vmatmul.bf16.gmra.mxu0 %v1219
        %v4559 = vpop.f32.mrf.mxu0
        %v4560 = vadd.f32 %v4511, %v4559
        %v4561 = vpop.f32.mrf.mxu0
        %v4562 = vadd.f32 %v4513, %v4561
        %4563 = vmatmul.bf16.gmra.mxu0 %v1227
        %v4564 = vpop.f32.mrf.mxu0
        %v4565 = vadd.f32 %v4516, %v4564
        %v4566 = vpop.f32.mrf.mxu0
        %v4567 = vadd.f32 %v4518, %v4566
        %4568 = vmatmul.bf16.gmra.mxu0 %v1235
        %v4569 = vpop.f32.mrf.mxu0
        %v4570 = vadd.f32 %v4521, %v4569
        %v4571 = vpop.f32.mrf.mxu0
        %v4572 = vadd.f32 %v4523, %v4571
        %4573 = vdwg.mxu0
        %4574 = vmatpush.bf16.msra.mxu0 %v3681
        %4575 = vmatpush.bf16.msra.mxu0 %v3673
        %4576 = vmatpush.bf16.msra.mxu0 %v3665
        %4577 = vmatpush.bf16.msra.mxu0 %v3657
        %4578 = vmatpush.bf16.msra.mxu0 %v3649
        %4579 = vmatpush.bf16.msra.mxu0 %v3641
        %4580 = vmatpush.bf16.msra.mxu0 %v3633
        %4581 = vmatpush.bf16.msra.mxu0 %v3625
        %4582 = vmatmul.bf16.gmra.mxu0 %v1180
        %v4583 = vpop.f32.mrf.mxu0
        %v4584 = vadd.f32 %v4535, %v4583
        %v4585 = vpop.f32.mrf.mxu0
        %v4586 = vadd.f32 %v4537, %v4585
        %4587 = vmatmul.bf16.gmra.mxu0 %v1188
        %v4588 = vpop.f32.mrf.mxu0
        %v4589 = vadd.f32 %v4540, %v4588
        %v4590 = vpop.f32.mrf.mxu0
        %v4591 = vadd.f32 %v4542, %v4590
        %4592 = vmatmul.bf16.gmra.mxu0 %v1196
        %v4593 = vpop.f32.mrf.mxu0
        %v4594 = vadd.f32 %v4545, %v4593
        %v4595 = vpop.f32.mrf.mxu0
        %v4596 = vadd.f32 %v4547, %v4595
        %4597 = vmatmul.bf16.gmra.mxu0 %v1204
        %v4598 = vpop.f32.mrf.mxu0
        %v4599 = vadd.f32 %v4550, %v4598
        %v4600 = vpop.f32.mrf.mxu0
        %v4601 = vadd.f32 %v4552, %v4600
        %4602 = vmatmul.bf16.gmra.mxu0 %v1212
        %v4603 = vpop.f32.mrf.mxu0
        %v4604 = vadd.f32 %v4555, %v4603
        %v4605 = vpop.f32.mrf.mxu0
        %v4606 = vadd.f32 %v4557, %v4605
        %4607 = vmatmul.bf16.gmra.mxu0 %v1220
        %v4608 = vpop.f32.mrf.mxu0
        %v4609 = vadd.f32 %v4560, %v4608
        %v4610 = vpop.f32.mrf.mxu0
        %v4611 = vadd.f32 %v4562, %v4610
        %4612 = vmatmul.bf16.gmra.mxu0 %v1228
        %v4613 = vpop.f32.mrf.mxu0
        %v4614 = vadd.f32 %v4565, %v4613
        %v4615 = vpop.f32.mrf.mxu0
        %v4616 = vadd.f32 %v4567, %v4615
        %4617 = vmatmul.bf16.gmra.mxu0 %v1236
        %v4618 = vpop.f32.mrf.mxu0
        %v4619 = vadd.f32 %v4570, %v4618
        %v4620 = vpop.f32.mrf.mxu0
        %v4621 = vadd.f32 %v4572, %v4620
        %4622 = vdwg.mxu0
        %4623 = vmatpush.bf16.msra.mxu0 %v3745
        %4624 = vmatpush.bf16.msra.mxu0 %v3737
        %4625 = vmatpush.bf16.msra.mxu0 %v3729
        %4626 = vmatpush.bf16.msra.mxu0 %v3721
        %4627 = vmatpush.bf16.msra.mxu0 %v3713
        %4628 = vmatpush.bf16.msra.mxu0 %v3705
        %4629 = vmatpush.bf16.msra.mxu0 %v3697
        %4630 = vmatpush.bf16.msra.mxu0 %v3689
        %4631 = vmatmul.bf16.gmra.mxu0 %v1181
        %v4632 = vpop.f32.mrf.mxu0
        %v4633 = vadd.f32 %v4584, %v4632
        %v4634 = vpop.f32.mrf.mxu0
        %v4635 = vadd.f32 %v4586, %v4634
        %4636 = vmatmul.bf16.gmra.mxu0 %v1189
        %v4637 = vpop.f32.mrf.mxu0
        %v4638 = vadd.f32 %v4589, %v4637
        %v4639 = vpop.f32.mrf.mxu0
        %v4640 = vadd.f32 %v4591, %v4639
        %4641 = vmatmul.bf16.gmra.mxu0 %v1197
        %v4642 = vpop.f32.mrf.mxu0
        %v4643 = vadd.f32 %v4594, %v4642
        %v4644 = vpop.f32.mrf.mxu0
        %v4645 = vadd.f32 %v4596, %v4644
        %4646 = vmatmul.bf16.gmra.mxu0 %v1205
        %v4647 = vpop.f32.mrf.mxu0
        %v4648 = vadd.f32 %v4599, %v4647
        %v4649 = vpop.f32.mrf.mxu0
        %v4650 = vadd.f32 %v4601, %v4649
        %4651 = vmatmul.bf16.gmra.mxu0 %v1213
        %v4652 = vpop.f32.mrf.mxu0
        %v4653 = vadd.f32 %v4604, %v4652
        %v4654 = vpop.f32.mrf.mxu0
        %v4655 = vadd.f32 %v4606, %v4654
        %4656 = vmatmul.bf16.gmra.mxu0 %v1221
        %v4657 = vpop.f32.mrf.mxu0
        %v4658 = vadd.f32 %v4609, %v4657
        %v4659 = vpop.f32.mrf.mxu0
        %v4660 = vadd.f32 %v4611, %v4659
        %4661 = vmatmul.bf16.gmra.mxu0 %v1229
        %v4662 = vpop.f32.mrf.mxu0
        %v4663 = vadd.f32 %v4614, %v4662
        %v4664 = vpop.f32.mrf.mxu0
        %v4665 = vadd.f32 %v4616, %v4664
        %4666 = vmatmul.bf16.gmra.mxu0 %v1237
        %v4667 = vpop.f32.mrf.mxu0
        %v4668 = vadd.f32 %v4619, %v4667
        %v4669 = vpop.f32.mrf.mxu0
        %v4670 = vadd.f32 %v4621, %v4669
        %4671 = vdwg.mxu0
        %4672 = vmatpush.bf16.msra.mxu0 %v3809
        %4673 = vmatpush.bf16.msra.mxu0 %v3801
        %4674 = vmatpush.bf16.msra.mxu0 %v3793
        %4675 = vmatpush.bf16.msra.mxu0 %v3785
        %4676 = vmatpush.bf16.msra.mxu0 %v3777
        %4677 = vmatpush.bf16.msra.mxu0 %v3769
        %4678 = vmatpush.bf16.msra.mxu0 %v3761
        %4679 = vmatpush.bf16.msra.mxu0 %v3753
        %4680 = vmatmul.bf16.gmra.mxu0 %v1182
        %v4681 = vpop.f32.mrf.mxu0
        %v4682 = vadd.f32 %v4633, %v4681
        %v4683 = vpop.f32.mrf.mxu0
        %v4684 = vadd.f32 %v4635, %v4683
        %4685 = vmatmul.bf16.gmra.mxu0 %v1190
        %v4686 = vpop.f32.mrf.mxu0
        %v4687 = vadd.f32 %v4638, %v4686
        %v4688 = vpop.f32.mrf.mxu0
        %v4689 = vadd.f32 %v4640, %v4688
        %4690 = vmatmul.bf16.gmra.mxu0 %v1198
        %v4691 = vpop.f32.mrf.mxu0
        %v4692 = vadd.f32 %v4643, %v4691
        %v4693 = vpop.f32.mrf.mxu0
        %v4694 = vadd.f32 %v4645, %v4693
        %4695 = vmatmul.bf16.gmra.mxu0 %v1206
        %v4696 = vpop.f32.mrf.mxu0
        %v4697 = vadd.f32 %v4648, %v4696
        %v4698 = vpop.f32.mrf.mxu0
        %v4699 = vadd.f32 %v4650, %v4698
        %4700 = vmatmul.bf16.gmra.mxu0 %v1214
        %v4701 = vpop.f32.mrf.mxu0
        %v4702 = vadd.f32 %v4653, %v4701
        %v4703 = vpop.f32.mrf.mxu0
        %v4704 = vadd.f32 %v4655, %v4703
        %4705 = vmatmul.bf16.gmra.mxu0 %v1222
        %v4706 = vpop.f32.mrf.mxu0
        %v4707 = vadd.f32 %v4658, %v4706
        %v4708 = vpop.f32.mrf.mxu0
        %v4709 = vadd.f32 %v4660, %v4708
        %4710 = vmatmul.bf16.gmra.mxu0 %v1230
        %v4711 = vpop.f32.mrf.mxu0
        %v4712 = vadd.f32 %v4663, %v4711
        %v4713 = vpop.f32.mrf.mxu0
        %v4714 = vadd.f32 %v4665, %v4713
        %4715 = vmatmul.bf16.gmra.mxu0 %v1238
        %v4716 = vpop.f32.mrf.mxu0
        %v4717 = vadd.f32 %v4668, %v4716
        %v4718 = vpop.f32.mrf.mxu0
        %v4719 = vadd.f32 %v4670, %v4718
        %4720 = vdwg.mxu0
        %4721 = vmatpush.bf16.msra.mxu0 %v3362
        %4722 = vmatpush.bf16.msra.mxu0 %v3354
        %4723 = vmatpush.bf16.msra.mxu0 %v3346
        %4724 = vmatpush.bf16.msra.mxu0 %v3338
        %4725 = vmatpush.bf16.msra.mxu0 %v3330
        %4726 = vmatpush.bf16.msra.mxu0 %v3322
        %4727 = vmatpush.bf16.msra.mxu0 %v3314
        %4728 = vmatpush.bf16.msra.mxu0 %v3306
        %4729 = vmatmul.bf16.gmra.mxu0 %v1175
        %v4730 = vpop.f32.mrf.mxu0
        %v4731 = vadd.f32 %v1754, %v4730
        %v4732 = vpop.f32.mrf.mxu0
        %v4733 = vadd.f32 %v1754, %v4732
        %4734 = vmatmul.bf16.gmra.mxu0 %v1183
        %v4735 = vpop.f32.mrf.mxu0
        %v4736 = vadd.f32 %v1754, %v4735
        %v4737 = vpop.f32.mrf.mxu0
        %v4738 = vadd.f32 %v1754, %v4737
        %4739 = vmatmul.bf16.gmra.mxu0 %v1191
        %v4740 = vpop.f32.mrf.mxu0
        %v4741 = vadd.f32 %v1754, %v4740
        %v4742 = vpop.f32.mrf.mxu0
        %v4743 = vadd.f32 %v1754, %v4742
        %4744 = vmatmul.bf16.gmra.mxu0 %v1199
        %v4745 = vpop.f32.mrf.mxu0
        %v4746 = vadd.f32 %v1754, %v4745
        %v4747 = vpop.f32.mrf.mxu0
        %v4748 = vadd.f32 %v1754, %v4747
        %4749 = vmatmul.bf16.gmra.mxu0 %v1207
        %v4750 = vpop.f32.mrf.mxu0
        %v4751 = vadd.f32 %v1754, %v4750
        %v4752 = vpop.f32.mrf.mxu0
        %v4753 = vadd.f32 %v1754, %v4752
        %4754 = vmatmul.bf16.gmra.mxu0 %v1215
        %v4755 = vpop.f32.mrf.mxu0
        %v4756 = vadd.f32 %v1754, %v4755
        %v4757 = vpop.f32.mrf.mxu0
        %v4758 = vadd.f32 %v1754, %v4757
        %4759 = vmatmul.bf16.gmra.mxu0 %v1223
        %v4760 = vpop.f32.mrf.mxu0
        %v4761 = vadd.f32 %v1754, %v4760
        %v4762 = vpop.f32.mrf.mxu0
        %v4763 = vadd.f32 %v1754, %v4762
        %4764 = vmatmul.bf16.gmra.mxu0 %v1231
        %v4765 = vpop.f32.mrf.mxu0
        %v4766 = vadd.f32 %v1754, %v4765
        %v4767 = vpop.f32.mrf.mxu0
        %v4768 = vadd.f32 %v1754, %v4767
        %4769 = vdwg.mxu0
        %4770 = vmatpush.bf16.msra.mxu0 %v3426
        %4771 = vmatpush.bf16.msra.mxu0 %v3418
        %4772 = vmatpush.bf16.msra.mxu0 %v3410
        %4773 = vmatpush.bf16.msra.mxu0 %v3402
        %4774 = vmatpush.bf16.msra.mxu0 %v3394
        %4775 = vmatpush.bf16.msra.mxu0 %v3386
        %4776 = vmatpush.bf16.msra.mxu0 %v3378
        %4777 = vmatpush.bf16.msra.mxu0 %v3370
        %4778 = vmatmul.bf16.gmra.mxu0 %v1176
        %v4779 = vpop.f32.mrf.mxu0
        %v4780 = vadd.f32 %v4731, %v4779
        %v4781 = vpop.f32.mrf.mxu0
        %v4782 = vadd.f32 %v4733, %v4781
        %4783 = vmatmul.bf16.gmra.mxu0 %v1184
        %v4784 = vpop.f32.mrf.mxu0
        %v4785 = vadd.f32 %v4736, %v4784
        %v4786 = vpop.f32.mrf.mxu0
        %v4787 = vadd.f32 %v4738, %v4786
        %4788 = vmatmul.bf16.gmra.mxu0 %v1192
        %v4789 = vpop.f32.mrf.mxu0
        %v4790 = vadd.f32 %v4741, %v4789
        %v4791 = vpop.f32.mrf.mxu0
        %v4792 = vadd.f32 %v4743, %v4791
        %4793 = vmatmul.bf16.gmra.mxu0 %v1200
        %v4794 = vpop.f32.mrf.mxu0
        %v4795 = vadd.f32 %v4746, %v4794
        %v4796 = vpop.f32.mrf.mxu0
        %v4797 = vadd.f32 %v4748, %v4796
        %4798 = vmatmul.bf16.gmra.mxu0 %v1208
        %v4799 = vpop.f32.mrf.mxu0
        %v4800 = vadd.f32 %v4751, %v4799
        %v4801 = vpop.f32.mrf.mxu0
        %v4802 = vadd.f32 %v4753, %v4801
        %4803 = vmatmul.bf16.gmra.mxu0 %v1216
        %v4804 = vpop.f32.mrf.mxu0
        %v4805 = vadd.f32 %v4756, %v4804
        %v4806 = vpop.f32.mrf.mxu0
        %v4807 = vadd.f32 %v4758, %v4806
        %4808 = vmatmul.bf16.gmra.mxu0 %v1224
        %v4809 = vpop.f32.mrf.mxu0
        %v4810 = vadd.f32 %v4761, %v4809
        %v4811 = vpop.f32.mrf.mxu0
        %v4812 = vadd.f32 %v4763, %v4811
        %4813 = vmatmul.bf16.gmra.mxu0 %v1232
        %v4814 = vpop.f32.mrf.mxu0
        %v4815 = vadd.f32 %v4766, %v4814
        %v4816 = vpop.f32.mrf.mxu0
        %v4817 = vadd.f32 %v4768, %v4816
        %4818 = vdwg.mxu0
        %4819 = vmatpush.bf16.msra.mxu0 %v3490
        %4820 = vmatpush.bf16.msra.mxu0 %v3482
        %4821 = vmatpush.bf16.msra.mxu0 %v3474
        %4822 = vmatpush.bf16.msra.mxu0 %v3466
        %4823 = vmatpush.bf16.msra.mxu0 %v3458
        %4824 = vmatpush.bf16.msra.mxu0 %v3450
        %4825 = vmatpush.bf16.msra.mxu0 %v3442
        %4826 = vmatpush.bf16.msra.mxu0 %v3434
        %4827 = vmatmul.bf16.gmra.mxu0 %v1177
        %v4828 = vpop.f32.mrf.mxu0
        %v4829 = vadd.f32 %v4780, %v4828
        %v4830 = vpop.f32.mrf.mxu0
        %v4831 = vadd.f32 %v4782, %v4830
        %4832 = vmatmul.bf16.gmra.mxu0 %v1185
        %v4833 = vpop.f32.mrf.mxu0
        %v4834 = vadd.f32 %v4785, %v4833
        %v4835 = vpop.f32.mrf.mxu0
        %v4836 = vadd.f32 %v4787, %v4835
        %4837 = vmatmul.bf16.gmra.mxu0 %v1193
        %v4838 = vpop.f32.mrf.mxu0
        %v4839 = vadd.f32 %v4790, %v4838
        %v4840 = vpop.f32.mrf.mxu0
        %v4841 = vadd.f32 %v4792, %v4840
        %4842 = vmatmul.bf16.gmra.mxu0 %v1201
        %v4843 = vpop.f32.mrf.mxu0
        %v4844 = vadd.f32 %v4795, %v4843
        %v4845 = vpop.f32.mrf.mxu0
        %v4846 = vadd.f32 %v4797, %v4845
        %4847 = vmatmul.bf16.gmra.mxu0 %v1209
        %v4848 = vpop.f32.mrf.mxu0
        %v4849 = vadd.f32 %v4800, %v4848
        %v4850 = vpop.f32.mrf.mxu0
        %v4851 = vadd.f32 %v4802, %v4850
        %4852 = vmatmul.bf16.gmra.mxu0 %v1217
        %v4853 = vpop.f32.mrf.mxu0
        %v4854 = vadd.f32 %v4805, %v4853
        %v4855 = vpop.f32.mrf.mxu0
        %v4856 = vadd.f32 %v4807, %v4855
        %4857 = vmatmul.bf16.gmra.mxu0 %v1225
        %v4858 = vpop.f32.mrf.mxu0
        %v4859 = vadd.f32 %v4810, %v4858
        %v4860 = vpop.f32.mrf.mxu0
        %v4861 = vadd.f32 %v4812, %v4860
        %4862 = vmatmul.bf16.gmra.mxu0 %v1233
        %v4863 = vpop.f32.mrf.mxu0
        %v4864 = vadd.f32 %v4815, %v4863
        %v4865 = vpop.f32.mrf.mxu0
        %v4866 = vadd.f32 %v4817, %v4865
        %4867 = vdwg.mxu0
        %4868 = vmatpush.bf16.msra.mxu0 %v3554
        %4869 = vmatpush.bf16.msra.mxu0 %v3546
        %4870 = vmatpush.bf16.msra.mxu0 %v3538
        %4871 = vmatpush.bf16.msra.mxu0 %v3530
        %4872 = vmatpush.bf16.msra.mxu0 %v3522
        %4873 = vmatpush.bf16.msra.mxu0 %v3514
        %4874 = vmatpush.bf16.msra.mxu0 %v3506
        %4875 = vmatpush.bf16.msra.mxu0 %v3498
        %4876 = vmatmul.bf16.gmra.mxu0 %v1178
        %v4877 = vpop.f32.mrf.mxu0
        %v4878 = vadd.f32 %v4829, %v4877
        %v4879 = vpop.f32.mrf.mxu0
        %v4880 = vadd.f32 %v4831, %v4879
        %4881 = vmatmul.bf16.gmra.mxu0 %v1186
        %v4882 = vpop.f32.mrf.mxu0
        %v4883 = vadd.f32 %v4834, %v4882
        %v4884 = vpop.f32.mrf.mxu0
        %v4885 = vadd.f32 %v4836, %v4884
        %4886 = vmatmul.bf16.gmra.mxu0 %v1194
        %v4887 = vpop.f32.mrf.mxu0
        %v4888 = vadd.f32 %v4839, %v4887
        %v4889 = vpop.f32.mrf.mxu0
        %v4890 = vadd.f32 %v4841, %v4889
        %4891 = vmatmul.bf16.gmra.mxu0 %v1202
        %v4892 = vpop.f32.mrf.mxu0
        %v4893 = vadd.f32 %v4844, %v4892
        %v4894 = vpop.f32.mrf.mxu0
        %v4895 = vadd.f32 %v4846, %v4894
        %4896 = vmatmul.bf16.gmra.mxu0 %v1210
        %v4897 = vpop.f32.mrf.mxu0
        %v4898 = vadd.f32 %v4849, %v4897
        %v4899 = vpop.f32.mrf.mxu0
        %v4900 = vadd.f32 %v4851, %v4899
        %4901 = vmatmul.bf16.gmra.mxu0 %v1218
        %v4902 = vpop.f32.mrf.mxu0
        %v4903 = vadd.f32 %v4854, %v4902
        %v4904 = vpop.f32.mrf.mxu0
        %v4905 = vadd.f32 %v4856, %v4904
        %4906 = vmatmul.bf16.gmra.mxu0 %v1226
        %v4907 = vpop.f32.mrf.mxu0
        %v4908 = vadd.f32 %v4859, %v4907
        %v4909 = vpop.f32.mrf.mxu0
        %v4910 = vadd.f32 %v4861, %v4909
        %4911 = vmatmul.bf16.gmra.mxu0 %v1234
        %v4912 = vpop.f32.mrf.mxu0
        %v4913 = vadd.f32 %v4864, %v4912
        %v4914 = vpop.f32.mrf.mxu0
        %v4915 = vadd.f32 %v4866, %v4914
        %4916 = vdwg.mxu0
        %4917 = vmatpush.bf16.msra.mxu0 %v3618
        %4918 = vmatpush.bf16.msra.mxu0 %v3610
        %4919 = vmatpush.bf16.msra.mxu0 %v3602
        %4920 = vmatpush.bf16.msra.mxu0 %v3594
        %4921 = vmatpush.bf16.msra.mxu0 %v3586
        %4922 = vmatpush.bf16.msra.mxu0 %v3578
        %4923 = vmatpush.bf16.msra.mxu0 %v3570
        %4924 = vmatpush.bf16.msra.mxu0 %v3562
        %4925 = vmatmul.bf16.gmra.mxu0 %v1179
        %v4926 = vpop.f32.mrf.mxu0
        %v4927 = vadd.f32 %v4878, %v4926
        %v4928 = vpop.f32.mrf.mxu0
        %v4929 = vadd.f32 %v4880, %v4928
        %4930 = vmatmul.bf16.gmra.mxu0 %v1187
        %v4931 = vpop.f32.mrf.mxu0
        %v4932 = vadd.f32 %v4883, %v4931
        %v4933 = vpop.f32.mrf.mxu0
        %v4934 = vadd.f32 %v4885, %v4933
        %4935 = vmatmul.bf16.gmra.mxu0 %v1195
        %v4936 = vpop.f32.mrf.mxu0
        %v4937 = vadd.f32 %v4888, %v4936
        %v4938 = vpop.f32.mrf.mxu0
        %v4939 = vadd.f32 %v4890, %v4938
        %4940 = vmatmul.bf16.gmra.mxu0 %v1203
        %v4941 = vpop.f32.mrf.mxu0
        %v4942 = vadd.f32 %v4893, %v4941
        %v4943 = vpop.f32.mrf.mxu0
        %v4944 = vadd.f32 %v4895, %v4943
        %4945 = vmatmul.bf16.gmra.mxu0 %v1211
        %v4946 = vpop.f32.mrf.mxu0
        %v4947 = vadd.f32 %v4898, %v4946
        %v4948 = vpop.f32.mrf.mxu0
        %v4949 = vadd.f32 %v4900, %v4948
        %4950 = vmatmul.bf16.gmra.mxu0 %v1219
        %v4951 = vpop.f32.mrf.mxu0
        %v4952 = vadd.f32 %v4903, %v4951
        %v4953 = vpop.f32.mrf.mxu0
        %v4954 = vadd.f32 %v4905, %v4953
        %4955 = vmatmul.bf16.gmra.mxu0 %v1227
        %v4956 = vpop.f32.mrf.mxu0
        %v4957 = vadd.f32 %v4908, %v4956
        %v4958 = vpop.f32.mrf.mxu0
        %v4959 = vadd.f32 %v4910, %v4958
        %4960 = vmatmul.bf16.gmra.mxu0 %v1235
        %v4961 = vpop.f32.mrf.mxu0
        %v4962 = vadd.f32 %v4913, %v4961
        %v4963 = vpop.f32.mrf.mxu0
        %v4964 = vadd.f32 %v4915, %v4963
        %4965 = vdwg.mxu0
        %4966 = vmatpush.bf16.msra.mxu0 %v3682
        %4967 = vmatpush.bf16.msra.mxu0 %v3674
        %4968 = vmatpush.bf16.msra.mxu0 %v3666
        %4969 = vmatpush.bf16.msra.mxu0 %v3658
        %4970 = vmatpush.bf16.msra.mxu0 %v3650
        %4971 = vmatpush.bf16.msra.mxu0 %v3642
        %4972 = vmatpush.bf16.msra.mxu0 %v3634
        %4973 = vmatpush.bf16.msra.mxu0 %v3626
        %4974 = vmatmul.bf16.gmra.mxu0 %v1180
        %v4975 = vpop.f32.mrf.mxu0
        %v4976 = vadd.f32 %v4927, %v4975
        %v4977 = vpop.f32.mrf.mxu0
        %v4978 = vadd.f32 %v4929, %v4977
        %4979 = vmatmul.bf16.gmra.mxu0 %v1188
        %v4980 = vpop.f32.mrf.mxu0
        %v4981 = vadd.f32 %v4932, %v4980
        %v4982 = vpop.f32.mrf.mxu0
        %v4983 = vadd.f32 %v4934, %v4982
        %4984 = vmatmul.bf16.gmra.mxu0 %v1196
        %v4985 = vpop.f32.mrf.mxu0
        %v4986 = vadd.f32 %v4937, %v4985
        %v4987 = vpop.f32.mrf.mxu0
        %v4988 = vadd.f32 %v4939, %v4987
        %4989 = vmatmul.bf16.gmra.mxu0 %v1204
        %v4990 = vpop.f32.mrf.mxu0
        %v4991 = vadd.f32 %v4942, %v4990
        %v4992 = vpop.f32.mrf.mxu0
        %v4993 = vadd.f32 %v4944, %v4992
        %4994 = vmatmul.bf16.gmra.mxu0 %v1212
        %v4995 = vpop.f32.mrf.mxu0
        %v4996 = vadd.f32 %v4947, %v4995
        %v4997 = vpop.f32.mrf.mxu0
        %v4998 = vadd.f32 %v4949, %v4997
        %4999 = vmatmul.bf16.gmra.mxu0 %v1220
        %v5000 = vpop.f32.mrf.mxu0
        %v5001 = vadd.f32 %v4952, %v5000
        %v5002 = vpop.f32.mrf.mxu0
        %v5003 = vadd.f32 %v4954, %v5002
        %5004 = vmatmul.bf16.gmra.mxu0 %v1228
        %v5005 = vpop.f32.mrf.mxu0
        %v5006 = vadd.f32 %v4957, %v5005
        %v5007 = vpop.f32.mrf.mxu0
        %v5008 = vadd.f32 %v4959, %v5007
        %5009 = vmatmul.bf16.gmra.mxu0 %v1236
        %v5010 = vpop.f32.mrf.mxu0
        %v5011 = vadd.f32 %v4962, %v5010
        %v5012 = vpop.f32.mrf.mxu0
        %v5013 = vadd.f32 %v4964, %v5012
        %5014 = vdwg.mxu0
        %5015 = vmatpush.bf16.msra.mxu0 %v3746
        %5016 = vmatpush.bf16.msra.mxu0 %v3738
        %5017 = vmatpush.bf16.msra.mxu0 %v3730
        %5018 = vmatpush.bf16.msra.mxu0 %v3722
        %5019 = vmatpush.bf16.msra.mxu0 %v3714
        %5020 = vmatpush.bf16.msra.mxu0 %v3706
        %5021 = vmatpush.bf16.msra.mxu0 %v3698
        %5022 = vmatpush.bf16.msra.mxu0 %v3690
        %5023 = vmatmul.bf16.gmra.mxu0 %v1181
        %v5024 = vpop.f32.mrf.mxu0
        %v5025 = vadd.f32 %v4976, %v5024
        %v5026 = vpop.f32.mrf.mxu0
        %v5027 = vadd.f32 %v4978, %v5026
        %5028 = vmatmul.bf16.gmra.mxu0 %v1189
        %v5029 = vpop.f32.mrf.mxu0
        %v5030 = vadd.f32 %v4981, %v5029
        %v5031 = vpop.f32.mrf.mxu0
        %v5032 = vadd.f32 %v4983, %v5031
        %5033 = vmatmul.bf16.gmra.mxu0 %v1197
        %v5034 = vpop.f32.mrf.mxu0
        %v5035 = vadd.f32 %v4986, %v5034
        %v5036 = vpop.f32.mrf.mxu0
        %v5037 = vadd.f32 %v4988, %v5036
        %5038 = vmatmul.bf16.gmra.mxu0 %v1205
        %v5039 = vpop.f32.mrf.mxu0
        %v5040 = vadd.f32 %v4991, %v5039
        %v5041 = vpop.f32.mrf.mxu0
        %v5042 = vadd.f32 %v4993, %v5041
        %5043 = vmatmul.bf16.gmra.mxu0 %v1213
        %v5044 = vpop.f32.mrf.mxu0
        %v5045 = vadd.f32 %v4996, %v5044
        %v5046 = vpop.f32.mrf.mxu0
        %v5047 = vadd.f32 %v4998, %v5046
        %5048 = vmatmul.bf16.gmra.mxu0 %v1221
        %v5049 = vpop.f32.mrf.mxu0
        %v5050 = vadd.f32 %v5001, %v5049
        %v5051 = vpop.f32.mrf.mxu0
        %v5052 = vadd.f32 %v5003, %v5051
        %5053 = vmatmul.bf16.gmra.mxu0 %v1229
        %v5054 = vpop.f32.mrf.mxu0
        %v5055 = vadd.f32 %v5006, %v5054
        %v5056 = vpop.f32.mrf.mxu0
        %v5057 = vadd.f32 %v5008, %v5056
        %5058 = vmatmul.bf16.gmra.mxu0 %v1237
        %v5059 = vpop.f32.mrf.mxu0
        %v5060 = vadd.f32 %v5011, %v5059
        %v5061 = vpop.f32.mrf.mxu0
        %v5062 = vadd.f32 %v5013, %v5061
        %5063 = vdwg.mxu0
        %5064 = vmatpush.bf16.msra.mxu0 %v3810
        %5065 = vmatpush.bf16.msra.mxu0 %v3802
        %5066 = vmatpush.bf16.msra.mxu0 %v3794
        %5067 = vmatpush.bf16.msra.mxu0 %v3786
        %5068 = vmatpush.bf16.msra.mxu0 %v3778
        %5069 = vmatpush.bf16.msra.mxu0 %v3770
        %5070 = vmatpush.bf16.msra.mxu0 %v3762
        %5071 = vmatpush.bf16.msra.mxu0 %v3754
        %5072 = vmatmul.bf16.gmra.mxu0 %v1182
        %v5073 = vpop.f32.mrf.mxu0
        %v5074 = vadd.f32 %v5025, %v5073
        %v5075 = vpop.f32.mrf.mxu0
        %v5076 = vadd.f32 %v5027, %v5075
        %5077 = vmatmul.bf16.gmra.mxu0 %v1190
        %v5078 = vpop.f32.mrf.mxu0
        %v5079 = vadd.f32 %v5030, %v5078
        %v5080 = vpop.f32.mrf.mxu0
        %v5081 = vadd.f32 %v5032, %v5080
        %5082 = vmatmul.bf16.gmra.mxu0 %v1198
        %v5083 = vpop.f32.mrf.mxu0
        %v5084 = vadd.f32 %v5035, %v5083
        %v5085 = vpop.f32.mrf.mxu0
        %v5086 = vadd.f32 %v5037, %v5085
        %5087 = vmatmul.bf16.gmra.mxu0 %v1206
        %v5088 = vpop.f32.mrf.mxu0
        %v5089 = vadd.f32 %v5040, %v5088
        %v5090 = vpop.f32.mrf.mxu0
        %v5091 = vadd.f32 %v5042, %v5090
        %5092 = vmatmul.bf16.gmra.mxu0 %v1214
        %v5093 = vpop.f32.mrf.mxu0
        %v5094 = vadd.f32 %v5045, %v5093
        %v5095 = vpop.f32.mrf.mxu0
        %v5096 = vadd.f32 %v5047, %v5095
        %5097 = vmatmul.bf16.gmra.mxu0 %v1222
        %v5098 = vpop.f32.mrf.mxu0
        %v5099 = vadd.f32 %v5050, %v5098
        %v5100 = vpop.f32.mrf.mxu0
        %v5101 = vadd.f32 %v5052, %v5100
        %5102 = vmatmul.bf16.gmra.mxu0 %v1230
        %v5103 = vpop.f32.mrf.mxu0
        %v5104 = vadd.f32 %v5055, %v5103
        %v5105 = vpop.f32.mrf.mxu0
        %v5106 = vadd.f32 %v5057, %v5105
        %5107 = vmatmul.bf16.gmra.mxu0 %v1238
        %v5108 = vpop.f32.mrf.mxu0
        %v5109 = vadd.f32 %v5060, %v5108
        %v5110 = vpop.f32.mrf.mxu0
        %v5111 = vadd.f32 %v5062, %v5110
        %5112 = vdwg.mxu0
        %5113 = vmatpush.bf16.msra.mxu0 %v3363
        %5114 = vmatpush.bf16.msra.mxu0 %v3355
        %5115 = vmatpush.bf16.msra.mxu0 %v3347
        %5116 = vmatpush.bf16.msra.mxu0 %v3339
        %5117 = vmatpush.bf16.msra.mxu0 %v3331
        %5118 = vmatpush.bf16.msra.mxu0 %v3323
        %5119 = vmatpush.bf16.msra.mxu0 %v3315
        %5120 = vmatpush.bf16.msra.mxu0 %v3307
        %5121 = vmatmul.bf16.gmra.mxu0 %v1175
        %v5122 = vpop.f32.mrf.mxu0
        %v5123 = vadd.f32 %v1755, %v5122
        %v5124 = vpop.f32.mrf.mxu0
        %v5125 = vadd.f32 %v1755, %v5124
        %5126 = vmatmul.bf16.gmra.mxu0 %v1183
        %v5127 = vpop.f32.mrf.mxu0
        %v5128 = vadd.f32 %v1755, %v5127
        %v5129 = vpop.f32.mrf.mxu0
        %v5130 = vadd.f32 %v1755, %v5129
        %5131 = vmatmul.bf16.gmra.mxu0 %v1191
        %v5132 = vpop.f32.mrf.mxu0
        %v5133 = vadd.f32 %v1755, %v5132
        %v5134 = vpop.f32.mrf.mxu0
        %v5135 = vadd.f32 %v1755, %v5134
        %5136 = vmatmul.bf16.gmra.mxu0 %v1199
        %v5137 = vpop.f32.mrf.mxu0
        %v5138 = vadd.f32 %v1755, %v5137
        %v5139 = vpop.f32.mrf.mxu0
        %v5140 = vadd.f32 %v1755, %v5139
        %5141 = vmatmul.bf16.gmra.mxu0 %v1207
        %v5142 = vpop.f32.mrf.mxu0
        %v5143 = vadd.f32 %v1755, %v5142
        %v5144 = vpop.f32.mrf.mxu0
        %v5145 = vadd.f32 %v1755, %v5144
        %5146 = vmatmul.bf16.gmra.mxu0 %v1215
        %v5147 = vpop.f32.mrf.mxu0
        %v5148 = vadd.f32 %v1755, %v5147
        %v5149 = vpop.f32.mrf.mxu0
        %v5150 = vadd.f32 %v1755, %v5149
        %5151 = vmatmul.bf16.gmra.mxu0 %v1223
        %v5152 = vpop.f32.mrf.mxu0
        %v5153 = vadd.f32 %v1755, %v5152
        %v5154 = vpop.f32.mrf.mxu0
        %v5155 = vadd.f32 %v1755, %v5154
        %5156 = vmatmul.bf16.gmra.mxu0 %v1231
        %v5157 = vpop.f32.mrf.mxu0
        %v5158 = vadd.f32 %v1755, %v5157
        %v5159 = vpop.f32.mrf.mxu0
        %v5160 = vadd.f32 %v1755, %v5159
        %5161 = vdwg.mxu0
        %5162 = vmatpush.bf16.msra.mxu0 %v3427
        %5163 = vmatpush.bf16.msra.mxu0 %v3419
        %5164 = vmatpush.bf16.msra.mxu0 %v3411
        %5165 = vmatpush.bf16.msra.mxu0 %v3403
        %5166 = vmatpush.bf16.msra.mxu0 %v3395
        %5167 = vmatpush.bf16.msra.mxu0 %v3387
        %5168 = vmatpush.bf16.msra.mxu0 %v3379
        %5169 = vmatpush.bf16.msra.mxu0 %v3371
        %5170 = vmatmul.bf16.gmra.mxu0 %v1176
        %v5171 = vpop.f32.mrf.mxu0
        %v5172 = vadd.f32 %v5123, %v5171
        %v5173 = vpop.f32.mrf.mxu0
        %v5174 = vadd.f32 %v5125, %v5173
        %5175 = vmatmul.bf16.gmra.mxu0 %v1184
        %v5176 = vpop.f32.mrf.mxu0
        %v5177 = vadd.f32 %v5128, %v5176
        %v5178 = vpop.f32.mrf.mxu0
        %v5179 = vadd.f32 %v5130, %v5178
        %5180 = vmatmul.bf16.gmra.mxu0 %v1192
        %v5181 = vpop.f32.mrf.mxu0
        %v5182 = vadd.f32 %v5133, %v5181
        %v5183 = vpop.f32.mrf.mxu0
        %v5184 = vadd.f32 %v5135, %v5183
        %5185 = vmatmul.bf16.gmra.mxu0 %v1200
        %v5186 = vpop.f32.mrf.mxu0
        %v5187 = vadd.f32 %v5138, %v5186
        %v5188 = vpop.f32.mrf.mxu0
        %v5189 = vadd.f32 %v5140, %v5188
        %5190 = vmatmul.bf16.gmra.mxu0 %v1208
        %v5191 = vpop.f32.mrf.mxu0
        %v5192 = vadd.f32 %v5143, %v5191
        %v5193 = vpop.f32.mrf.mxu0
        %v5194 = vadd.f32 %v5145, %v5193
        %5195 = vmatmul.bf16.gmra.mxu0 %v1216
        %v5196 = vpop.f32.mrf.mxu0
        %v5197 = vadd.f32 %v5148, %v5196
        %v5198 = vpop.f32.mrf.mxu0
        %v5199 = vadd.f32 %v5150, %v5198
        %5200 = vmatmul.bf16.gmra.mxu0 %v1224
        %v5201 = vpop.f32.mrf.mxu0
        %v5202 = vadd.f32 %v5153, %v5201
        %v5203 = vpop.f32.mrf.mxu0
        %v5204 = vadd.f32 %v5155, %v5203
        %5205 = vmatmul.bf16.gmra.mxu0 %v1232
        %v5206 = vpop.f32.mrf.mxu0
        %v5207 = vadd.f32 %v5158, %v5206
        %v5208 = vpop.f32.mrf.mxu0
        %v5209 = vadd.f32 %v5160, %v5208
        %5210 = vdwg.mxu0
        %5211 = vmatpush.bf16.msra.mxu0 %v3491
        %5212 = vmatpush.bf16.msra.mxu0 %v3483
        %5213 = vmatpush.bf16.msra.mxu0 %v3475
        %5214 = vmatpush.bf16.msra.mxu0 %v3467
        %5215 = vmatpush.bf16.msra.mxu0 %v3459
        %5216 = vmatpush.bf16.msra.mxu0 %v3451
        %5217 = vmatpush.bf16.msra.mxu0 %v3443
        %5218 = vmatpush.bf16.msra.mxu0 %v3435
        %5219 = vmatmul.bf16.gmra.mxu0 %v1177
        %v5220 = vpop.f32.mrf.mxu0
        %v5221 = vadd.f32 %v5172, %v5220
        %v5222 = vpop.f32.mrf.mxu0
        %v5223 = vadd.f32 %v5174, %v5222
        %5224 = vmatmul.bf16.gmra.mxu0 %v1185
        %v5225 = vpop.f32.mrf.mxu0
        %v5226 = vadd.f32 %v5177, %v5225
        %v5227 = vpop.f32.mrf.mxu0
        %v5228 = vadd.f32 %v5179, %v5227
        %5229 = vmatmul.bf16.gmra.mxu0 %v1193
        %v5230 = vpop.f32.mrf.mxu0
        %v5231 = vadd.f32 %v5182, %v5230
        %v5232 = vpop.f32.mrf.mxu0
        %v5233 = vadd.f32 %v5184, %v5232
        %5234 = vmatmul.bf16.gmra.mxu0 %v1201
        %v5235 = vpop.f32.mrf.mxu0
        %v5236 = vadd.f32 %v5187, %v5235
        %v5237 = vpop.f32.mrf.mxu0
        %v5238 = vadd.f32 %v5189, %v5237
        %5239 = vmatmul.bf16.gmra.mxu0 %v1209
        %v5240 = vpop.f32.mrf.mxu0
        %v5241 = vadd.f32 %v5192, %v5240
        %v5242 = vpop.f32.mrf.mxu0
        %v5243 = vadd.f32 %v5194, %v5242
        %5244 = vmatmul.bf16.gmra.mxu0 %v1217
        %v5245 = vpop.f32.mrf.mxu0
        %v5246 = vadd.f32 %v5197, %v5245
        %v5247 = vpop.f32.mrf.mxu0
        %v5248 = vadd.f32 %v5199, %v5247
        %5249 = vmatmul.bf16.gmra.mxu0 %v1225
        %v5250 = vpop.f32.mrf.mxu0
        %v5251 = vadd.f32 %v5202, %v5250
        %v5252 = vpop.f32.mrf.mxu0
        %v5253 = vadd.f32 %v5204, %v5252
        %5254 = vmatmul.bf16.gmra.mxu0 %v1233
        %v5255 = vpop.f32.mrf.mxu0
        %v5256 = vadd.f32 %v5207, %v5255
        %v5257 = vpop.f32.mrf.mxu0
        %v5258 = vadd.f32 %v5209, %v5257
        %5259 = vdwg.mxu0
        %5260 = vmatpush.bf16.msra.mxu0 %v3555
        %5261 = vmatpush.bf16.msra.mxu0 %v3547
        %5262 = vmatpush.bf16.msra.mxu0 %v3539
        %5263 = vmatpush.bf16.msra.mxu0 %v3531
        %5264 = vmatpush.bf16.msra.mxu0 %v3523
        %5265 = vmatpush.bf16.msra.mxu0 %v3515
        %5266 = vmatpush.bf16.msra.mxu0 %v3507
        %5267 = vmatpush.bf16.msra.mxu0 %v3499
        %5268 = vmatmul.bf16.gmra.mxu0 %v1178
        %v5269 = vpop.f32.mrf.mxu0
        %v5270 = vadd.f32 %v5221, %v5269
        %v5271 = vpop.f32.mrf.mxu0
        %v5272 = vadd.f32 %v5223, %v5271
        %5273 = vmatmul.bf16.gmra.mxu0 %v1186
        %v5274 = vpop.f32.mrf.mxu0
        %v5275 = vadd.f32 %v5226, %v5274
        %v5276 = vpop.f32.mrf.mxu0
        %v5277 = vadd.f32 %v5228, %v5276
        %5278 = vmatmul.bf16.gmra.mxu0 %v1194
        %v5279 = vpop.f32.mrf.mxu0
        %v5280 = vadd.f32 %v5231, %v5279
        %v5281 = vpop.f32.mrf.mxu0
        %v5282 = vadd.f32 %v5233, %v5281
        %5283 = vmatmul.bf16.gmra.mxu0 %v1202
        %v5284 = vpop.f32.mrf.mxu0
        %v5285 = vadd.f32 %v5236, %v5284
        %v5286 = vpop.f32.mrf.mxu0
        %v5287 = vadd.f32 %v5238, %v5286
        %5288 = vmatmul.bf16.gmra.mxu0 %v1210
        %v5289 = vpop.f32.mrf.mxu0
        %v5290 = vadd.f32 %v5241, %v5289
        %v5291 = vpop.f32.mrf.mxu0
        %v5292 = vadd.f32 %v5243, %v5291
        %5293 = vmatmul.bf16.gmra.mxu0 %v1218
        %v5294 = vpop.f32.mrf.mxu0
        %v5295 = vadd.f32 %v5246, %v5294
        %v5296 = vpop.f32.mrf.mxu0
        %v5297 = vadd.f32 %v5248, %v5296
        %5298 = vmatmul.bf16.gmra.mxu0 %v1226
        %v5299 = vpop.f32.mrf.mxu0
        %v5300 = vadd.f32 %v5251, %v5299
        %v5301 = vpop.f32.mrf.mxu0
        %v5302 = vadd.f32 %v5253, %v5301
        %5303 = vmatmul.bf16.gmra.mxu0 %v1234
        %v5304 = vpop.f32.mrf.mxu0
        %v5305 = vadd.f32 %v5256, %v5304
        %v5306 = vpop.f32.mrf.mxu0
        %v5307 = vadd.f32 %v5258, %v5306
        %5308 = vdwg.mxu0
        %5309 = vmatpush.bf16.msra.mxu0 %v3619
        %5310 = vmatpush.bf16.msra.mxu0 %v3611
        %5311 = vmatpush.bf16.msra.mxu0 %v3603
        %5312 = vmatpush.bf16.msra.mxu0 %v3595
        %5313 = vmatpush.bf16.msra.mxu0 %v3587
        %5314 = vmatpush.bf16.msra.mxu0 %v3579
        %5315 = vmatpush.bf16.msra.mxu0 %v3571
        %5316 = vmatpush.bf16.msra.mxu0 %v3563
        %5317 = vmatmul.bf16.gmra.mxu0 %v1179
        %v5318 = vpop.f32.mrf.mxu0
        %v5319 = vadd.f32 %v5270, %v5318
        %v5320 = vpop.f32.mrf.mxu0
        %v5321 = vadd.f32 %v5272, %v5320
        %5322 = vmatmul.bf16.gmra.mxu0 %v1187
        %v5323 = vpop.f32.mrf.mxu0
        %v5324 = vadd.f32 %v5275, %v5323
        %v5325 = vpop.f32.mrf.mxu0
        %v5326 = vadd.f32 %v5277, %v5325
        %5327 = vmatmul.bf16.gmra.mxu0 %v1195
        %v5328 = vpop.f32.mrf.mxu0
        %v5329 = vadd.f32 %v5280, %v5328
        %v5330 = vpop.f32.mrf.mxu0
        %v5331 = vadd.f32 %v5282, %v5330
        %5332 = vmatmul.bf16.gmra.mxu0 %v1203
        %v5333 = vpop.f32.mrf.mxu0
        %v5334 = vadd.f32 %v5285, %v5333
        %v5335 = vpop.f32.mrf.mxu0
        %v5336 = vadd.f32 %v5287, %v5335
        %5337 = vmatmul.bf16.gmra.mxu0 %v1211
        %v5338 = vpop.f32.mrf.mxu0
        %v5339 = vadd.f32 %v5290, %v5338
        %v5340 = vpop.f32.mrf.mxu0
        %v5341 = vadd.f32 %v5292, %v5340
        %5342 = vmatmul.bf16.gmra.mxu0 %v1219
        %v5343 = vpop.f32.mrf.mxu0
        %v5344 = vadd.f32 %v5295, %v5343
        %v5345 = vpop.f32.mrf.mxu0
        %v5346 = vadd.f32 %v5297, %v5345
        %5347 = vmatmul.bf16.gmra.mxu0 %v1227
        %v5348 = vpop.f32.mrf.mxu0
        %v5349 = vadd.f32 %v5300, %v5348
        %v5350 = vpop.f32.mrf.mxu0
        %v5351 = vadd.f32 %v5302, %v5350
        %5352 = vmatmul.bf16.gmra.mxu0 %v1235
        %v5353 = vpop.f32.mrf.mxu0
        %v5354 = vadd.f32 %v5305, %v5353
        %v5355 = vpop.f32.mrf.mxu0
        %v5356 = vadd.f32 %v5307, %v5355
        %5357 = vdwg.mxu0
        %5358 = vmatpush.bf16.msra.mxu0 %v3683
        %5359 = vmatpush.bf16.msra.mxu0 %v3675
        %5360 = vmatpush.bf16.msra.mxu0 %v3667
        %5361 = vmatpush.bf16.msra.mxu0 %v3659
        %5362 = vmatpush.bf16.msra.mxu0 %v3651
        %5363 = vmatpush.bf16.msra.mxu0 %v3643
        %5364 = vmatpush.bf16.msra.mxu0 %v3635
        %5365 = vmatpush.bf16.msra.mxu0 %v3627
        %5366 = vmatmul.bf16.gmra.mxu0 %v1180
        %v5367 = vpop.f32.mrf.mxu0
        %v5368 = vadd.f32 %v5319, %v5367
        %v5369 = vpop.f32.mrf.mxu0
        %v5370 = vadd.f32 %v5321, %v5369
        %5371 = vmatmul.bf16.gmra.mxu0 %v1188
        %v5372 = vpop.f32.mrf.mxu0
        %v5373 = vadd.f32 %v5324, %v5372
        %v5374 = vpop.f32.mrf.mxu0
        %v5375 = vadd.f32 %v5326, %v5374
        %5376 = vmatmul.bf16.gmra.mxu0 %v1196
        %v5377 = vpop.f32.mrf.mxu0
        %v5378 = vadd.f32 %v5329, %v5377
        %v5379 = vpop.f32.mrf.mxu0
        %v5380 = vadd.f32 %v5331, %v5379
        %5381 = vmatmul.bf16.gmra.mxu0 %v1204
        %v5382 = vpop.f32.mrf.mxu0
        %v5383 = vadd.f32 %v5334, %v5382
        %v5384 = vpop.f32.mrf.mxu0
        %v5385 = vadd.f32 %v5336, %v5384
        %5386 = vmatmul.bf16.gmra.mxu0 %v1212
        %v5387 = vpop.f32.mrf.mxu0
        %v5388 = vadd.f32 %v5339, %v5387
        %v5389 = vpop.f32.mrf.mxu0
        %v5390 = vadd.f32 %v5341, %v5389
        %5391 = vmatmul.bf16.gmra.mxu0 %v1220
        %v5392 = vpop.f32.mrf.mxu0
        %v5393 = vadd.f32 %v5344, %v5392
        %v5394 = vpop.f32.mrf.mxu0
        %v5395 = vadd.f32 %v5346, %v5394
        %5396 = vmatmul.bf16.gmra.mxu0 %v1228
        %v5397 = vpop.f32.mrf.mxu0
        %v5398 = vadd.f32 %v5349, %v5397
        %v5399 = vpop.f32.mrf.mxu0
        %v5400 = vadd.f32 %v5351, %v5399
        %5401 = vmatmul.bf16.gmra.mxu0 %v1236
        %v5402 = vpop.f32.mrf.mxu0
        %v5403 = vadd.f32 %v5354, %v5402
        %v5404 = vpop.f32.mrf.mxu0
        %v5405 = vadd.f32 %v5356, %v5404
        %5406 = vdwg.mxu0
        %5407 = vmatpush.bf16.msra.mxu0 %v3747
        %5408 = vmatpush.bf16.msra.mxu0 %v3739
        %5409 = vmatpush.bf16.msra.mxu0 %v3731
        %5410 = vmatpush.bf16.msra.mxu0 %v3723
        %5411 = vmatpush.bf16.msra.mxu0 %v3715
        %5412 = vmatpush.bf16.msra.mxu0 %v3707
        %5413 = vmatpush.bf16.msra.mxu0 %v3699
        %5414 = vmatpush.bf16.msra.mxu0 %v3691
        %5415 = vmatmul.bf16.gmra.mxu0 %v1181
        %v5416 = vpop.f32.mrf.mxu0
        %v5417 = vadd.f32 %v5368, %v5416
        %v5418 = vpop.f32.mrf.mxu0
        %v5419 = vadd.f32 %v5370, %v5418
        %5420 = vmatmul.bf16.gmra.mxu0 %v1189
        %v5421 = vpop.f32.mrf.mxu0
        %v5422 = vadd.f32 %v5373, %v5421
        %v5423 = vpop.f32.mrf.mxu0
        %v5424 = vadd.f32 %v5375, %v5423
        %5425 = vmatmul.bf16.gmra.mxu0 %v1197
        %v5426 = vpop.f32.mrf.mxu0
        %v5427 = vadd.f32 %v5378, %v5426
        %v5428 = vpop.f32.mrf.mxu0
        %v5429 = vadd.f32 %v5380, %v5428
        %5430 = vmatmul.bf16.gmra.mxu0 %v1205
        %v5431 = vpop.f32.mrf.mxu0
        %v5432 = vadd.f32 %v5383, %v5431
        %v5433 = vpop.f32.mrf.mxu0
        %v5434 = vadd.f32 %v5385, %v5433
        %5435 = vmatmul.bf16.gmra.mxu0 %v1213
        %v5436 = vpop.f32.mrf.mxu0
        %v5437 = vadd.f32 %v5388, %v5436
        %v5438 = vpop.f32.mrf.mxu0
        %v5439 = vadd.f32 %v5390, %v5438
        %5440 = vmatmul.bf16.gmra.mxu0 %v1221
        %v5441 = vpop.f32.mrf.mxu0
        %v5442 = vadd.f32 %v5393, %v5441
        %v5443 = vpop.f32.mrf.mxu0
        %v5444 = vadd.f32 %v5395, %v5443
        %5445 = vmatmul.bf16.gmra.mxu0 %v1229
        %v5446 = vpop.f32.mrf.mxu0
        %v5447 = vadd.f32 %v5398, %v5446
        %v5448 = vpop.f32.mrf.mxu0
        %v5449 = vadd.f32 %v5400, %v5448
        %5450 = vmatmul.bf16.gmra.mxu0 %v1237
        %v5451 = vpop.f32.mrf.mxu0
        %v5452 = vadd.f32 %v5403, %v5451
        %v5453 = vpop.f32.mrf.mxu0
        %v5454 = vadd.f32 %v5405, %v5453
        %5455 = vdwg.mxu0
        %5456 = vmatpush.bf16.msra.mxu0 %v3811
        %5457 = vmatpush.bf16.msra.mxu0 %v3803
        %5458 = vmatpush.bf16.msra.mxu0 %v3795
        %5459 = vmatpush.bf16.msra.mxu0 %v3787
        %5460 = vmatpush.bf16.msra.mxu0 %v3779
        %5461 = vmatpush.bf16.msra.mxu0 %v3771
        %5462 = vmatpush.bf16.msra.mxu0 %v3763
        %5463 = vmatpush.bf16.msra.mxu0 %v3755
        %5464 = vmatmul.bf16.gmra.mxu0 %v1182
        %v5465 = vpop.f32.mrf.mxu0
        %v5466 = vadd.f32 %v5417, %v5465
        %v5467 = vpop.f32.mrf.mxu0
        %v5468 = vadd.f32 %v5419, %v5467
        %5469 = vmatmul.bf16.gmra.mxu0 %v1190
        %v5470 = vpop.f32.mrf.mxu0
        %v5471 = vadd.f32 %v5422, %v5470
        %v5472 = vpop.f32.mrf.mxu0
        %v5473 = vadd.f32 %v5424, %v5472
        %5474 = vmatmul.bf16.gmra.mxu0 %v1198
        %v5475 = vpop.f32.mrf.mxu0
        %v5476 = vadd.f32 %v5427, %v5475
        %v5477 = vpop.f32.mrf.mxu0
        %v5478 = vadd.f32 %v5429, %v5477
        %5479 = vmatmul.bf16.gmra.mxu0 %v1206
        %v5480 = vpop.f32.mrf.mxu0
        %v5481 = vadd.f32 %v5432, %v5480
        %v5482 = vpop.f32.mrf.mxu0
        %v5483 = vadd.f32 %v5434, %v5482
        %5484 = vmatmul.bf16.gmra.mxu0 %v1214
        %v5485 = vpop.f32.mrf.mxu0
        %v5486 = vadd.f32 %v5437, %v5485
        %v5487 = vpop.f32.mrf.mxu0
        %v5488 = vadd.f32 %v5439, %v5487
        %5489 = vmatmul.bf16.gmra.mxu0 %v1222
        %v5490 = vpop.f32.mrf.mxu0
        %v5491 = vadd.f32 %v5442, %v5490
        %v5492 = vpop.f32.mrf.mxu0
        %v5493 = vadd.f32 %v5444, %v5492
        %5494 = vmatmul.bf16.gmra.mxu0 %v1230
        %v5495 = vpop.f32.mrf.mxu0
        %v5496 = vadd.f32 %v5447, %v5495
        %v5497 = vpop.f32.mrf.mxu0
        %v5498 = vadd.f32 %v5449, %v5497
        %5499 = vmatmul.bf16.gmra.mxu0 %v1238
        %v5500 = vpop.f32.mrf.mxu0
        %v5501 = vadd.f32 %v5452, %v5500
        %v5502 = vpop.f32.mrf.mxu0
        %v5503 = vadd.f32 %v5454, %v5502
        %5504 = vdwg.mxu0
        %5505 = vmatpush.bf16.msra.mxu0 %v3364
        %5506 = vmatpush.bf16.msra.mxu0 %v3356
        %5507 = vmatpush.bf16.msra.mxu0 %v3348
        %5508 = vmatpush.bf16.msra.mxu0 %v3340
        %5509 = vmatpush.bf16.msra.mxu0 %v3332
        %5510 = vmatpush.bf16.msra.mxu0 %v3324
        %5511 = vmatpush.bf16.msra.mxu0 %v3316
        %5512 = vmatpush.bf16.msra.mxu0 %v3308
        %5513 = vmatmul.bf16.gmra.mxu0 %v1175
        %v5514 = vpop.f32.mrf.mxu0
        %v5515 = vadd.f32 %v1756, %v5514
        %v5516 = vpop.f32.mrf.mxu0
        %v5517 = vadd.f32 %v1756, %v5516
        %5518 = vmatmul.bf16.gmra.mxu0 %v1183
        %v5519 = vpop.f32.mrf.mxu0
        %v5520 = vadd.f32 %v1756, %v5519
        %v5521 = vpop.f32.mrf.mxu0
        %v5522 = vadd.f32 %v1756, %v5521
        %5523 = vmatmul.bf16.gmra.mxu0 %v1191
        %v5524 = vpop.f32.mrf.mxu0
        %v5525 = vadd.f32 %v1756, %v5524
        %v5526 = vpop.f32.mrf.mxu0
        %v5527 = vadd.f32 %v1756, %v5526
        %5528 = vmatmul.bf16.gmra.mxu0 %v1199
        %v5529 = vpop.f32.mrf.mxu0
        %v5530 = vadd.f32 %v1756, %v5529
        %v5531 = vpop.f32.mrf.mxu0
        %v5532 = vadd.f32 %v1756, %v5531
        %5533 = vmatmul.bf16.gmra.mxu0 %v1207
        %v5534 = vpop.f32.mrf.mxu0
        %v5535 = vadd.f32 %v1756, %v5534
        %v5536 = vpop.f32.mrf.mxu0
        %v5537 = vadd.f32 %v1756, %v5536
        %5538 = vmatmul.bf16.gmra.mxu0 %v1215
        %v5539 = vpop.f32.mrf.mxu0
        %v5540 = vadd.f32 %v1756, %v5539
        %v5541 = vpop.f32.mrf.mxu0
        %v5542 = vadd.f32 %v1756, %v5541
        %5543 = vmatmul.bf16.gmra.mxu0 %v1223
        %v5544 = vpop.f32.mrf.mxu0
        %v5545 = vadd.f32 %v1756, %v5544
        %v5546 = vpop.f32.mrf.mxu0
        %v5547 = vadd.f32 %v1756, %v5546
        %5548 = vmatmul.bf16.gmra.mxu0 %v1231
        %v5549 = vpop.f32.mrf.mxu0
        %v5550 = vadd.f32 %v1756, %v5549
        %v5551 = vpop.f32.mrf.mxu0
        %v5552 = vadd.f32 %v1756, %v5551
        %5553 = vdwg.mxu0
        %5554 = vmatpush.bf16.msra.mxu0 %v3428
        %5555 = vmatpush.bf16.msra.mxu0 %v3420
        %5556 = vmatpush.bf16.msra.mxu0 %v3412
        %5557 = vmatpush.bf16.msra.mxu0 %v3404
        %5558 = vmatpush.bf16.msra.mxu0 %v3396
        %5559 = vmatpush.bf16.msra.mxu0 %v3388
        %5560 = vmatpush.bf16.msra.mxu0 %v3380
        %5561 = vmatpush.bf16.msra.mxu0 %v3372
        %5562 = vmatmul.bf16.gmra.mxu0 %v1176
        %v5563 = vpop.f32.mrf.mxu0
        %v5564 = vadd.f32 %v5515, %v5563
        %v5565 = vpop.f32.mrf.mxu0
        %v5566 = vadd.f32 %v5517, %v5565
        %5567 = vmatmul.bf16.gmra.mxu0 %v1184
        %v5568 = vpop.f32.mrf.mxu0
        %v5569 = vadd.f32 %v5520, %v5568
        %v5570 = vpop.f32.mrf.mxu0
        %v5571 = vadd.f32 %v5522, %v5570
        %5572 = vmatmul.bf16.gmra.mxu0 %v1192
        %v5573 = vpop.f32.mrf.mxu0
        %v5574 = vadd.f32 %v5525, %v5573
        %v5575 = vpop.f32.mrf.mxu0
        %v5576 = vadd.f32 %v5527, %v5575
        %5577 = vmatmul.bf16.gmra.mxu0 %v1200
        %v5578 = vpop.f32.mrf.mxu0
        %v5579 = vadd.f32 %v5530, %v5578
        %v5580 = vpop.f32.mrf.mxu0
        %v5581 = vadd.f32 %v5532, %v5580
        %5582 = vmatmul.bf16.gmra.mxu0 %v1208
        %v5583 = vpop.f32.mrf.mxu0
        %v5584 = vadd.f32 %v5535, %v5583
        %v5585 = vpop.f32.mrf.mxu0
        %v5586 = vadd.f32 %v5537, %v5585
        %5587 = vmatmul.bf16.gmra.mxu0 %v1216
        %v5588 = vpop.f32.mrf.mxu0
        %v5589 = vadd.f32 %v5540, %v5588
        %v5590 = vpop.f32.mrf.mxu0
        %v5591 = vadd.f32 %v5542, %v5590
        %5592 = vmatmul.bf16.gmra.mxu0 %v1224
        %v5593 = vpop.f32.mrf.mxu0
        %v5594 = vadd.f32 %v5545, %v5593
        %v5595 = vpop.f32.mrf.mxu0
        %v5596 = vadd.f32 %v5547, %v5595
        %5597 = vmatmul.bf16.gmra.mxu0 %v1232
        %v5598 = vpop.f32.mrf.mxu0
        %v5599 = vadd.f32 %v5550, %v5598
        %v5600 = vpop.f32.mrf.mxu0
        %v5601 = vadd.f32 %v5552, %v5600
        %5602 = vdwg.mxu0
        %5603 = vmatpush.bf16.msra.mxu0 %v3492
        %5604 = vmatpush.bf16.msra.mxu0 %v3484
        %5605 = vmatpush.bf16.msra.mxu0 %v3476
        %5606 = vmatpush.bf16.msra.mxu0 %v3468
        %5607 = vmatpush.bf16.msra.mxu0 %v3460
        %5608 = vmatpush.bf16.msra.mxu0 %v3452
        %5609 = vmatpush.bf16.msra.mxu0 %v3444
        %5610 = vmatpush.bf16.msra.mxu0 %v3436
        %5611 = vmatmul.bf16.gmra.mxu0 %v1177
        %v5612 = vpop.f32.mrf.mxu0
        %v5613 = vadd.f32 %v5564, %v5612
        %v5614 = vpop.f32.mrf.mxu0
        %v5615 = vadd.f32 %v5566, %v5614
        %5616 = vmatmul.bf16.gmra.mxu0 %v1185
        %v5617 = vpop.f32.mrf.mxu0
        %v5618 = vadd.f32 %v5569, %v5617
        %v5619 = vpop.f32.mrf.mxu0
        %v5620 = vadd.f32 %v5571, %v5619
        %5621 = vmatmul.bf16.gmra.mxu0 %v1193
        %v5622 = vpop.f32.mrf.mxu0
        %v5623 = vadd.f32 %v5574, %v5622
        %v5624 = vpop.f32.mrf.mxu0
        %v5625 = vadd.f32 %v5576, %v5624
        %5626 = vmatmul.bf16.gmra.mxu0 %v1201
        %v5627 = vpop.f32.mrf.mxu0
        %v5628 = vadd.f32 %v5579, %v5627
        %v5629 = vpop.f32.mrf.mxu0
        %v5630 = vadd.f32 %v5581, %v5629
        %5631 = vmatmul.bf16.gmra.mxu0 %v1209
        %v5632 = vpop.f32.mrf.mxu0
        %v5633 = vadd.f32 %v5584, %v5632
        %v5634 = vpop.f32.mrf.mxu0
        %v5635 = vadd.f32 %v5586, %v5634
        %5636 = vmatmul.bf16.gmra.mxu0 %v1217
        %v5637 = vpop.f32.mrf.mxu0
        %v5638 = vadd.f32 %v5589, %v5637
        %v5639 = vpop.f32.mrf.mxu0
        %v5640 = vadd.f32 %v5591, %v5639
        %5641 = vmatmul.bf16.gmra.mxu0 %v1225
        %v5642 = vpop.f32.mrf.mxu0
        %v5643 = vadd.f32 %v5594, %v5642
        %v5644 = vpop.f32.mrf.mxu0
        %v5645 = vadd.f32 %v5596, %v5644
        %5646 = vmatmul.bf16.gmra.mxu0 %v1233
        %v5647 = vpop.f32.mrf.mxu0
        %v5648 = vadd.f32 %v5599, %v5647
        %v5649 = vpop.f32.mrf.mxu0
        %v5650 = vadd.f32 %v5601, %v5649
        %5651 = vdwg.mxu0
        %5652 = vmatpush.bf16.msra.mxu0 %v3556
        %5653 = vmatpush.bf16.msra.mxu0 %v3548
        %5654 = vmatpush.bf16.msra.mxu0 %v3540
        %5655 = vmatpush.bf16.msra.mxu0 %v3532
        %5656 = vmatpush.bf16.msra.mxu0 %v3524
        %5657 = vmatpush.bf16.msra.mxu0 %v3516
        %5658 = vmatpush.bf16.msra.mxu0 %v3508
        %5659 = vmatpush.bf16.msra.mxu0 %v3500
        %5660 = vmatmul.bf16.gmra.mxu0 %v1178
        %v5661 = vpop.f32.mrf.mxu0
        %v5662 = vadd.f32 %v5613, %v5661
        %v5663 = vpop.f32.mrf.mxu0
        %v5664 = vadd.f32 %v5615, %v5663
        %5665 = vmatmul.bf16.gmra.mxu0 %v1186
        %v5666 = vpop.f32.mrf.mxu0
        %v5667 = vadd.f32 %v5618, %v5666
        %v5668 = vpop.f32.mrf.mxu0
        %v5669 = vadd.f32 %v5620, %v5668
        %5670 = vmatmul.bf16.gmra.mxu0 %v1194
        %v5671 = vpop.f32.mrf.mxu0
        %v5672 = vadd.f32 %v5623, %v5671
        %v5673 = vpop.f32.mrf.mxu0
        %v5674 = vadd.f32 %v5625, %v5673
        %5675 = vmatmul.bf16.gmra.mxu0 %v1202
        %v5676 = vpop.f32.mrf.mxu0
        %v5677 = vadd.f32 %v5628, %v5676
        %v5678 = vpop.f32.mrf.mxu0
        %v5679 = vadd.f32 %v5630, %v5678
        %5680 = vmatmul.bf16.gmra.mxu0 %v1210
        %v5681 = vpop.f32.mrf.mxu0
        %v5682 = vadd.f32 %v5633, %v5681
        %v5683 = vpop.f32.mrf.mxu0
        %v5684 = vadd.f32 %v5635, %v5683
        %5685 = vmatmul.bf16.gmra.mxu0 %v1218
        %v5686 = vpop.f32.mrf.mxu0
        %v5687 = vadd.f32 %v5638, %v5686
        %v5688 = vpop.f32.mrf.mxu0
        %v5689 = vadd.f32 %v5640, %v5688
        %5690 = vmatmul.bf16.gmra.mxu0 %v1226
        %v5691 = vpop.f32.mrf.mxu0
        %v5692 = vadd.f32 %v5643, %v5691
        %v5693 = vpop.f32.mrf.mxu0
        %v5694 = vadd.f32 %v5645, %v5693
        %5695 = vmatmul.bf16.gmra.mxu0 %v1234
        %v5696 = vpop.f32.mrf.mxu0
        %v5697 = vadd.f32 %v5648, %v5696
        %v5698 = vpop.f32.mrf.mxu0
        %v5699 = vadd.f32 %v5650, %v5698
        %5700 = vdwg.mxu0
        %5701 = vmatpush.bf16.msra.mxu0 %v3620
        %5702 = vmatpush.bf16.msra.mxu0 %v3612
        %5703 = vmatpush.bf16.msra.mxu0 %v3604
        %5704 = vmatpush.bf16.msra.mxu0 %v3596
        %5705 = vmatpush.bf16.msra.mxu0 %v3588
        %5706 = vmatpush.bf16.msra.mxu0 %v3580
        %5707 = vmatpush.bf16.msra.mxu0 %v3572
        %5708 = vmatpush.bf16.msra.mxu0 %v3564
        %5709 = vmatmul.bf16.gmra.mxu0 %v1179
        %v5710 = vpop.f32.mrf.mxu0
        %v5711 = vadd.f32 %v5662, %v5710
        %v5712 = vpop.f32.mrf.mxu0
        %v5713 = vadd.f32 %v5664, %v5712
        %5714 = vmatmul.bf16.gmra.mxu0 %v1187
        %v5715 = vpop.f32.mrf.mxu0
        %v5716 = vadd.f32 %v5667, %v5715
        %v5717 = vpop.f32.mrf.mxu0
        %v5718 = vadd.f32 %v5669, %v5717
        %5719 = vmatmul.bf16.gmra.mxu0 %v1195
        %v5720 = vpop.f32.mrf.mxu0
        %v5721 = vadd.f32 %v5672, %v5720
        %v5722 = vpop.f32.mrf.mxu0
        %v5723 = vadd.f32 %v5674, %v5722
        %5724 = vmatmul.bf16.gmra.mxu0 %v1203
        %v5725 = vpop.f32.mrf.mxu0
        %v5726 = vadd.f32 %v5677, %v5725
        %v5727 = vpop.f32.mrf.mxu0
        %v5728 = vadd.f32 %v5679, %v5727
        %5729 = vmatmul.bf16.gmra.mxu0 %v1211
        %v5730 = vpop.f32.mrf.mxu0
        %v5731 = vadd.f32 %v5682, %v5730
        %v5732 = vpop.f32.mrf.mxu0
        %v5733 = vadd.f32 %v5684, %v5732
        %5734 = vmatmul.bf16.gmra.mxu0 %v1219
        %v5735 = vpop.f32.mrf.mxu0
        %v5736 = vadd.f32 %v5687, %v5735
        %v5737 = vpop.f32.mrf.mxu0
        %v5738 = vadd.f32 %v5689, %v5737
        %5739 = vmatmul.bf16.gmra.mxu0 %v1227
        %v5740 = vpop.f32.mrf.mxu0
        %v5741 = vadd.f32 %v5692, %v5740
        %v5742 = vpop.f32.mrf.mxu0
        %v5743 = vadd.f32 %v5694, %v5742
        %5744 = vmatmul.bf16.gmra.mxu0 %v1235
        %v5745 = vpop.f32.mrf.mxu0
        %v5746 = vadd.f32 %v5697, %v5745
        %v5747 = vpop.f32.mrf.mxu0
        %v5748 = vadd.f32 %v5699, %v5747
        %5749 = vdwg.mxu0
        %5750 = vmatpush.bf16.msra.mxu0 %v3684
        %5751 = vmatpush.bf16.msra.mxu0 %v3676
        %5752 = vmatpush.bf16.msra.mxu0 %v3668
        %5753 = vmatpush.bf16.msra.mxu0 %v3660
        %5754 = vmatpush.bf16.msra.mxu0 %v3652
        %5755 = vmatpush.bf16.msra.mxu0 %v3644
        %5756 = vmatpush.bf16.msra.mxu0 %v3636
        %5757 = vmatpush.bf16.msra.mxu0 %v3628
        %5758 = vmatmul.bf16.gmra.mxu0 %v1180
        %v5759 = vpop.f32.mrf.mxu0
        %v5760 = vadd.f32 %v5711, %v5759
        %v5761 = vpop.f32.mrf.mxu0
        %v5762 = vadd.f32 %v5713, %v5761
        %5763 = vmatmul.bf16.gmra.mxu0 %v1188
        %v5764 = vpop.f32.mrf.mxu0
        %v5765 = vadd.f32 %v5716, %v5764
        %v5766 = vpop.f32.mrf.mxu0
        %v5767 = vadd.f32 %v5718, %v5766
        %5768 = vmatmul.bf16.gmra.mxu0 %v1196
        %v5769 = vpop.f32.mrf.mxu0
        %v5770 = vadd.f32 %v5721, %v5769
        %v5771 = vpop.f32.mrf.mxu0
        %v5772 = vadd.f32 %v5723, %v5771
        %5773 = vmatmul.bf16.gmra.mxu0 %v1204
        %v5774 = vpop.f32.mrf.mxu0
        %v5775 = vadd.f32 %v5726, %v5774
        %v5776 = vpop.f32.mrf.mxu0
        %v5777 = vadd.f32 %v5728, %v5776
        %5778 = vmatmul.bf16.gmra.mxu0 %v1212
        %v5779 = vpop.f32.mrf.mxu0
        %v5780 = vadd.f32 %v5731, %v5779
        %v5781 = vpop.f32.mrf.mxu0
        %v5782 = vadd.f32 %v5733, %v5781
        %5783 = vmatmul.bf16.gmra.mxu0 %v1220
        %v5784 = vpop.f32.mrf.mxu0
        %v5785 = vadd.f32 %v5736, %v5784
        %v5786 = vpop.f32.mrf.mxu0
        %v5787 = vadd.f32 %v5738, %v5786
        %5788 = vmatmul.bf16.gmra.mxu0 %v1228
        %v5789 = vpop.f32.mrf.mxu0
        %v5790 = vadd.f32 %v5741, %v5789
        %v5791 = vpop.f32.mrf.mxu0
        %v5792 = vadd.f32 %v5743, %v5791
        %5793 = vmatmul.bf16.gmra.mxu0 %v1236
        %v5794 = vpop.f32.mrf.mxu0
        %v5795 = vadd.f32 %v5746, %v5794
        %v5796 = vpop.f32.mrf.mxu0
        %v5797 = vadd.f32 %v5748, %v5796
        %5798 = vdwg.mxu0
        %5799 = vmatpush.bf16.msra.mxu0 %v3748
        %5800 = vmatpush.bf16.msra.mxu0 %v3740
        %5801 = vmatpush.bf16.msra.mxu0 %v3732
        %5802 = vmatpush.bf16.msra.mxu0 %v3724
        %5803 = vmatpush.bf16.msra.mxu0 %v3716
        %5804 = vmatpush.bf16.msra.mxu0 %v3708
        %5805 = vmatpush.bf16.msra.mxu0 %v3700
        %5806 = vmatpush.bf16.msra.mxu0 %v3692
        %5807 = vmatmul.bf16.gmra.mxu0 %v1181
        %v5808 = vpop.f32.mrf.mxu0
        %v5809 = vadd.f32 %v5760, %v5808
        %v5810 = vpop.f32.mrf.mxu0
        %v5811 = vadd.f32 %v5762, %v5810
        %5812 = vmatmul.bf16.gmra.mxu0 %v1189
        %v5813 = vpop.f32.mrf.mxu0
        %v5814 = vadd.f32 %v5765, %v5813
        %v5815 = vpop.f32.mrf.mxu0
        %v5816 = vadd.f32 %v5767, %v5815
        %5817 = vmatmul.bf16.gmra.mxu0 %v1197
        %v5818 = vpop.f32.mrf.mxu0
        %v5819 = vadd.f32 %v5770, %v5818
        %v5820 = vpop.f32.mrf.mxu0
        %v5821 = vadd.f32 %v5772, %v5820
        %5822 = vmatmul.bf16.gmra.mxu0 %v1205
        %v5823 = vpop.f32.mrf.mxu0
        %v5824 = vadd.f32 %v5775, %v5823
        %v5825 = vpop.f32.mrf.mxu0
        %v5826 = vadd.f32 %v5777, %v5825
        %5827 = vmatmul.bf16.gmra.mxu0 %v1213
        %v5828 = vpop.f32.mrf.mxu0
        %v5829 = vadd.f32 %v5780, %v5828
        %v5830 = vpop.f32.mrf.mxu0
        %v5831 = vadd.f32 %v5782, %v5830
        %5832 = vmatmul.bf16.gmra.mxu0 %v1221
        %v5833 = vpop.f32.mrf.mxu0
        %v5834 = vadd.f32 %v5785, %v5833
        %v5835 = vpop.f32.mrf.mxu0
        %v5836 = vadd.f32 %v5787, %v5835
        %5837 = vmatmul.bf16.gmra.mxu0 %v1229
        %v5838 = vpop.f32.mrf.mxu0
        %v5839 = vadd.f32 %v5790, %v5838
        %v5840 = vpop.f32.mrf.mxu0
        %v5841 = vadd.f32 %v5792, %v5840
        %5842 = vmatmul.bf16.gmra.mxu0 %v1237
        %v5843 = vpop.f32.mrf.mxu0
        %v5844 = vadd.f32 %v5795, %v5843
        %v5845 = vpop.f32.mrf.mxu0
        %v5846 = vadd.f32 %v5797, %v5845
        %5847 = vdwg.mxu0
        %5848 = vmatpush.bf16.msra.mxu0 %v3812
        %5849 = vmatpush.bf16.msra.mxu0 %v3804
        %5850 = vmatpush.bf16.msra.mxu0 %v3796
        %5851 = vmatpush.bf16.msra.mxu0 %v3788
        %5852 = vmatpush.bf16.msra.mxu0 %v3780
        %5853 = vmatpush.bf16.msra.mxu0 %v3772
        %5854 = vmatpush.bf16.msra.mxu0 %v3764
        %5855 = vmatpush.bf16.msra.mxu0 %v3756
        %5856 = vmatmul.bf16.gmra.mxu0 %v1182
        %v5857 = vpop.f32.mrf.mxu0
        %v5858 = vadd.f32 %v5809, %v5857
        %v5859 = vpop.f32.mrf.mxu0
        %v5860 = vadd.f32 %v5811, %v5859
        %5861 = vmatmul.bf16.gmra.mxu0 %v1190
        %v5862 = vpop.f32.mrf.mxu0
        %v5863 = vadd.f32 %v5814, %v5862
        %v5864 = vpop.f32.mrf.mxu0
        %v5865 = vadd.f32 %v5816, %v5864
        %5866 = vmatmul.bf16.gmra.mxu0 %v1198
        %v5867 = vpop.f32.mrf.mxu0
        %v5868 = vadd.f32 %v5819, %v5867
        %v5869 = vpop.f32.mrf.mxu0
        %v5870 = vadd.f32 %v5821, %v5869
        %5871 = vmatmul.bf16.gmra.mxu0 %v1206
        %v5872 = vpop.f32.mrf.mxu0
        %v5873 = vadd.f32 %v5824, %v5872
        %v5874 = vpop.f32.mrf.mxu0
        %v5875 = vadd.f32 %v5826, %v5874
        %5876 = vmatmul.bf16.gmra.mxu0 %v1214
        %v5877 = vpop.f32.mrf.mxu0
        %v5878 = vadd.f32 %v5829, %v5877
        %v5879 = vpop.f32.mrf.mxu0
        %v5880 = vadd.f32 %v5831, %v5879
        %5881 = vmatmul.bf16.gmra.mxu0 %v1222
        %v5882 = vpop.f32.mrf.mxu0
        %v5883 = vadd.f32 %v5834, %v5882
        %v5884 = vpop.f32.mrf.mxu0
        %v5885 = vadd.f32 %v5836, %v5884
        %5886 = vmatmul.bf16.gmra.mxu0 %v1230
        %v5887 = vpop.f32.mrf.mxu0
        %v5888 = vadd.f32 %v5839, %v5887
        %v5889 = vpop.f32.mrf.mxu0
        %v5890 = vadd.f32 %v5841, %v5889
        %5891 = vmatmul.bf16.gmra.mxu0 %v1238
        %v5892 = vpop.f32.mrf.mxu0
        %v5893 = vadd.f32 %v5844, %v5892
        %v5894 = vpop.f32.mrf.mxu0
        %v5895 = vadd.f32 %v5846, %v5894
        %5896 = vdwg.mxu0
        %5897 = vmatpush.bf16.msra.mxu0 %v3365
        %5898 = vmatpush.bf16.msra.mxu0 %v3357
        %5899 = vmatpush.bf16.msra.mxu0 %v3349
        %5900 = vmatpush.bf16.msra.mxu0 %v3341
        %5901 = vmatpush.bf16.msra.mxu0 %v3333
        %5902 = vmatpush.bf16.msra.mxu0 %v3325
        %5903 = vmatpush.bf16.msra.mxu0 %v3317
        %5904 = vmatpush.bf16.msra.mxu0 %v3309
        %5905 = vmatmul.bf16.gmra.mxu0 %v1175
        %v5906 = vpop.f32.mrf.mxu0
        %v5907 = vadd.f32 %v1757, %v5906
        %v5908 = vpop.f32.mrf.mxu0
        %v5909 = vadd.f32 %v1757, %v5908
        %5910 = vmatmul.bf16.gmra.mxu0 %v1183
        %v5911 = vpop.f32.mrf.mxu0
        %v5912 = vadd.f32 %v1757, %v5911
        %v5913 = vpop.f32.mrf.mxu0
        %v5914 = vadd.f32 %v1757, %v5913
        %5915 = vmatmul.bf16.gmra.mxu0 %v1191
        %v5916 = vpop.f32.mrf.mxu0
        %v5917 = vadd.f32 %v1757, %v5916
        %v5918 = vpop.f32.mrf.mxu0
        %v5919 = vadd.f32 %v1757, %v5918
        %5920 = vmatmul.bf16.gmra.mxu0 %v1199
        %v5921 = vpop.f32.mrf.mxu0
        %v5922 = vadd.f32 %v1757, %v5921
        %v5923 = vpop.f32.mrf.mxu0
        %v5924 = vadd.f32 %v1757, %v5923
        %5925 = vmatmul.bf16.gmra.mxu0 %v1207
        %v5926 = vpop.f32.mrf.mxu0
        %v5927 = vadd.f32 %v1757, %v5926
        %v5928 = vpop.f32.mrf.mxu0
        %v5929 = vadd.f32 %v1757, %v5928
        %5930 = vmatmul.bf16.gmra.mxu0 %v1215
        %v5931 = vpop.f32.mrf.mxu0
        %v5932 = vadd.f32 %v1757, %v5931
        %v5933 = vpop.f32.mrf.mxu0
        %v5934 = vadd.f32 %v1757, %v5933
        %5935 = vmatmul.bf16.gmra.mxu0 %v1223
        %v5936 = vpop.f32.mrf.mxu0
        %v5937 = vadd.f32 %v1757, %v5936
        %v5938 = vpop.f32.mrf.mxu0
        %v5939 = vadd.f32 %v1757, %v5938
        %5940 = vmatmul.bf16.gmra.mxu0 %v1231
        %v5941 = vpop.f32.mrf.mxu0
        %v5942 = vadd.f32 %v1757, %v5941
        %v5943 = vpop.f32.mrf.mxu0
        %v5944 = vadd.f32 %v1757, %v5943
        %5945 = vdwg.mxu0
        %5946 = vmatpush.bf16.msra.mxu0 %v3429
        %5947 = vmatpush.bf16.msra.mxu0 %v3421
        %5948 = vmatpush.bf16.msra.mxu0 %v3413
        %5949 = vmatpush.bf16.msra.mxu0 %v3405
        %5950 = vmatpush.bf16.msra.mxu0 %v3397
        %5951 = vmatpush.bf16.msra.mxu0 %v3389
        %5952 = vmatpush.bf16.msra.mxu0 %v3381
        %5953 = vmatpush.bf16.msra.mxu0 %v3373
        %5954 = vmatmul.bf16.gmra.mxu0 %v1176
        %v5955 = vpop.f32.mrf.mxu0
        %v5956 = vadd.f32 %v5907, %v5955
        %v5957 = vpop.f32.mrf.mxu0
        %v5958 = vadd.f32 %v5909, %v5957
        %5959 = vmatmul.bf16.gmra.mxu0 %v1184
        %v5960 = vpop.f32.mrf.mxu0
        %v5961 = vadd.f32 %v5912, %v5960
        %v5962 = vpop.f32.mrf.mxu0
        %v5963 = vadd.f32 %v5914, %v5962
        %5964 = vmatmul.bf16.gmra.mxu0 %v1192
        %v5965 = vpop.f32.mrf.mxu0
        %v5966 = vadd.f32 %v5917, %v5965
        %v5967 = vpop.f32.mrf.mxu0
        %v5968 = vadd.f32 %v5919, %v5967
        %5969 = vmatmul.bf16.gmra.mxu0 %v1200
        %v5970 = vpop.f32.mrf.mxu0
        %v5971 = vadd.f32 %v5922, %v5970
        %v5972 = vpop.f32.mrf.mxu0
        %v5973 = vadd.f32 %v5924, %v5972
        %5974 = vmatmul.bf16.gmra.mxu0 %v1208
        %v5975 = vpop.f32.mrf.mxu0
        %v5976 = vadd.f32 %v5927, %v5975
        %v5977 = vpop.f32.mrf.mxu0
        %v5978 = vadd.f32 %v5929, %v5977
        %5979 = vmatmul.bf16.gmra.mxu0 %v1216
        %v5980 = vpop.f32.mrf.mxu0
        %v5981 = vadd.f32 %v5932, %v5980
        %v5982 = vpop.f32.mrf.mxu0
        %v5983 = vadd.f32 %v5934, %v5982
        %5984 = vmatmul.bf16.gmra.mxu0 %v1224
        %v5985 = vpop.f32.mrf.mxu0
        %v5986 = vadd.f32 %v5937, %v5985
        %v5987 = vpop.f32.mrf.mxu0
        %v5988 = vadd.f32 %v5939, %v5987
        %5989 = vmatmul.bf16.gmra.mxu0 %v1232
        %v5990 = vpop.f32.mrf.mxu0
        %v5991 = vadd.f32 %v5942, %v5990
        %v5992 = vpop.f32.mrf.mxu0
        %v5993 = vadd.f32 %v5944, %v5992
        %5994 = vdwg.mxu0
        %5995 = vmatpush.bf16.msra.mxu0 %v3493
        %5996 = vmatpush.bf16.msra.mxu0 %v3485
        %5997 = vmatpush.bf16.msra.mxu0 %v3477
        %5998 = vmatpush.bf16.msra.mxu0 %v3469
        %5999 = vmatpush.bf16.msra.mxu0 %v3461
        %6000 = vmatpush.bf16.msra.mxu0 %v3453
        %6001 = vmatpush.bf16.msra.mxu0 %v3445
        %6002 = vmatpush.bf16.msra.mxu0 %v3437
        %6003 = vmatmul.bf16.gmra.mxu0 %v1177
        %v6004 = vpop.f32.mrf.mxu0
        %v6005 = vadd.f32 %v5956, %v6004
        %v6006 = vpop.f32.mrf.mxu0
        %v6007 = vadd.f32 %v5958, %v6006
        %6008 = vmatmul.bf16.gmra.mxu0 %v1185
        %v6009 = vpop.f32.mrf.mxu0
        %v6010 = vadd.f32 %v5961, %v6009
        %v6011 = vpop.f32.mrf.mxu0
        %v6012 = vadd.f32 %v5963, %v6011
        %6013 = vmatmul.bf16.gmra.mxu0 %v1193
        %v6014 = vpop.f32.mrf.mxu0
        %v6015 = vadd.f32 %v5966, %v6014
        %v6016 = vpop.f32.mrf.mxu0
        %v6017 = vadd.f32 %v5968, %v6016
        %6018 = vmatmul.bf16.gmra.mxu0 %v1201
        %v6019 = vpop.f32.mrf.mxu0
        %v6020 = vadd.f32 %v5971, %v6019
        %v6021 = vpop.f32.mrf.mxu0
        %v6022 = vadd.f32 %v5973, %v6021
        %6023 = vmatmul.bf16.gmra.mxu0 %v1209
        %v6024 = vpop.f32.mrf.mxu0
        %v6025 = vadd.f32 %v5976, %v6024
        %v6026 = vpop.f32.mrf.mxu0
        %v6027 = vadd.f32 %v5978, %v6026
        %6028 = vmatmul.bf16.gmra.mxu0 %v1217
        %v6029 = vpop.f32.mrf.mxu0
        %v6030 = vadd.f32 %v5981, %v6029
        %v6031 = vpop.f32.mrf.mxu0
        %v6032 = vadd.f32 %v5983, %v6031
        %6033 = vmatmul.bf16.gmra.mxu0 %v1225
        %v6034 = vpop.f32.mrf.mxu0
        %v6035 = vadd.f32 %v5986, %v6034
        %v6036 = vpop.f32.mrf.mxu0
        %v6037 = vadd.f32 %v5988, %v6036
        %6038 = vmatmul.bf16.gmra.mxu0 %v1233
        %v6039 = vpop.f32.mrf.mxu0
        %v6040 = vadd.f32 %v5991, %v6039
        %v6041 = vpop.f32.mrf.mxu0
        %v6042 = vadd.f32 %v5993, %v6041
        %6043 = vdwg.mxu0
        %6044 = vmatpush.bf16.msra.mxu0 %v3557
        %6045 = vmatpush.bf16.msra.mxu0 %v3549
        %6046 = vmatpush.bf16.msra.mxu0 %v3541
        %6047 = vmatpush.bf16.msra.mxu0 %v3533
        %6048 = vmatpush.bf16.msra.mxu0 %v3525
        %6049 = vmatpush.bf16.msra.mxu0 %v3517
        %6050 = vmatpush.bf16.msra.mxu0 %v3509
        %6051 = vmatpush.bf16.msra.mxu0 %v3501
        %6052 = vmatmul.bf16.gmra.mxu0 %v1178
        %v6053 = vpop.f32.mrf.mxu0
        %v6054 = vadd.f32 %v6005, %v6053
        %v6055 = vpop.f32.mrf.mxu0
        %v6056 = vadd.f32 %v6007, %v6055
        %6057 = vmatmul.bf16.gmra.mxu0 %v1186
        %v6058 = vpop.f32.mrf.mxu0
        %v6059 = vadd.f32 %v6010, %v6058
        %v6060 = vpop.f32.mrf.mxu0
        %v6061 = vadd.f32 %v6012, %v6060
        %6062 = vmatmul.bf16.gmra.mxu0 %v1194
        %v6063 = vpop.f32.mrf.mxu0
        %v6064 = vadd.f32 %v6015, %v6063
        %v6065 = vpop.f32.mrf.mxu0
        %v6066 = vadd.f32 %v6017, %v6065
        %6067 = vmatmul.bf16.gmra.mxu0 %v1202
        %v6068 = vpop.f32.mrf.mxu0
        %v6069 = vadd.f32 %v6020, %v6068
        %v6070 = vpop.f32.mrf.mxu0
        %v6071 = vadd.f32 %v6022, %v6070
        %6072 = vmatmul.bf16.gmra.mxu0 %v1210
        %v6073 = vpop.f32.mrf.mxu0
        %v6074 = vadd.f32 %v6025, %v6073
        %v6075 = vpop.f32.mrf.mxu0
        %v6076 = vadd.f32 %v6027, %v6075
        %6077 = vmatmul.bf16.gmra.mxu0 %v1218
        %v6078 = vpop.f32.mrf.mxu0
        %v6079 = vadd.f32 %v6030, %v6078
        %v6080 = vpop.f32.mrf.mxu0
        %v6081 = vadd.f32 %v6032, %v6080
        %6082 = vmatmul.bf16.gmra.mxu0 %v1226
        %v6083 = vpop.f32.mrf.mxu0
        %v6084 = vadd.f32 %v6035, %v6083
        %v6085 = vpop.f32.mrf.mxu0
        %v6086 = vadd.f32 %v6037, %v6085
        %6087 = vmatmul.bf16.gmra.mxu0 %v1234
        %v6088 = vpop.f32.mrf.mxu0
        %v6089 = vadd.f32 %v6040, %v6088
        %v6090 = vpop.f32.mrf.mxu0
        %v6091 = vadd.f32 %v6042, %v6090
        %6092 = vdwg.mxu0
        %6093 = vmatpush.bf16.msra.mxu0 %v3621
        %6094 = vmatpush.bf16.msra.mxu0 %v3613
        %6095 = vmatpush.bf16.msra.mxu0 %v3605
        %6096 = vmatpush.bf16.msra.mxu0 %v3597
        %6097 = vmatpush.bf16.msra.mxu0 %v3589
        %6098 = vmatpush.bf16.msra.mxu0 %v3581
        %6099 = vmatpush.bf16.msra.mxu0 %v3573
        %6100 = vmatpush.bf16.msra.mxu0 %v3565
        %6101 = vmatmul.bf16.gmra.mxu0 %v1179
        %v6102 = vpop.f32.mrf.mxu0
        %v6103 = vadd.f32 %v6054, %v6102
        %v6104 = vpop.f32.mrf.mxu0
        %v6105 = vadd.f32 %v6056, %v6104
        %6106 = vmatmul.bf16.gmra.mxu0 %v1187
        %v6107 = vpop.f32.mrf.mxu0
        %v6108 = vadd.f32 %v6059, %v6107
        %v6109 = vpop.f32.mrf.mxu0
        %v6110 = vadd.f32 %v6061, %v6109
        %6111 = vmatmul.bf16.gmra.mxu0 %v1195
        %v6112 = vpop.f32.mrf.mxu0
        %v6113 = vadd.f32 %v6064, %v6112
        %v6114 = vpop.f32.mrf.mxu0
        %v6115 = vadd.f32 %v6066, %v6114
        %6116 = vmatmul.bf16.gmra.mxu0 %v1203
        %v6117 = vpop.f32.mrf.mxu0
        %v6118 = vadd.f32 %v6069, %v6117
        %v6119 = vpop.f32.mrf.mxu0
        %v6120 = vadd.f32 %v6071, %v6119
        %6121 = vmatmul.bf16.gmra.mxu0 %v1211
        %v6122 = vpop.f32.mrf.mxu0
        %v6123 = vadd.f32 %v6074, %v6122
        %v6124 = vpop.f32.mrf.mxu0
        %v6125 = vadd.f32 %v6076, %v6124
        %6126 = vmatmul.bf16.gmra.mxu0 %v1219
        %v6127 = vpop.f32.mrf.mxu0
        %v6128 = vadd.f32 %v6079, %v6127
        %v6129 = vpop.f32.mrf.mxu0
        %v6130 = vadd.f32 %v6081, %v6129
        %6131 = vmatmul.bf16.gmra.mxu0 %v1227
        %v6132 = vpop.f32.mrf.mxu0
        %v6133 = vadd.f32 %v6084, %v6132
        %v6134 = vpop.f32.mrf.mxu0
        %v6135 = vadd.f32 %v6086, %v6134
        %6136 = vmatmul.bf16.gmra.mxu0 %v1235
        %v6137 = vpop.f32.mrf.mxu0
        %v6138 = vadd.f32 %v6089, %v6137
        %v6139 = vpop.f32.mrf.mxu0
        %v6140 = vadd.f32 %v6091, %v6139
        %6141 = vdwg.mxu0
        %6142 = vmatpush.bf16.msra.mxu0 %v3685
        %6143 = vmatpush.bf16.msra.mxu0 %v3677
        %6144 = vmatpush.bf16.msra.mxu0 %v3669
        %6145 = vmatpush.bf16.msra.mxu0 %v3661
        %6146 = vmatpush.bf16.msra.mxu0 %v3653
        %6147 = vmatpush.bf16.msra.mxu0 %v3645
        %6148 = vmatpush.bf16.msra.mxu0 %v3637
        %6149 = vmatpush.bf16.msra.mxu0 %v3629
        %6150 = vmatmul.bf16.gmra.mxu0 %v1180
        %v6151 = vpop.f32.mrf.mxu0
        %v6152 = vadd.f32 %v6103, %v6151
        %v6153 = vpop.f32.mrf.mxu0
        %v6154 = vadd.f32 %v6105, %v6153
        %6155 = vmatmul.bf16.gmra.mxu0 %v1188
        %v6156 = vpop.f32.mrf.mxu0
        %v6157 = vadd.f32 %v6108, %v6156
        %v6158 = vpop.f32.mrf.mxu0
        %v6159 = vadd.f32 %v6110, %v6158
        %6160 = vmatmul.bf16.gmra.mxu0 %v1196
        %v6161 = vpop.f32.mrf.mxu0
        %v6162 = vadd.f32 %v6113, %v6161
        %v6163 = vpop.f32.mrf.mxu0
        %v6164 = vadd.f32 %v6115, %v6163
        %6165 = vmatmul.bf16.gmra.mxu0 %v1204
        %v6166 = vpop.f32.mrf.mxu0
        %v6167 = vadd.f32 %v6118, %v6166
        %v6168 = vpop.f32.mrf.mxu0
        %v6169 = vadd.f32 %v6120, %v6168
        %6170 = vmatmul.bf16.gmra.mxu0 %v1212
        %v6171 = vpop.f32.mrf.mxu0
        %v6172 = vadd.f32 %v6123, %v6171
        %v6173 = vpop.f32.mrf.mxu0
        %v6174 = vadd.f32 %v6125, %v6173
        %6175 = vmatmul.bf16.gmra.mxu0 %v1220
        %v6176 = vpop.f32.mrf.mxu0
        %v6177 = vadd.f32 %v6128, %v6176
        %v6178 = vpop.f32.mrf.mxu0
        %v6179 = vadd.f32 %v6130, %v6178
        %6180 = vmatmul.bf16.gmra.mxu0 %v1228
        %v6181 = vpop.f32.mrf.mxu0
        %v6182 = vadd.f32 %v6133, %v6181
        %v6183 = vpop.f32.mrf.mxu0
        %v6184 = vadd.f32 %v6135, %v6183
        %6185 = vmatmul.bf16.gmra.mxu0 %v1236
        %v6186 = vpop.f32.mrf.mxu0
        %v6187 = vadd.f32 %v6138, %v6186
        %v6188 = vpop.f32.mrf.mxu0
        %v6189 = vadd.f32 %v6140, %v6188
        %6190 = vdwg.mxu0
        %6191 = vmatpush.bf16.msra.mxu0 %v3749
        %6192 = vmatpush.bf16.msra.mxu0 %v3741
        %6193 = vmatpush.bf16.msra.mxu0 %v3733
        %6194 = vmatpush.bf16.msra.mxu0 %v3725
        %6195 = vmatpush.bf16.msra.mxu0 %v3717
        %6196 = vmatpush.bf16.msra.mxu0 %v3709
        %6197 = vmatpush.bf16.msra.mxu0 %v3701
        %6198 = vmatpush.bf16.msra.mxu0 %v3693
        %6199 = vmatmul.bf16.gmra.mxu0 %v1181
        %v6200 = vpop.f32.mrf.mxu0
        %v6201 = vadd.f32 %v6152, %v6200
        %v6202 = vpop.f32.mrf.mxu0
        %v6203 = vadd.f32 %v6154, %v6202
        %6204 = vmatmul.bf16.gmra.mxu0 %v1189
        %v6205 = vpop.f32.mrf.mxu0
        %v6206 = vadd.f32 %v6157, %v6205
        %v6207 = vpop.f32.mrf.mxu0
        %v6208 = vadd.f32 %v6159, %v6207
        %6209 = vmatmul.bf16.gmra.mxu0 %v1197
        %v6210 = vpop.f32.mrf.mxu0
        %v6211 = vadd.f32 %v6162, %v6210
        %v6212 = vpop.f32.mrf.mxu0
        %v6213 = vadd.f32 %v6164, %v6212
        %6214 = vmatmul.bf16.gmra.mxu0 %v1205
        %v6215 = vpop.f32.mrf.mxu0
        %v6216 = vadd.f32 %v6167, %v6215
        %v6217 = vpop.f32.mrf.mxu0
        %v6218 = vadd.f32 %v6169, %v6217
        %6219 = vmatmul.bf16.gmra.mxu0 %v1213
        %v6220 = vpop.f32.mrf.mxu0
        %v6221 = vadd.f32 %v6172, %v6220
        %v6222 = vpop.f32.mrf.mxu0
        %v6223 = vadd.f32 %v6174, %v6222
        %6224 = vmatmul.bf16.gmra.mxu0 %v1221
        %v6225 = vpop.f32.mrf.mxu0
        %v6226 = vadd.f32 %v6177, %v6225
        %v6227 = vpop.f32.mrf.mxu0
        %v6228 = vadd.f32 %v6179, %v6227
        %6229 = vmatmul.bf16.gmra.mxu0 %v1229
        %v6230 = vpop.f32.mrf.mxu0
        %v6231 = vadd.f32 %v6182, %v6230
        %v6232 = vpop.f32.mrf.mxu0
        %v6233 = vadd.f32 %v6184, %v6232
        %6234 = vmatmul.bf16.gmra.mxu0 %v1237
        %v6235 = vpop.f32.mrf.mxu0
        %v6236 = vadd.f32 %v6187, %v6235
        %v6237 = vpop.f32.mrf.mxu0
        %v6238 = vadd.f32 %v6189, %v6237
        %6239 = vdwg.mxu0
        %6240 = vmatpush.bf16.msra.mxu0 %v3813
        %6241 = vmatpush.bf16.msra.mxu0 %v3805
        %6242 = vmatpush.bf16.msra.mxu0 %v3797
        %6243 = vmatpush.bf16.msra.mxu0 %v3789
        %6244 = vmatpush.bf16.msra.mxu0 %v3781
        %6245 = vmatpush.bf16.msra.mxu0 %v3773
        %6246 = vmatpush.bf16.msra.mxu0 %v3765
        %6247 = vmatpush.bf16.msra.mxu0 %v3757
        %6248 = vmatmul.bf16.gmra.mxu0 %v1182
        %v6249 = vpop.f32.mrf.mxu0
        %v6250 = vadd.f32 %v6201, %v6249
        %v6251 = vpop.f32.mrf.mxu0
        %v6252 = vadd.f32 %v6203, %v6251
        %6253 = vmatmul.bf16.gmra.mxu0 %v1190
        %v6254 = vpop.f32.mrf.mxu0
        %v6255 = vadd.f32 %v6206, %v6254
        %v6256 = vpop.f32.mrf.mxu0
        %v6257 = vadd.f32 %v6208, %v6256
        %6258 = vmatmul.bf16.gmra.mxu0 %v1198
        %v6259 = vpop.f32.mrf.mxu0
        %v6260 = vadd.f32 %v6211, %v6259
        %v6261 = vpop.f32.mrf.mxu0
        %v6262 = vadd.f32 %v6213, %v6261
        %6263 = vmatmul.bf16.gmra.mxu0 %v1206
        %v6264 = vpop.f32.mrf.mxu0
        %v6265 = vadd.f32 %v6216, %v6264
        %v6266 = vpop.f32.mrf.mxu0
        %v6267 = vadd.f32 %v6218, %v6266
        %6268 = vmatmul.bf16.gmra.mxu0 %v1214
        %v6269 = vpop.f32.mrf.mxu0
        %v6270 = vadd.f32 %v6221, %v6269
        %v6271 = vpop.f32.mrf.mxu0
        %v6272 = vadd.f32 %v6223, %v6271
        %6273 = vmatmul.bf16.gmra.mxu0 %v1222
        %v6274 = vpop.f32.mrf.mxu0
        %v6275 = vadd.f32 %v6226, %v6274
        %v6276 = vpop.f32.mrf.mxu0
        %v6277 = vadd.f32 %v6228, %v6276
        %6278 = vmatmul.bf16.gmra.mxu0 %v1230
        %v6279 = vpop.f32.mrf.mxu0
        %v6280 = vadd.f32 %v6231, %v6279
        %v6281 = vpop.f32.mrf.mxu0
        %v6282 = vadd.f32 %v6233, %v6281
        %6283 = vmatmul.bf16.gmra.mxu0 %v1238
        %v6284 = vpop.f32.mrf.mxu0
        %v6285 = vadd.f32 %v6236, %v6284
        %v6286 = vpop.f32.mrf.mxu0
        %v6287 = vadd.f32 %v6238, %v6286
        %6288 = vdwg.mxu0
        %6289 = vmatpush.bf16.msra.mxu0 %v3366
        %6290 = vmatpush.bf16.msra.mxu0 %v3358
        %6291 = vmatpush.bf16.msra.mxu0 %v3350
        %6292 = vmatpush.bf16.msra.mxu0 %v3342
        %6293 = vmatpush.bf16.msra.mxu0 %v3334
        %6294 = vmatpush.bf16.msra.mxu0 %v3326
        %6295 = vmatpush.bf16.msra.mxu0 %v3318
        %6296 = vmatpush.bf16.msra.mxu0 %v3310
        %6297 = vmatmul.bf16.gmra.mxu0 %v1175
        %v6298 = vpop.f32.mrf.mxu0
        %v6299 = vadd.f32 %v1758, %v6298
        %v6300 = vpop.f32.mrf.mxu0
        %v6301 = vadd.f32 %v1758, %v6300
        %6302 = vmatmul.bf16.gmra.mxu0 %v1183
        %v6303 = vpop.f32.mrf.mxu0
        %v6304 = vadd.f32 %v1758, %v6303
        %v6305 = vpop.f32.mrf.mxu0
        %v6306 = vadd.f32 %v1758, %v6305
        %6307 = vmatmul.bf16.gmra.mxu0 %v1191
        %v6308 = vpop.f32.mrf.mxu0
        %v6309 = vadd.f32 %v1758, %v6308
        %v6310 = vpop.f32.mrf.mxu0
        %v6311 = vadd.f32 %v1758, %v6310
        %6312 = vmatmul.bf16.gmra.mxu0 %v1199
        %v6313 = vpop.f32.mrf.mxu0
        %v6314 = vadd.f32 %v1758, %v6313
        %v6315 = vpop.f32.mrf.mxu0
        %v6316 = vadd.f32 %v1758, %v6315
        %6317 = vmatmul.bf16.gmra.mxu0 %v1207
        %v6318 = vpop.f32.mrf.mxu0
        %v6319 = vadd.f32 %v1758, %v6318
        %v6320 = vpop.f32.mrf.mxu0
        %v6321 = vadd.f32 %v1758, %v6320
        %6322 = vmatmul.bf16.gmra.mxu0 %v1215
        %v6323 = vpop.f32.mrf.mxu0
        %v6324 = vadd.f32 %v1758, %v6323
        %v6325 = vpop.f32.mrf.mxu0
        %v6326 = vadd.f32 %v1758, %v6325
        %6327 = vmatmul.bf16.gmra.mxu0 %v1223
        %v6328 = vpop.f32.mrf.mxu0
        %v6329 = vadd.f32 %v1758, %v6328
        %v6330 = vpop.f32.mrf.mxu0
        %v6331 = vadd.f32 %v1758, %v6330
        %6332 = vmatmul.bf16.gmra.mxu0 %v1231
        %v6333 = vpop.f32.mrf.mxu0
        %v6334 = vadd.f32 %v1758, %v6333
        %v6335 = vpop.f32.mrf.mxu0
        %v6336 = vadd.f32 %v1758, %v6335
        %6337 = vdwg.mxu0
        %6338 = vmatpush.bf16.msra.mxu0 %v3430
        %6339 = vmatpush.bf16.msra.mxu0 %v3422
        %6340 = vmatpush.bf16.msra.mxu0 %v3414
        %6341 = vmatpush.bf16.msra.mxu0 %v3406
        %6342 = vmatpush.bf16.msra.mxu0 %v3398
        %6343 = vmatpush.bf16.msra.mxu0 %v3390
        %6344 = vmatpush.bf16.msra.mxu0 %v3382
        %6345 = vmatpush.bf16.msra.mxu0 %v3374
        %6346 = vmatmul.bf16.gmra.mxu0 %v1176
        %v6347 = vpop.f32.mrf.mxu0
        %v6348 = vadd.f32 %v6299, %v6347
        %v6349 = vpop.f32.mrf.mxu0
        %v6350 = vadd.f32 %v6301, %v6349
        %6351 = vmatmul.bf16.gmra.mxu0 %v1184
        %v6352 = vpop.f32.mrf.mxu0
        %v6353 = vadd.f32 %v6304, %v6352
        %v6354 = vpop.f32.mrf.mxu0
        %v6355 = vadd.f32 %v6306, %v6354
        %6356 = vmatmul.bf16.gmra.mxu0 %v1192
        %v6357 = vpop.f32.mrf.mxu0
        %v6358 = vadd.f32 %v6309, %v6357
        %v6359 = vpop.f32.mrf.mxu0
        %v6360 = vadd.f32 %v6311, %v6359
        %6361 = vmatmul.bf16.gmra.mxu0 %v1200
        %v6362 = vpop.f32.mrf.mxu0
        %v6363 = vadd.f32 %v6314, %v6362
        %v6364 = vpop.f32.mrf.mxu0
        %v6365 = vadd.f32 %v6316, %v6364
        %6366 = vmatmul.bf16.gmra.mxu0 %v1208
        %v6367 = vpop.f32.mrf.mxu0
        %v6368 = vadd.f32 %v6319, %v6367
        %v6369 = vpop.f32.mrf.mxu0
        %v6370 = vadd.f32 %v6321, %v6369
        %6371 = vmatmul.bf16.gmra.mxu0 %v1216
        %v6372 = vpop.f32.mrf.mxu0
        %v6373 = vadd.f32 %v6324, %v6372
        %v6374 = vpop.f32.mrf.mxu0
        %v6375 = vadd.f32 %v6326, %v6374
        %6376 = vmatmul.bf16.gmra.mxu0 %v1224
        %v6377 = vpop.f32.mrf.mxu0
        %v6378 = vadd.f32 %v6329, %v6377
        %v6379 = vpop.f32.mrf.mxu0
        %v6380 = vadd.f32 %v6331, %v6379
        %6381 = vmatmul.bf16.gmra.mxu0 %v1232
        %v6382 = vpop.f32.mrf.mxu0
        %v6383 = vadd.f32 %v6334, %v6382
        %v6384 = vpop.f32.mrf.mxu0
        %v6385 = vadd.f32 %v6336, %v6384
        %6386 = vdwg.mxu0
        %6387 = vmatpush.bf16.msra.mxu0 %v3494
        %6388 = vmatpush.bf16.msra.mxu0 %v3486
        %6389 = vmatpush.bf16.msra.mxu0 %v3478
        %6390 = vmatpush.bf16.msra.mxu0 %v3470
        %6391 = vmatpush.bf16.msra.mxu0 %v3462
        %6392 = vmatpush.bf16.msra.mxu0 %v3454
        %6393 = vmatpush.bf16.msra.mxu0 %v3446
        %6394 = vmatpush.bf16.msra.mxu0 %v3438
        %6395 = vmatmul.bf16.gmra.mxu0 %v1177
        %v6396 = vpop.f32.mrf.mxu0
        %v6397 = vadd.f32 %v6348, %v6396
        %v6398 = vpop.f32.mrf.mxu0
        %v6399 = vadd.f32 %v6350, %v6398
        %6400 = vmatmul.bf16.gmra.mxu0 %v1185
        %v6401 = vpop.f32.mrf.mxu0
        %v6402 = vadd.f32 %v6353, %v6401
        %v6403 = vpop.f32.mrf.mxu0
        %v6404 = vadd.f32 %v6355, %v6403
        %6405 = vmatmul.bf16.gmra.mxu0 %v1193
        %v6406 = vpop.f32.mrf.mxu0
        %v6407 = vadd.f32 %v6358, %v6406
        %v6408 = vpop.f32.mrf.mxu0
        %v6409 = vadd.f32 %v6360, %v6408
        %6410 = vmatmul.bf16.gmra.mxu0 %v1201
        %v6411 = vpop.f32.mrf.mxu0
        %v6412 = vadd.f32 %v6363, %v6411
        %v6413 = vpop.f32.mrf.mxu0
        %v6414 = vadd.f32 %v6365, %v6413
        %6415 = vmatmul.bf16.gmra.mxu0 %v1209
        %v6416 = vpop.f32.mrf.mxu0
        %v6417 = vadd.f32 %v6368, %v6416
        %v6418 = vpop.f32.mrf.mxu0
        %v6419 = vadd.f32 %v6370, %v6418
        %6420 = vmatmul.bf16.gmra.mxu0 %v1217
        %v6421 = vpop.f32.mrf.mxu0
        %v6422 = vadd.f32 %v6373, %v6421
        %v6423 = vpop.f32.mrf.mxu0
        %v6424 = vadd.f32 %v6375, %v6423
        %6425 = vmatmul.bf16.gmra.mxu0 %v1225
        %v6426 = vpop.f32.mrf.mxu0
        %v6427 = vadd.f32 %v6378, %v6426
        %v6428 = vpop.f32.mrf.mxu0
        %v6429 = vadd.f32 %v6380, %v6428
        %6430 = vmatmul.bf16.gmra.mxu0 %v1233
        %v6431 = vpop.f32.mrf.mxu0
        %v6432 = vadd.f32 %v6383, %v6431
        %v6433 = vpop.f32.mrf.mxu0
        %v6434 = vadd.f32 %v6385, %v6433
        %6435 = vdwg.mxu0
        %6436 = vmatpush.bf16.msra.mxu0 %v3558
        %6437 = vmatpush.bf16.msra.mxu0 %v3550
        %6438 = vmatpush.bf16.msra.mxu0 %v3542
        %6439 = vmatpush.bf16.msra.mxu0 %v3534
        %6440 = vmatpush.bf16.msra.mxu0 %v3526
        %6441 = vmatpush.bf16.msra.mxu0 %v3518
        %6442 = vmatpush.bf16.msra.mxu0 %v3510
        %6443 = vmatpush.bf16.msra.mxu0 %v3502
        %6444 = vmatmul.bf16.gmra.mxu0 %v1178
        %v6445 = vpop.f32.mrf.mxu0
        %v6446 = vadd.f32 %v6397, %v6445
        %v6447 = vpop.f32.mrf.mxu0
        %v6448 = vadd.f32 %v6399, %v6447
        %6449 = vmatmul.bf16.gmra.mxu0 %v1186
        %v6450 = vpop.f32.mrf.mxu0
        %v6451 = vadd.f32 %v6402, %v6450
        %v6452 = vpop.f32.mrf.mxu0
        %v6453 = vadd.f32 %v6404, %v6452
        %6454 = vmatmul.bf16.gmra.mxu0 %v1194
        %v6455 = vpop.f32.mrf.mxu0
        %v6456 = vadd.f32 %v6407, %v6455
        %v6457 = vpop.f32.mrf.mxu0
        %v6458 = vadd.f32 %v6409, %v6457
        %6459 = vmatmul.bf16.gmra.mxu0 %v1202
        %v6460 = vpop.f32.mrf.mxu0
        %v6461 = vadd.f32 %v6412, %v6460
        %v6462 = vpop.f32.mrf.mxu0
        %v6463 = vadd.f32 %v6414, %v6462
        %6464 = vmatmul.bf16.gmra.mxu0 %v1210
        %v6465 = vpop.f32.mrf.mxu0
        %v6466 = vadd.f32 %v6417, %v6465
        %v6467 = vpop.f32.mrf.mxu0
        %v6468 = vadd.f32 %v6419, %v6467
        %6469 = vmatmul.bf16.gmra.mxu0 %v1218
        %v6470 = vpop.f32.mrf.mxu0
        %v6471 = vadd.f32 %v6422, %v6470
        %v6472 = vpop.f32.mrf.mxu0
        %v6473 = vadd.f32 %v6424, %v6472
        %6474 = vmatmul.bf16.gmra.mxu0 %v1226
        %v6475 = vpop.f32.mrf.mxu0
        %v6476 = vadd.f32 %v6427, %v6475
        %v6477 = vpop.f32.mrf.mxu0
        %v6478 = vadd.f32 %v6429, %v6477
        %6479 = vmatmul.bf16.gmra.mxu0 %v1234
        %v6480 = vpop.f32.mrf.mxu0
        %v6481 = vadd.f32 %v6432, %v6480
        %v6482 = vpop.f32.mrf.mxu0
        %v6483 = vadd.f32 %v6434, %v6482
        %6484 = vdwg.mxu0
        %6485 = vmatpush.bf16.msra.mxu0 %v3622
        %6486 = vmatpush.bf16.msra.mxu0 %v3614
        %6487 = vmatpush.bf16.msra.mxu0 %v3606
        %6488 = vmatpush.bf16.msra.mxu0 %v3598
        %6489 = vmatpush.bf16.msra.mxu0 %v3590
        %6490 = vmatpush.bf16.msra.mxu0 %v3582
        %6491 = vmatpush.bf16.msra.mxu0 %v3574
        %6492 = vmatpush.bf16.msra.mxu0 %v3566
        %6493 = vmatmul.bf16.gmra.mxu0 %v1179
        %v6494 = vpop.f32.mrf.mxu0
        %v6495 = vadd.f32 %v6446, %v6494
        %v6496 = vpop.f32.mrf.mxu0
        %v6497 = vadd.f32 %v6448, %v6496
        %6498 = vmatmul.bf16.gmra.mxu0 %v1187
        %v6499 = vpop.f32.mrf.mxu0
        %v6500 = vadd.f32 %v6451, %v6499
        %v6501 = vpop.f32.mrf.mxu0
        %v6502 = vadd.f32 %v6453, %v6501
        %6503 = vmatmul.bf16.gmra.mxu0 %v1195
        %v6504 = vpop.f32.mrf.mxu0
        %v6505 = vadd.f32 %v6456, %v6504
        %v6506 = vpop.f32.mrf.mxu0
        %v6507 = vadd.f32 %v6458, %v6506
        %6508 = vmatmul.bf16.gmra.mxu0 %v1203
        %v6509 = vpop.f32.mrf.mxu0
        %v6510 = vadd.f32 %v6461, %v6509
        %v6511 = vpop.f32.mrf.mxu0
        %v6512 = vadd.f32 %v6463, %v6511
        %6513 = vmatmul.bf16.gmra.mxu0 %v1211
        %v6514 = vpop.f32.mrf.mxu0
        %v6515 = vadd.f32 %v6466, %v6514
        %v6516 = vpop.f32.mrf.mxu0
        %v6517 = vadd.f32 %v6468, %v6516
        %6518 = vmatmul.bf16.gmra.mxu0 %v1219
        %v6519 = vpop.f32.mrf.mxu0
        %v6520 = vadd.f32 %v6471, %v6519
        %v6521 = vpop.f32.mrf.mxu0
        %v6522 = vadd.f32 %v6473, %v6521
        %6523 = vmatmul.bf16.gmra.mxu0 %v1227
        %v6524 = vpop.f32.mrf.mxu0
        %v6525 = vadd.f32 %v6476, %v6524
        %v6526 = vpop.f32.mrf.mxu0
        %v6527 = vadd.f32 %v6478, %v6526
        %6528 = vmatmul.bf16.gmra.mxu0 %v1235
        %v6529 = vpop.f32.mrf.mxu0
        %v6530 = vadd.f32 %v6481, %v6529
        %v6531 = vpop.f32.mrf.mxu0
        %v6532 = vadd.f32 %v6483, %v6531
        %6533 = vdwg.mxu0
        %6534 = vmatpush.bf16.msra.mxu0 %v3686
        %6535 = vmatpush.bf16.msra.mxu0 %v3678
        %6536 = vmatpush.bf16.msra.mxu0 %v3670
        %6537 = vmatpush.bf16.msra.mxu0 %v3662
        %6538 = vmatpush.bf16.msra.mxu0 %v3654
        %6539 = vmatpush.bf16.msra.mxu0 %v3646
        %6540 = vmatpush.bf16.msra.mxu0 %v3638
        %6541 = vmatpush.bf16.msra.mxu0 %v3630
        %6542 = vmatmul.bf16.gmra.mxu0 %v1180
        %v6543 = vpop.f32.mrf.mxu0
        %v6544 = vadd.f32 %v6495, %v6543
        %v6545 = vpop.f32.mrf.mxu0
        %v6546 = vadd.f32 %v6497, %v6545
        %6547 = vmatmul.bf16.gmra.mxu0 %v1188
        %v6548 = vpop.f32.mrf.mxu0
        %v6549 = vadd.f32 %v6500, %v6548
        %v6550 = vpop.f32.mrf.mxu0
        %v6551 = vadd.f32 %v6502, %v6550
        %6552 = vmatmul.bf16.gmra.mxu0 %v1196
        %v6553 = vpop.f32.mrf.mxu0
        %v6554 = vadd.f32 %v6505, %v6553
        %v6555 = vpop.f32.mrf.mxu0
        %v6556 = vadd.f32 %v6507, %v6555
        %6557 = vmatmul.bf16.gmra.mxu0 %v1204
        %v6558 = vpop.f32.mrf.mxu0
        %v6559 = vadd.f32 %v6510, %v6558
        %v6560 = vpop.f32.mrf.mxu0
        %v6561 = vadd.f32 %v6512, %v6560
        %6562 = vmatmul.bf16.gmra.mxu0 %v1212
        %v6563 = vpop.f32.mrf.mxu0
        %v6564 = vadd.f32 %v6515, %v6563
        %v6565 = vpop.f32.mrf.mxu0
        %v6566 = vadd.f32 %v6517, %v6565
        %6567 = vmatmul.bf16.gmra.mxu0 %v1220
        %v6568 = vpop.f32.mrf.mxu0
        %v6569 = vadd.f32 %v6520, %v6568
        %v6570 = vpop.f32.mrf.mxu0
        %v6571 = vadd.f32 %v6522, %v6570
        %6572 = vmatmul.bf16.gmra.mxu0 %v1228
        %v6573 = vpop.f32.mrf.mxu0
        %v6574 = vadd.f32 %v6525, %v6573
        %v6575 = vpop.f32.mrf.mxu0
        %v6576 = vadd.f32 %v6527, %v6575
        %6577 = vmatmul.bf16.gmra.mxu0 %v1236
        %v6578 = vpop.f32.mrf.mxu0
        %v6579 = vadd.f32 %v6530, %v6578
        %v6580 = vpop.f32.mrf.mxu0
        %v6581 = vadd.f32 %v6532, %v6580
        %6582 = vdwg.mxu0
        %6583 = vmatpush.bf16.msra.mxu0 %v3750
        %6584 = vmatpush.bf16.msra.mxu0 %v3742
        %6585 = vmatpush.bf16.msra.mxu0 %v3734
        %6586 = vmatpush.bf16.msra.mxu0 %v3726
        %6587 = vmatpush.bf16.msra.mxu0 %v3718
        %6588 = vmatpush.bf16.msra.mxu0 %v3710
        %6589 = vmatpush.bf16.msra.mxu0 %v3702
        %6590 = vmatpush.bf16.msra.mxu0 %v3694
        %6591 = vmatmul.bf16.gmra.mxu0 %v1181
        %v6592 = vpop.f32.mrf.mxu0
        %v6593 = vadd.f32 %v6544, %v6592
        %v6594 = vpop.f32.mrf.mxu0
        %v6595 = vadd.f32 %v6546, %v6594
        %6596 = vmatmul.bf16.gmra.mxu0 %v1189
        %v6597 = vpop.f32.mrf.mxu0
        %v6598 = vadd.f32 %v6549, %v6597
        %v6599 = vpop.f32.mrf.mxu0
        %v6600 = vadd.f32 %v6551, %v6599
        %6601 = vmatmul.bf16.gmra.mxu0 %v1197
        %v6602 = vpop.f32.mrf.mxu0
        %v6603 = vadd.f32 %v6554, %v6602
        %v6604 = vpop.f32.mrf.mxu0
        %v6605 = vadd.f32 %v6556, %v6604
        %6606 = vmatmul.bf16.gmra.mxu0 %v1205
        %v6607 = vpop.f32.mrf.mxu0
        %v6608 = vadd.f32 %v6559, %v6607
        %v6609 = vpop.f32.mrf.mxu0
        %v6610 = vadd.f32 %v6561, %v6609
        %6611 = vmatmul.bf16.gmra.mxu0 %v1213
        %v6612 = vpop.f32.mrf.mxu0
        %v6613 = vadd.f32 %v6564, %v6612
        %v6614 = vpop.f32.mrf.mxu0
        %v6615 = vadd.f32 %v6566, %v6614
        %6616 = vmatmul.bf16.gmra.mxu0 %v1221
        %v6617 = vpop.f32.mrf.mxu0
        %v6618 = vadd.f32 %v6569, %v6617
        %v6619 = vpop.f32.mrf.mxu0
        %v6620 = vadd.f32 %v6571, %v6619
        %6621 = vmatmul.bf16.gmra.mxu0 %v1229
        %v6622 = vpop.f32.mrf.mxu0
        %v6623 = vadd.f32 %v6574, %v6622
        %v6624 = vpop.f32.mrf.mxu0
        %v6625 = vadd.f32 %v6576, %v6624
        %6626 = vmatmul.bf16.gmra.mxu0 %v1237
        %v6627 = vpop.f32.mrf.mxu0
        %v6628 = vadd.f32 %v6579, %v6627
        %v6629 = vpop.f32.mrf.mxu0
        %v6630 = vadd.f32 %v6581, %v6629
        %6631 = vdwg.mxu0
        %6632 = vmatpush.bf16.msra.mxu0 %v3814
        %6633 = vmatpush.bf16.msra.mxu0 %v3806
        %6634 = vmatpush.bf16.msra.mxu0 %v3798
        %6635 = vmatpush.bf16.msra.mxu0 %v3790
        %6636 = vmatpush.bf16.msra.mxu0 %v3782
        %6637 = vmatpush.bf16.msra.mxu0 %v3774
        %6638 = vmatpush.bf16.msra.mxu0 %v3766
        %6639 = vmatpush.bf16.msra.mxu0 %v3758
        %6640 = vmatmul.bf16.gmra.mxu0 %v1182
        %v6641 = vpop.f32.mrf.mxu0
        %v6642 = vadd.f32 %v6593, %v6641
        %v6643 = vpop.f32.mrf.mxu0
        %v6644 = vadd.f32 %v6595, %v6643
        %6645 = vmatmul.bf16.gmra.mxu0 %v1190
        %v6646 = vpop.f32.mrf.mxu0
        %v6647 = vadd.f32 %v6598, %v6646
        %v6648 = vpop.f32.mrf.mxu0
        %v6649 = vadd.f32 %v6600, %v6648
        %6650 = vmatmul.bf16.gmra.mxu0 %v1198
        %v6651 = vpop.f32.mrf.mxu0
        %v6652 = vadd.f32 %v6603, %v6651
        %v6653 = vpop.f32.mrf.mxu0
        %v6654 = vadd.f32 %v6605, %v6653
        %6655 = vmatmul.bf16.gmra.mxu0 %v1206
        %v6656 = vpop.f32.mrf.mxu0
        %v6657 = vadd.f32 %v6608, %v6656
        %v6658 = vpop.f32.mrf.mxu0
        %v6659 = vadd.f32 %v6610, %v6658
        %6660 = vmatmul.bf16.gmra.mxu0 %v1214
        %v6661 = vpop.f32.mrf.mxu0
        %v6662 = vadd.f32 %v6613, %v6661
        %v6663 = vpop.f32.mrf.mxu0
        %v6664 = vadd.f32 %v6615, %v6663
        %6665 = vmatmul.bf16.gmra.mxu0 %v1222
        %v6666 = vpop.f32.mrf.mxu0
        %v6667 = vadd.f32 %v6618, %v6666
        %v6668 = vpop.f32.mrf.mxu0
        %v6669 = vadd.f32 %v6620, %v6668
        %6670 = vmatmul.bf16.gmra.mxu0 %v1230
        %v6671 = vpop.f32.mrf.mxu0
        %v6672 = vadd.f32 %v6623, %v6671
        %v6673 = vpop.f32.mrf.mxu0
        %v6674 = vadd.f32 %v6625, %v6673
        %6675 = vmatmul.bf16.gmra.mxu0 %v1238
        %v6676 = vpop.f32.mrf.mxu0
        %v6677 = vadd.f32 %v6628, %v6676
        %v6678 = vpop.f32.mrf.mxu0
        %v6679 = vadd.f32 %v6630, %v6678
        %6680 = vdwg.mxu0
        %6681 = vmatpush.bf16.msra.mxu0 %v3367
        %6682 = vmatpush.bf16.msra.mxu0 %v3359
        %6683 = vmatpush.bf16.msra.mxu0 %v3351
        %6684 = vmatpush.bf16.msra.mxu0 %v3343
        %6685 = vmatpush.bf16.msra.mxu0 %v3335
        %6686 = vmatpush.bf16.msra.mxu0 %v3327
        %6687 = vmatpush.bf16.msra.mxu0 %v3319
        %6688 = vmatpush.bf16.msra.mxu0 %v3311
        %6689 = vmatmul.bf16.gmra.mxu0 %v1175
        %v6690 = vpop.f32.mrf.mxu0
        %v6691 = vadd.f32 %v1759, %v6690
        %v6692 = vpop.f32.mrf.mxu0
        %v6693 = vadd.f32 %v1759, %v6692
        %6694 = vmatmul.bf16.gmra.mxu0 %v1183
        %v6695 = vpop.f32.mrf.mxu0
        %v6696 = vadd.f32 %v1759, %v6695
        %v6697 = vpop.f32.mrf.mxu0
        %v6698 = vadd.f32 %v1759, %v6697
        %6699 = vmatmul.bf16.gmra.mxu0 %v1191
        %v6700 = vpop.f32.mrf.mxu0
        %v6701 = vadd.f32 %v1759, %v6700
        %v6702 = vpop.f32.mrf.mxu0
        %v6703 = vadd.f32 %v1759, %v6702
        %6704 = vmatmul.bf16.gmra.mxu0 %v1199
        %v6705 = vpop.f32.mrf.mxu0
        %v6706 = vadd.f32 %v1759, %v6705
        %v6707 = vpop.f32.mrf.mxu0
        %v6708 = vadd.f32 %v1759, %v6707
        %6709 = vmatmul.bf16.gmra.mxu0 %v1207
        %v6710 = vpop.f32.mrf.mxu0
        %v6711 = vadd.f32 %v1759, %v6710
        %v6712 = vpop.f32.mrf.mxu0
        %v6713 = vadd.f32 %v1759, %v6712
        %6714 = vmatmul.bf16.gmra.mxu0 %v1215
        %v6715 = vpop.f32.mrf.mxu0
        %v6716 = vadd.f32 %v1759, %v6715
        %v6717 = vpop.f32.mrf.mxu0
        %v6718 = vadd.f32 %v1759, %v6717
        %6719 = vmatmul.bf16.gmra.mxu0 %v1223
        %v6720 = vpop.f32.mrf.mxu0
        %v6721 = vadd.f32 %v1759, %v6720
        %v6722 = vpop.f32.mrf.mxu0
        %v6723 = vadd.f32 %v1759, %v6722
        %6724 = vmatmul.bf16.gmra.mxu0 %v1231
        %v6725 = vpop.f32.mrf.mxu0
        %v6726 = vadd.f32 %v1759, %v6725
        %v6727 = vpop.f32.mrf.mxu0
        %v6728 = vadd.f32 %v1759, %v6727
        %6729 = vdwg.mxu0
        %6730 = vmatpush.bf16.msra.mxu0 %v3431
        %6731 = vmatpush.bf16.msra.mxu0 %v3423
        %6732 = vmatpush.bf16.msra.mxu0 %v3415
        %6733 = vmatpush.bf16.msra.mxu0 %v3407
        %6734 = vmatpush.bf16.msra.mxu0 %v3399
        %6735 = vmatpush.bf16.msra.mxu0 %v3391
        %6736 = vmatpush.bf16.msra.mxu0 %v3383
        %6737 = vmatpush.bf16.msra.mxu0 %v3375
        %6738 = vmatmul.bf16.gmra.mxu0 %v1176
        %v6739 = vpop.f32.mrf.mxu0
        %v6740 = vadd.f32 %v6691, %v6739
        %v6741 = vpop.f32.mrf.mxu0
        %v6742 = vadd.f32 %v6693, %v6741
        %6743 = vmatmul.bf16.gmra.mxu0 %v1184
        %v6744 = vpop.f32.mrf.mxu0
        %v6745 = vadd.f32 %v6696, %v6744
        %v6746 = vpop.f32.mrf.mxu0
        %v6747 = vadd.f32 %v6698, %v6746
        %6748 = vmatmul.bf16.gmra.mxu0 %v1192
        %v6749 = vpop.f32.mrf.mxu0
        %v6750 = vadd.f32 %v6701, %v6749
        %v6751 = vpop.f32.mrf.mxu0
        %v6752 = vadd.f32 %v6703, %v6751
        %6753 = vmatmul.bf16.gmra.mxu0 %v1200
        %v6754 = vpop.f32.mrf.mxu0
        %v6755 = vadd.f32 %v6706, %v6754
        %v6756 = vpop.f32.mrf.mxu0
        %v6757 = vadd.f32 %v6708, %v6756
        %6758 = vmatmul.bf16.gmra.mxu0 %v1208
        %v6759 = vpop.f32.mrf.mxu0
        %v6760 = vadd.f32 %v6711, %v6759
        %v6761 = vpop.f32.mrf.mxu0
        %v6762 = vadd.f32 %v6713, %v6761
        %6763 = vmatmul.bf16.gmra.mxu0 %v1216
        %v6764 = vpop.f32.mrf.mxu0
        %v6765 = vadd.f32 %v6716, %v6764
        %v6766 = vpop.f32.mrf.mxu0
        %v6767 = vadd.f32 %v6718, %v6766
        %6768 = vmatmul.bf16.gmra.mxu0 %v1224
        %v6769 = vpop.f32.mrf.mxu0
        %v6770 = vadd.f32 %v6721, %v6769
        %v6771 = vpop.f32.mrf.mxu0
        %v6772 = vadd.f32 %v6723, %v6771
        %6773 = vmatmul.bf16.gmra.mxu0 %v1232
        %v6774 = vpop.f32.mrf.mxu0
        %v6775 = vadd.f32 %v6726, %v6774
        %v6776 = vpop.f32.mrf.mxu0
        %v6777 = vadd.f32 %v6728, %v6776
        %6778 = vdwg.mxu0
        %6779 = vmatpush.bf16.msra.mxu0 %v3495
        %6780 = vmatpush.bf16.msra.mxu0 %v3487
        %6781 = vmatpush.bf16.msra.mxu0 %v3479
        %6782 = vmatpush.bf16.msra.mxu0 %v3471
        %6783 = vmatpush.bf16.msra.mxu0 %v3463
        %6784 = vmatpush.bf16.msra.mxu0 %v3455
        %6785 = vmatpush.bf16.msra.mxu0 %v3447
        %6786 = vmatpush.bf16.msra.mxu0 %v3439
        %6787 = vmatmul.bf16.gmra.mxu0 %v1177
        %v6788 = vpop.f32.mrf.mxu0
        %v6789 = vadd.f32 %v6740, %v6788
        %v6790 = vpop.f32.mrf.mxu0
        %v6791 = vadd.f32 %v6742, %v6790
        %6792 = vmatmul.bf16.gmra.mxu0 %v1185
        %v6793 = vpop.f32.mrf.mxu0
        %v6794 = vadd.f32 %v6745, %v6793
        %v6795 = vpop.f32.mrf.mxu0
        %v6796 = vadd.f32 %v6747, %v6795
        %6797 = vmatmul.bf16.gmra.mxu0 %v1193
        %v6798 = vpop.f32.mrf.mxu0
        %v6799 = vadd.f32 %v6750, %v6798
        %v6800 = vpop.f32.mrf.mxu0
        %v6801 = vadd.f32 %v6752, %v6800
        %6802 = vmatmul.bf16.gmra.mxu0 %v1201
        %v6803 = vpop.f32.mrf.mxu0
        %v6804 = vadd.f32 %v6755, %v6803
        %v6805 = vpop.f32.mrf.mxu0
        %v6806 = vadd.f32 %v6757, %v6805
        %6807 = vmatmul.bf16.gmra.mxu0 %v1209
        %v6808 = vpop.f32.mrf.mxu0
        %v6809 = vadd.f32 %v6760, %v6808
        %v6810 = vpop.f32.mrf.mxu0
        %v6811 = vadd.f32 %v6762, %v6810
        %6812 = vmatmul.bf16.gmra.mxu0 %v1217
        %v6813 = vpop.f32.mrf.mxu0
        %v6814 = vadd.f32 %v6765, %v6813
        %v6815 = vpop.f32.mrf.mxu0
        %v6816 = vadd.f32 %v6767, %v6815
        %6817 = vmatmul.bf16.gmra.mxu0 %v1225
        %v6818 = vpop.f32.mrf.mxu0
        %v6819 = vadd.f32 %v6770, %v6818
        %v6820 = vpop.f32.mrf.mxu0
        %v6821 = vadd.f32 %v6772, %v6820
        %6822 = vmatmul.bf16.gmra.mxu0 %v1233
        %v6823 = vpop.f32.mrf.mxu0
        %v6824 = vadd.f32 %v6775, %v6823
        %v6825 = vpop.f32.mrf.mxu0
        %v6826 = vadd.f32 %v6777, %v6825
        %6827 = vdwg.mxu0
        %6828 = vmatpush.bf16.msra.mxu0 %v3559
        %6829 = vmatpush.bf16.msra.mxu0 %v3551
        %6830 = vmatpush.bf16.msra.mxu0 %v3543
        %6831 = vmatpush.bf16.msra.mxu0 %v3535
        %6832 = vmatpush.bf16.msra.mxu0 %v3527
        %6833 = vmatpush.bf16.msra.mxu0 %v3519
        %6834 = vmatpush.bf16.msra.mxu0 %v3511
        %6835 = vmatpush.bf16.msra.mxu0 %v3503
        %6836 = vmatmul.bf16.gmra.mxu0 %v1178
        %v6837 = vpop.f32.mrf.mxu0
        %v6838 = vadd.f32 %v6789, %v6837
        %v6839 = vpop.f32.mrf.mxu0
        %v6840 = vadd.f32 %v6791, %v6839
        %6841 = vmatmul.bf16.gmra.mxu0 %v1186
        %v6842 = vpop.f32.mrf.mxu0
        %v6843 = vadd.f32 %v6794, %v6842
        %v6844 = vpop.f32.mrf.mxu0
        %v6845 = vadd.f32 %v6796, %v6844
        %6846 = vmatmul.bf16.gmra.mxu0 %v1194
        %v6847 = vpop.f32.mrf.mxu0
        %v6848 = vadd.f32 %v6799, %v6847
        %v6849 = vpop.f32.mrf.mxu0
        %v6850 = vadd.f32 %v6801, %v6849
        %6851 = vmatmul.bf16.gmra.mxu0 %v1202
        %v6852 = vpop.f32.mrf.mxu0
        %v6853 = vadd.f32 %v6804, %v6852
        %v6854 = vpop.f32.mrf.mxu0
        %v6855 = vadd.f32 %v6806, %v6854
        %6856 = vmatmul.bf16.gmra.mxu0 %v1210
        %v6857 = vpop.f32.mrf.mxu0
        %v6858 = vadd.f32 %v6809, %v6857
        %v6859 = vpop.f32.mrf.mxu0
        %v6860 = vadd.f32 %v6811, %v6859
        %6861 = vmatmul.bf16.gmra.mxu0 %v1218
        %v6862 = vpop.f32.mrf.mxu0
        %v6863 = vadd.f32 %v6814, %v6862
        %v6864 = vpop.f32.mrf.mxu0
        %v6865 = vadd.f32 %v6816, %v6864
        %6866 = vmatmul.bf16.gmra.mxu0 %v1226
        %v6867 = vpop.f32.mrf.mxu0
        %v6868 = vadd.f32 %v6819, %v6867
        %v6869 = vpop.f32.mrf.mxu0
        %v6870 = vadd.f32 %v6821, %v6869
        %6871 = vmatmul.bf16.gmra.mxu0 %v1234
        %v6872 = vpop.f32.mrf.mxu0
        %v6873 = vadd.f32 %v6824, %v6872
        %v6874 = vpop.f32.mrf.mxu0
        %v6875 = vadd.f32 %v6826, %v6874
        %6876 = vdwg.mxu0
        %6877 = vmatpush.bf16.msra.mxu0 %v3623
        %6878 = vmatpush.bf16.msra.mxu0 %v3615
        %6879 = vmatpush.bf16.msra.mxu0 %v3607
        %6880 = vmatpush.bf16.msra.mxu0 %v3599
        %6881 = vmatpush.bf16.msra.mxu0 %v3591
        %6882 = vmatpush.bf16.msra.mxu0 %v3583
        %6883 = vmatpush.bf16.msra.mxu0 %v3575
        %6884 = vmatpush.bf16.msra.mxu0 %v3567
        %6885 = vmatmul.bf16.gmra.mxu0 %v1179
        %v6886 = vpop.f32.mrf.mxu0
        %v6887 = vadd.f32 %v6838, %v6886
        %v6888 = vpop.f32.mrf.mxu0
        %v6889 = vadd.f32 %v6840, %v6888
        %6890 = vmatmul.bf16.gmra.mxu0 %v1187
        %v6891 = vpop.f32.mrf.mxu0
        %v6892 = vadd.f32 %v6843, %v6891
        %v6893 = vpop.f32.mrf.mxu0
        %v6894 = vadd.f32 %v6845, %v6893
        %6895 = vmatmul.bf16.gmra.mxu0 %v1195
        %v6896 = vpop.f32.mrf.mxu0
        %v6897 = vadd.f32 %v6848, %v6896
        %v6898 = vpop.f32.mrf.mxu0
        %v6899 = vadd.f32 %v6850, %v6898
        %6900 = vmatmul.bf16.gmra.mxu0 %v1203
        %v6901 = vpop.f32.mrf.mxu0
        %v6902 = vadd.f32 %v6853, %v6901
        %v6903 = vpop.f32.mrf.mxu0
        %v6904 = vadd.f32 %v6855, %v6903
        %6905 = vmatmul.bf16.gmra.mxu0 %v1211
        %v6906 = vpop.f32.mrf.mxu0
        %v6907 = vadd.f32 %v6858, %v6906
        %v6908 = vpop.f32.mrf.mxu0
        %v6909 = vadd.f32 %v6860, %v6908
        %6910 = vmatmul.bf16.gmra.mxu0 %v1219
        %v6911 = vpop.f32.mrf.mxu0
        %v6912 = vadd.f32 %v6863, %v6911
        %v6913 = vpop.f32.mrf.mxu0
        %v6914 = vadd.f32 %v6865, %v6913
        %6915 = vmatmul.bf16.gmra.mxu0 %v1227
        %v6916 = vpop.f32.mrf.mxu0
        %v6917 = vadd.f32 %v6868, %v6916
        %v6918 = vpop.f32.mrf.mxu0
        %v6919 = vadd.f32 %v6870, %v6918
        %6920 = vmatmul.bf16.gmra.mxu0 %v1235
        %v6921 = vpop.f32.mrf.mxu0
        %v6922 = vadd.f32 %v6873, %v6921
        %v6923 = vpop.f32.mrf.mxu0
        %v6924 = vadd.f32 %v6875, %v6923
        %6925 = vdwg.mxu0
        %6926 = vmatpush.bf16.msra.mxu0 %v3687
        %6927 = vmatpush.bf16.msra.mxu0 %v3679
        %6928 = vmatpush.bf16.msra.mxu0 %v3671
        %6929 = vmatpush.bf16.msra.mxu0 %v3663
        %6930 = vmatpush.bf16.msra.mxu0 %v3655
        %6931 = vmatpush.bf16.msra.mxu0 %v3647
        %6932 = vmatpush.bf16.msra.mxu0 %v3639
        %6933 = vmatpush.bf16.msra.mxu0 %v3631
        %6934 = vmatmul.bf16.gmra.mxu0 %v1180
        %v6935 = vpop.f32.mrf.mxu0
        %v6936 = vadd.f32 %v6887, %v6935
        %v6937 = vpop.f32.mrf.mxu0
        %v6938 = vadd.f32 %v6889, %v6937
        %6939 = vmatmul.bf16.gmra.mxu0 %v1188
        %v6940 = vpop.f32.mrf.mxu0
        %v6941 = vadd.f32 %v6892, %v6940
        %v6942 = vpop.f32.mrf.mxu0
        %v6943 = vadd.f32 %v6894, %v6942
        %6944 = vmatmul.bf16.gmra.mxu0 %v1196
        %v6945 = vpop.f32.mrf.mxu0
        %v6946 = vadd.f32 %v6897, %v6945
        %v6947 = vpop.f32.mrf.mxu0
        %v6948 = vadd.f32 %v6899, %v6947
        %6949 = vmatmul.bf16.gmra.mxu0 %v1204
        %v6950 = vpop.f32.mrf.mxu0
        %v6951 = vadd.f32 %v6902, %v6950
        %v6952 = vpop.f32.mrf.mxu0
        %v6953 = vadd.f32 %v6904, %v6952
        %6954 = vmatmul.bf16.gmra.mxu0 %v1212
        %v6955 = vpop.f32.mrf.mxu0
        %v6956 = vadd.f32 %v6907, %v6955
        %v6957 = vpop.f32.mrf.mxu0
        %v6958 = vadd.f32 %v6909, %v6957
        %6959 = vmatmul.bf16.gmra.mxu0 %v1220
        %v6960 = vpop.f32.mrf.mxu0
        %v6961 = vadd.f32 %v6912, %v6960
        %v6962 = vpop.f32.mrf.mxu0
        %v6963 = vadd.f32 %v6914, %v6962
        %6964 = vmatmul.bf16.gmra.mxu0 %v1228
        %v6965 = vpop.f32.mrf.mxu0
        %v6966 = vadd.f32 %v6917, %v6965
        %v6967 = vpop.f32.mrf.mxu0
        %v6968 = vadd.f32 %v6919, %v6967
        %6969 = vmatmul.bf16.gmra.mxu0 %v1236
        %v6970 = vpop.f32.mrf.mxu0
        %v6971 = vadd.f32 %v6922, %v6970
        %v6972 = vpop.f32.mrf.mxu0
        %v6973 = vadd.f32 %v6924, %v6972
        %6974 = vdwg.mxu0
        %6975 = vmatpush.bf16.msra.mxu0 %v3751
        %6976 = vmatpush.bf16.msra.mxu0 %v3743
        %6977 = vmatpush.bf16.msra.mxu0 %v3735
        %6978 = vmatpush.bf16.msra.mxu0 %v3727
        %6979 = vmatpush.bf16.msra.mxu0 %v3719
        %6980 = vmatpush.bf16.msra.mxu0 %v3711
        %6981 = vmatpush.bf16.msra.mxu0 %v3703
        %6982 = vmatpush.bf16.msra.mxu0 %v3695
        %6983 = vmatmul.bf16.gmra.mxu0 %v1181
        %v6984 = vpop.f32.mrf.mxu0
        %v6985 = vadd.f32 %v6936, %v6984
        %v6986 = vpop.f32.mrf.mxu0
        %v6987 = vadd.f32 %v6938, %v6986
        %6988 = vmatmul.bf16.gmra.mxu0 %v1189
        %v6989 = vpop.f32.mrf.mxu0
        %v6990 = vadd.f32 %v6941, %v6989
        %v6991 = vpop.f32.mrf.mxu0
        %v6992 = vadd.f32 %v6943, %v6991
        %6993 = vmatmul.bf16.gmra.mxu0 %v1197
        %v6994 = vpop.f32.mrf.mxu0
        %v6995 = vadd.f32 %v6946, %v6994
        %v6996 = vpop.f32.mrf.mxu0
        %v6997 = vadd.f32 %v6948, %v6996
        %6998 = vmatmul.bf16.gmra.mxu0 %v1205
        %v6999 = vpop.f32.mrf.mxu0
        %v7000 = vadd.f32 %v6951, %v6999
        %v7001 = vpop.f32.mrf.mxu0
        %v7002 = vadd.f32 %v6953, %v7001
        %7003 = vmatmul.bf16.gmra.mxu0 %v1213
        %v7004 = vpop.f32.mrf.mxu0
        %v7005 = vadd.f32 %v6956, %v7004
        %v7006 = vpop.f32.mrf.mxu0
        %v7007 = vadd.f32 %v6958, %v7006
        %7008 = vmatmul.bf16.gmra.mxu0 %v1221
        %v7009 = vpop.f32.mrf.mxu0
        %v7010 = vadd.f32 %v6961, %v7009
        %v7011 = vpop.f32.mrf.mxu0
        %v7012 = vadd.f32 %v6963, %v7011
        %7013 = vmatmul.bf16.gmra.mxu0 %v1229
        %v7014 = vpop.f32.mrf.mxu0
        %v7015 = vadd.f32 %v6966, %v7014
        %v7016 = vpop.f32.mrf.mxu0
        %v7017 = vadd.f32 %v6968, %v7016
        %7018 = vmatmul.bf16.gmra.mxu0 %v1237
        %v7019 = vpop.f32.mrf.mxu0
        %v7020 = vadd.f32 %v6971, %v7019
        %v7021 = vpop.f32.mrf.mxu0
        %v7022 = vadd.f32 %v6973, %v7021
        %7023 = vdwg.mxu0
        %7024 = vmatpush.bf16.msra.mxu0 %v3815
        %7025 = vmatpush.bf16.msra.mxu0 %v3807
        %7026 = vmatpush.bf16.msra.mxu0 %v3799
        %7027 = vmatpush.bf16.msra.mxu0 %v3791
        %7028 = vmatpush.bf16.msra.mxu0 %v3783
        %7029 = vmatpush.bf16.msra.mxu0 %v3775
        %7030 = vmatpush.bf16.msra.mxu0 %v3767
        %7031 = vmatpush.bf16.msra.mxu0 %v3759
        %7032 = vmatmul.bf16.gmra.mxu0 %v1182
        %v7033 = vpop.f32.mrf.mxu0
        %v7034 = vadd.f32 %v6985, %v7033
        %v7035 = vpop.f32.mrf.mxu0
        %v7036 = vadd.f32 %v6987, %v7035
        %7037 = vmatmul.bf16.gmra.mxu0 %v1190
        %v7038 = vpop.f32.mrf.mxu0
        %v7039 = vadd.f32 %v6990, %v7038
        %v7040 = vpop.f32.mrf.mxu0
        %v7041 = vadd.f32 %v6992, %v7040
        %7042 = vmatmul.bf16.gmra.mxu0 %v1198
        %v7043 = vpop.f32.mrf.mxu0
        %v7044 = vadd.f32 %v6995, %v7043
        %v7045 = vpop.f32.mrf.mxu0
        %v7046 = vadd.f32 %v6997, %v7045
        %7047 = vmatmul.bf16.gmra.mxu0 %v1206
        %v7048 = vpop.f32.mrf.mxu0
        %v7049 = vadd.f32 %v7000, %v7048
        %v7050 = vpop.f32.mrf.mxu0
        %v7051 = vadd.f32 %v7002, %v7050
        %7052 = vmatmul.bf16.gmra.mxu0 %v1214
        %v7053 = vpop.f32.mrf.mxu0
        %v7054 = vadd.f32 %v7005, %v7053
        %v7055 = vpop.f32.mrf.mxu0
        %v7056 = vadd.f32 %v7007, %v7055
        %7057 = vmatmul.bf16.gmra.mxu0 %v1222
        %v7058 = vpop.f32.mrf.mxu0
        %v7059 = vadd.f32 %v7010, %v7058
        %v7060 = vpop.f32.mrf.mxu0
        %v7061 = vadd.f32 %v7012, %v7060
        %7062 = vmatmul.bf16.gmra.mxu0 %v1230
        %v7063 = vpop.f32.mrf.mxu0
        %v7064 = vadd.f32 %v7015, %v7063
        %v7065 = vpop.f32.mrf.mxu0
        %v7066 = vadd.f32 %v7017, %v7065
        %7067 = vmatmul.bf16.gmra.mxu0 %v1238
        %v7068 = vpop.f32.mrf.mxu0
        %v7069 = vadd.f32 %v7020, %v7068
        %v7070 = vpop.f32.mrf.mxu0
        %v7071 = vadd.f32 %v7022, %v7070
        %7072 = vdwg.mxu0
        %7073 = vmatpush.bf16.msra.mxu0 %v3368
        %7074 = vmatpush.bf16.msra.mxu0 %v3360
        %7075 = vmatpush.bf16.msra.mxu0 %v3352
        %7076 = vmatpush.bf16.msra.mxu0 %v3344
        %7077 = vmatpush.bf16.msra.mxu0 %v3336
        %7078 = vmatpush.bf16.msra.mxu0 %v3328
        %7079 = vmatpush.bf16.msra.mxu0 %v3320
        %7080 = vmatpush.bf16.msra.mxu0 %v3312
        %7081 = vmatmul.bf16.gmra.mxu0 %v1175
        %v7082 = vpop.f32.mrf.mxu0
        %v7083 = vadd.f32 %v1760, %v7082
        %v7084 = vpop.f32.mrf.mxu0
        %v7085 = vadd.f32 %v1760, %v7084
        %7086 = vmatmul.bf16.gmra.mxu0 %v1183
        %v7087 = vpop.f32.mrf.mxu0
        %v7088 = vadd.f32 %v1760, %v7087
        %v7089 = vpop.f32.mrf.mxu0
        %v7090 = vadd.f32 %v1760, %v7089
        %7091 = vmatmul.bf16.gmra.mxu0 %v1191
        %v7092 = vpop.f32.mrf.mxu0
        %v7093 = vadd.f32 %v1760, %v7092
        %v7094 = vpop.f32.mrf.mxu0
        %v7095 = vadd.f32 %v1760, %v7094
        %7096 = vmatmul.bf16.gmra.mxu0 %v1199
        %v7097 = vpop.f32.mrf.mxu0
        %v7098 = vadd.f32 %v1760, %v7097
        %v7099 = vpop.f32.mrf.mxu0
        %v7100 = vadd.f32 %v1760, %v7099
        %7101 = vmatmul.bf16.gmra.mxu0 %v1207
        %v7102 = vpop.f32.mrf.mxu0
        %v7103 = vadd.f32 %v1760, %v7102
        %v7104 = vpop.f32.mrf.mxu0
        %v7105 = vadd.f32 %v1760, %v7104
        %7106 = vmatmul.bf16.gmra.mxu0 %v1215
        %v7107 = vpop.f32.mrf.mxu0
        %v7108 = vadd.f32 %v1760, %v7107
        %v7109 = vpop.f32.mrf.mxu0
        %v7110 = vadd.f32 %v1760, %v7109
        %7111 = vmatmul.bf16.gmra.mxu0 %v1223
        %v7112 = vpop.f32.mrf.mxu0
        %v7113 = vadd.f32 %v1760, %v7112
        %v7114 = vpop.f32.mrf.mxu0
        %v7115 = vadd.f32 %v1760, %v7114
        %7116 = vmatmul.bf16.gmra.mxu0 %v1231
        %v7117 = vpop.f32.mrf.mxu0
        %v7118 = vadd.f32 %v1760, %v7117
        %v7119 = vpop.f32.mrf.mxu0
        %v7120 = vadd.f32 %v1760, %v7119
        %7121 = vdwg.mxu0
        %7122 = vmatpush.bf16.msra.mxu0 %v3432
        %7123 = vmatpush.bf16.msra.mxu0 %v3424
        %7124 = vmatpush.bf16.msra.mxu0 %v3416
        %7125 = vmatpush.bf16.msra.mxu0 %v3408
        %7126 = vmatpush.bf16.msra.mxu0 %v3400
        %7127 = vmatpush.bf16.msra.mxu0 %v3392
        %7128 = vmatpush.bf16.msra.mxu0 %v3384
        %7129 = vmatpush.bf16.msra.mxu0 %v3376
        %7130 = vmatmul.bf16.gmra.mxu0 %v1176
        %v7131 = vpop.f32.mrf.mxu0
        %v7132 = vadd.f32 %v7083, %v7131
        %v7133 = vpop.f32.mrf.mxu0
        %v7134 = vadd.f32 %v7085, %v7133
        %7135 = vmatmul.bf16.gmra.mxu0 %v1184
        %v7136 = vpop.f32.mrf.mxu0
        %v7137 = vadd.f32 %v7088, %v7136
        %v7138 = vpop.f32.mrf.mxu0
        %v7139 = vadd.f32 %v7090, %v7138
        %7140 = vmatmul.bf16.gmra.mxu0 %v1192
        %v7141 = vpop.f32.mrf.mxu0
        %v7142 = vadd.f32 %v7093, %v7141
        %v7143 = vpop.f32.mrf.mxu0
        %v7144 = vadd.f32 %v7095, %v7143
        %7145 = vmatmul.bf16.gmra.mxu0 %v1200
        %v7146 = vpop.f32.mrf.mxu0
        %v7147 = vadd.f32 %v7098, %v7146
        %v7148 = vpop.f32.mrf.mxu0
        %v7149 = vadd.f32 %v7100, %v7148
        %7150 = vmatmul.bf16.gmra.mxu0 %v1208
        %v7151 = vpop.f32.mrf.mxu0
        %v7152 = vadd.f32 %v7103, %v7151
        %v7153 = vpop.f32.mrf.mxu0
        %v7154 = vadd.f32 %v7105, %v7153
        %7155 = vmatmul.bf16.gmra.mxu0 %v1216
        %v7156 = vpop.f32.mrf.mxu0
        %v7157 = vadd.f32 %v7108, %v7156
        %v7158 = vpop.f32.mrf.mxu0
        %v7159 = vadd.f32 %v7110, %v7158
        %7160 = vmatmul.bf16.gmra.mxu0 %v1224
        %v7161 = vpop.f32.mrf.mxu0
        %v7162 = vadd.f32 %v7113, %v7161
        %v7163 = vpop.f32.mrf.mxu0
        %v7164 = vadd.f32 %v7115, %v7163
        %7165 = vmatmul.bf16.gmra.mxu0 %v1232
        %v7166 = vpop.f32.mrf.mxu0
        %v7167 = vadd.f32 %v7118, %v7166
        %v7168 = vpop.f32.mrf.mxu0
        %v7169 = vadd.f32 %v7120, %v7168
        %7170 = vdwg.mxu0
        %7171 = vmatpush.bf16.msra.mxu0 %v3496
        %7172 = vmatpush.bf16.msra.mxu0 %v3488
        %7173 = vmatpush.bf16.msra.mxu0 %v3480
        %7174 = vmatpush.bf16.msra.mxu0 %v3472
        %7175 = vmatpush.bf16.msra.mxu0 %v3464
        %7176 = vmatpush.bf16.msra.mxu0 %v3456
        %7177 = vmatpush.bf16.msra.mxu0 %v3448
        %7178 = vmatpush.bf16.msra.mxu0 %v3440
        %7179 = vmatmul.bf16.gmra.mxu0 %v1177
        %v7180 = vpop.f32.mrf.mxu0
        %v7181 = vadd.f32 %v7132, %v7180
        %v7182 = vpop.f32.mrf.mxu0
        %v7183 = vadd.f32 %v7134, %v7182
        %7184 = vmatmul.bf16.gmra.mxu0 %v1185
        %v7185 = vpop.f32.mrf.mxu0
        %v7186 = vadd.f32 %v7137, %v7185
        %v7187 = vpop.f32.mrf.mxu0
        %v7188 = vadd.f32 %v7139, %v7187
        %7189 = vmatmul.bf16.gmra.mxu0 %v1193
        %v7190 = vpop.f32.mrf.mxu0
        %v7191 = vadd.f32 %v7142, %v7190
        %v7192 = vpop.f32.mrf.mxu0
        %v7193 = vadd.f32 %v7144, %v7192
        %7194 = vmatmul.bf16.gmra.mxu0 %v1201
        %v7195 = vpop.f32.mrf.mxu0
        %v7196 = vadd.f32 %v7147, %v7195
        %v7197 = vpop.f32.mrf.mxu0
        %v7198 = vadd.f32 %v7149, %v7197
        %7199 = vmatmul.bf16.gmra.mxu0 %v1209
        %v7200 = vpop.f32.mrf.mxu0
        %v7201 = vadd.f32 %v7152, %v7200
        %v7202 = vpop.f32.mrf.mxu0
        %v7203 = vadd.f32 %v7154, %v7202
        %7204 = vmatmul.bf16.gmra.mxu0 %v1217
        %v7205 = vpop.f32.mrf.mxu0
        %v7206 = vadd.f32 %v7157, %v7205
        %v7207 = vpop.f32.mrf.mxu0
        %v7208 = vadd.f32 %v7159, %v7207
        %7209 = vmatmul.bf16.gmra.mxu0 %v1225
        %v7210 = vpop.f32.mrf.mxu0
        %v7211 = vadd.f32 %v7162, %v7210
        %v7212 = vpop.f32.mrf.mxu0
        %v7213 = vadd.f32 %v7164, %v7212
        %7214 = vmatmul.bf16.gmra.mxu0 %v1233
        %v7215 = vpop.f32.mrf.mxu0
        %v7216 = vadd.f32 %v7167, %v7215
        %v7217 = vpop.f32.mrf.mxu0
        %v7218 = vadd.f32 %v7169, %v7217
        %7219 = vdwg.mxu0
        %7220 = vmatpush.bf16.msra.mxu0 %v3560
        %7221 = vmatpush.bf16.msra.mxu0 %v3552
        %7222 = vmatpush.bf16.msra.mxu0 %v3544
        %7223 = vmatpush.bf16.msra.mxu0 %v3536
        %7224 = vmatpush.bf16.msra.mxu0 %v3528
        %7225 = vmatpush.bf16.msra.mxu0 %v3520
        %7226 = vmatpush.bf16.msra.mxu0 %v3512
        %7227 = vmatpush.bf16.msra.mxu0 %v3504
        %7228 = vmatmul.bf16.gmra.mxu0 %v1178
        %v7229 = vpop.f32.mrf.mxu0
        %v7230 = vadd.f32 %v7181, %v7229
        %v7231 = vpop.f32.mrf.mxu0
        %v7232 = vadd.f32 %v7183, %v7231
        %7233 = vmatmul.bf16.gmra.mxu0 %v1186
        %v7234 = vpop.f32.mrf.mxu0
        %v7235 = vadd.f32 %v7186, %v7234
        %v7236 = vpop.f32.mrf.mxu0
        %v7237 = vadd.f32 %v7188, %v7236
        %7238 = vmatmul.bf16.gmra.mxu0 %v1194
        %v7239 = vpop.f32.mrf.mxu0
        %v7240 = vadd.f32 %v7191, %v7239
        %v7241 = vpop.f32.mrf.mxu0
        %v7242 = vadd.f32 %v7193, %v7241
        %7243 = vmatmul.bf16.gmra.mxu0 %v1202
        %v7244 = vpop.f32.mrf.mxu0
        %v7245 = vadd.f32 %v7196, %v7244
        %v7246 = vpop.f32.mrf.mxu0
        %v7247 = vadd.f32 %v7198, %v7246
        %7248 = vmatmul.bf16.gmra.mxu0 %v1210
        %v7249 = vpop.f32.mrf.mxu0
        %v7250 = vadd.f32 %v7201, %v7249
        %v7251 = vpop.f32.mrf.mxu0
        %v7252 = vadd.f32 %v7203, %v7251
        %7253 = vmatmul.bf16.gmra.mxu0 %v1218
        %v7254 = vpop.f32.mrf.mxu0
        %v7255 = vadd.f32 %v7206, %v7254
        %v7256 = vpop.f32.mrf.mxu0
        %v7257 = vadd.f32 %v7208, %v7256
        %7258 = vmatmul.bf16.gmra.mxu0 %v1226
        %v7259 = vpop.f32.mrf.mxu0
        %v7260 = vadd.f32 %v7211, %v7259
        %v7261 = vpop.f32.mrf.mxu0
        %v7262 = vadd.f32 %v7213, %v7261
        %7263 = vmatmul.bf16.gmra.mxu0 %v1234
        %v7264 = vpop.f32.mrf.mxu0
        %v7265 = vadd.f32 %v7216, %v7264
        %v7266 = vpop.f32.mrf.mxu0
        %v7267 = vadd.f32 %v7218, %v7266
        %7268 = vdwg.mxu0
        %7269 = vmatpush.bf16.msra.mxu0 %v3624
        %7270 = vmatpush.bf16.msra.mxu0 %v3616
        %7271 = vmatpush.bf16.msra.mxu0 %v3608
        %7272 = vmatpush.bf16.msra.mxu0 %v3600
        %7273 = vmatpush.bf16.msra.mxu0 %v3592
        %7274 = vmatpush.bf16.msra.mxu0 %v3584
        %7275 = vmatpush.bf16.msra.mxu0 %v3576
        %7276 = vmatpush.bf16.msra.mxu0 %v3568
        %7277 = vmatmul.bf16.gmra.mxu0 %v1179
        %v7278 = vpop.f32.mrf.mxu0
        %v7279 = vadd.f32 %v7230, %v7278
        %v7280 = vpop.f32.mrf.mxu0
        %v7281 = vadd.f32 %v7232, %v7280
        %7282 = vmatmul.bf16.gmra.mxu0 %v1187
        %v7283 = vpop.f32.mrf.mxu0
        %v7284 = vadd.f32 %v7235, %v7283
        %v7285 = vpop.f32.mrf.mxu0
        %v7286 = vadd.f32 %v7237, %v7285
        %7287 = vmatmul.bf16.gmra.mxu0 %v1195
        %v7288 = vpop.f32.mrf.mxu0
        %v7289 = vadd.f32 %v7240, %v7288
        %v7290 = vpop.f32.mrf.mxu0
        %v7291 = vadd.f32 %v7242, %v7290
        %7292 = vmatmul.bf16.gmra.mxu0 %v1203
        %v7293 = vpop.f32.mrf.mxu0
        %v7294 = vadd.f32 %v7245, %v7293
        %v7295 = vpop.f32.mrf.mxu0
        %v7296 = vadd.f32 %v7247, %v7295
        %7297 = vmatmul.bf16.gmra.mxu0 %v1211
        %v7298 = vpop.f32.mrf.mxu0
        %v7299 = vadd.f32 %v7250, %v7298
        %v7300 = vpop.f32.mrf.mxu0
        %v7301 = vadd.f32 %v7252, %v7300
        %7302 = vmatmul.bf16.gmra.mxu0 %v1219
        %v7303 = vpop.f32.mrf.mxu0
        %v7304 = vadd.f32 %v7255, %v7303
        %v7305 = vpop.f32.mrf.mxu0
        %v7306 = vadd.f32 %v7257, %v7305
        %7307 = vmatmul.bf16.gmra.mxu0 %v1227
        %v7308 = vpop.f32.mrf.mxu0
        %v7309 = vadd.f32 %v7260, %v7308
        %v7310 = vpop.f32.mrf.mxu0
        %v7311 = vadd.f32 %v7262, %v7310
        %7312 = vmatmul.bf16.gmra.mxu0 %v1235
        %v7313 = vpop.f32.mrf.mxu0
        %v7314 = vadd.f32 %v7265, %v7313
        %v7315 = vpop.f32.mrf.mxu0
        %v7316 = vadd.f32 %v7267, %v7315
        %7317 = vdwg.mxu0
        %7318 = vmatpush.bf16.msra.mxu0 %v3688
        %7319 = vmatpush.bf16.msra.mxu0 %v3680
        %7320 = vmatpush.bf16.msra.mxu0 %v3672
        %7321 = vmatpush.bf16.msra.mxu0 %v3664
        %7322 = vmatpush.bf16.msra.mxu0 %v3656
        %7323 = vmatpush.bf16.msra.mxu0 %v3648
        %7324 = vmatpush.bf16.msra.mxu0 %v3640
        %7325 = vmatpush.bf16.msra.mxu0 %v3632
        %7326 = vmatmul.bf16.gmra.mxu0 %v1180
        %v7327 = vpop.f32.mrf.mxu0
        %v7328 = vadd.f32 %v7279, %v7327
        %v7329 = vpop.f32.mrf.mxu0
        %v7330 = vadd.f32 %v7281, %v7329
        %7331 = vmatmul.bf16.gmra.mxu0 %v1188
        %v7332 = vpop.f32.mrf.mxu0
        %v7333 = vadd.f32 %v7284, %v7332
        %v7334 = vpop.f32.mrf.mxu0
        %v7335 = vadd.f32 %v7286, %v7334
        %7336 = vmatmul.bf16.gmra.mxu0 %v1196
        %v7337 = vpop.f32.mrf.mxu0
        %v7338 = vadd.f32 %v7289, %v7337
        %v7339 = vpop.f32.mrf.mxu0
        %v7340 = vadd.f32 %v7291, %v7339
        %7341 = vmatmul.bf16.gmra.mxu0 %v1204
        %v7342 = vpop.f32.mrf.mxu0
        %v7343 = vadd.f32 %v7294, %v7342
        %v7344 = vpop.f32.mrf.mxu0
        %v7345 = vadd.f32 %v7296, %v7344
        %7346 = vmatmul.bf16.gmra.mxu0 %v1212
        %v7347 = vpop.f32.mrf.mxu0
        %v7348 = vadd.f32 %v7299, %v7347
        %v7349 = vpop.f32.mrf.mxu0
        %v7350 = vadd.f32 %v7301, %v7349
        %7351 = vmatmul.bf16.gmra.mxu0 %v1220
        %v7352 = vpop.f32.mrf.mxu0
        %v7353 = vadd.f32 %v7304, %v7352
        %v7354 = vpop.f32.mrf.mxu0
        %v7355 = vadd.f32 %v7306, %v7354
        %7356 = vmatmul.bf16.gmra.mxu0 %v1228
        %v7357 = vpop.f32.mrf.mxu0
        %v7358 = vadd.f32 %v7309, %v7357
        %v7359 = vpop.f32.mrf.mxu0
        %v7360 = vadd.f32 %v7311, %v7359
        %7361 = vmatmul.bf16.gmra.mxu0 %v1236
        %v7362 = vpop.f32.mrf.mxu0
        %v7363 = vadd.f32 %v7314, %v7362
        %v7364 = vpop.f32.mrf.mxu0
        %v7365 = vadd.f32 %v7316, %v7364
        %7366 = vdwg.mxu0
        %7367 = vmatpush.bf16.msra.mxu0 %v3752
        %7368 = vmatpush.bf16.msra.mxu0 %v3744
        %7369 = vmatpush.bf16.msra.mxu0 %v3736
        %7370 = vmatpush.bf16.msra.mxu0 %v3728
        %7371 = vmatpush.bf16.msra.mxu0 %v3720
        %7372 = vmatpush.bf16.msra.mxu0 %v3712
        %7373 = vmatpush.bf16.msra.mxu0 %v3704
        %7374 = vmatpush.bf16.msra.mxu0 %v3696
        %7375 = vmatmul.bf16.gmra.mxu0 %v1181
        %v7376 = vpop.f32.mrf.mxu0
        %v7377 = vadd.f32 %v7328, %v7376
        %v7378 = vpop.f32.mrf.mxu0
        %v7379 = vadd.f32 %v7330, %v7378
        %7380 = vmatmul.bf16.gmra.mxu0 %v1189
        %v7381 = vpop.f32.mrf.mxu0
        %v7382 = vadd.f32 %v7333, %v7381
        %v7383 = vpop.f32.mrf.mxu0
        %v7384 = vadd.f32 %v7335, %v7383
        %7385 = vmatmul.bf16.gmra.mxu0 %v1197
        %v7386 = vpop.f32.mrf.mxu0
        %v7387 = vadd.f32 %v7338, %v7386
        %v7388 = vpop.f32.mrf.mxu0
        %v7389 = vadd.f32 %v7340, %v7388
        %7390 = vmatmul.bf16.gmra.mxu0 %v1205
        %v7391 = vpop.f32.mrf.mxu0
        %v7392 = vadd.f32 %v7343, %v7391
        %v7393 = vpop.f32.mrf.mxu0
        %v7394 = vadd.f32 %v7345, %v7393
        %7395 = vmatmul.bf16.gmra.mxu0 %v1213
        %v7396 = vpop.f32.mrf.mxu0
        %v7397 = vadd.f32 %v7348, %v7396
        %v7398 = vpop.f32.mrf.mxu0
        %v7399 = vadd.f32 %v7350, %v7398
        %7400 = vmatmul.bf16.gmra.mxu0 %v1221
        %v7401 = vpop.f32.mrf.mxu0
        %v7402 = vadd.f32 %v7353, %v7401
        %v7403 = vpop.f32.mrf.mxu0
        %v7404 = vadd.f32 %v7355, %v7403
        %7405 = vmatmul.bf16.gmra.mxu0 %v1229
        %v7406 = vpop.f32.mrf.mxu0
        %v7407 = vadd.f32 %v7358, %v7406
        %v7408 = vpop.f32.mrf.mxu0
        %v7409 = vadd.f32 %v7360, %v7408
        %7410 = vmatmul.bf16.gmra.mxu0 %v1237
        %v7411 = vpop.f32.mrf.mxu0
        %v7412 = vadd.f32 %v7363, %v7411
        %v7413 = vpop.f32.mrf.mxu0
        %v7414 = vadd.f32 %v7365, %v7413
        %7415 = vdwg.mxu0
        %7416 = vmatpush.bf16.msra.mxu0 %v3816
        %7417 = vmatpush.bf16.msra.mxu0 %v3808
        %7418 = vmatpush.bf16.msra.mxu0 %v3800
        %7419 = vmatpush.bf16.msra.mxu0 %v3792
        %7420 = vmatpush.bf16.msra.mxu0 %v3784
        %7421 = vmatpush.bf16.msra.mxu0 %v3776
        %7422 = vmatpush.bf16.msra.mxu0 %v3768
        %7423 = vmatpush.bf16.msra.mxu0 %v3760
        %7424 = vmatmul.bf16.gmra.mxu0 %v1182
        %v7425 = vpop.f32.mrf.mxu0
        %v7426 = vadd.f32 %v7377, %v7425
        %v7427 = vpop.f32.mrf.mxu0
        %v7428 = vadd.f32 %v7379, %v7427
        %7429 = vmatmul.bf16.gmra.mxu0 %v1190
        %v7430 = vpop.f32.mrf.mxu0
        %v7431 = vadd.f32 %v7382, %v7430
        %v7432 = vpop.f32.mrf.mxu0
        %v7433 = vadd.f32 %v7384, %v7432
        %7434 = vmatmul.bf16.gmra.mxu0 %v1198
        %v7435 = vpop.f32.mrf.mxu0
        %v7436 = vadd.f32 %v7387, %v7435
        %v7437 = vpop.f32.mrf.mxu0
        %v7438 = vadd.f32 %v7389, %v7437
        %7439 = vmatmul.bf16.gmra.mxu0 %v1206
        %v7440 = vpop.f32.mrf.mxu0
        %v7441 = vadd.f32 %v7392, %v7440
        %v7442 = vpop.f32.mrf.mxu0
        %v7443 = vadd.f32 %v7394, %v7442
        %7444 = vmatmul.bf16.gmra.mxu0 %v1214
        %v7445 = vpop.f32.mrf.mxu0
        %v7446 = vadd.f32 %v7397, %v7445
        %v7447 = vpop.f32.mrf.mxu0
        %v7448 = vadd.f32 %v7399, %v7447
        %7449 = vmatmul.bf16.gmra.mxu0 %v1222
        %v7450 = vpop.f32.mrf.mxu0
        %v7451 = vadd.f32 %v7402, %v7450
        %v7452 = vpop.f32.mrf.mxu0
        %v7453 = vadd.f32 %v7404, %v7452
        %7454 = vmatmul.bf16.gmra.mxu0 %v1230
        %v7455 = vpop.f32.mrf.mxu0
        %v7456 = vadd.f32 %v7407, %v7455
        %v7457 = vpop.f32.mrf.mxu0
        %v7458 = vadd.f32 %v7409, %v7457
        %7459 = vmatmul.bf16.gmra.mxu0 %v1238
        %v7460 = vpop.f32.mrf.mxu0
        %v7461 = vadd.f32 %v7412, %v7460
        %v7462 = vpop.f32.mrf.mxu0
        %v7463 = vadd.f32 %v7414, %v7462
        %7464 = vdwg.mxu0
        %v7465 = vmax.f32 %v4682, 0.0
        %v7466 = vmax.f32 %v5074, 0.0
        %v7467 = vmax.f32 %v5466, 0.0
        %v7468 = vmax.f32 %v5858, 0.0
        %v7469 = vmax.f32 %v6250, 0.0
        %v7470 = vmax.f32 %v6642, 0.0
        %v7471 = vmax.f32 %v7034, 0.0
        %v7472 = vmax.f32 %v7426, 0.0
        %v7473 = vmax.f32 %v4684, 0.0
        %v7474 = vmax.f32 %v5076, 0.0
        %v7475 = vmax.f32 %v5468, 0.0
        %v7476 = vmax.f32 %v5860, 0.0
        %v7477 = vmax.f32 %v6252, 0.0
        %v7478 = vmax.f32 %v6644, 0.0
        %v7479 = vmax.f32 %v7036, 0.0
        %v7480 = vmax.f32 %v7428, 0.0
        %v7481 = vmax.f32 %v4687, 0.0
        %v7482 = vmax.f32 %v5079, 0.0
        %v7483 = vmax.f32 %v5471, 0.0
        %v7484 = vmax.f32 %v5863, 0.0
        %v7485 = vmax.f32 %v6255, 0.0
        %v7486 = vmax.f32 %v6647, 0.0
        %v7487 = vmax.f32 %v7039, 0.0
        %v7488 = vmax.f32 %v7431, 0.0
        %v7489 = vmax.f32 %v4689, 0.0
        %v7490 = vmax.f32 %v5081, 0.0
        %v7491 = vmax.f32 %v5473, 0.0
        %v7492 = vmax.f32 %v5865, 0.0
        %v7493 = vmax.f32 %v6257, 0.0
        %v7494 = vmax.f32 %v6649, 0.0
        %v7495 = vmax.f32 %v7041, 0.0
        %v7496 = vmax.f32 %v7433, 0.0
        %v7497 = vmax.f32 %v4692, 0.0
        %v7498 = vmax.f32 %v5084, 0.0
        %v7499 = vmax.f32 %v5476, 0.0
        %v7500 = vmax.f32 %v5868, 0.0
        %v7501 = vmax.f32 %v6260, 0.0
        %v7502 = vmax.f32 %v6652, 0.0
        %v7503 = vmax.f32 %v7044, 0.0
        %v7504 = vmax.f32 %v7436, 0.0
        %v7505 = vmax.f32 %v4694, 0.0
        %v7506 = vmax.f32 %v5086, 0.0
        %v7507 = vmax.f32 %v5478, 0.0
        %v7508 = vmax.f32 %v5870, 0.0
        %v7509 = vmax.f32 %v6262, 0.0
        %v7510 = vmax.f32 %v6654, 0.0
        %v7511 = vmax.f32 %v7046, 0.0
        %v7512 = vmax.f32 %v7438, 0.0
        %v7513 = vmax.f32 %v4697, 0.0
        %v7514 = vmax.f32 %v5089, 0.0
        %v7515 = vmax.f32 %v5481, 0.0
        %v7516 = vmax.f32 %v5873, 0.0
        %v7517 = vmax.f32 %v6265, 0.0
        %v7518 = vmax.f32 %v6657, 0.0
        %v7519 = vmax.f32 %v7049, 0.0
        %v7520 = vmax.f32 %v7441, 0.0
        %v7521 = vmax.f32 %v4699, 0.0
        %v7522 = vmax.f32 %v5091, 0.0
        %v7523 = vmax.f32 %v5483, 0.0
        %v7524 = vmax.f32 %v5875, 0.0
        %v7525 = vmax.f32 %v6267, 0.0
        %v7526 = vmax.f32 %v6659, 0.0
        %v7527 = vmax.f32 %v7051, 0.0
        %v7528 = vmax.f32 %v7443, 0.0
        %v7529 = vmax.f32 %v4702, 0.0
        %v7530 = vmax.f32 %v5094, 0.0
        %v7531 = vmax.f32 %v5486, 0.0
        %v7532 = vmax.f32 %v5878, 0.0
        %v7533 = vmax.f32 %v6270, 0.0
        %v7534 = vmax.f32 %v6662, 0.0
        %v7535 = vmax.f32 %v7054, 0.0
        %v7536 = vmax.f32 %v7446, 0.0
        %v7537 = vmax.f32 %v4704, 0.0
        %v7538 = vmax.f32 %v5096, 0.0
        %v7539 = vmax.f32 %v5488, 0.0
        %v7540 = vmax.f32 %v5880, 0.0
        %v7541 = vmax.f32 %v6272, 0.0
        %v7542 = vmax.f32 %v6664, 0.0
        %v7543 = vmax.f32 %v7056, 0.0
        %v7544 = vmax.f32 %v7448, 0.0
        %v7545 = vmax.f32 %v4707, 0.0
        %v7546 = vmax.f32 %v5099, 0.0
        %v7547 = vmax.f32 %v5491, 0.0
        %v7548 = vmax.f32 %v5883, 0.0
        %v7549 = vmax.f32 %v6275, 0.0
        %v7550 = vmax.f32 %v6667, 0.0
        %v7551 = vmax.f32 %v7059, 0.0
        %v7552 = vmax.f32 %v7451, 0.0
        %v7553 = vmax.f32 %v4709, 0.0
        %v7554 = vmax.f32 %v5101, 0.0
        %v7555 = vmax.f32 %v5493, 0.0
        %v7556 = vmax.f32 %v5885, 0.0
        %v7557 = vmax.f32 %v6277, 0.0
        %v7558 = vmax.f32 %v6669, 0.0
        %v7559 = vmax.f32 %v7061, 0.0
        %v7560 = vmax.f32 %v7453, 0.0
        %v7561 = vmax.f32 %v4712, 0.0
        %v7562 = vmax.f32 %v5104, 0.0
        %v7563 = vmax.f32 %v5496, 0.0
        %v7564 = vmax.f32 %v5888, 0.0
        %v7565 = vmax.f32 %v6280, 0.0
        %v7566 = vmax.f32 %v6672, 0.0
        %v7567 = vmax.f32 %v7064, 0.0
        %v7568 = vmax.f32 %v7456, 0.0
        %v7569 = vmax.f32 %v4714, 0.0
        %v7570 = vmax.f32 %v5106, 0.0
        %v7571 = vmax.f32 %v5498, 0.0
        %v7572 = vmax.f32 %v5890, 0.0
        %v7573 = vmax.f32 %v6282, 0.0
        %v7574 = vmax.f32 %v6674, 0.0
        %v7575 = vmax.f32 %v7066, 0.0
        %v7576 = vmax.f32 %v7458, 0.0
        %v7577 = vmax.f32 %v4717, 0.0
        %v7578 = vmax.f32 %v5109, 0.0
        %v7579 = vmax.f32 %v5501, 0.0
        %v7580 = vmax.f32 %v5893, 0.0
        %v7581 = vmax.f32 %v6285, 0.0
        %v7582 = vmax.f32 %v6677, 0.0
        %v7583 = vmax.f32 %v7069, 0.0
        %v7584 = vmax.f32 %v7461, 0.0
        %v7585 = vmax.f32 %v4719, 0.0
        %v7586 = vmax.f32 %v5111, 0.0
        %v7587 = vmax.f32 %v5503, 0.0
        %v7588 = vmax.f32 %v5895, 0.0
        %v7589 = vmax.f32 %v6287, 0.0
        %v7590 = vmax.f32 %v6679, 0.0
        %v7591 = vmax.f32 %v7071, 0.0
        %v7592 = vmax.f32 %v7463, 0.0
        %v7593 = vpack.c.bf16 %v7473, %v7465
        %v7594 = vpack.c.bf16 %v7474, %v7466
        %v7595 = vpack.c.bf16 %v7475, %v7467
        %v7596 = vpack.c.bf16 %v7476, %v7468
        %v7597 = vpack.c.bf16 %v7477, %v7469
        %v7598 = vpack.c.bf16 %v7478, %v7470
        %v7599 = vpack.c.bf16 %v7479, %v7471
        %v7600 = vpack.c.bf16 %v7480, %v7472
        %v7601 = vpack.c.bf16 %v7489, %v7481
        %v7602 = vpack.c.bf16 %v7490, %v7482
        %v7603 = vpack.c.bf16 %v7491, %v7483
        %v7604 = vpack.c.bf16 %v7492, %v7484
        %v7605 = vpack.c.bf16 %v7493, %v7485
        %v7606 = vpack.c.bf16 %v7494, %v7486
        %v7607 = vpack.c.bf16 %v7495, %v7487
        %v7608 = vpack.c.bf16 %v7496, %v7488
        %v7609 = vpack.c.bf16 %v7505, %v7497
        %v7610 = vpack.c.bf16 %v7506, %v7498
        %v7611 = vpack.c.bf16 %v7507, %v7499
        %v7612 = vpack.c.bf16 %v7508, %v7500
        %v7613 = vpack.c.bf16 %v7509, %v7501
        %v7614 = vpack.c.bf16 %v7510, %v7502
        %v7615 = vpack.c.bf16 %v7511, %v7503
        %v7616 = vpack.c.bf16 %v7512, %v7504
        %v7617 = vpack.c.bf16 %v7521, %v7513
        %v7618 = vpack.c.bf16 %v7522, %v7514
        %v7619 = vpack.c.bf16 %v7523, %v7515
        %v7620 = vpack.c.bf16 %v7524, %v7516
        %v7621 = vpack.c.bf16 %v7525, %v7517
        %v7622 = vpack.c.bf16 %v7526, %v7518
        %v7623 = vpack.c.bf16 %v7527, %v7519
        %v7624 = vpack.c.bf16 %v7528, %v7520
        %v7625 = vpack.c.bf16 %v7537, %v7529
        %v7626 = vpack.c.bf16 %v7538, %v7530
        %v7627 = vpack.c.bf16 %v7539, %v7531
        %v7628 = vpack.c.bf16 %v7540, %v7532
        %v7629 = vpack.c.bf16 %v7541, %v7533
        %v7630 = vpack.c.bf16 %v7542, %v7534
        %v7631 = vpack.c.bf16 %v7543, %v7535
        %v7632 = vpack.c.bf16 %v7544, %v7536
        %v7633 = vpack.c.bf16 %v7553, %v7545
        %v7634 = vpack.c.bf16 %v7554, %v7546
        %v7635 = vpack.c.bf16 %v7555, %v7547
        %v7636 = vpack.c.bf16 %v7556, %v7548
        %v7637 = vpack.c.bf16 %v7557, %v7549
        %v7638 = vpack.c.bf16 %v7558, %v7550
        %v7639 = vpack.c.bf16 %v7559, %v7551
        %v7640 = vpack.c.bf16 %v7560, %v7552
        %v7641 = vpack.c.bf16 %v7569, %v7561
        %v7642 = vpack.c.bf16 %v7570, %v7562
        %v7643 = vpack.c.bf16 %v7571, %v7563
        %v7644 = vpack.c.bf16 %v7572, %v7564
        %v7645 = vpack.c.bf16 %v7573, %v7565
        %v7646 = vpack.c.bf16 %v7574, %v7566
        %v7647 = vpack.c.bf16 %v7575, %v7567
        %v7648 = vpack.c.bf16 %v7576, %v7568
        %v7649 = vpack.c.bf16 %v7585, %v7577
        %v7650 = vpack.c.bf16 %v7586, %v7578
        %v7651 = vpack.c.bf16 %v7587, %v7579
        %v7652 = vpack.c.bf16 %v7588, %v7580
        %v7653 = vpack.c.bf16 %v7589, %v7581
        %v7654 = vpack.c.bf16 %v7590, %v7582
        %v7655 = vpack.c.bf16 %v7591, %v7583
        %v7656 = vpack.c.bf16 %v7592, %v7584
        %v7657 = vld [vmem:[#allocation10] sm:$0xff]
        %v7658 = vld [vmem:[#allocation10 + $0x8] sm:$0xff]
        %v7659 = vld [vmem:[#allocation10 + $0x10] sm:$0xff]
        %v7660 = vld [vmem:[#allocation10 + $0x18] sm:$0xff]
        %v7661 = vld [vmem:[#allocation10 + $0x20] sm:$0xff]
        %v7662 = vld [vmem:[#allocation10 + $0x28] sm:$0xff]
        %v7663 = vld [vmem:[#allocation10 + $0x30] sm:$0xff]
        %v7664 = vld [vmem:[#allocation10 + $0x38] sm:$0xff]
        %v7665 = vld [vmem:[#allocation10 + $0x40] sm:$0xff]
        %v7666 = vld [vmem:[#allocation10 + $0x48] sm:$0xff]
        %v7667 = vld [vmem:[#allocation10 + $0x50] sm:$0xff]
        %v7668 = vld [vmem:[#allocation10 + $0x58] sm:$0xff]
        %v7669 = vld [vmem:[#allocation10 + $0x60] sm:$0xff]
        %v7670 = vld [vmem:[#allocation10 + $0x68] sm:$0xff]
        %v7671 = vld [vmem:[#allocation10 + $0x70] sm:$0xff]
        %v7672 = vld [vmem:[#allocation10 + $0x78] sm:$0xff]
        %v7673 = vld [vmem:[#allocation10 + $0x80] sm:$0xff]
        %v7674 = vld [vmem:[#allocation10 + $0x88] sm:$0xff]
        %v7675 = vld [vmem:[#allocation10 + $0x90] sm:$0xff]
        %v7676 = vld [vmem:[#allocation10 + $0x98] sm:$0xff]
        %v7677 = vld [vmem:[#allocation10 + $0xa0] sm:$0xff]
        %v7678 = vld [vmem:[#allocation10 + $0xa8] sm:$0xff]
        %v7679 = vld [vmem:[#allocation10 + $0xb0] sm:$0xff]
        %v7680 = vld [vmem:[#allocation10 + $0xb8] sm:$0xff]
        %v7681 = vld [vmem:[#allocation10 + $0xc0] sm:$0xff]
        %v7682 = vld [vmem:[#allocation10 + $0xc8] sm:$0xff]
        %v7683 = vld [vmem:[#allocation10 + $0xd0] sm:$0xff]
        %v7684 = vld [vmem:[#allocation10 + $0xd8] sm:$0xff]
        %v7685 = vld [vmem:[#allocation10 + $0xe0] sm:$0xff]
        %v7686 = vld [vmem:[#allocation10 + $0xe8] sm:$0xff]
        %v7687 = vld [vmem:[#allocation10 + $0xf0] sm:$0xff]
        %v7688 = vld [vmem:[#allocation10 + $0xf8] sm:$0xff]
        %v7689 = vld [vmem:[#allocation10 + $0x100] sm:$0xff]
        %v7690 = vld [vmem:[#allocation10 + $0x108] sm:$0xff]
        %v7691 = vld [vmem:[#allocation10 + $0x110] sm:$0xff]
        %v7692 = vld [vmem:[#allocation10 + $0x118] sm:$0xff]
        %v7693 = vld [vmem:[#allocation10 + $0x120] sm:$0xff]
        %v7694 = vld [vmem:[#allocation10 + $0x128] sm:$0xff]
        %v7695 = vld [vmem:[#allocation10 + $0x130] sm:$0xff]
        %v7696 = vld [vmem:[#allocation10 + $0x138] sm:$0xff]
        %v7697 = vld [vmem:[#allocation10 + $0x140] sm:$0xff]
        %v7698 = vld [vmem:[#allocation10 + $0x148] sm:$0xff]
        %v7699 = vld [vmem:[#allocation10 + $0x150] sm:$0xff]
        %v7700 = vld [vmem:[#allocation10 + $0x158] sm:$0xff]
        %v7701 = vld [vmem:[#allocation10 + $0x160] sm:$0xff]
        %v7702 = vld [vmem:[#allocation10 + $0x168] sm:$0xff]
        %v7703 = vld [vmem:[#allocation10 + $0x170] sm:$0xff]
        %v7704 = vld [vmem:[#allocation10 + $0x178] sm:$0xff]
        %v7705 = vld [vmem:[#allocation10 + $0x180] sm:$0xff]
        %v7706 = vld [vmem:[#allocation10 + $0x188] sm:$0xff]
        %v7707 = vld [vmem:[#allocation10 + $0x190] sm:$0xff]
        %v7708 = vld [vmem:[#allocation10 + $0x198] sm:$0xff]
        %v7709 = vld [vmem:[#allocation10 + $0x1a0] sm:$0xff]
        %v7710 = vld [vmem:[#allocation10 + $0x1a8] sm:$0xff]
        %v7711 = vld [vmem:[#allocation10 + $0x1b0] sm:$0xff]
        %v7712 = vld [vmem:[#allocation10 + $0x1b8] sm:$0xff]
        %v7713 = vld [vmem:[#allocation10 + $0x1c0] sm:$0xff]
        %v7714 = vld [vmem:[#allocation10 + $0x1c8] sm:$0xff]
        %v7715 = vld [vmem:[#allocation10 + $0x1d0] sm:$0xff]
        %v7716 = vld [vmem:[#allocation10 + $0x1d8] sm:$0xff]
        %v7717 = vld [vmem:[#allocation10 + $0x1e0] sm:$0xff]
        %v7718 = vld [vmem:[#allocation10 + $0x1e8] sm:$0xff]
        %v7719 = vld [vmem:[#allocation10 + $0x1f0] sm:$0xff]
        %v7720 = vld [vmem:[#allocation10 + $0x1f8] sm:$0xff]
        %v7721 = vld [vmem:[#allocation10 + $0x200] sm:$0xff]
        %v7722 = vld [vmem:[#allocation10 + $0x208] sm:$0xff]
        %v7723 = vld [vmem:[#allocation10 + $0x210] sm:$0xff]
        %v7724 = vld [vmem:[#allocation10 + $0x218] sm:$0xff]
        %v7725 = vld [vmem:[#allocation10 + $0x220] sm:$0xff]
        %v7726 = vld [vmem:[#allocation10 + $0x228] sm:$0xff]
        %v7727 = vld [vmem:[#allocation10 + $0x230] sm:$0xff]
        %v7728 = vld [vmem:[#allocation10 + $0x238] sm:$0xff]
        %v7729 = vld [vmem:[#allocation10 + $0x240] sm:$0xff]
        %v7730 = vld [vmem:[#allocation10 + $0x248] sm:$0xff]
        %v7731 = vld [vmem:[#allocation10 + $0x250] sm:$0xff]
        %v7732 = vld [vmem:[#allocation10 + $0x258] sm:$0xff]
        %v7733 = vld [vmem:[#allocation10 + $0x260] sm:$0xff]
        %v7734 = vld [vmem:[#allocation10 + $0x268] sm:$0xff]
        %v7735 = vld [vmem:[#allocation10 + $0x270] sm:$0xff]
        %v7736 = vld [vmem:[#allocation10 + $0x278] sm:$0xff]
        %v7737 = vld [vmem:[#allocation10 + $0x280] sm:$0xff]
        %v7738 = vld [vmem:[#allocation10 + $0x288] sm:$0xff]
        %v7739 = vld [vmem:[#allocation10 + $0x290] sm:$0xff]
        %v7740 = vld [vmem:[#allocation10 + $0x298] sm:$0xff]
        %v7741 = vld [vmem:[#allocation10 + $0x2a0] sm:$0xff]
        %v7742 = vld [vmem:[#allocation10 + $0x2a8] sm:$0xff]
        %v7743 = vld [vmem:[#allocation10 + $0x2b0] sm:$0xff]
        %v7744 = vld [vmem:[#allocation10 + $0x2b8] sm:$0xff]
        %v7745 = vld [vmem:[#allocation10 + $0x2c0] sm:$0xff]
        %v7746 = vld [vmem:[#allocation10 + $0x2c8] sm:$0xff]
        %v7747 = vld [vmem:[#allocation10 + $0x2d0] sm:$0xff]
        %v7748 = vld [vmem:[#allocation10 + $0x2d8] sm:$0xff]
        %v7749 = vld [vmem:[#allocation10 + $0x2e0] sm:$0xff]
        %v7750 = vld [vmem:[#allocation10 + $0x2e8] sm:$0xff]
        %v7751 = vld [vmem:[#allocation10 + $0x2f0] sm:$0xff]
        %v7752 = vld [vmem:[#allocation10 + $0x2f8] sm:$0xff]
        %v7753 = vld [vmem:[#allocation10 + $0x300] sm:$0xff]
        %v7754 = vld [vmem:[#allocation10 + $0x308] sm:$0xff]
        %v7755 = vld [vmem:[#allocation10 + $0x310] sm:$0xff]
        %v7756 = vld [vmem:[#allocation10 + $0x318] sm:$0xff]
        %v7757 = vld [vmem:[#allocation10 + $0x320] sm:$0xff]
        %v7758 = vld [vmem:[#allocation10 + $0x328] sm:$0xff]
        %v7759 = vld [vmem:[#allocation10 + $0x330] sm:$0xff]
        %v7760 = vld [vmem:[#allocation10 + $0x338] sm:$0xff]
        %v7761 = vld [vmem:[#allocation10 + $0x340] sm:$0xff]
        %v7762 = vld [vmem:[#allocation10 + $0x348] sm:$0xff]
        %v7763 = vld [vmem:[#allocation10 + $0x350] sm:$0xff]
        %v7764 = vld [vmem:[#allocation10 + $0x358] sm:$0xff]
        %v7765 = vld [vmem:[#allocation10 + $0x360] sm:$0xff]
        %v7766 = vld [vmem:[#allocation10 + $0x368] sm:$0xff]
        %v7767 = vld [vmem:[#allocation10 + $0x370] sm:$0xff]
        %v7768 = vld [vmem:[#allocation10 + $0x378] sm:$0xff]
        %v7769 = vld [vmem:[#allocation10 + $0x380] sm:$0xff]
        %v7770 = vld [vmem:[#allocation10 + $0x388] sm:$0xff]
        %v7771 = vld [vmem:[#allocation10 + $0x390] sm:$0xff]
        %v7772 = vld [vmem:[#allocation10 + $0x398] sm:$0xff]
        %v7773 = vld [vmem:[#allocation10 + $0x3a0] sm:$0xff]
        %v7774 = vld [vmem:[#allocation10 + $0x3a8] sm:$0xff]
        %v7775 = vld [vmem:[#allocation10 + $0x3b0] sm:$0xff]
        %v7776 = vld [vmem:[#allocation10 + $0x3b8] sm:$0xff]
        %v7777 = vld [vmem:[#allocation10 + $0x3c0] sm:$0xff]
        %v7778 = vld [vmem:[#allocation10 + $0x3c8] sm:$0xff]
        %v7779 = vld [vmem:[#allocation10 + $0x3d0] sm:$0xff]
        %v7780 = vld [vmem:[#allocation10 + $0x3d8] sm:$0xff]
        %v7781 = vld [vmem:[#allocation10 + $0x3e0] sm:$0xff]
        %v7782 = vld [vmem:[#allocation10 + $0x3e8] sm:$0xff]
        %v7783 = vld [vmem:[#allocation10 + $0x3f0] sm:$0xff]
        %v7784 = vld [vmem:[#allocation10 + $0x3f8] sm:$0xff]
        %v7785 = vld [vmem:[#allocation10 + $0x400] sm:$0xff]
        %v7786 = vld [vmem:[#allocation10 + $0x408] sm:$0xff]
        %v7787 = vld [vmem:[#allocation10 + $0x410] sm:$0xff]
        %v7788 = vld [vmem:[#allocation10 + $0x418] sm:$0xff]
        %v7789 = vld [vmem:[#allocation10 + $0x420] sm:$0xff]
        %v7790 = vld [vmem:[#allocation10 + $0x428] sm:$0xff]
        %v7791 = vld [vmem:[#allocation10 + $0x430] sm:$0xff]
        %v7792 = vld [vmem:[#allocation10 + $0x438] sm:$0xff]
        %v7793 = vld [vmem:[#allocation10 + $0x440] sm:$0xff]
        %v7794 = vld [vmem:[#allocation10 + $0x448] sm:$0xff]
        %v7795 = vld [vmem:[#allocation10 + $0x450] sm:$0xff]
        %v7796 = vld [vmem:[#allocation10 + $0x458] sm:$0xff]
        %v7797 = vld [vmem:[#allocation10 + $0x460] sm:$0xff]
        %v7798 = vld [vmem:[#allocation10 + $0x468] sm:$0xff]
        %v7799 = vld [vmem:[#allocation10 + $0x470] sm:$0xff]
        %v7800 = vld [vmem:[#allocation10 + $0x478] sm:$0xff]
        %v7801 = vld [vmem:[#allocation10 + $0x480] sm:$0xff]
        %v7802 = vld [vmem:[#allocation10 + $0x488] sm:$0xff]
        %v7803 = vld [vmem:[#allocation10 + $0x490] sm:$0xff]
        %v7804 = vld [vmem:[#allocation10 + $0x498] sm:$0xff]
        %v7805 = vld [vmem:[#allocation10 + $0x4a0] sm:$0xff]
        %v7806 = vld [vmem:[#allocation10 + $0x4a8] sm:$0xff]
        %v7807 = vld [vmem:[#allocation10 + $0x4b0] sm:$0xff]
        %v7808 = vld [vmem:[#allocation10 + $0x4b8] sm:$0xff]
        %v7809 = vld [vmem:[#allocation10 + $0x4c0] sm:$0xff]
        %v7810 = vld [vmem:[#allocation10 + $0x4c8] sm:$0xff]
        %v7811 = vld [vmem:[#allocation10 + $0x4d0] sm:$0xff]
        %v7812 = vld [vmem:[#allocation10 + $0x4d8] sm:$0xff]
        %v7813 = vld [vmem:[#allocation10 + $0x4e0] sm:$0xff]
        %v7814 = vld [vmem:[#allocation10 + $0x4e8] sm:$0xff]
        %v7815 = vld [vmem:[#allocation10 + $0x4f0] sm:$0xff]
        %v7816 = vld [vmem:[#allocation10 + $0x4f8] sm:$0xff]
        %v7817 = vld [vmem:[#allocation10 + $0x500] sm:$0xff]
        %v7818 = vld [vmem:[#allocation10 + $0x508] sm:$0xff]
        %v7819 = vld [vmem:[#allocation10 + $0x510] sm:$0xff]
        %v7820 = vld [vmem:[#allocation10 + $0x518] sm:$0xff]
        %v7821 = vld [vmem:[#allocation10 + $0x520] sm:$0xff]
        %v7822 = vld [vmem:[#allocation10 + $0x528] sm:$0xff]
        %v7823 = vld [vmem:[#allocation10 + $0x530] sm:$0xff]
        %v7824 = vld [vmem:[#allocation10 + $0x538] sm:$0xff]
        %v7825 = vld [vmem:[#allocation10 + $0x540] sm:$0xff]
        %v7826 = vld [vmem:[#allocation10 + $0x548] sm:$0xff]
        %v7827 = vld [vmem:[#allocation10 + $0x550] sm:$0xff]
        %v7828 = vld [vmem:[#allocation10 + $0x558] sm:$0xff]
        %v7829 = vld [vmem:[#allocation10 + $0x560] sm:$0xff]
        %v7830 = vld [vmem:[#allocation10 + $0x568] sm:$0xff]
        %v7831 = vld [vmem:[#allocation10 + $0x570] sm:$0xff]
        %v7832 = vld [vmem:[#allocation10 + $0x578] sm:$0xff]
        %v7833 = vld [vmem:[#allocation10 + $0x580] sm:$0xff]
        %v7834 = vld [vmem:[#allocation10 + $0x588] sm:$0xff]
        %v7835 = vld [vmem:[#allocation10 + $0x590] sm:$0xff]
        %v7836 = vld [vmem:[#allocation10 + $0x598] sm:$0xff]
        %v7837 = vld [vmem:[#allocation10 + $0x5a0] sm:$0xff]
        %v7838 = vld [vmem:[#allocation10 + $0x5a8] sm:$0xff]
        %v7839 = vld [vmem:[#allocation10 + $0x5b0] sm:$0xff]
        %v7840 = vld [vmem:[#allocation10 + $0x5b8] sm:$0xff]
        %v7841 = vld [vmem:[#allocation10 + $0x5c0] sm:$0xff]
        %v7842 = vld [vmem:[#allocation10 + $0x5c8] sm:$0xff]
        %v7843 = vld [vmem:[#allocation10 + $0x5d0] sm:$0xff]
        %v7844 = vld [vmem:[#allocation10 + $0x5d8] sm:$0xff]
        %v7845 = vld [vmem:[#allocation10 + $0x5e0] sm:$0xff]
        %v7846 = vld [vmem:[#allocation10 + $0x5e8] sm:$0xff]
        %v7847 = vld [vmem:[#allocation10 + $0x5f0] sm:$0xff]
        %v7848 = vld [vmem:[#allocation10 + $0x5f8] sm:$0xff]
        %v7849 = vld [vmem:[#allocation10 + $0x600] sm:$0xff]
        %v7850 = vld [vmem:[#allocation10 + $0x608] sm:$0xff]
        %v7851 = vld [vmem:[#allocation10 + $0x610] sm:$0xff]
        %v7852 = vld [vmem:[#allocation10 + $0x618] sm:$0xff]
        %v7853 = vld [vmem:[#allocation10 + $0x620] sm:$0xff]
        %v7854 = vld [vmem:[#allocation10 + $0x628] sm:$0xff]
        %v7855 = vld [vmem:[#allocation10 + $0x630] sm:$0xff]
        %v7856 = vld [vmem:[#allocation10 + $0x638] sm:$0xff]
        %v7857 = vld [vmem:[#allocation10 + $0x640] sm:$0xff]
        %v7858 = vld [vmem:[#allocation10 + $0x648] sm:$0xff]
        %v7859 = vld [vmem:[#allocation10 + $0x650] sm:$0xff]
        %v7860 = vld [vmem:[#allocation10 + $0x658] sm:$0xff]
        %v7861 = vld [vmem:[#allocation10 + $0x660] sm:$0xff]
        %v7862 = vld [vmem:[#allocation10 + $0x668] sm:$0xff]
        %v7863 = vld [vmem:[#allocation10 + $0x670] sm:$0xff]
        %v7864 = vld [vmem:[#allocation10 + $0x678] sm:$0xff]
        %v7865 = vld [vmem:[#allocation10 + $0x680] sm:$0xff]
        %v7866 = vld [vmem:[#allocation10 + $0x688] sm:$0xff]
        %v7867 = vld [vmem:[#allocation10 + $0x690] sm:$0xff]
        %v7868 = vld [vmem:[#allocation10 + $0x698] sm:$0xff]
        %v7869 = vld [vmem:[#allocation10 + $0x6a0] sm:$0xff]
        %v7870 = vld [vmem:[#allocation10 + $0x6a8] sm:$0xff]
        %v7871 = vld [vmem:[#allocation10 + $0x6b0] sm:$0xff]
        %v7872 = vld [vmem:[#allocation10 + $0x6b8] sm:$0xff]
        %v7873 = vld [vmem:[#allocation10 + $0x6c0] sm:$0xff]
        %v7874 = vld [vmem:[#allocation10 + $0x6c8] sm:$0xff]
        %v7875 = vld [vmem:[#allocation10 + $0x6d0] sm:$0xff]
        %v7876 = vld [vmem:[#allocation10 + $0x6d8] sm:$0xff]
        %v7877 = vld [vmem:[#allocation10 + $0x6e0] sm:$0xff]
        %v7878 = vld [vmem:[#allocation10 + $0x6e8] sm:$0xff]
        %v7879 = vld [vmem:[#allocation10 + $0x6f0] sm:$0xff]
        %v7880 = vld [vmem:[#allocation10 + $0x6f8] sm:$0xff]
        %v7881 = vld [vmem:[#allocation10 + $0x700] sm:$0xff]
        %v7882 = vld [vmem:[#allocation10 + $0x708] sm:$0xff]
        %v7883 = vld [vmem:[#allocation10 + $0x710] sm:$0xff]
        %v7884 = vld [vmem:[#allocation10 + $0x718] sm:$0xff]
        %v7885 = vld [vmem:[#allocation10 + $0x720] sm:$0xff]
        %v7886 = vld [vmem:[#allocation10 + $0x728] sm:$0xff]
        %v7887 = vld [vmem:[#allocation10 + $0x730] sm:$0xff]
        %v7888 = vld [vmem:[#allocation10 + $0x738] sm:$0xff]
        %v7889 = vld [vmem:[#allocation10 + $0x740] sm:$0xff]
        %v7890 = vld [vmem:[#allocation10 + $0x748] sm:$0xff]
        %v7891 = vld [vmem:[#allocation10 + $0x750] sm:$0xff]
        %v7892 = vld [vmem:[#allocation10 + $0x758] sm:$0xff]
        %v7893 = vld [vmem:[#allocation10 + $0x760] sm:$0xff]
        %v7894 = vld [vmem:[#allocation10 + $0x768] sm:$0xff]
        %v7895 = vld [vmem:[#allocation10 + $0x770] sm:$0xff]
        %v7896 = vld [vmem:[#allocation10 + $0x778] sm:$0xff]
        %v7897 = vld [vmem:[#allocation10 + $0x780] sm:$0xff]
        %v7898 = vld [vmem:[#allocation10 + $0x788] sm:$0xff]
        %v7899 = vld [vmem:[#allocation10 + $0x790] sm:$0xff]
        %v7900 = vld [vmem:[#allocation10 + $0x798] sm:$0xff]
        %v7901 = vld [vmem:[#allocation10 + $0x7a0] sm:$0xff]
        %v7902 = vld [vmem:[#allocation10 + $0x7a8] sm:$0xff]
        %v7903 = vld [vmem:[#allocation10 + $0x7b0] sm:$0xff]
        %v7904 = vld [vmem:[#allocation10 + $0x7b8] sm:$0xff]
        %v7905 = vld [vmem:[#allocation10 + $0x7c0] sm:$0xff]
        %v7906 = vld [vmem:[#allocation10 + $0x7c8] sm:$0xff]
        %v7907 = vld [vmem:[#allocation10 + $0x7d0] sm:$0xff]
        %v7908 = vld [vmem:[#allocation10 + $0x7d8] sm:$0xff]
        %v7909 = vld [vmem:[#allocation10 + $0x7e0] sm:$0xff]
        %v7910 = vld [vmem:[#allocation10 + $0x7e8] sm:$0xff]
        %v7911 = vld [vmem:[#allocation10 + $0x7f0] sm:$0xff]
        %v7912 = vld [vmem:[#allocation10 + $0x7f8] sm:$0xff]
        %v7913 = vld [vmem:[#allocation11] sm:$0xf]
        %v7915 = vperm.slane %v7913, 0
        %v7916 = vperm.slane %v7913, 1
        %v7917 = vperm.slane %v7913, 2
        %v7918 = vperm.slane %v7913, 3
        %v8179 = vunpack.c.l.b16 %v7657
        %v8180 = vunpack.c.h.b16 %v7657
        %v8181 = vunpack.c.l.b16 %v7658
        %v8182 = vunpack.c.h.b16 %v7658
        %v8183 = vunpack.c.l.b16 %v7659
        %v8184 = vunpack.c.h.b16 %v7659
        %v8185 = vunpack.c.l.b16 %v7660
        %v8186 = vunpack.c.h.b16 %v7660
        %v8187 = vunpack.c.l.b16 %v7661
        %v8188 = vunpack.c.h.b16 %v7661
        %v8189 = vunpack.c.l.b16 %v7662
        %v8190 = vunpack.c.h.b16 %v7662
        %v8191 = vunpack.c.l.b16 %v7663
        %v8192 = vunpack.c.h.b16 %v7663
        %v8193 = vunpack.c.l.b16 %v7664
        %v8194 = vunpack.c.h.b16 %v7664
        %v8195 = vunpack.c.l.b16 %v7665
        %v8196 = vunpack.c.h.b16 %v7665
        %v8197 = vunpack.c.l.b16 %v7666
        %v8198 = vunpack.c.h.b16 %v7666
        %v8199 = vunpack.c.l.b16 %v7667
        %v8200 = vunpack.c.h.b16 %v7667
        %v8201 = vunpack.c.l.b16 %v7668
        %v8202 = vunpack.c.h.b16 %v7668
        %v8203 = vunpack.c.l.b16 %v7669
        %v8204 = vunpack.c.h.b16 %v7669
        %v8205 = vunpack.c.l.b16 %v7670
        %v8206 = vunpack.c.h.b16 %v7670
        %v8207 = vunpack.c.l.b16 %v7671
        %v8208 = vunpack.c.h.b16 %v7671
        %v8209 = vunpack.c.l.b16 %v7672
        %v8210 = vunpack.c.h.b16 %v7672
        %v8211 = vunpack.c.l.b16 %v7673
        %v8212 = vunpack.c.h.b16 %v7673
        %v8213 = vunpack.c.l.b16 %v7674
        %v8214 = vunpack.c.h.b16 %v7674
        %v8215 = vunpack.c.l.b16 %v7675
        %v8216 = vunpack.c.h.b16 %v7675
        %v8217 = vunpack.c.l.b16 %v7676
        %v8218 = vunpack.c.h.b16 %v7676
        %v8219 = vunpack.c.l.b16 %v7677
        %v8220 = vunpack.c.h.b16 %v7677
        %v8221 = vunpack.c.l.b16 %v7678
        %v8222 = vunpack.c.h.b16 %v7678
        %v8223 = vunpack.c.l.b16 %v7679
        %v8224 = vunpack.c.h.b16 %v7679
        %v8225 = vunpack.c.l.b16 %v7680
        %v8226 = vunpack.c.h.b16 %v7680
        %v8227 = vunpack.c.l.b16 %v7681
        %v8228 = vunpack.c.h.b16 %v7681
        %v8229 = vunpack.c.l.b16 %v7682
        %v8230 = vunpack.c.h.b16 %v7682
        %v8231 = vunpack.c.l.b16 %v7683
        %v8232 = vunpack.c.h.b16 %v7683
        %v8233 = vunpack.c.l.b16 %v7684
        %v8234 = vunpack.c.h.b16 %v7684
        %v8235 = vunpack.c.l.b16 %v7685
        %v8236 = vunpack.c.h.b16 %v7685
        %v8237 = vunpack.c.l.b16 %v7686
        %v8238 = vunpack.c.h.b16 %v7686
        %v8239 = vunpack.c.l.b16 %v7687
        %v8240 = vunpack.c.h.b16 %v7687
        %v8241 = vunpack.c.l.b16 %v7688
        %v8242 = vunpack.c.h.b16 %v7688
        %v8243 = vunpack.c.l.b16 %v7689
        %v8244 = vunpack.c.h.b16 %v7689
        %v8245 = vunpack.c.l.b16 %v7690
        %v8246 = vunpack.c.h.b16 %v7690
        %v8247 = vunpack.c.l.b16 %v7691
        %v8248 = vunpack.c.h.b16 %v7691
        %v8249 = vunpack.c.l.b16 %v7692
        %v8250 = vunpack.c.h.b16 %v7692
        %v8251 = vunpack.c.l.b16 %v7693
        %v8252 = vunpack.c.h.b16 %v7693
        %v8253 = vunpack.c.l.b16 %v7694
        %v8254 = vunpack.c.h.b16 %v7694
        %v8255 = vunpack.c.l.b16 %v7695
        %v8256 = vunpack.c.h.b16 %v7695
        %v8257 = vunpack.c.l.b16 %v7696
        %v8258 = vunpack.c.h.b16 %v7696
        %v8259 = vunpack.c.l.b16 %v7697
        %v8260 = vunpack.c.h.b16 %v7697
        %v8261 = vunpack.c.l.b16 %v7698
        %v8262 = vunpack.c.h.b16 %v7698
        %v8263 = vunpack.c.l.b16 %v7699
        %v8264 = vunpack.c.h.b16 %v7699
        %v8265 = vunpack.c.l.b16 %v7700
        %v8266 = vunpack.c.h.b16 %v7700
        %v8267 = vunpack.c.l.b16 %v7701
        %v8268 = vunpack.c.h.b16 %v7701
        %v8269 = vunpack.c.l.b16 %v7702
        %v8270 = vunpack.c.h.b16 %v7702
        %v8271 = vunpack.c.l.b16 %v7703
        %v8272 = vunpack.c.h.b16 %v7703
        %v8273 = vunpack.c.l.b16 %v7704
        %v8274 = vunpack.c.h.b16 %v7704
        %v8275 = vunpack.c.l.b16 %v7705
        %v8276 = vunpack.c.h.b16 %v7705
        %v8277 = vunpack.c.l.b16 %v7706
        %v8278 = vunpack.c.h.b16 %v7706
        %v8279 = vunpack.c.l.b16 %v7707
        %v8280 = vunpack.c.h.b16 %v7707
        %v8281 = vunpack.c.l.b16 %v7708
        %v8282 = vunpack.c.h.b16 %v7708
        %v8283 = vunpack.c.l.b16 %v7709
        %v8284 = vunpack.c.h.b16 %v7709
        %v8285 = vunpack.c.l.b16 %v7710
        %v8286 = vunpack.c.h.b16 %v7710
        %v8287 = vunpack.c.l.b16 %v7711
        %v8288 = vunpack.c.h.b16 %v7711
        %v8289 = vunpack.c.l.b16 %v7712
        %v8290 = vunpack.c.h.b16 %v7712
        %v8291 = vunpack.c.l.b16 %v7713
        %v8292 = vunpack.c.h.b16 %v7713
        %v8293 = vunpack.c.l.b16 %v7714
        %v8294 = vunpack.c.h.b16 %v7714
        %v8295 = vunpack.c.l.b16 %v7715
        %v8296 = vunpack.c.h.b16 %v7715
        %v8297 = vunpack.c.l.b16 %v7716
        %v8298 = vunpack.c.h.b16 %v7716
        %v8299 = vunpack.c.l.b16 %v7717
        %v8300 = vunpack.c.h.b16 %v7717
        %v8301 = vunpack.c.l.b16 %v7718
        %v8302 = vunpack.c.h.b16 %v7718
        %v8303 = vunpack.c.l.b16 %v7719
        %v8304 = vunpack.c.h.b16 %v7719
        %v8305 = vunpack.c.l.b16 %v7720
        %v8306 = vunpack.c.h.b16 %v7720
        %v8307 = vunpack.c.l.b16 %v7721
        %v8308 = vunpack.c.h.b16 %v7721
        %v8309 = vunpack.c.l.b16 %v7722
        %v8310 = vunpack.c.h.b16 %v7722
        %v8311 = vunpack.c.l.b16 %v7723
        %v8312 = vunpack.c.h.b16 %v7723
        %v8313 = vunpack.c.l.b16 %v7724
        %v8314 = vunpack.c.h.b16 %v7724
        %v8315 = vunpack.c.l.b16 %v7725
        %v8316 = vunpack.c.h.b16 %v7725
        %v8317 = vunpack.c.l.b16 %v7726
        %v8318 = vunpack.c.h.b16 %v7726
        %v8319 = vunpack.c.l.b16 %v7727
        %v8320 = vunpack.c.h.b16 %v7727
        %v8321 = vunpack.c.l.b16 %v7728
        %v8322 = vunpack.c.h.b16 %v7728
        %v8323 = vunpack.c.l.b16 %v7729
        %v8324 = vunpack.c.h.b16 %v7729
        %v8325 = vunpack.c.l.b16 %v7730
        %v8326 = vunpack.c.h.b16 %v7730
        %v8327 = vunpack.c.l.b16 %v7731
        %v8328 = vunpack.c.h.b16 %v7731
        %v8329 = vunpack.c.l.b16 %v7732
        %v8330 = vunpack.c.h.b16 %v7732
        %v8331 = vunpack.c.l.b16 %v7733
        %v8332 = vunpack.c.h.b16 %v7733
        %v8333 = vunpack.c.l.b16 %v7734
        %v8334 = vunpack.c.h.b16 %v7734
        %v8335 = vunpack.c.l.b16 %v7735
        %v8336 = vunpack.c.h.b16 %v7735
        %v8337 = vunpack.c.l.b16 %v7736
        %v8338 = vunpack.c.h.b16 %v7736
        %v8339 = vunpack.c.l.b16 %v7737
        %v8340 = vunpack.c.h.b16 %v7737
        %v8341 = vunpack.c.l.b16 %v7738
        %v8342 = vunpack.c.h.b16 %v7738
        %v8343 = vunpack.c.l.b16 %v7739
        %v8344 = vunpack.c.h.b16 %v7739
        %v8345 = vunpack.c.l.b16 %v7740
        %v8346 = vunpack.c.h.b16 %v7740
        %v8347 = vunpack.c.l.b16 %v7741
        %v8348 = vunpack.c.h.b16 %v7741
        %v8349 = vunpack.c.l.b16 %v7742
        %v8350 = vunpack.c.h.b16 %v7742
        %v8351 = vunpack.c.l.b16 %v7743
        %v8352 = vunpack.c.h.b16 %v7743
        %v8353 = vunpack.c.l.b16 %v7744
        %v8354 = vunpack.c.h.b16 %v7744
        %v8355 = vunpack.c.l.b16 %v7745
        %v8356 = vunpack.c.h.b16 %v7745
        %v8357 = vunpack.c.l.b16 %v7746
        %v8358 = vunpack.c.h.b16 %v7746
        %v8359 = vunpack.c.l.b16 %v7747
        %v8360 = vunpack.c.h.b16 %v7747
        %v8361 = vunpack.c.l.b16 %v7748
        %v8362 = vunpack.c.h.b16 %v7748
        %v8363 = vunpack.c.l.b16 %v7749
        %v8364 = vunpack.c.h.b16 %v7749
        %v8365 = vunpack.c.l.b16 %v7750
        %v8366 = vunpack.c.h.b16 %v7750
        %v8367 = vunpack.c.l.b16 %v7751
        %v8368 = vunpack.c.h.b16 %v7751
        %v8369 = vunpack.c.l.b16 %v7752
        %v8370 = vunpack.c.h.b16 %v7752
        %v8371 = vunpack.c.l.b16 %v7753
        %v8372 = vunpack.c.h.b16 %v7753
        %v8373 = vunpack.c.l.b16 %v7754
        %v8374 = vunpack.c.h.b16 %v7754
        %v8375 = vunpack.c.l.b16 %v7755
        %v8376 = vunpack.c.h.b16 %v7755
        %v8377 = vunpack.c.l.b16 %v7756
        %v8378 = vunpack.c.h.b16 %v7756
        %v8379 = vunpack.c.l.b16 %v7757
        %v8380 = vunpack.c.h.b16 %v7757
        %v8381 = vunpack.c.l.b16 %v7758
        %v8382 = vunpack.c.h.b16 %v7758
        %v8383 = vunpack.c.l.b16 %v7759
        %v8384 = vunpack.c.h.b16 %v7759
        %v8385 = vunpack.c.l.b16 %v7760
        %v8386 = vunpack.c.h.b16 %v7760
        %v8387 = vunpack.c.l.b16 %v7761
        %v8388 = vunpack.c.h.b16 %v7761
        %v8389 = vunpack.c.l.b16 %v7762
        %v8390 = vunpack.c.h.b16 %v7762
        %v8391 = vunpack.c.l.b16 %v7763
        %v8392 = vunpack.c.h.b16 %v7763
        %v8393 = vunpack.c.l.b16 %v7764
        %v8394 = vunpack.c.h.b16 %v7764
        %v8395 = vunpack.c.l.b16 %v7765
        %v8396 = vunpack.c.h.b16 %v7765
        %v8397 = vunpack.c.l.b16 %v7766
        %v8398 = vunpack.c.h.b16 %v7766
        %v8399 = vunpack.c.l.b16 %v7767
        %v8400 = vunpack.c.h.b16 %v7767
        %v8401 = vunpack.c.l.b16 %v7768
        %v8402 = vunpack.c.h.b16 %v7768
        %v8403 = vunpack.c.l.b16 %v7769
        %v8404 = vunpack.c.h.b16 %v7769
        %v8405 = vunpack.c.l.b16 %v7770
        %v8406 = vunpack.c.h.b16 %v7770
        %v8407 = vunpack.c.l.b16 %v7771
        %v8408 = vunpack.c.h.b16 %v7771
        %v8409 = vunpack.c.l.b16 %v7772
        %v8410 = vunpack.c.h.b16 %v7772
        %v8411 = vunpack.c.l.b16 %v7773
        %v8412 = vunpack.c.h.b16 %v7773
        %v8413 = vunpack.c.l.b16 %v7774
        %v8414 = vunpack.c.h.b16 %v7774
        %v8415 = vunpack.c.l.b16 %v7775
        %v8416 = vunpack.c.h.b16 %v7775
        %v8417 = vunpack.c.l.b16 %v7776
        %v8418 = vunpack.c.h.b16 %v7776
        %v8419 = vunpack.c.l.b16 %v7777
        %v8420 = vunpack.c.h.b16 %v7777
        %v8421 = vunpack.c.l.b16 %v7778
        %v8422 = vunpack.c.h.b16 %v7778
        %v8423 = vunpack.c.l.b16 %v7779
        %v8424 = vunpack.c.h.b16 %v7779
        %v8425 = vunpack.c.l.b16 %v7780
        %v8426 = vunpack.c.h.b16 %v7780
        %v8427 = vunpack.c.l.b16 %v7781
        %v8428 = vunpack.c.h.b16 %v7781
        %v8429 = vunpack.c.l.b16 %v7782
        %v8430 = vunpack.c.h.b16 %v7782
        %v8431 = vunpack.c.l.b16 %v7783
        %v8432 = vunpack.c.h.b16 %v7783
        %v8433 = vunpack.c.l.b16 %v7784
        %v8434 = vunpack.c.h.b16 %v7784
        %v8435 = vunpack.c.l.b16 %v7785
        %v8436 = vunpack.c.h.b16 %v7785
        %v8437 = vunpack.c.l.b16 %v7786
        %v8438 = vunpack.c.h.b16 %v7786
        %v8439 = vunpack.c.l.b16 %v7787
        %v8440 = vunpack.c.h.b16 %v7787
        %v8441 = vunpack.c.l.b16 %v7788
        %v8442 = vunpack.c.h.b16 %v7788
        %v8443 = vunpack.c.l.b16 %v7789
        %v8444 = vunpack.c.h.b16 %v7789
        %v8445 = vunpack.c.l.b16 %v7790
        %v8446 = vunpack.c.h.b16 %v7790
        %v8447 = vunpack.c.l.b16 %v7791
        %v8448 = vunpack.c.h.b16 %v7791
        %v8449 = vunpack.c.l.b16 %v7792
        %v8450 = vunpack.c.h.b16 %v7792
        %v8451 = vunpack.c.l.b16 %v7793
        %v8452 = vunpack.c.h.b16 %v7793
        %v8453 = vunpack.c.l.b16 %v7794
        %v8454 = vunpack.c.h.b16 %v7794
        %v8455 = vunpack.c.l.b16 %v7795
        %v8456 = vunpack.c.h.b16 %v7795
        %v8457 = vunpack.c.l.b16 %v7796
        %v8458 = vunpack.c.h.b16 %v7796
        %v8459 = vunpack.c.l.b16 %v7797
        %v8460 = vunpack.c.h.b16 %v7797
        %v8461 = vunpack.c.l.b16 %v7798
        %v8462 = vunpack.c.h.b16 %v7798
        %v8463 = vunpack.c.l.b16 %v7799
        %v8464 = vunpack.c.h.b16 %v7799
        %v8465 = vunpack.c.l.b16 %v7800
        %v8466 = vunpack.c.h.b16 %v7800
        %v8467 = vunpack.c.l.b16 %v7801
        %v8468 = vunpack.c.h.b16 %v7801
        %v8469 = vunpack.c.l.b16 %v7802
        %v8470 = vunpack.c.h.b16 %v7802
        %v8471 = vunpack.c.l.b16 %v7803
        %v8472 = vunpack.c.h.b16 %v7803
        %v8473 = vunpack.c.l.b16 %v7804
        %v8474 = vunpack.c.h.b16 %v7804
        %v8475 = vunpack.c.l.b16 %v7805
        %v8476 = vunpack.c.h.b16 %v7805
        %v8477 = vunpack.c.l.b16 %v7806
        %v8478 = vunpack.c.h.b16 %v7806
        %v8479 = vunpack.c.l.b16 %v7807
        %v8480 = vunpack.c.h.b16 %v7807
        %v8481 = vunpack.c.l.b16 %v7808
        %v8482 = vunpack.c.h.b16 %v7808
        %v8483 = vunpack.c.l.b16 %v7809
        %v8484 = vunpack.c.h.b16 %v7809
        %v8485 = vunpack.c.l.b16 %v7810
        %v8486 = vunpack.c.h.b16 %v7810
        %v8487 = vunpack.c.l.b16 %v7811
        %v8488 = vunpack.c.h.b16 %v7811
        %v8489 = vunpack.c.l.b16 %v7812
        %v8490 = vunpack.c.h.b16 %v7812
        %v8491 = vunpack.c.l.b16 %v7813
        %v8492 = vunpack.c.h.b16 %v7813
        %v8493 = vunpack.c.l.b16 %v7814
        %v8494 = vunpack.c.h.b16 %v7814
        %v8495 = vunpack.c.l.b16 %v7815
        %v8496 = vunpack.c.h.b16 %v7815
        %v8497 = vunpack.c.l.b16 %v7816
        %v8498 = vunpack.c.h.b16 %v7816
        %v8499 = vunpack.c.l.b16 %v7817
        %v8500 = vunpack.c.h.b16 %v7817
        %v8501 = vunpack.c.l.b16 %v7818
        %v8502 = vunpack.c.h.b16 %v7818
        %v8503 = vunpack.c.l.b16 %v7819
        %v8504 = vunpack.c.h.b16 %v7819
        %v8505 = vunpack.c.l.b16 %v7820
        %v8506 = vunpack.c.h.b16 %v7820
        %v8507 = vunpack.c.l.b16 %v7821
        %v8508 = vunpack.c.h.b16 %v7821
        %v8509 = vunpack.c.l.b16 %v7822
        %v8510 = vunpack.c.h.b16 %v7822
        %v8511 = vunpack.c.l.b16 %v7823
        %v8512 = vunpack.c.h.b16 %v7823
        %v8513 = vunpack.c.l.b16 %v7824
        %v8514 = vunpack.c.h.b16 %v7824
        %v8515 = vunpack.c.l.b16 %v7825
        %v8516 = vunpack.c.h.b16 %v7825
        %v8517 = vunpack.c.l.b16 %v7826
        %v8518 = vunpack.c.h.b16 %v7826
        %v8519 = vunpack.c.l.b16 %v7827
        %v8520 = vunpack.c.h.b16 %v7827
        %v8521 = vunpack.c.l.b16 %v7828
        %v8522 = vunpack.c.h.b16 %v7828
        %v8523 = vunpack.c.l.b16 %v7829
        %v8524 = vunpack.c.h.b16 %v7829
        %v8525 = vunpack.c.l.b16 %v7830
        %v8526 = vunpack.c.h.b16 %v7830
        %v8527 = vunpack.c.l.b16 %v7831
        %v8528 = vunpack.c.h.b16 %v7831
        %v8529 = vunpack.c.l.b16 %v7832
        %v8530 = vunpack.c.h.b16 %v7832
        %v8531 = vunpack.c.l.b16 %v7833
        %v8532 = vunpack.c.h.b16 %v7833
        %v8533 = vunpack.c.l.b16 %v7834
        %v8534 = vunpack.c.h.b16 %v7834
        %v8535 = vunpack.c.l.b16 %v7835
        %v8536 = vunpack.c.h.b16 %v7835
        %v8537 = vunpack.c.l.b16 %v7836
        %v8538 = vunpack.c.h.b16 %v7836
        %v8539 = vunpack.c.l.b16 %v7837
        %v8540 = vunpack.c.h.b16 %v7837
        %v8541 = vunpack.c.l.b16 %v7838
        %v8542 = vunpack.c.h.b16 %v7838
        %v8543 = vunpack.c.l.b16 %v7839
        %v8544 = vunpack.c.h.b16 %v7839
        %v8545 = vunpack.c.l.b16 %v7840
        %v8546 = vunpack.c.h.b16 %v7840
        %v8547 = vunpack.c.l.b16 %v7841
        %v8548 = vunpack.c.h.b16 %v7841
        %v8549 = vunpack.c.l.b16 %v7842
        %v8550 = vunpack.c.h.b16 %v7842
        %v8551 = vunpack.c.l.b16 %v7843
        %v8552 = vunpack.c.h.b16 %v7843
        %v8553 = vunpack.c.l.b16 %v7844
        %v8554 = vunpack.c.h.b16 %v7844
        %v8555 = vunpack.c.l.b16 %v7845
        %v8556 = vunpack.c.h.b16 %v7845
        %v8557 = vunpack.c.l.b16 %v7846
        %v8558 = vunpack.c.h.b16 %v7846
        %v8559 = vunpack.c.l.b16 %v7847
        %v8560 = vunpack.c.h.b16 %v7847
        %v8561 = vunpack.c.l.b16 %v7848
        %v8562 = vunpack.c.h.b16 %v7848
        %v8563 = vunpack.c.l.b16 %v7849
        %v8564 = vunpack.c.h.b16 %v7849
        %v8565 = vunpack.c.l.b16 %v7850
        %v8566 = vunpack.c.h.b16 %v7850
        %v8567 = vunpack.c.l.b16 %v7851
        %v8568 = vunpack.c.h.b16 %v7851
        %v8569 = vunpack.c.l.b16 %v7852
        %v8570 = vunpack.c.h.b16 %v7852
        %v8571 = vunpack.c.l.b16 %v7853
        %v8572 = vunpack.c.h.b16 %v7853
        %v8573 = vunpack.c.l.b16 %v7854
        %v8574 = vunpack.c.h.b16 %v7854
        %v8575 = vunpack.c.l.b16 %v7855
        %v8576 = vunpack.c.h.b16 %v7855
        %v8577 = vunpack.c.l.b16 %v7856
        %v8578 = vunpack.c.h.b16 %v7856
        %v8579 = vunpack.c.l.b16 %v7857
        %v8580 = vunpack.c.h.b16 %v7857
        %v8581 = vunpack.c.l.b16 %v7858
        %v8582 = vunpack.c.h.b16 %v7858
        %v8583 = vunpack.c.l.b16 %v7859
        %v8584 = vunpack.c.h.b16 %v7859
        %v8585 = vunpack.c.l.b16 %v7860
        %v8586 = vunpack.c.h.b16 %v7860
        %v8587 = vunpack.c.l.b16 %v7861
        %v8588 = vunpack.c.h.b16 %v7861
        %v8589 = vunpack.c.l.b16 %v7862
        %v8590 = vunpack.c.h.b16 %v7862
        %v8591 = vunpack.c.l.b16 %v7863
        %v8592 = vunpack.c.h.b16 %v7863
        %v8593 = vunpack.c.l.b16 %v7864
        %v8594 = vunpack.c.h.b16 %v7864
        %v8595 = vunpack.c.l.b16 %v7865
        %v8596 = vunpack.c.h.b16 %v7865
        %v8597 = vunpack.c.l.b16 %v7866
        %v8598 = vunpack.c.h.b16 %v7866
        %v8599 = vunpack.c.l.b16 %v7867
        %v8600 = vunpack.c.h.b16 %v7867
        %v8601 = vunpack.c.l.b16 %v7868
        %v8602 = vunpack.c.h.b16 %v7868
        %v8603 = vunpack.c.l.b16 %v7869
        %v8604 = vunpack.c.h.b16 %v7869
        %v8605 = vunpack.c.l.b16 %v7870
        %v8606 = vunpack.c.h.b16 %v7870
        %v8607 = vunpack.c.l.b16 %v7871
        %v8608 = vunpack.c.h.b16 %v7871
        %v8609 = vunpack.c.l.b16 %v7872
        %v8610 = vunpack.c.h.b16 %v7872
        %v8611 = vunpack.c.l.b16 %v7873
        %v8612 = vunpack.c.h.b16 %v7873
        %v8613 = vunpack.c.l.b16 %v7874
        %v8614 = vunpack.c.h.b16 %v7874
        %v8615 = vunpack.c.l.b16 %v7875
        %v8616 = vunpack.c.h.b16 %v7875
        %v8617 = vunpack.c.l.b16 %v7876
        %v8618 = vunpack.c.h.b16 %v7876
        %v8619 = vunpack.c.l.b16 %v7877
        %v8620 = vunpack.c.h.b16 %v7877
        %v8621 = vunpack.c.l.b16 %v7878
        %v8622 = vunpack.c.h.b16 %v7878
        %v8623 = vunpack.c.l.b16 %v7879
        %v8624 = vunpack.c.h.b16 %v7879
        %v8625 = vunpack.c.l.b16 %v7880
        %v8626 = vunpack.c.h.b16 %v7880
        %v8627 = vunpack.c.l.b16 %v7881
        %v8628 = vunpack.c.h.b16 %v7881
        %v8629 = vunpack.c.l.b16 %v7882
        %v8630 = vunpack.c.h.b16 %v7882
        %v8631 = vunpack.c.l.b16 %v7883
        %v8632 = vunpack.c.h.b16 %v7883
        %v8633 = vunpack.c.l.b16 %v7884
        %v8634 = vunpack.c.h.b16 %v7884
        %v8635 = vunpack.c.l.b16 %v7885
        %v8636 = vunpack.c.h.b16 %v7885
        %v8637 = vunpack.c.l.b16 %v7886
        %v8638 = vunpack.c.h.b16 %v7886
        %v8639 = vunpack.c.l.b16 %v7887
        %v8640 = vunpack.c.h.b16 %v7887
        %v8641 = vunpack.c.l.b16 %v7888
        %v8642 = vunpack.c.h.b16 %v7888
        %v8643 = vunpack.c.l.b16 %v7889
        %v8644 = vunpack.c.h.b16 %v7889
        %v8645 = vunpack.c.l.b16 %v7890
        %v8646 = vunpack.c.h.b16 %v7890
        %v8647 = vunpack.c.l.b16 %v7891
        %v8648 = vunpack.c.h.b16 %v7891
        %v8649 = vunpack.c.l.b16 %v7892
        %v8650 = vunpack.c.h.b16 %v7892
        %v8651 = vunpack.c.l.b16 %v7893
        %v8652 = vunpack.c.h.b16 %v7893
        %v8653 = vunpack.c.l.b16 %v7894
        %v8654 = vunpack.c.h.b16 %v7894
        %v8655 = vunpack.c.l.b16 %v7895
        %v8656 = vunpack.c.h.b16 %v7895
        %v8657 = vunpack.c.l.b16 %v7896
        %v8658 = vunpack.c.h.b16 %v7896
        %v8659 = vunpack.c.l.b16 %v7897
        %v8660 = vunpack.c.h.b16 %v7897
        %v8661 = vunpack.c.l.b16 %v7898
        %v8662 = vunpack.c.h.b16 %v7898
        %v8663 = vunpack.c.l.b16 %v7899
        %v8664 = vunpack.c.h.b16 %v7899
        %v8665 = vunpack.c.l.b16 %v7900
        %v8666 = vunpack.c.h.b16 %v7900
        %v8667 = vunpack.c.l.b16 %v7901
        %v8668 = vunpack.c.h.b16 %v7901
        %v8669 = vunpack.c.l.b16 %v7902
        %v8670 = vunpack.c.h.b16 %v7902
        %v8671 = vunpack.c.l.b16 %v7903
        %v8672 = vunpack.c.h.b16 %v7903
        %v8673 = vunpack.c.l.b16 %v7904
        %v8674 = vunpack.c.h.b16 %v7904
        %v8675 = vunpack.c.l.b16 %v7905
        %v8676 = vunpack.c.h.b16 %v7905
        %v8677 = vunpack.c.l.b16 %v7906
        %v8678 = vunpack.c.h.b16 %v7906
        %v8679 = vunpack.c.l.b16 %v7907
        %v8680 = vunpack.c.h.b16 %v7907
        %v8681 = vunpack.c.l.b16 %v7908
        %v8682 = vunpack.c.h.b16 %v7908
        %v8683 = vunpack.c.l.b16 %v7909
        %v8684 = vunpack.c.h.b16 %v7909
        %v8685 = vunpack.c.l.b16 %v7910
        %v8686 = vunpack.c.h.b16 %v7910
        %v8687 = vunpack.c.l.b16 %v7911
        %v8688 = vunpack.c.h.b16 %v7911
        %v8689 = vunpack.c.l.b16 %v7912
        %v8690 = vunpack.c.h.b16 %v7912
        %v8691 = vpack.c.b16 %v8183, %v8179
        %v8692 = vpack.c.b16 %v8184, %v8180
        %v8693 = vpack.c.b16 %v8185, %v8181
        %v8694 = vpack.c.b16 %v8186, %v8182
        %v8695 = vpack.c.b16 %v8191, %v8187
        %v8696 = vpack.c.b16 %v8192, %v8188
        %v8697 = vpack.c.b16 %v8193, %v8189
        %v8698 = vpack.c.b16 %v8194, %v8190
        %v8699 = vpack.c.b16 %v8199, %v8195
        %v8700 = vpack.c.b16 %v8200, %v8196
        %v8701 = vpack.c.b16 %v8201, %v8197
        %v8702 = vpack.c.b16 %v8202, %v8198
        %v8703 = vpack.c.b16 %v8207, %v8203
        %v8704 = vpack.c.b16 %v8208, %v8204
        %v8705 = vpack.c.b16 %v8209, %v8205
        %v8706 = vpack.c.b16 %v8210, %v8206
        %v8707 = vpack.c.b16 %v8215, %v8211
        %v8708 = vpack.c.b16 %v8216, %v8212
        %v8709 = vpack.c.b16 %v8217, %v8213
        %v8710 = vpack.c.b16 %v8218, %v8214
        %v8711 = vpack.c.b16 %v8223, %v8219
        %v8712 = vpack.c.b16 %v8224, %v8220
        %v8713 = vpack.c.b16 %v8225, %v8221
        %v8714 = vpack.c.b16 %v8226, %v8222
        %v8715 = vpack.c.b16 %v8231, %v8227
        %v8716 = vpack.c.b16 %v8232, %v8228
        %v8717 = vpack.c.b16 %v8233, %v8229
        %v8718 = vpack.c.b16 %v8234, %v8230
        %v8719 = vpack.c.b16 %v8239, %v8235
        %v8720 = vpack.c.b16 %v8240, %v8236
        %v8721 = vpack.c.b16 %v8241, %v8237
        %v8722 = vpack.c.b16 %v8242, %v8238
        %v8723 = vpack.c.b16 %v8247, %v8243
        %v8724 = vpack.c.b16 %v8248, %v8244
        %v8725 = vpack.c.b16 %v8249, %v8245
        %v8726 = vpack.c.b16 %v8250, %v8246
        %v8727 = vpack.c.b16 %v8255, %v8251
        %v8728 = vpack.c.b16 %v8256, %v8252
        %v8729 = vpack.c.b16 %v8257, %v8253
        %v8730 = vpack.c.b16 %v8258, %v8254
        %v8731 = vpack.c.b16 %v8263, %v8259
        %v8732 = vpack.c.b16 %v8264, %v8260
        %v8733 = vpack.c.b16 %v8265, %v8261
        %v8734 = vpack.c.b16 %v8266, %v8262
        %v8735 = vpack.c.b16 %v8271, %v8267
        %v8736 = vpack.c.b16 %v8272, %v8268
        %v8737 = vpack.c.b16 %v8273, %v8269
        %v8738 = vpack.c.b16 %v8274, %v8270
        %v8739 = vpack.c.b16 %v8279, %v8275
        %v8740 = vpack.c.b16 %v8280, %v8276
        %v8741 = vpack.c.b16 %v8281, %v8277
        %v8742 = vpack.c.b16 %v8282, %v8278
        %v8743 = vpack.c.b16 %v8287, %v8283
        %v8744 = vpack.c.b16 %v8288, %v8284
        %v8745 = vpack.c.b16 %v8289, %v8285
        %v8746 = vpack.c.b16 %v8290, %v8286
        %v8747 = vpack.c.b16 %v8295, %v8291
        %v8748 = vpack.c.b16 %v8296, %v8292
        %v8749 = vpack.c.b16 %v8297, %v8293
        %v8750 = vpack.c.b16 %v8298, %v8294
        %v8751 = vpack.c.b16 %v8303, %v8299
        %v8752 = vpack.c.b16 %v8304, %v8300
        %v8753 = vpack.c.b16 %v8305, %v8301
        %v8754 = vpack.c.b16 %v8306, %v8302
        %v8755 = vpack.c.b16 %v8311, %v8307
        %v8756 = vpack.c.b16 %v8312, %v8308
        %v8757 = vpack.c.b16 %v8313, %v8309
        %v8758 = vpack.c.b16 %v8314, %v8310
        %v8759 = vpack.c.b16 %v8319, %v8315
        %v8760 = vpack.c.b16 %v8320, %v8316
        %v8761 = vpack.c.b16 %v8321, %v8317
        %v8762 = vpack.c.b16 %v8322, %v8318
        %v8763 = vpack.c.b16 %v8327, %v8323
        %v8764 = vpack.c.b16 %v8328, %v8324
        %v8765 = vpack.c.b16 %v8329, %v8325
        %v8766 = vpack.c.b16 %v8330, %v8326
        %v8767 = vpack.c.b16 %v8335, %v8331
        %v8768 = vpack.c.b16 %v8336, %v8332
        %v8769 = vpack.c.b16 %v8337, %v8333
        %v8770 = vpack.c.b16 %v8338, %v8334
        %v8771 = vpack.c.b16 %v8343, %v8339
        %v8772 = vpack.c.b16 %v8344, %v8340
        %v8773 = vpack.c.b16 %v8345, %v8341
        %v8774 = vpack.c.b16 %v8346, %v8342
        %v8775 = vpack.c.b16 %v8351, %v8347
        %v8776 = vpack.c.b16 %v8352, %v8348
        %v8777 = vpack.c.b16 %v8353, %v8349
        %v8778 = vpack.c.b16 %v8354, %v8350
        %v8779 = vpack.c.b16 %v8359, %v8355
        %v8780 = vpack.c.b16 %v8360, %v8356
        %v8781 = vpack.c.b16 %v8361, %v8357
        %v8782 = vpack.c.b16 %v8362, %v8358
        %v8783 = vpack.c.b16 %v8367, %v8363
        %v8784 = vpack.c.b16 %v8368, %v8364
        %v8785 = vpack.c.b16 %v8369, %v8365
        %v8786 = vpack.c.b16 %v8370, %v8366
        %v8787 = vpack.c.b16 %v8375, %v8371
        %v8788 = vpack.c.b16 %v8376, %v8372
        %v8789 = vpack.c.b16 %v8377, %v8373
        %v8790 = vpack.c.b16 %v8378, %v8374
        %v8791 = vpack.c.b16 %v8383, %v8379
        %v8792 = vpack.c.b16 %v8384, %v8380
        %v8793 = vpack.c.b16 %v8385, %v8381
        %v8794 = vpack.c.b16 %v8386, %v8382
        %v8795 = vpack.c.b16 %v8391, %v8387
        %v8796 = vpack.c.b16 %v8392, %v8388
        %v8797 = vpack.c.b16 %v8393, %v8389
        %v8798 = vpack.c.b16 %v8394, %v8390
        %v8799 = vpack.c.b16 %v8399, %v8395
        %v8800 = vpack.c.b16 %v8400, %v8396
        %v8801 = vpack.c.b16 %v8401, %v8397
        %v8802 = vpack.c.b16 %v8402, %v8398
        %v8803 = vpack.c.b16 %v8407, %v8403
        %v8804 = vpack.c.b16 %v8408, %v8404
        %v8805 = vpack.c.b16 %v8409, %v8405
        %v8806 = vpack.c.b16 %v8410, %v8406
        %v8807 = vpack.c.b16 %v8415, %v8411
        %v8808 = vpack.c.b16 %v8416, %v8412
        %v8809 = vpack.c.b16 %v8417, %v8413
        %v8810 = vpack.c.b16 %v8418, %v8414
        %v8811 = vpack.c.b16 %v8423, %v8419
        %v8812 = vpack.c.b16 %v8424, %v8420
        %v8813 = vpack.c.b16 %v8425, %v8421
        %v8814 = vpack.c.b16 %v8426, %v8422
        %v8815 = vpack.c.b16 %v8431, %v8427
        %v8816 = vpack.c.b16 %v8432, %v8428
        %v8817 = vpack.c.b16 %v8433, %v8429
        %v8818 = vpack.c.b16 %v8434, %v8430
        %v8819 = vpack.c.b16 %v8439, %v8435
        %v8820 = vpack.c.b16 %v8440, %v8436
        %v8821 = vpack.c.b16 %v8441, %v8437
        %v8822 = vpack.c.b16 %v8442, %v8438
        %v8823 = vpack.c.b16 %v8447, %v8443
        %v8824 = vpack.c.b16 %v8448, %v8444
        %v8825 = vpack.c.b16 %v8449, %v8445
        %v8826 = vpack.c.b16 %v8450, %v8446
        %v8827 = vpack.c.b16 %v8455, %v8451
        %v8828 = vpack.c.b16 %v8456, %v8452
        %v8829 = vpack.c.b16 %v8457, %v8453
        %v8830 = vpack.c.b16 %v8458, %v8454
        %v8831 = vpack.c.b16 %v8463, %v8459
        %v8832 = vpack.c.b16 %v8464, %v8460
        %v8833 = vpack.c.b16 %v8465, %v8461
        %v8834 = vpack.c.b16 %v8466, %v8462
        %v8835 = vpack.c.b16 %v8471, %v8467
        %v8836 = vpack.c.b16 %v8472, %v8468
        %v8837 = vpack.c.b16 %v8473, %v8469
        %v8838 = vpack.c.b16 %v8474, %v8470
        %v8839 = vpack.c.b16 %v8479, %v8475
        %v8840 = vpack.c.b16 %v8480, %v8476
        %v8841 = vpack.c.b16 %v8481, %v8477
        %v8842 = vpack.c.b16 %v8482, %v8478
        %v8843 = vpack.c.b16 %v8487, %v8483
        %v8844 = vpack.c.b16 %v8488, %v8484
        %v8845 = vpack.c.b16 %v8489, %v8485
        %v8846 = vpack.c.b16 %v8490, %v8486
        %v8847 = vpack.c.b16 %v8495, %v8491
        %v8848 = vpack.c.b16 %v8496, %v8492
        %v8849 = vpack.c.b16 %v8497, %v8493
        %v8850 = vpack.c.b16 %v8498, %v8494
        %v8851 = vpack.c.b16 %v8503, %v8499
        %v8852 = vpack.c.b16 %v8504, %v8500
        %v8853 = vpack.c.b16 %v8505, %v8501
        %v8854 = vpack.c.b16 %v8506, %v8502
        %v8855 = vpack.c.b16 %v8511, %v8507
        %v8856 = vpack.c.b16 %v8512, %v8508
        %v8857 = vpack.c.b16 %v8513, %v8509
        %v8858 = vpack.c.b16 %v8514, %v8510
        %v8859 = vpack.c.b16 %v8519, %v8515
        %v8860 = vpack.c.b16 %v8520, %v8516
        %v8861 = vpack.c.b16 %v8521, %v8517
        %v8862 = vpack.c.b16 %v8522, %v8518
        %v8863 = vpack.c.b16 %v8527, %v8523
        %v8864 = vpack.c.b16 %v8528, %v8524
        %v8865 = vpack.c.b16 %v8529, %v8525
        %v8866 = vpack.c.b16 %v8530, %v8526
        %v8867 = vpack.c.b16 %v8535, %v8531
        %v8868 = vpack.c.b16 %v8536, %v8532
        %v8869 = vpack.c.b16 %v8537, %v8533
        %v8870 = vpack.c.b16 %v8538, %v8534
        %v8871 = vpack.c.b16 %v8543, %v8539
        %v8872 = vpack.c.b16 %v8544, %v8540
        %v8873 = vpack.c.b16 %v8545, %v8541
        %v8874 = vpack.c.b16 %v8546, %v8542
        %v8875 = vpack.c.b16 %v8551, %v8547
        %v8876 = vpack.c.b16 %v8552, %v8548
        %v8877 = vpack.c.b16 %v8553, %v8549
        %v8878 = vpack.c.b16 %v8554, %v8550
        %v8879 = vpack.c.b16 %v8559, %v8555
        %v8880 = vpack.c.b16 %v8560, %v8556
        %v8881 = vpack.c.b16 %v8561, %v8557
        %v8882 = vpack.c.b16 %v8562, %v8558
        %v8883 = vpack.c.b16 %v8567, %v8563
        %v8884 = vpack.c.b16 %v8568, %v8564
        %v8885 = vpack.c.b16 %v8569, %v8565
        %v8886 = vpack.c.b16 %v8570, %v8566
        %v8887 = vpack.c.b16 %v8575, %v8571
        %v8888 = vpack.c.b16 %v8576, %v8572
        %v8889 = vpack.c.b16 %v8577, %v8573
        %v8890 = vpack.c.b16 %v8578, %v8574
        %v8891 = vpack.c.b16 %v8583, %v8579
        %v8892 = vpack.c.b16 %v8584, %v8580
        %v8893 = vpack.c.b16 %v8585, %v8581
        %v8894 = vpack.c.b16 %v8586, %v8582
        %v8895 = vpack.c.b16 %v8591, %v8587
        %v8896 = vpack.c.b16 %v8592, %v8588
        %v8897 = vpack.c.b16 %v8593, %v8589
        %v8898 = vpack.c.b16 %v8594, %v8590
        %v8899 = vpack.c.b16 %v8599, %v8595
        %v8900 = vpack.c.b16 %v8600, %v8596
        %v8901 = vpack.c.b16 %v8601, %v8597
        %v8902 = vpack.c.b16 %v8602, %v8598
        %v8903 = vpack.c.b16 %v8607, %v8603
        %v8904 = vpack.c.b16 %v8608, %v8604
        %v8905 = vpack.c.b16 %v8609, %v8605
        %v8906 = vpack.c.b16 %v8610, %v8606
        %v8907 = vpack.c.b16 %v8615, %v8611
        %v8908 = vpack.c.b16 %v8616, %v8612
        %v8909 = vpack.c.b16 %v8617, %v8613
        %v8910 = vpack.c.b16 %v8618, %v8614
        %v8911 = vpack.c.b16 %v8623, %v8619
        %v8912 = vpack.c.b16 %v8624, %v8620
        %v8913 = vpack.c.b16 %v8625, %v8621
        %v8914 = vpack.c.b16 %v8626, %v8622
        %v8915 = vpack.c.b16 %v8631, %v8627
        %v8916 = vpack.c.b16 %v8632, %v8628
        %v8917 = vpack.c.b16 %v8633, %v8629
        %v8918 = vpack.c.b16 %v8634, %v8630
        %v8919 = vpack.c.b16 %v8639, %v8635
        %v8920 = vpack.c.b16 %v8640, %v8636
        %v8921 = vpack.c.b16 %v8641, %v8637
        %v8922 = vpack.c.b16 %v8642, %v8638
        %v8923 = vpack.c.b16 %v8647, %v8643
        %v8924 = vpack.c.b16 %v8648, %v8644
        %v8925 = vpack.c.b16 %v8649, %v8645
        %v8926 = vpack.c.b16 %v8650, %v8646
        %v8927 = vpack.c.b16 %v8655, %v8651
        %v8928 = vpack.c.b16 %v8656, %v8652
        %v8929 = vpack.c.b16 %v8657, %v8653
        %v8930 = vpack.c.b16 %v8658, %v8654
        %v8931 = vpack.c.b16 %v8663, %v8659
        %v8932 = vpack.c.b16 %v8664, %v8660
        %v8933 = vpack.c.b16 %v8665, %v8661
        %v8934 = vpack.c.b16 %v8666, %v8662
        %v8935 = vpack.c.b16 %v8671, %v8667
        %v8936 = vpack.c.b16 %v8672, %v8668
        %v8937 = vpack.c.b16 %v8673, %v8669
        %v8938 = vpack.c.b16 %v8674, %v8670
        %v8939 = vpack.c.b16 %v8679, %v8675
        %v8940 = vpack.c.b16 %v8680, %v8676
        %v8941 = vpack.c.b16 %v8681, %v8677
        %v8942 = vpack.c.b16 %v8682, %v8678
        %v8943 = vpack.c.b16 %v8687, %v8683
        %v8944 = vpack.c.b16 %v8688, %v8684
        %v8945 = vpack.c.b16 %v8689, %v8685
        %v8946 = vpack.c.b16 %v8690, %v8686
        %9203 = vmatpush.bf16.msra.mxu0 %v8719
        %9204 = vmatpush.bf16.msra.mxu0 %v8715
        %9205 = vmatpush.bf16.msra.mxu0 %v8711
        %9206 = vmatpush.bf16.msra.mxu0 %v8707
        %9207 = vmatpush.bf16.msra.mxu0 %v8703
        %9208 = vmatpush.bf16.msra.mxu0 %v8699
        %9209 = vmatpush.bf16.msra.mxu0 %v8695
        %9210 = vmatpush.bf16.msra.mxu0 %v8691
        %9211 = vmatmul.bf16.gmra.mxu0 %v7593
        %v9212 = vpop.f32.mrf.mxu0
        %v9213 = vadd.f32 %v7915, %v9212
        %v9214 = vpop.f32.mrf.mxu0
        %v9215 = vadd.f32 %v7915, %v9214
        %9216 = vmatmul.bf16.gmra.mxu0 %v7601
        %v9217 = vpop.f32.mrf.mxu0
        %v9218 = vadd.f32 %v7915, %v9217
        %v9219 = vpop.f32.mrf.mxu0
        %v9220 = vadd.f32 %v7915, %v9219
        %9221 = vmatmul.bf16.gmra.mxu0 %v7609
        %v9222 = vpop.f32.mrf.mxu0
        %v9223 = vadd.f32 %v7915, %v9222
        %v9224 = vpop.f32.mrf.mxu0
        %v9225 = vadd.f32 %v7915, %v9224
        %9226 = vmatmul.bf16.gmra.mxu0 %v7617
        %v9227 = vpop.f32.mrf.mxu0
        %v9228 = vadd.f32 %v7915, %v9227
        %v9229 = vpop.f32.mrf.mxu0
        %v9230 = vadd.f32 %v7915, %v9229
        %9231 = vmatmul.bf16.gmra.mxu0 %v7625
        %v9232 = vpop.f32.mrf.mxu0
        %v9233 = vadd.f32 %v7915, %v9232
        %v9234 = vpop.f32.mrf.mxu0
        %v9235 = vadd.f32 %v7915, %v9234
        %9236 = vmatmul.bf16.gmra.mxu0 %v7633
        %v9237 = vpop.f32.mrf.mxu0
        %v9238 = vadd.f32 %v7915, %v9237
        %v9239 = vpop.f32.mrf.mxu0
        %v9240 = vadd.f32 %v7915, %v9239
        %9241 = vmatmul.bf16.gmra.mxu0 %v7641
        %v9242 = vpop.f32.mrf.mxu0
        %v9243 = vadd.f32 %v7915, %v9242
        %v9244 = vpop.f32.mrf.mxu0
        %v9245 = vadd.f32 %v7915, %v9244
        %9246 = vmatmul.bf16.gmra.mxu0 %v7649
        %v9247 = vpop.f32.mrf.mxu0
        %v9248 = vadd.f32 %v7915, %v9247
        %v9249 = vpop.f32.mrf.mxu0
        %v9250 = vadd.f32 %v7915, %v9249
        %9251 = vdwg.mxu0
        %9252 = vmatpush.bf16.msra.mxu0 %v8751
        %9253 = vmatpush.bf16.msra.mxu0 %v8747
        %9254 = vmatpush.bf16.msra.mxu0 %v8743
        %9255 = vmatpush.bf16.msra.mxu0 %v8739
        %9256 = vmatpush.bf16.msra.mxu0 %v8735
        %9257 = vmatpush.bf16.msra.mxu0 %v8731
        %9258 = vmatpush.bf16.msra.mxu0 %v8727
        %9259 = vmatpush.bf16.msra.mxu0 %v8723
        %9260 = vmatmul.bf16.gmra.mxu0 %v7594
        %v9261 = vpop.f32.mrf.mxu0
        %v9262 = vadd.f32 %v9213, %v9261
        %v9263 = vpop.f32.mrf.mxu0
        %v9264 = vadd.f32 %v9215, %v9263
        %9265 = vmatmul.bf16.gmra.mxu0 %v7602
        %v9266 = vpop.f32.mrf.mxu0
        %v9267 = vadd.f32 %v9218, %v9266
        %v9268 = vpop.f32.mrf.mxu0
        %v9269 = vadd.f32 %v9220, %v9268
        %9270 = vmatmul.bf16.gmra.mxu0 %v7610
        %v9271 = vpop.f32.mrf.mxu0
        %v9272 = vadd.f32 %v9223, %v9271
        %v9273 = vpop.f32.mrf.mxu0
        %v9274 = vadd.f32 %v9225, %v9273
        %9275 = vmatmul.bf16.gmra.mxu0 %v7618
        %v9276 = vpop.f32.mrf.mxu0
        %v9277 = vadd.f32 %v9228, %v9276
        %v9278 = vpop.f32.mrf.mxu0
        %v9279 = vadd.f32 %v9230, %v9278
        %9280 = vmatmul.bf16.gmra.mxu0 %v7626
        %v9281 = vpop.f32.mrf.mxu0
        %v9282 = vadd.f32 %v9233, %v9281
        %v9283 = vpop.f32.mrf.mxu0
        %v9284 = vadd.f32 %v9235, %v9283
        %9285 = vmatmul.bf16.gmra.mxu0 %v7634
        %v9286 = vpop.f32.mrf.mxu0
        %v9287 = vadd.f32 %v9238, %v9286
        %v9288 = vpop.f32.mrf.mxu0
        %v9289 = vadd.f32 %v9240, %v9288
        %9290 = vmatmul.bf16.gmra.mxu0 %v7642
        %v9291 = vpop.f32.mrf.mxu0
        %v9292 = vadd.f32 %v9243, %v9291
        %v9293 = vpop.f32.mrf.mxu0
        %v9294 = vadd.f32 %v9245, %v9293
        %9295 = vmatmul.bf16.gmra.mxu0 %v7650
        %v9296 = vpop.f32.mrf.mxu0
        %v9297 = vadd.f32 %v9248, %v9296
        %v9298 = vpop.f32.mrf.mxu0
        %v9299 = vadd.f32 %v9250, %v9298
        %9300 = vdwg.mxu0
        %9301 = vmatpush.bf16.msra.mxu0 %v8783
        %9302 = vmatpush.bf16.msra.mxu0 %v8779
        %9303 = vmatpush.bf16.msra.mxu0 %v8775
        %9304 = vmatpush.bf16.msra.mxu0 %v8771
        %9305 = vmatpush.bf16.msra.mxu0 %v8767
        %9306 = vmatpush.bf16.msra.mxu0 %v8763
        %9307 = vmatpush.bf16.msra.mxu0 %v8759
        %9308 = vmatpush.bf16.msra.mxu0 %v8755
        %9309 = vmatmul.bf16.gmra.mxu0 %v7595
        %v9310 = vpop.f32.mrf.mxu0
        %v9311 = vadd.f32 %v9262, %v9310
        %v9312 = vpop.f32.mrf.mxu0
        %v9313 = vadd.f32 %v9264, %v9312
        %9314 = vmatmul.bf16.gmra.mxu0 %v7603
        %v9315 = vpop.f32.mrf.mxu0
        %v9316 = vadd.f32 %v9267, %v9315
        %v9317 = vpop.f32.mrf.mxu0
        %v9318 = vadd.f32 %v9269, %v9317
        %9319 = vmatmul.bf16.gmra.mxu0 %v7611
        %v9320 = vpop.f32.mrf.mxu0
        %v9321 = vadd.f32 %v9272, %v9320
        %v9322 = vpop.f32.mrf.mxu0
        %v9323 = vadd.f32 %v9274, %v9322
        %9324 = vmatmul.bf16.gmra.mxu0 %v7619
        %v9325 = vpop.f32.mrf.mxu0
        %v9326 = vadd.f32 %v9277, %v9325
        %v9327 = vpop.f32.mrf.mxu0
        %v9328 = vadd.f32 %v9279, %v9327
        %9329 = vmatmul.bf16.gmra.mxu0 %v7627
        %v9330 = vpop.f32.mrf.mxu0
        %v9331 = vadd.f32 %v9282, %v9330
        %v9332 = vpop.f32.mrf.mxu0
        %v9333 = vadd.f32 %v9284, %v9332
        %9334 = vmatmul.bf16.gmra.mxu0 %v7635
        %v9335 = vpop.f32.mrf.mxu0
        %v9336 = vadd.f32 %v9287, %v9335
        %v9337 = vpop.f32.mrf.mxu0
        %v9338 = vadd.f32 %v9289, %v9337
        %9339 = vmatmul.bf16.gmra.mxu0 %v7643
        %v9340 = vpop.f32.mrf.mxu0
        %v9341 = vadd.f32 %v9292, %v9340
        %v9342 = vpop.f32.mrf.mxu0
        %v9343 = vadd.f32 %v9294, %v9342
        %9344 = vmatmul.bf16.gmra.mxu0 %v7651
        %v9345 = vpop.f32.mrf.mxu0
        %v9346 = vadd.f32 %v9297, %v9345
        %v9347 = vpop.f32.mrf.mxu0
        %v9348 = vadd.f32 %v9299, %v9347
        %9349 = vdwg.mxu0
        %9350 = vmatpush.bf16.msra.mxu0 %v8815
        %9351 = vmatpush.bf16.msra.mxu0 %v8811
        %9352 = vmatpush.bf16.msra.mxu0 %v8807
        %9353 = vmatpush.bf16.msra.mxu0 %v8803
        %9354 = vmatpush.bf16.msra.mxu0 %v8799
        %9355 = vmatpush.bf16.msra.mxu0 %v8795
        %9356 = vmatpush.bf16.msra.mxu0 %v8791
        %9357 = vmatpush.bf16.msra.mxu0 %v8787
        %9358 = vmatmul.bf16.gmra.mxu0 %v7596
        %v9359 = vpop.f32.mrf.mxu0
        %v9360 = vadd.f32 %v9311, %v9359
        %v9361 = vpop.f32.mrf.mxu0
        %v9362 = vadd.f32 %v9313, %v9361
        %9363 = vmatmul.bf16.gmra.mxu0 %v7604
        %v9364 = vpop.f32.mrf.mxu0
        %v9365 = vadd.f32 %v9316, %v9364
        %v9366 = vpop.f32.mrf.mxu0
        %v9367 = vadd.f32 %v9318, %v9366
        %9368 = vmatmul.bf16.gmra.mxu0 %v7612
        %v9369 = vpop.f32.mrf.mxu0
        %v9370 = vadd.f32 %v9321, %v9369
        %v9371 = vpop.f32.mrf.mxu0
        %v9372 = vadd.f32 %v9323, %v9371
        %9373 = vmatmul.bf16.gmra.mxu0 %v7620
        %v9374 = vpop.f32.mrf.mxu0
        %v9375 = vadd.f32 %v9326, %v9374
        %v9376 = vpop.f32.mrf.mxu0
        %v9377 = vadd.f32 %v9328, %v9376
        %9378 = vmatmul.bf16.gmra.mxu0 %v7628
        %v9379 = vpop.f32.mrf.mxu0
        %v9380 = vadd.f32 %v9331, %v9379
        %v9381 = vpop.f32.mrf.mxu0
        %v9382 = vadd.f32 %v9333, %v9381
        %9383 = vmatmul.bf16.gmra.mxu0 %v7636
        %v9384 = vpop.f32.mrf.mxu0
        %v9385 = vadd.f32 %v9336, %v9384
        %v9386 = vpop.f32.mrf.mxu0
        %v9387 = vadd.f32 %v9338, %v9386
        %9388 = vmatmul.bf16.gmra.mxu0 %v7644
        %v9389 = vpop.f32.mrf.mxu0
        %v9390 = vadd.f32 %v9341, %v9389
        %v9391 = vpop.f32.mrf.mxu0
        %v9392 = vadd.f32 %v9343, %v9391
        %9393 = vmatmul.bf16.gmra.mxu0 %v7652
        %v9394 = vpop.f32.mrf.mxu0
        %v9395 = vadd.f32 %v9346, %v9394
        %v9396 = vpop.f32.mrf.mxu0
        %v9397 = vadd.f32 %v9348, %v9396
        %9398 = vdwg.mxu0
        %9399 = vmatpush.bf16.msra.mxu0 %v8847
        %9400 = vmatpush.bf16.msra.mxu0 %v8843
        %9401 = vmatpush.bf16.msra.mxu0 %v8839
        %9402 = vmatpush.bf16.msra.mxu0 %v8835
        %9403 = vmatpush.bf16.msra.mxu0 %v8831
        %9404 = vmatpush.bf16.msra.mxu0 %v8827
        %9405 = vmatpush.bf16.msra.mxu0 %v8823
        %9406 = vmatpush.bf16.msra.mxu0 %v8819
        %9407 = vmatmul.bf16.gmra.mxu0 %v7597
        %v9408 = vpop.f32.mrf.mxu0
        %v9409 = vadd.f32 %v9360, %v9408
        %v9410 = vpop.f32.mrf.mxu0
        %v9411 = vadd.f32 %v9362, %v9410
        %9412 = vmatmul.bf16.gmra.mxu0 %v7605
        %v9413 = vpop.f32.mrf.mxu0
        %v9414 = vadd.f32 %v9365, %v9413
        %v9415 = vpop.f32.mrf.mxu0
        %v9416 = vadd.f32 %v9367, %v9415
        %9417 = vmatmul.bf16.gmra.mxu0 %v7613
        %v9418 = vpop.f32.mrf.mxu0
        %v9419 = vadd.f32 %v9370, %v9418
        %v9420 = vpop.f32.mrf.mxu0
        %v9421 = vadd.f32 %v9372, %v9420
        %9422 = vmatmul.bf16.gmra.mxu0 %v7621
        %v9423 = vpop.f32.mrf.mxu0
        %v9424 = vadd.f32 %v9375, %v9423
        %v9425 = vpop.f32.mrf.mxu0
        %v9426 = vadd.f32 %v9377, %v9425
        %9427 = vmatmul.bf16.gmra.mxu0 %v7629
        %v9428 = vpop.f32.mrf.mxu0
        %v9429 = vadd.f32 %v9380, %v9428
        %v9430 = vpop.f32.mrf.mxu0
        %v9431 = vadd.f32 %v9382, %v9430
        %9432 = vmatmul.bf16.gmra.mxu0 %v7637
        %v9433 = vpop.f32.mrf.mxu0
        %v9434 = vadd.f32 %v9385, %v9433
        %v9435 = vpop.f32.mrf.mxu0
        %v9436 = vadd.f32 %v9387, %v9435
        %9437 = vmatmul.bf16.gmra.mxu0 %v7645
        %v9438 = vpop.f32.mrf.mxu0
        %v9439 = vadd.f32 %v9390, %v9438
        %v9440 = vpop.f32.mrf.mxu0
        %v9441 = vadd.f32 %v9392, %v9440
        %9442 = vmatmul.bf16.gmra.mxu0 %v7653
        %v9443 = vpop.f32.mrf.mxu0
        %v9444 = vadd.f32 %v9395, %v9443
        %v9445 = vpop.f32.mrf.mxu0
        %v9446 = vadd.f32 %v9397, %v9445
        %9447 = vdwg.mxu0
        %9448 = vmatpush.bf16.msra.mxu0 %v8879
        %9449 = vmatpush.bf16.msra.mxu0 %v8875
        %9450 = vmatpush.bf16.msra.mxu0 %v8871
        %9451 = vmatpush.bf16.msra.mxu0 %v8867
        %9452 = vmatpush.bf16.msra.mxu0 %v8863
        %9453 = vmatpush.bf16.msra.mxu0 %v8859
        %9454 = vmatpush.bf16.msra.mxu0 %v8855
        %9455 = vmatpush.bf16.msra.mxu0 %v8851
        %9456 = vmatmul.bf16.gmra.mxu0 %v7598
        %v9457 = vpop.f32.mrf.mxu0
        %v9458 = vadd.f32 %v9409, %v9457
        %v9459 = vpop.f32.mrf.mxu0
        %v9460 = vadd.f32 %v9411, %v9459
        %9461 = vmatmul.bf16.gmra.mxu0 %v7606
        %v9462 = vpop.f32.mrf.mxu0
        %v9463 = vadd.f32 %v9414, %v9462
        %v9464 = vpop.f32.mrf.mxu0
        %v9465 = vadd.f32 %v9416, %v9464
        %9466 = vmatmul.bf16.gmra.mxu0 %v7614
        %v9467 = vpop.f32.mrf.mxu0
        %v9468 = vadd.f32 %v9419, %v9467
        %v9469 = vpop.f32.mrf.mxu0
        %v9470 = vadd.f32 %v9421, %v9469
        %9471 = vmatmul.bf16.gmra.mxu0 %v7622
        %v9472 = vpop.f32.mrf.mxu0
        %v9473 = vadd.f32 %v9424, %v9472
        %v9474 = vpop.f32.mrf.mxu0
        %v9475 = vadd.f32 %v9426, %v9474
        %9476 = vmatmul.bf16.gmra.mxu0 %v7630
        %v9477 = vpop.f32.mrf.mxu0
        %v9478 = vadd.f32 %v9429, %v9477
        %v9479 = vpop.f32.mrf.mxu0
        %v9480 = vadd.f32 %v9431, %v9479
        %9481 = vmatmul.bf16.gmra.mxu0 %v7638
        %v9482 = vpop.f32.mrf.mxu0
        %v9483 = vadd.f32 %v9434, %v9482
        %v9484 = vpop.f32.mrf.mxu0
        %v9485 = vadd.f32 %v9436, %v9484
        %9486 = vmatmul.bf16.gmra.mxu0 %v7646
        %v9487 = vpop.f32.mrf.mxu0
        %v9488 = vadd.f32 %v9439, %v9487
        %v9489 = vpop.f32.mrf.mxu0
        %v9490 = vadd.f32 %v9441, %v9489
        %9491 = vmatmul.bf16.gmra.mxu0 %v7654
        %v9492 = vpop.f32.mrf.mxu0
        %v9493 = vadd.f32 %v9444, %v9492
        %v9494 = vpop.f32.mrf.mxu0
        %v9495 = vadd.f32 %v9446, %v9494
        %9496 = vdwg.mxu0
        %9497 = vmatpush.bf16.msra.mxu0 %v8911
        %9498 = vmatpush.bf16.msra.mxu0 %v8907
        %9499 = vmatpush.bf16.msra.mxu0 %v8903
        %9500 = vmatpush.bf16.msra.mxu0 %v8899
        %9501 = vmatpush.bf16.msra.mxu0 %v8895
        %9502 = vmatpush.bf16.msra.mxu0 %v8891
        %9503 = vmatpush.bf16.msra.mxu0 %v8887
        %9504 = vmatpush.bf16.msra.mxu0 %v8883
        %9505 = vmatmul.bf16.gmra.mxu0 %v7599
        %v9506 = vpop.f32.mrf.mxu0
        %v9507 = vadd.f32 %v9458, %v9506
        %v9508 = vpop.f32.mrf.mxu0
        %v9509 = vadd.f32 %v9460, %v9508
        %9510 = vmatmul.bf16.gmra.mxu0 %v7607
        %v9511 = vpop.f32.mrf.mxu0
        %v9512 = vadd.f32 %v9463, %v9511
        %v9513 = vpop.f32.mrf.mxu0
        %v9514 = vadd.f32 %v9465, %v9513
        %9515 = vmatmul.bf16.gmra.mxu0 %v7615
        %v9516 = vpop.f32.mrf.mxu0
        %v9517 = vadd.f32 %v9468, %v9516
        %v9518 = vpop.f32.mrf.mxu0
        %v9519 = vadd.f32 %v9470, %v9518
        %9520 = vmatmul.bf16.gmra.mxu0 %v7623
        %v9521 = vpop.f32.mrf.mxu0
        %v9522 = vadd.f32 %v9473, %v9521
        %v9523 = vpop.f32.mrf.mxu0
        %v9524 = vadd.f32 %v9475, %v9523
        %9525 = vmatmul.bf16.gmra.mxu0 %v7631
        %v9526 = vpop.f32.mrf.mxu0
        %v9527 = vadd.f32 %v9478, %v9526
        %v9528 = vpop.f32.mrf.mxu0
        %v9529 = vadd.f32 %v9480, %v9528
        %9530 = vmatmul.bf16.gmra.mxu0 %v7639
        %v9531 = vpop.f32.mrf.mxu0
        %v9532 = vadd.f32 %v9483, %v9531
        %v9533 = vpop.f32.mrf.mxu0
        %v9534 = vadd.f32 %v9485, %v9533
        %9535 = vmatmul.bf16.gmra.mxu0 %v7647
        %v9536 = vpop.f32.mrf.mxu0
        %v9537 = vadd.f32 %v9488, %v9536
        %v9538 = vpop.f32.mrf.mxu0
        %v9539 = vadd.f32 %v9490, %v9538
        %9540 = vmatmul.bf16.gmra.mxu0 %v7655
        %v9541 = vpop.f32.mrf.mxu0
        %v9542 = vadd.f32 %v9493, %v9541
        %v9543 = vpop.f32.mrf.mxu0
        %v9544 = vadd.f32 %v9495, %v9543
        %9545 = vdwg.mxu0
        %9546 = vmatpush.bf16.msra.mxu0 %v8943
        %9547 = vmatpush.bf16.msra.mxu0 %v8939
        %9548 = vmatpush.bf16.msra.mxu0 %v8935
        %9549 = vmatpush.bf16.msra.mxu0 %v8931
        %9550 = vmatpush.bf16.msra.mxu0 %v8927
        %9551 = vmatpush.bf16.msra.mxu0 %v8923
        %9552 = vmatpush.bf16.msra.mxu0 %v8919
        %9553 = vmatpush.bf16.msra.mxu0 %v8915
        %9554 = vmatmul.bf16.gmra.mxu0 %v7600
        %v9555 = vpop.f32.mrf.mxu0
        %v9556 = vadd.f32 %v9507, %v9555
        %v9557 = vpop.f32.mrf.mxu0
        %v9558 = vadd.f32 %v9509, %v9557
        %9559 = vmatmul.bf16.gmra.mxu0 %v7608
        %v9560 = vpop.f32.mrf.mxu0
        %v9561 = vadd.f32 %v9512, %v9560
        %v9562 = vpop.f32.mrf.mxu0
        %v9563 = vadd.f32 %v9514, %v9562
        %9564 = vmatmul.bf16.gmra.mxu0 %v7616
        %v9565 = vpop.f32.mrf.mxu0
        %v9566 = vadd.f32 %v9517, %v9565
        %v9567 = vpop.f32.mrf.mxu0
        %v9568 = vadd.f32 %v9519, %v9567
        %9569 = vmatmul.bf16.gmra.mxu0 %v7624
        %v9570 = vpop.f32.mrf.mxu0
        %v9571 = vadd.f32 %v9522, %v9570
        %v9572 = vpop.f32.mrf.mxu0
        %v9573 = vadd.f32 %v9524, %v9572
        %9574 = vmatmul.bf16.gmra.mxu0 %v7632
        %v9575 = vpop.f32.mrf.mxu0
        %v9576 = vadd.f32 %v9527, %v9575
        %v9577 = vpop.f32.mrf.mxu0
        %v9578 = vadd.f32 %v9529, %v9577
        %9579 = vmatmul.bf16.gmra.mxu0 %v7640
        %v9580 = vpop.f32.mrf.mxu0
        %v9581 = vadd.f32 %v9532, %v9580
        %v9582 = vpop.f32.mrf.mxu0
        %v9583 = vadd.f32 %v9534, %v9582
        %9584 = vmatmul.bf16.gmra.mxu0 %v7648
        %v9585 = vpop.f32.mrf.mxu0
        %v9586 = vadd.f32 %v9537, %v9585
        %v9587 = vpop.f32.mrf.mxu0
        %v9588 = vadd.f32 %v9539, %v9587
        %9589 = vmatmul.bf16.gmra.mxu0 %v7656
        %v9590 = vpop.f32.mrf.mxu0
        %v9591 = vadd.f32 %v9542, %v9590
        %v9592 = vpop.f32.mrf.mxu0
        %v9593 = vadd.f32 %v9544, %v9592
        %9594 = vdwg.mxu0
        %9595 = vmatpush.bf16.msra.mxu0 %v8720
        %9596 = vmatpush.bf16.msra.mxu0 %v8716
        %9597 = vmatpush.bf16.msra.mxu0 %v8712
        %9598 = vmatpush.bf16.msra.mxu0 %v8708
        %9599 = vmatpush.bf16.msra.mxu0 %v8704
        %9600 = vmatpush.bf16.msra.mxu0 %v8700
        %9601 = vmatpush.bf16.msra.mxu0 %v8696
        %9602 = vmatpush.bf16.msra.mxu0 %v8692
        %9603 = vmatmul.bf16.gmra.mxu0 %v7593
        %v9604 = vpop.f32.mrf.mxu0
        %v9605 = vadd.f32 %v7916, %v9604
        %v9606 = vpop.f32.mrf.mxu0
        %v9607 = vadd.f32 %v7916, %v9606
        %9608 = vmatmul.bf16.gmra.mxu0 %v7601
        %v9609 = vpop.f32.mrf.mxu0
        %v9610 = vadd.f32 %v7916, %v9609
        %v9611 = vpop.f32.mrf.mxu0
        %v9612 = vadd.f32 %v7916, %v9611
        %9613 = vmatmul.bf16.gmra.mxu0 %v7609
        %v9614 = vpop.f32.mrf.mxu0
        %v9615 = vadd.f32 %v7916, %v9614
        %v9616 = vpop.f32.mrf.mxu0
        %v9617 = vadd.f32 %v7916, %v9616
        %9618 = vmatmul.bf16.gmra.mxu0 %v7617
        %v9619 = vpop.f32.mrf.mxu0
        %v9620 = vadd.f32 %v7916, %v9619
        %v9621 = vpop.f32.mrf.mxu0
        %v9622 = vadd.f32 %v7916, %v9621
        %9623 = vmatmul.bf16.gmra.mxu0 %v7625
        %v9624 = vpop.f32.mrf.mxu0
        %v9625 = vadd.f32 %v7916, %v9624
        %v9626 = vpop.f32.mrf.mxu0
        %v9627 = vadd.f32 %v7916, %v9626
        %9628 = vmatmul.bf16.gmra.mxu0 %v7633
        %v9629 = vpop.f32.mrf.mxu0
        %v9630 = vadd.f32 %v7916, %v9629
        %v9631 = vpop.f32.mrf.mxu0
        %v9632 = vadd.f32 %v7916, %v9631
        %9633 = vmatmul.bf16.gmra.mxu0 %v7641
        %v9634 = vpop.f32.mrf.mxu0
        %v9635 = vadd.f32 %v7916, %v9634
        %v9636 = vpop.f32.mrf.mxu0
        %v9637 = vadd.f32 %v7916, %v9636
        %9638 = vmatmul.bf16.gmra.mxu0 %v7649
        %v9639 = vpop.f32.mrf.mxu0
        %v9640 = vadd.f32 %v7916, %v9639
        %v9641 = vpop.f32.mrf.mxu0
        %v9642 = vadd.f32 %v7916, %v9641
        %9643 = vdwg.mxu0
        %9644 = vmatpush.bf16.msra.mxu0 %v8752
        %9645 = vmatpush.bf16.msra.mxu0 %v8748
        %9646 = vmatpush.bf16.msra.mxu0 %v8744
        %9647 = vmatpush.bf16.msra.mxu0 %v8740
        %9648 = vmatpush.bf16.msra.mxu0 %v8736
        %9649 = vmatpush.bf16.msra.mxu0 %v8732
        %9650 = vmatpush.bf16.msra.mxu0 %v8728
        %9651 = vmatpush.bf16.msra.mxu0 %v8724
        %9652 = vmatmul.bf16.gmra.mxu0 %v7594
        %v9653 = vpop.f32.mrf.mxu0
        %v9654 = vadd.f32 %v9605, %v9653
        %v9655 = vpop.f32.mrf.mxu0
        %v9656 = vadd.f32 %v9607, %v9655
        %9657 = vmatmul.bf16.gmra.mxu0 %v7602
        %v9658 = vpop.f32.mrf.mxu0
        %v9659 = vadd.f32 %v9610, %v9658
        %v9660 = vpop.f32.mrf.mxu0
        %v9661 = vadd.f32 %v9612, %v9660
        %9662 = vmatmul.bf16.gmra.mxu0 %v7610
        %v9663 = vpop.f32.mrf.mxu0
        %v9664 = vadd.f32 %v9615, %v9663
        %v9665 = vpop.f32.mrf.mxu0
        %v9666 = vadd.f32 %v9617, %v9665
        %9667 = vmatmul.bf16.gmra.mxu0 %v7618
        %v9668 = vpop.f32.mrf.mxu0
        %v9669 = vadd.f32 %v9620, %v9668
        %v9670 = vpop.f32.mrf.mxu0
        %v9671 = vadd.f32 %v9622, %v9670
        %9672 = vmatmul.bf16.gmra.mxu0 %v7626
        %v9673 = vpop.f32.mrf.mxu0
        %v9674 = vadd.f32 %v9625, %v9673
        %v9675 = vpop.f32.mrf.mxu0
        %v9676 = vadd.f32 %v9627, %v9675
        %9677 = vmatmul.bf16.gmra.mxu0 %v7634
        %v9678 = vpop.f32.mrf.mxu0
        %v9679 = vadd.f32 %v9630, %v9678
        %v9680 = vpop.f32.mrf.mxu0
        %v9681 = vadd.f32 %v9632, %v9680
        %9682 = vmatmul.bf16.gmra.mxu0 %v7642
        %v9683 = vpop.f32.mrf.mxu0
        %v9684 = vadd.f32 %v9635, %v9683
        %v9685 = vpop.f32.mrf.mxu0
        %v9686 = vadd.f32 %v9637, %v9685
        %9687 = vmatmul.bf16.gmra.mxu0 %v7650
        %v9688 = vpop.f32.mrf.mxu0
        %v9689 = vadd.f32 %v9640, %v9688
        %v9690 = vpop.f32.mrf.mxu0
        %v9691 = vadd.f32 %v9642, %v9690
        %9692 = vdwg.mxu0
        %9693 = vmatpush.bf16.msra.mxu0 %v8784
        %9694 = vmatpush.bf16.msra.mxu0 %v8780
        %9695 = vmatpush.bf16.msra.mxu0 %v8776
        %9696 = vmatpush.bf16.msra.mxu0 %v8772
        %9697 = vmatpush.bf16.msra.mxu0 %v8768
        %9698 = vmatpush.bf16.msra.mxu0 %v8764
        %9699 = vmatpush.bf16.msra.mxu0 %v8760
        %9700 = vmatpush.bf16.msra.mxu0 %v8756
        %9701 = vmatmul.bf16.gmra.mxu0 %v7595
        %v9702 = vpop.f32.mrf.mxu0
        %v9703 = vadd.f32 %v9654, %v9702
        %v9704 = vpop.f32.mrf.mxu0
        %v9705 = vadd.f32 %v9656, %v9704
        %9706 = vmatmul.bf16.gmra.mxu0 %v7603
        %v9707 = vpop.f32.mrf.mxu0
        %v9708 = vadd.f32 %v9659, %v9707
        %v9709 = vpop.f32.mrf.mxu0
        %v9710 = vadd.f32 %v9661, %v9709
        %9711 = vmatmul.bf16.gmra.mxu0 %v7611
        %v9712 = vpop.f32.mrf.mxu0
        %v9713 = vadd.f32 %v9664, %v9712
        %v9714 = vpop.f32.mrf.mxu0
        %v9715 = vadd.f32 %v9666, %v9714
        %9716 = vmatmul.bf16.gmra.mxu0 %v7619
        %v9717 = vpop.f32.mrf.mxu0
        %v9718 = vadd.f32 %v9669, %v9717
        %v9719 = vpop.f32.mrf.mxu0
        %v9720 = vadd.f32 %v9671, %v9719
        %9721 = vmatmul.bf16.gmra.mxu0 %v7627
        %v9722 = vpop.f32.mrf.mxu0
        %v9723 = vadd.f32 %v9674, %v9722
        %v9724 = vpop.f32.mrf.mxu0
        %v9725 = vadd.f32 %v9676, %v9724
        %9726 = vmatmul.bf16.gmra.mxu0 %v7635
        %v9727 = vpop.f32.mrf.mxu0
        %v9728 = vadd.f32 %v9679, %v9727
        %v9729 = vpop.f32.mrf.mxu0
        %v9730 = vadd.f32 %v9681, %v9729
        %9731 = vmatmul.bf16.gmra.mxu0 %v7643
        %v9732 = vpop.f32.mrf.mxu0
        %v9733 = vadd.f32 %v9684, %v9732
        %v9734 = vpop.f32.mrf.mxu0
        %v9735 = vadd.f32 %v9686, %v9734
        %9736 = vmatmul.bf16.gmra.mxu0 %v7651
        %v9737 = vpop.f32.mrf.mxu0
        %v9738 = vadd.f32 %v9689, %v9737
        %v9739 = vpop.f32.mrf.mxu0
        %v9740 = vadd.f32 %v9691, %v9739
        %9741 = vdwg.mxu0
        %9742 = vmatpush.bf16.msra.mxu0 %v8816
        %9743 = vmatpush.bf16.msra.mxu0 %v8812
        %9744 = vmatpush.bf16.msra.mxu0 %v8808
        %9745 = vmatpush.bf16.msra.mxu0 %v8804
        %9746 = vmatpush.bf16.msra.mxu0 %v8800
        %9747 = vmatpush.bf16.msra.mxu0 %v8796
        %9748 = vmatpush.bf16.msra.mxu0 %v8792
        %9749 = vmatpush.bf16.msra.mxu0 %v8788
        %9750 = vmatmul.bf16.gmra.mxu0 %v7596
        %v9751 = vpop.f32.mrf.mxu0
        %v9752 = vadd.f32 %v9703, %v9751
        %v9753 = vpop.f32.mrf.mxu0
        %v9754 = vadd.f32 %v9705, %v9753
        %9755 = vmatmul.bf16.gmra.mxu0 %v7604
        %v9756 = vpop.f32.mrf.mxu0
        %v9757 = vadd.f32 %v9708, %v9756
        %v9758 = vpop.f32.mrf.mxu0
        %v9759 = vadd.f32 %v9710, %v9758
        %9760 = vmatmul.bf16.gmra.mxu0 %v7612
        %v9761 = vpop.f32.mrf.mxu0
        %v9762 = vadd.f32 %v9713, %v9761
        %v9763 = vpop.f32.mrf.mxu0
        %v9764 = vadd.f32 %v9715, %v9763
        %9765 = vmatmul.bf16.gmra.mxu0 %v7620
        %v9766 = vpop.f32.mrf.mxu0
        %v9767 = vadd.f32 %v9718, %v9766
        %v9768 = vpop.f32.mrf.mxu0
        %v9769 = vadd.f32 %v9720, %v9768
        %9770 = vmatmul.bf16.gmra.mxu0 %v7628
        %v9771 = vpop.f32.mrf.mxu0
        %v9772 = vadd.f32 %v9723, %v9771
        %v9773 = vpop.f32.mrf.mxu0
        %v9774 = vadd.f32 %v9725, %v9773
        %9775 = vmatmul.bf16.gmra.mxu0 %v7636
        %v9776 = vpop.f32.mrf.mxu0
        %v9777 = vadd.f32 %v9728, %v9776
        %v9778 = vpop.f32.mrf.mxu0
        %v9779 = vadd.f32 %v9730, %v9778
        %9780 = vmatmul.bf16.gmra.mxu0 %v7644
        %v9781 = vpop.f32.mrf.mxu0
        %v9782 = vadd.f32 %v9733, %v9781
        %v9783 = vpop.f32.mrf.mxu0
        %v9784 = vadd.f32 %v9735, %v9783
        %9785 = vmatmul.bf16.gmra.mxu0 %v7652
        %v9786 = vpop.f32.mrf.mxu0
        %v9787 = vadd.f32 %v9738, %v9786
        %v9788 = vpop.f32.mrf.mxu0
        %v9789 = vadd.f32 %v9740, %v9788
        %9790 = vdwg.mxu0
        %9791 = vmatpush.bf16.msra.mxu0 %v8848
        %9792 = vmatpush.bf16.msra.mxu0 %v8844
        %9793 = vmatpush.bf16.msra.mxu0 %v8840
        %9794 = vmatpush.bf16.msra.mxu0 %v8836
        %9795 = vmatpush.bf16.msra.mxu0 %v8832
        %9796 = vmatpush.bf16.msra.mxu0 %v8828
        %9797 = vmatpush.bf16.msra.mxu0 %v8824
        %9798 = vmatpush.bf16.msra.mxu0 %v8820
        %9799 = vmatmul.bf16.gmra.mxu0 %v7597
        %v9800 = vpop.f32.mrf.mxu0
        %v9801 = vadd.f32 %v9752, %v9800
        %v9802 = vpop.f32.mrf.mxu0
        %v9803 = vadd.f32 %v9754, %v9802
        %9804 = vmatmul.bf16.gmra.mxu0 %v7605
        %v9805 = vpop.f32.mrf.mxu0
        %v9806 = vadd.f32 %v9757, %v9805
        %v9807 = vpop.f32.mrf.mxu0
        %v9808 = vadd.f32 %v9759, %v9807
        %9809 = vmatmul.bf16.gmra.mxu0 %v7613
        %v9810 = vpop.f32.mrf.mxu0
        %v9811 = vadd.f32 %v9762, %v9810
        %v9812 = vpop.f32.mrf.mxu0
        %v9813 = vadd.f32 %v9764, %v9812
        %9814 = vmatmul.bf16.gmra.mxu0 %v7621
        %v9815 = vpop.f32.mrf.mxu0
        %v9816 = vadd.f32 %v9767, %v9815
        %v9817 = vpop.f32.mrf.mxu0
        %v9818 = vadd.f32 %v9769, %v9817
        %9819 = vmatmul.bf16.gmra.mxu0 %v7629
        %v9820 = vpop.f32.mrf.mxu0
        %v9821 = vadd.f32 %v9772, %v9820
        %v9822 = vpop.f32.mrf.mxu0
        %v9823 = vadd.f32 %v9774, %v9822
        %9824 = vmatmul.bf16.gmra.mxu0 %v7637
        %v9825 = vpop.f32.mrf.mxu0
        %v9826 = vadd.f32 %v9777, %v9825
        %v9827 = vpop.f32.mrf.mxu0
        %v9828 = vadd.f32 %v9779, %v9827
        %9829 = vmatmul.bf16.gmra.mxu0 %v7645
        %v9830 = vpop.f32.mrf.mxu0
        %v9831 = vadd.f32 %v9782, %v9830
        %v9832 = vpop.f32.mrf.mxu0
        %v9833 = vadd.f32 %v9784, %v9832
        %9834 = vmatmul.bf16.gmra.mxu0 %v7653
        %v9835 = vpop.f32.mrf.mxu0
        %v9836 = vadd.f32 %v9787, %v9835
        %v9837 = vpop.f32.mrf.mxu0
        %v9838 = vadd.f32 %v9789, %v9837
        %9839 = vdwg.mxu0
        %9840 = vmatpush.bf16.msra.mxu0 %v8880
        %9841 = vmatpush.bf16.msra.mxu0 %v8876
        %9842 = vmatpush.bf16.msra.mxu0 %v8872
        %9843 = vmatpush.bf16.msra.mxu0 %v8868
        %9844 = vmatpush.bf16.msra.mxu0 %v8864
        %9845 = vmatpush.bf16.msra.mxu0 %v8860
        %9846 = vmatpush.bf16.msra.mxu0 %v8856
        %9847 = vmatpush.bf16.msra.mxu0 %v8852
        %9848 = vmatmul.bf16.gmra.mxu0 %v7598
        %v9849 = vpop.f32.mrf.mxu0
        %v9850 = vadd.f32 %v9801, %v9849
        %v9851 = vpop.f32.mrf.mxu0
        %v9852 = vadd.f32 %v9803, %v9851
        %9853 = vmatmul.bf16.gmra.mxu0 %v7606
        %v9854 = vpop.f32.mrf.mxu0
        %v9855 = vadd.f32 %v9806, %v9854
        %v9856 = vpop.f32.mrf.mxu0
        %v9857 = vadd.f32 %v9808, %v9856
        %9858 = vmatmul.bf16.gmra.mxu0 %v7614
        %v9859 = vpop.f32.mrf.mxu0
        %v9860 = vadd.f32 %v9811, %v9859
        %v9861 = vpop.f32.mrf.mxu0
        %v9862 = vadd.f32 %v9813, %v9861
        %9863 = vmatmul.bf16.gmra.mxu0 %v7622
        %v9864 = vpop.f32.mrf.mxu0
        %v9865 = vadd.f32 %v9816, %v9864
        %v9866 = vpop.f32.mrf.mxu0
        %v9867 = vadd.f32 %v9818, %v9866
        %9868 = vmatmul.bf16.gmra.mxu0 %v7630
        %v9869 = vpop.f32.mrf.mxu0
        %v9870 = vadd.f32 %v9821, %v9869
        %v9871 = vpop.f32.mrf.mxu0
        %v9872 = vadd.f32 %v9823, %v9871
        %9873 = vmatmul.bf16.gmra.mxu0 %v7638
        %v9874 = vpop.f32.mrf.mxu0
        %v9875 = vadd.f32 %v9826, %v9874
        %v9876 = vpop.f32.mrf.mxu0
        %v9877 = vadd.f32 %v9828, %v9876
        %9878 = vmatmul.bf16.gmra.mxu0 %v7646
        %v9879 = vpop.f32.mrf.mxu0
        %v9880 = vadd.f32 %v9831, %v9879
        %v9881 = vpop.f32.mrf.mxu0
        %v9882 = vadd.f32 %v9833, %v9881
        %9883 = vmatmul.bf16.gmra.mxu0 %v7654
        %v9884 = vpop.f32.mrf.mxu0
        %v9885 = vadd.f32 %v9836, %v9884
        %v9886 = vpop.f32.mrf.mxu0
        %v9887 = vadd.f32 %v9838, %v9886
        %9888 = vdwg.mxu0
        %9889 = vmatpush.bf16.msra.mxu0 %v8912
        %9890 = vmatpush.bf16.msra.mxu0 %v8908
        %9891 = vmatpush.bf16.msra.mxu0 %v8904
        %9892 = vmatpush.bf16.msra.mxu0 %v8900
        %9893 = vmatpush.bf16.msra.mxu0 %v8896
        %9894 = vmatpush.bf16.msra.mxu0 %v8892
        %9895 = vmatpush.bf16.msra.mxu0 %v8888
        %9896 = vmatpush.bf16.msra.mxu0 %v8884
        %9897 = vmatmul.bf16.gmra.mxu0 %v7599
        %v9898 = vpop.f32.mrf.mxu0
        %v9899 = vadd.f32 %v9850, %v9898
        %v9900 = vpop.f32.mrf.mxu0
        %v9901 = vadd.f32 %v9852, %v9900
        %9902 = vmatmul.bf16.gmra.mxu0 %v7607
        %v9903 = vpop.f32.mrf.mxu0
        %v9904 = vadd.f32 %v9855, %v9903
        %v9905 = vpop.f32.mrf.mxu0
        %v9906 = vadd.f32 %v9857, %v9905
        %9907 = vmatmul.bf16.gmra.mxu0 %v7615
        %v9908 = vpop.f32.mrf.mxu0
        %v9909 = vadd.f32 %v9860, %v9908
        %v9910 = vpop.f32.mrf.mxu0
        %v9911 = vadd.f32 %v9862, %v9910
        %9912 = vmatmul.bf16.gmra.mxu0 %v7623
        %v9913 = vpop.f32.mrf.mxu0
        %v9914 = vadd.f32 %v9865, %v9913
        %v9915 = vpop.f32.mrf.mxu0
        %v9916 = vadd.f32 %v9867, %v9915
        %9917 = vmatmul.bf16.gmra.mxu0 %v7631
        %v9918 = vpop.f32.mrf.mxu0
        %v9919 = vadd.f32 %v9870, %v9918
        %v9920 = vpop.f32.mrf.mxu0
        %v9921 = vadd.f32 %v9872, %v9920
        %9922 = vmatmul.bf16.gmra.mxu0 %v7639
        %v9923 = vpop.f32.mrf.mxu0
        %v9924 = vadd.f32 %v9875, %v9923
        %v9925 = vpop.f32.mrf.mxu0
        %v9926 = vadd.f32 %v9877, %v9925
        %9927 = vmatmul.bf16.gmra.mxu0 %v7647
        %v9928 = vpop.f32.mrf.mxu0
        %v9929 = vadd.f32 %v9880, %v9928
        %v9930 = vpop.f32.mrf.mxu0
        %v9931 = vadd.f32 %v9882, %v9930
        %9932 = vmatmul.bf16.gmra.mxu0 %v7655
        %v9933 = vpop.f32.mrf.mxu0
        %v9934 = vadd.f32 %v9885, %v9933
        %v9935 = vpop.f32.mrf.mxu0
        %v9936 = vadd.f32 %v9887, %v9935
        %9937 = vdwg.mxu0
        %9938 = vmatpush.bf16.msra.mxu0 %v8944
        %9939 = vmatpush.bf16.msra.mxu0 %v8940
        %9940 = vmatpush.bf16.msra.mxu0 %v8936
        %9941 = vmatpush.bf16.msra.mxu0 %v8932
        %9942 = vmatpush.bf16.msra.mxu0 %v8928
        %9943 = vmatpush.bf16.msra.mxu0 %v8924
        %9944 = vmatpush.bf16.msra.mxu0 %v8920
        %9945 = vmatpush.bf16.msra.mxu0 %v8916
        %9946 = vmatmul.bf16.gmra.mxu0 %v7600
        %v9947 = vpop.f32.mrf.mxu0
        %v9948 = vadd.f32 %v9899, %v9947
        %v9949 = vpop.f32.mrf.mxu0
        %v9950 = vadd.f32 %v9901, %v9949
        %9951 = vmatmul.bf16.gmra.mxu0 %v7608
        %v9952 = vpop.f32.mrf.mxu0
        %v9953 = vadd.f32 %v9904, %v9952
        %v9954 = vpop.f32.mrf.mxu0
        %v9955 = vadd.f32 %v9906, %v9954
        %9956 = vmatmul.bf16.gmra.mxu0 %v7616
        %v9957 = vpop.f32.mrf.mxu0
        %v9958 = vadd.f32 %v9909, %v9957
        %v9959 = vpop.f32.mrf.mxu0
        %v9960 = vadd.f32 %v9911, %v9959
        %9961 = vmatmul.bf16.gmra.mxu0 %v7624
        %v9962 = vpop.f32.mrf.mxu0
        %v9963 = vadd.f32 %v9914, %v9962
        %v9964 = vpop.f32.mrf.mxu0
        %v9965 = vadd.f32 %v9916, %v9964
        %9966 = vmatmul.bf16.gmra.mxu0 %v7632
        %v9967 = vpop.f32.mrf.mxu0
        %v9968 = vadd.f32 %v9919, %v9967
        %v9969 = vpop.f32.mrf.mxu0
        %v9970 = vadd.f32 %v9921, %v9969
        %9971 = vmatmul.bf16.gmra.mxu0 %v7640
        %v9972 = vpop.f32.mrf.mxu0
        %v9973 = vadd.f32 %v9924, %v9972
        %v9974 = vpop.f32.mrf.mxu0
        %v9975 = vadd.f32 %v9926, %v9974
        %9976 = vmatmul.bf16.gmra.mxu0 %v7648
        %v9977 = vpop.f32.mrf.mxu0
        %v9978 = vadd.f32 %v9929, %v9977
        %v9979 = vpop.f32.mrf.mxu0
        %v9980 = vadd.f32 %v9931, %v9979
        %9981 = vmatmul.bf16.gmra.mxu0 %v7656
        %v9982 = vpop.f32.mrf.mxu0
        %v9983 = vadd.f32 %v9934, %v9982
        %v9984 = vpop.f32.mrf.mxu0
        %v9985 = vadd.f32 %v9936, %v9984
        %9986 = vdwg.mxu0
        %9987 = vmatpush.bf16.msra.mxu0 %v8721
        %9988 = vmatpush.bf16.msra.mxu0 %v8717
        %9989 = vmatpush.bf16.msra.mxu0 %v8713
        %9990 = vmatpush.bf16.msra.mxu0 %v8709
        %9991 = vmatpush.bf16.msra.mxu0 %v8705
        %9992 = vmatpush.bf16.msra.mxu0 %v8701
        %9993 = vmatpush.bf16.msra.mxu0 %v8697
        %9994 = vmatpush.bf16.msra.mxu0 %v8693
        %9995 = vmatmul.bf16.gmra.mxu0 %v7593
        %v9996 = vpop.f32.mrf.mxu0
        %v9997 = vadd.f32 %v7917, %v9996
        %v9998 = vpop.f32.mrf.mxu0
        %v9999 = vadd.f32 %v7917, %v9998
        %10000 = vmatmul.bf16.gmra.mxu0 %v7601
        %v10001 = vpop.f32.mrf.mxu0
        %v10002 = vadd.f32 %v7917, %v10001
        %v10003 = vpop.f32.mrf.mxu0
        %v10004 = vadd.f32 %v7917, %v10003
        %10005 = vmatmul.bf16.gmra.mxu0 %v7609
        %v10006 = vpop.f32.mrf.mxu0
        %v10007 = vadd.f32 %v7917, %v10006
        %v10008 = vpop.f32.mrf.mxu0
        %v10009 = vadd.f32 %v7917, %v10008
        %10010 = vmatmul.bf16.gmra.mxu0 %v7617
        %v10011 = vpop.f32.mrf.mxu0
        %v10012 = vadd.f32 %v7917, %v10011
        %v10013 = vpop.f32.mrf.mxu0
        %v10014 = vadd.f32 %v7917, %v10013
        %10015 = vmatmul.bf16.gmra.mxu0 %v7625
        %v10016 = vpop.f32.mrf.mxu0
        %v10017 = vadd.f32 %v7917, %v10016
        %v10018 = vpop.f32.mrf.mxu0
        %v10019 = vadd.f32 %v7917, %v10018
        %10020 = vmatmul.bf16.gmra.mxu0 %v7633
        %v10021 = vpop.f32.mrf.mxu0
        %v10022 = vadd.f32 %v7917, %v10021
        %v10023 = vpop.f32.mrf.mxu0
        %v10024 = vadd.f32 %v7917, %v10023
        %10025 = vmatmul.bf16.gmra.mxu0 %v7641
        %v10026 = vpop.f32.mrf.mxu0
        %v10027 = vadd.f32 %v7917, %v10026
        %v10028 = vpop.f32.mrf.mxu0
        %v10029 = vadd.f32 %v7917, %v10028
        %10030 = vmatmul.bf16.gmra.mxu0 %v7649
        %v10031 = vpop.f32.mrf.mxu0
        %v10032 = vadd.f32 %v7917, %v10031
        %v10033 = vpop.f32.mrf.mxu0
        %v10034 = vadd.f32 %v7917, %v10033
        %10035 = vdwg.mxu0
        %10036 = vmatpush.bf16.msra.mxu0 %v8753
        %10037 = vmatpush.bf16.msra.mxu0 %v8749
        %10038 = vmatpush.bf16.msra.mxu0 %v8745
        %10039 = vmatpush.bf16.msra.mxu0 %v8741
        %10040 = vmatpush.bf16.msra.mxu0 %v8737
        %10041 = vmatpush.bf16.msra.mxu0 %v8733
        %10042 = vmatpush.bf16.msra.mxu0 %v8729
        %10043 = vmatpush.bf16.msra.mxu0 %v8725
        %10044 = vmatmul.bf16.gmra.mxu0 %v7594
        %v10045 = vpop.f32.mrf.mxu0
        %v10046 = vadd.f32 %v9997, %v10045
        %v10047 = vpop.f32.mrf.mxu0
        %v10048 = vadd.f32 %v9999, %v10047
        %10049 = vmatmul.bf16.gmra.mxu0 %v7602
        %v10050 = vpop.f32.mrf.mxu0
        %v10051 = vadd.f32 %v10002, %v10050
        %v10052 = vpop.f32.mrf.mxu0
        %v10053 = vadd.f32 %v10004, %v10052
        %10054 = vmatmul.bf16.gmra.mxu0 %v7610
        %v10055 = vpop.f32.mrf.mxu0
        %v10056 = vadd.f32 %v10007, %v10055
        %v10057 = vpop.f32.mrf.mxu0
        %v10058 = vadd.f32 %v10009, %v10057
        %10059 = vmatmul.bf16.gmra.mxu0 %v7618
        %v10060 = vpop.f32.mrf.mxu0
        %v10061 = vadd.f32 %v10012, %v10060
        %v10062 = vpop.f32.mrf.mxu0
        %v10063 = vadd.f32 %v10014, %v10062
        %10064 = vmatmul.bf16.gmra.mxu0 %v7626
        %v10065 = vpop.f32.mrf.mxu0
        %v10066 = vadd.f32 %v10017, %v10065
        %v10067 = vpop.f32.mrf.mxu0
        %v10068 = vadd.f32 %v10019, %v10067
        %10069 = vmatmul.bf16.gmra.mxu0 %v7634
        %v10070 = vpop.f32.mrf.mxu0
        %v10071 = vadd.f32 %v10022, %v10070
        %v10072 = vpop.f32.mrf.mxu0
        %v10073 = vadd.f32 %v10024, %v10072
        %10074 = vmatmul.bf16.gmra.mxu0 %v7642
        %v10075 = vpop.f32.mrf.mxu0
        %v10076 = vadd.f32 %v10027, %v10075
        %v10077 = vpop.f32.mrf.mxu0
        %v10078 = vadd.f32 %v10029, %v10077
        %10079 = vmatmul.bf16.gmra.mxu0 %v7650
        %v10080 = vpop.f32.mrf.mxu0
        %v10081 = vadd.f32 %v10032, %v10080
        %v10082 = vpop.f32.mrf.mxu0
        %v10083 = vadd.f32 %v10034, %v10082
        %10084 = vdwg.mxu0
        %10085 = vmatpush.bf16.msra.mxu0 %v8785
        %10086 = vmatpush.bf16.msra.mxu0 %v8781
        %10087 = vmatpush.bf16.msra.mxu0 %v8777
        %10088 = vmatpush.bf16.msra.mxu0 %v8773
        %10089 = vmatpush.bf16.msra.mxu0 %v8769
        %10090 = vmatpush.bf16.msra.mxu0 %v8765
        %10091 = vmatpush.bf16.msra.mxu0 %v8761
        %10092 = vmatpush.bf16.msra.mxu0 %v8757
        %10093 = vmatmul.bf16.gmra.mxu0 %v7595
        %v10094 = vpop.f32.mrf.mxu0
        %v10095 = vadd.f32 %v10046, %v10094
        %v10096 = vpop.f32.mrf.mxu0
        %v10097 = vadd.f32 %v10048, %v10096
        %10098 = vmatmul.bf16.gmra.mxu0 %v7603
        %v10099 = vpop.f32.mrf.mxu0
        %v10100 = vadd.f32 %v10051, %v10099
        %v10101 = vpop.f32.mrf.mxu0
        %v10102 = vadd.f32 %v10053, %v10101
        %10103 = vmatmul.bf16.gmra.mxu0 %v7611
        %v10104 = vpop.f32.mrf.mxu0
        %v10105 = vadd.f32 %v10056, %v10104
        %v10106 = vpop.f32.mrf.mxu0
        %v10107 = vadd.f32 %v10058, %v10106
        %10108 = vmatmul.bf16.gmra.mxu0 %v7619
        %v10109 = vpop.f32.mrf.mxu0
        %v10110 = vadd.f32 %v10061, %v10109
        %v10111 = vpop.f32.mrf.mxu0
        %v10112 = vadd.f32 %v10063, %v10111
        %10113 = vmatmul.bf16.gmra.mxu0 %v7627
        %v10114 = vpop.f32.mrf.mxu0
        %v10115 = vadd.f32 %v10066, %v10114
        %v10116 = vpop.f32.mrf.mxu0
        %v10117 = vadd.f32 %v10068, %v10116
        %10118 = vmatmul.bf16.gmra.mxu0 %v7635
        %v10119 = vpop.f32.mrf.mxu0
        %v10120 = vadd.f32 %v10071, %v10119
        %v10121 = vpop.f32.mrf.mxu0
        %v10122 = vadd.f32 %v10073, %v10121
        %10123 = vmatmul.bf16.gmra.mxu0 %v7643
        %v10124 = vpop.f32.mrf.mxu0
        %v10125 = vadd.f32 %v10076, %v10124
        %v10126 = vpop.f32.mrf.mxu0
        %v10127 = vadd.f32 %v10078, %v10126
        %10128 = vmatmul.bf16.gmra.mxu0 %v7651
        %v10129 = vpop.f32.mrf.mxu0
        %v10130 = vadd.f32 %v10081, %v10129
        %v10131 = vpop.f32.mrf.mxu0
        %v10132 = vadd.f32 %v10083, %v10131
        %10133 = vdwg.mxu0
        %10134 = vmatpush.bf16.msra.mxu0 %v8817
        %10135 = vmatpush.bf16.msra.mxu0 %v8813
        %10136 = vmatpush.bf16.msra.mxu0 %v8809
        %10137 = vmatpush.bf16.msra.mxu0 %v8805
        %10138 = vmatpush.bf16.msra.mxu0 %v8801
        %10139 = vmatpush.bf16.msra.mxu0 %v8797
        %10140 = vmatpush.bf16.msra.mxu0 %v8793
        %10141 = vmatpush.bf16.msra.mxu0 %v8789
        %10142 = vmatmul.bf16.gmra.mxu0 %v7596
        %v10143 = vpop.f32.mrf.mxu0
        %v10144 = vadd.f32 %v10095, %v10143
        %v10145 = vpop.f32.mrf.mxu0
        %v10146 = vadd.f32 %v10097, %v10145
        %10147 = vmatmul.bf16.gmra.mxu0 %v7604
        %v10148 = vpop.f32.mrf.mxu0
        %v10149 = vadd.f32 %v10100, %v10148
        %v10150 = vpop.f32.mrf.mxu0
        %v10151 = vadd.f32 %v10102, %v10150
        %10152 = vmatmul.bf16.gmra.mxu0 %v7612
        %v10153 = vpop.f32.mrf.mxu0
        %v10154 = vadd.f32 %v10105, %v10153
        %v10155 = vpop.f32.mrf.mxu0
        %v10156 = vadd.f32 %v10107, %v10155
        %10157 = vmatmul.bf16.gmra.mxu0 %v7620
        %v10158 = vpop.f32.mrf.mxu0
        %v10159 = vadd.f32 %v10110, %v10158
        %v10160 = vpop.f32.mrf.mxu0
        %v10161 = vadd.f32 %v10112, %v10160
        %10162 = vmatmul.bf16.gmra.mxu0 %v7628
        %v10163 = vpop.f32.mrf.mxu0
        %v10164 = vadd.f32 %v10115, %v10163
        %v10165 = vpop.f32.mrf.mxu0
        %v10166 = vadd.f32 %v10117, %v10165
        %10167 = vmatmul.bf16.gmra.mxu0 %v7636
        %v10168 = vpop.f32.mrf.mxu0
        %v10169 = vadd.f32 %v10120, %v10168
        %v10170 = vpop.f32.mrf.mxu0
        %v10171 = vadd.f32 %v10122, %v10170
        %10172 = vmatmul.bf16.gmra.mxu0 %v7644
        %v10173 = vpop.f32.mrf.mxu0
        %v10174 = vadd.f32 %v10125, %v10173
        %v10175 = vpop.f32.mrf.mxu0
        %v10176 = vadd.f32 %v10127, %v10175
        %10177 = vmatmul.bf16.gmra.mxu0 %v7652
        %v10178 = vpop.f32.mrf.mxu0
        %v10179 = vadd.f32 %v10130, %v10178
        %v10180 = vpop.f32.mrf.mxu0
        %v10181 = vadd.f32 %v10132, %v10180
        %10182 = vdwg.mxu0
        %10183 = vmatpush.bf16.msra.mxu0 %v8849
        %10184 = vmatpush.bf16.msra.mxu0 %v8845
        %10185 = vmatpush.bf16.msra.mxu0 %v8841
        %10186 = vmatpush.bf16.msra.mxu0 %v8837
        %10187 = vmatpush.bf16.msra.mxu0 %v8833
        %10188 = vmatpush.bf16.msra.mxu0 %v8829
        %10189 = vmatpush.bf16.msra.mxu0 %v8825
        %10190 = vmatpush.bf16.msra.mxu0 %v8821
        %10191 = vmatmul.bf16.gmra.mxu0 %v7597
        %v10192 = vpop.f32.mrf.mxu0
        %v10193 = vadd.f32 %v10144, %v10192
        %v10194 = vpop.f32.mrf.mxu0
        %v10195 = vadd.f32 %v10146, %v10194
        %10196 = vmatmul.bf16.gmra.mxu0 %v7605
        %v10197 = vpop.f32.mrf.mxu0
        %v10198 = vadd.f32 %v10149, %v10197
        %v10199 = vpop.f32.mrf.mxu0
        %v10200 = vadd.f32 %v10151, %v10199
        %10201 = vmatmul.bf16.gmra.mxu0 %v7613
        %v10202 = vpop.f32.mrf.mxu0
        %v10203 = vadd.f32 %v10154, %v10202
        %v10204 = vpop.f32.mrf.mxu0
        %v10205 = vadd.f32 %v10156, %v10204
        %10206 = vmatmul.bf16.gmra.mxu0 %v7621
        %v10207 = vpop.f32.mrf.mxu0
        %v10208 = vadd.f32 %v10159, %v10207
        %v10209 = vpop.f32.mrf.mxu0
        %v10210 = vadd.f32 %v10161, %v10209
        %10211 = vmatmul.bf16.gmra.mxu0 %v7629
        %v10212 = vpop.f32.mrf.mxu0
        %v10213 = vadd.f32 %v10164, %v10212
        %v10214 = vpop.f32.mrf.mxu0
        %v10215 = vadd.f32 %v10166, %v10214
        %10216 = vmatmul.bf16.gmra.mxu0 %v7637
        %v10217 = vpop.f32.mrf.mxu0
        %v10218 = vadd.f32 %v10169, %v10217
        %v10219 = vpop.f32.mrf.mxu0
        %v10220 = vadd.f32 %v10171, %v10219
        %10221 = vmatmul.bf16.gmra.mxu0 %v7645
        %v10222 = vpop.f32.mrf.mxu0
        %v10223 = vadd.f32 %v10174, %v10222
        %v10224 = vpop.f32.mrf.mxu0
        %v10225 = vadd.f32 %v10176, %v10224
        %10226 = vmatmul.bf16.gmra.mxu0 %v7653
        %v10227 = vpop.f32.mrf.mxu0
        %v10228 = vadd.f32 %v10179, %v10227
        %v10229 = vpop.f32.mrf.mxu0
        %v10230 = vadd.f32 %v10181, %v10229
        %10231 = vdwg.mxu0
        %10232 = vmatpush.bf16.msra.mxu0 %v8881
        %10233 = vmatpush.bf16.msra.mxu0 %v8877
        %10234 = vmatpush.bf16.msra.mxu0 %v8873
        %10235 = vmatpush.bf16.msra.mxu0 %v8869
        %10236 = vmatpush.bf16.msra.mxu0 %v8865
        %10237 = vmatpush.bf16.msra.mxu0 %v8861
        %10238 = vmatpush.bf16.msra.mxu0 %v8857
        %10239 = vmatpush.bf16.msra.mxu0 %v8853
        %10240 = vmatmul.bf16.gmra.mxu0 %v7598
        %v10241 = vpop.f32.mrf.mxu0
        %v10242 = vadd.f32 %v10193, %v10241
        %v10243 = vpop.f32.mrf.mxu0
        %v10244 = vadd.f32 %v10195, %v10243
        %10245 = vmatmul.bf16.gmra.mxu0 %v7606
        %v10246 = vpop.f32.mrf.mxu0
        %v10247 = vadd.f32 %v10198, %v10246
        %v10248 = vpop.f32.mrf.mxu0
        %v10249 = vadd.f32 %v10200, %v10248
        %10250 = vmatmul.bf16.gmra.mxu0 %v7614
        %v10251 = vpop.f32.mrf.mxu0
        %v10252 = vadd.f32 %v10203, %v10251
        %v10253 = vpop.f32.mrf.mxu0
        %v10254 = vadd.f32 %v10205, %v10253
        %10255 = vmatmul.bf16.gmra.mxu0 %v7622
        %v10256 = vpop.f32.mrf.mxu0
        %v10257 = vadd.f32 %v10208, %v10256
        %v10258 = vpop.f32.mrf.mxu0
        %v10259 = vadd.f32 %v10210, %v10258
        %10260 = vmatmul.bf16.gmra.mxu0 %v7630
        %v10261 = vpop.f32.mrf.mxu0
        %v10262 = vadd.f32 %v10213, %v10261
        %v10263 = vpop.f32.mrf.mxu0
        %v10264 = vadd.f32 %v10215, %v10263
        %10265 = vmatmul.bf16.gmra.mxu0 %v7638
        %v10266 = vpop.f32.mrf.mxu0
        %v10267 = vadd.f32 %v10218, %v10266
        %v10268 = vpop.f32.mrf.mxu0
        %v10269 = vadd.f32 %v10220, %v10268
        %10270 = vmatmul.bf16.gmra.mxu0 %v7646
        %v10271 = vpop.f32.mrf.mxu0
        %v10272 = vadd.f32 %v10223, %v10271
        %v10273 = vpop.f32.mrf.mxu0
        %v10274 = vadd.f32 %v10225, %v10273
        %10275 = vmatmul.bf16.gmra.mxu0 %v7654
        %v10276 = vpop.f32.mrf.mxu0
        %v10277 = vadd.f32 %v10228, %v10276
        %v10278 = vpop.f32.mrf.mxu0
        %v10279 = vadd.f32 %v10230, %v10278
        %10280 = vdwg.mxu0
        %10281 = vmatpush.bf16.msra.mxu0 %v8913
        %10282 = vmatpush.bf16.msra.mxu0 %v8909
        %10283 = vmatpush.bf16.msra.mxu0 %v8905
        %10284 = vmatpush.bf16.msra.mxu0 %v8901
        %10285 = vmatpush.bf16.msra.mxu0 %v8897
        %10286 = vmatpush.bf16.msra.mxu0 %v8893
        %10287 = vmatpush.bf16.msra.mxu0 %v8889
        %10288 = vmatpush.bf16.msra.mxu0 %v8885
        %10289 = vmatmul.bf16.gmra.mxu0 %v7599
        %v10290 = vpop.f32.mrf.mxu0
        %v10291 = vadd.f32 %v10242, %v10290
        %v10292 = vpop.f32.mrf.mxu0
        %v10293 = vadd.f32 %v10244, %v10292
        %10294 = vmatmul.bf16.gmra.mxu0 %v7607
        %v10295 = vpop.f32.mrf.mxu0
        %v10296 = vadd.f32 %v10247, %v10295
        %v10297 = vpop.f32.mrf.mxu0
        %v10298 = vadd.f32 %v10249, %v10297
        %10299 = vmatmul.bf16.gmra.mxu0 %v7615
        %v10300 = vpop.f32.mrf.mxu0
        %v10301 = vadd.f32 %v10252, %v10300
        %v10302 = vpop.f32.mrf.mxu0
        %v10303 = vadd.f32 %v10254, %v10302
        %10304 = vmatmul.bf16.gmra.mxu0 %v7623
        %v10305 = vpop.f32.mrf.mxu0
        %v10306 = vadd.f32 %v10257, %v10305
        %v10307 = vpop.f32.mrf.mxu0
        %v10308 = vadd.f32 %v10259, %v10307
        %10309 = vmatmul.bf16.gmra.mxu0 %v7631
        %v10310 = vpop.f32.mrf.mxu0
        %v10311 = vadd.f32 %v10262, %v10310
        %v10312 = vpop.f32.mrf.mxu0
        %v10313 = vadd.f32 %v10264, %v10312
        %10314 = vmatmul.bf16.gmra.mxu0 %v7639
        %v10315 = vpop.f32.mrf.mxu0
        %v10316 = vadd.f32 %v10267, %v10315
        %v10317 = vpop.f32.mrf.mxu0
        %v10318 = vadd.f32 %v10269, %v10317
        %10319 = vmatmul.bf16.gmra.mxu0 %v7647
        %v10320 = vpop.f32.mrf.mxu0
        %v10321 = vadd.f32 %v10272, %v10320
        %v10322 = vpop.f32.mrf.mxu0
        %v10323 = vadd.f32 %v10274, %v10322
        %10324 = vmatmul.bf16.gmra.mxu0 %v7655
        %v10325 = vpop.f32.mrf.mxu0
        %v10326 = vadd.f32 %v10277, %v10325
        %v10327 = vpop.f32.mrf.mxu0
        %v10328 = vadd.f32 %v10279, %v10327
        %10329 = vdwg.mxu0
        %10330 = vmatpush.bf16.msra.mxu0 %v8945
        %10331 = vmatpush.bf16.msra.mxu0 %v8941
        %10332 = vmatpush.bf16.msra.mxu0 %v8937
        %10333 = vmatpush.bf16.msra.mxu0 %v8933
        %10334 = vmatpush.bf16.msra.mxu0 %v8929
        %10335 = vmatpush.bf16.msra.mxu0 %v8925
        %10336 = vmatpush.bf16.msra.mxu0 %v8921
        %10337 = vmatpush.bf16.msra.mxu0 %v8917
        %10338 = vmatmul.bf16.gmra.mxu0 %v7600
        %v10339 = vpop.f32.mrf.mxu0
        %v10340 = vadd.f32 %v10291, %v10339
        %v10341 = vpop.f32.mrf.mxu0
        %v10342 = vadd.f32 %v10293, %v10341
        %10343 = vmatmul.bf16.gmra.mxu0 %v7608
        %v10344 = vpop.f32.mrf.mxu0
        %v10345 = vadd.f32 %v10296, %v10344
        %v10346 = vpop.f32.mrf.mxu0
        %v10347 = vadd.f32 %v10298, %v10346
        %10348 = vmatmul.bf16.gmra.mxu0 %v7616
        %v10349 = vpop.f32.mrf.mxu0
        %v10350 = vadd.f32 %v10301, %v10349
        %v10351 = vpop.f32.mrf.mxu0
        %v10352 = vadd.f32 %v10303, %v10351
        %10353 = vmatmul.bf16.gmra.mxu0 %v7624
        %v10354 = vpop.f32.mrf.mxu0
        %v10355 = vadd.f32 %v10306, %v10354
        %v10356 = vpop.f32.mrf.mxu0
        %v10357 = vadd.f32 %v10308, %v10356
        %10358 = vmatmul.bf16.gmra.mxu0 %v7632
        %v10359 = vpop.f32.mrf.mxu0
        %v10360 = vadd.f32 %v10311, %v10359
        %v10361 = vpop.f32.mrf.mxu0
        %v10362 = vadd.f32 %v10313, %v10361
        %10363 = vmatmul.bf16.gmra.mxu0 %v7640
        %v10364 = vpop.f32.mrf.mxu0
        %v10365 = vadd.f32 %v10316, %v10364
        %v10366 = vpop.f32.mrf.mxu0
        %v10367 = vadd.f32 %v10318, %v10366
        %10368 = vmatmul.bf16.gmra.mxu0 %v7648
        %v10369 = vpop.f32.mrf.mxu0
        %v10370 = vadd.f32 %v10321, %v10369
        %v10371 = vpop.f32.mrf.mxu0
        %v10372 = vadd.f32 %v10323, %v10371
        %10373 = vmatmul.bf16.gmra.mxu0 %v7656
        %v10374 = vpop.f32.mrf.mxu0
        %v10375 = vadd.f32 %v10326, %v10374
        %v10376 = vpop.f32.mrf.mxu0
        %v10377 = vadd.f32 %v10328, %v10376
        %10378 = vdwg.mxu0
        %10379 = vmatpush.bf16.msra.mxu0 %v8722
        %10380 = vmatpush.bf16.msra.mxu0 %v8718
        %10381 = vmatpush.bf16.msra.mxu0 %v8714
        %10382 = vmatpush.bf16.msra.mxu0 %v8710
        %10383 = vmatpush.bf16.msra.mxu0 %v8706
        %10384 = vmatpush.bf16.msra.mxu0 %v8702
        %10385 = vmatpush.bf16.msra.mxu0 %v8698
        %10386 = vmatpush.bf16.msra.mxu0 %v8694
        %10387 = vmatmul.bf16.gmra.mxu0 %v7593
        %v10388 = vpop.f32.mrf.mxu0
        %v10389 = vadd.f32 %v7918, %v10388
        %v10390 = vpop.f32.mrf.mxu0
        %v10391 = vadd.f32 %v7918, %v10390
        %10392 = vmatmul.bf16.gmra.mxu0 %v7601
        %v10393 = vpop.f32.mrf.mxu0
        %v10394 = vadd.f32 %v7918, %v10393
        %v10395 = vpop.f32.mrf.mxu0
        %v10396 = vadd.f32 %v7918, %v10395
        %10397 = vmatmul.bf16.gmra.mxu0 %v7609
        %v10398 = vpop.f32.mrf.mxu0
        %v10399 = vadd.f32 %v7918, %v10398
        %v10400 = vpop.f32.mrf.mxu0
        %v10401 = vadd.f32 %v7918, %v10400
        %10402 = vmatmul.bf16.gmra.mxu0 %v7617
        %v10403 = vpop.f32.mrf.mxu0
        %v10404 = vadd.f32 %v7918, %v10403
        %v10405 = vpop.f32.mrf.mxu0
        %v10406 = vadd.f32 %v7918, %v10405
        %10407 = vmatmul.bf16.gmra.mxu0 %v7625
        %v10408 = vpop.f32.mrf.mxu0
        %v10409 = vadd.f32 %v7918, %v10408
        %v10410 = vpop.f32.mrf.mxu0
        %v10411 = vadd.f32 %v7918, %v10410
        %10412 = vmatmul.bf16.gmra.mxu0 %v7633
        %v10413 = vpop.f32.mrf.mxu0
        %v10414 = vadd.f32 %v7918, %v10413
        %v10415 = vpop.f32.mrf.mxu0
        %v10416 = vadd.f32 %v7918, %v10415
        %10417 = vmatmul.bf16.gmra.mxu0 %v7641
        %v10418 = vpop.f32.mrf.mxu0
        %v10419 = vadd.f32 %v7918, %v10418
        %v10420 = vpop.f32.mrf.mxu0
        %v10421 = vadd.f32 %v7918, %v10420
        %10422 = vmatmul.bf16.gmra.mxu0 %v7649
        %v10423 = vpop.f32.mrf.mxu0
        %v10424 = vadd.f32 %v7918, %v10423
        %v10425 = vpop.f32.mrf.mxu0
        %v10426 = vadd.f32 %v7918, %v10425
        %10427 = vdwg.mxu0
        %10428 = vmatpush.bf16.msra.mxu0 %v8754
        %10429 = vmatpush.bf16.msra.mxu0 %v8750
        %10430 = vmatpush.bf16.msra.mxu0 %v8746
        %10431 = vmatpush.bf16.msra.mxu0 %v8742
        %10432 = vmatpush.bf16.msra.mxu0 %v8738
        %10433 = vmatpush.bf16.msra.mxu0 %v8734
        %10434 = vmatpush.bf16.msra.mxu0 %v8730
        %10435 = vmatpush.bf16.msra.mxu0 %v8726
        %10436 = vmatmul.bf16.gmra.mxu0 %v7594
        %v10437 = vpop.f32.mrf.mxu0
        %v10438 = vadd.f32 %v10389, %v10437
        %v10439 = vpop.f32.mrf.mxu0
        %v10440 = vadd.f32 %v10391, %v10439
        %10441 = vmatmul.bf16.gmra.mxu0 %v7602
        %v10442 = vpop.f32.mrf.mxu0
        %v10443 = vadd.f32 %v10394, %v10442
        %v10444 = vpop.f32.mrf.mxu0
        %v10445 = vadd.f32 %v10396, %v10444
        %10446 = vmatmul.bf16.gmra.mxu0 %v7610
        %v10447 = vpop.f32.mrf.mxu0
        %v10448 = vadd.f32 %v10399, %v10447
        %v10449 = vpop.f32.mrf.mxu0
        %v10450 = vadd.f32 %v10401, %v10449
        %10451 = vmatmul.bf16.gmra.mxu0 %v7618
        %v10452 = vpop.f32.mrf.mxu0
        %v10453 = vadd.f32 %v10404, %v10452
        %v10454 = vpop.f32.mrf.mxu0
        %v10455 = vadd.f32 %v10406, %v10454
        %10456 = vmatmul.bf16.gmra.mxu0 %v7626
        %v10457 = vpop.f32.mrf.mxu0
        %v10458 = vadd.f32 %v10409, %v10457
        %v10459 = vpop.f32.mrf.mxu0
        %v10460 = vadd.f32 %v10411, %v10459
        %10461 = vmatmul.bf16.gmra.mxu0 %v7634
        %v10462 = vpop.f32.mrf.mxu0
        %v10463 = vadd.f32 %v10414, %v10462
        %v10464 = vpop.f32.mrf.mxu0
        %v10465 = vadd.f32 %v10416, %v10464
        %10466 = vmatmul.bf16.gmra.mxu0 %v7642
        %v10467 = vpop.f32.mrf.mxu0
        %v10468 = vadd.f32 %v10419, %v10467
        %v10469 = vpop.f32.mrf.mxu0
        %v10470 = vadd.f32 %v10421, %v10469
        %10471 = vmatmul.bf16.gmra.mxu0 %v7650
        %v10472 = vpop.f32.mrf.mxu0
        %v10473 = vadd.f32 %v10424, %v10472
        %v10474 = vpop.f32.mrf.mxu0
        %v10475 = vadd.f32 %v10426, %v10474
        %10476 = vdwg.mxu0
        %10477 = vmatpush.bf16.msra.mxu0 %v8786
        %10478 = vmatpush.bf16.msra.mxu0 %v8782
        %10479 = vmatpush.bf16.msra.mxu0 %v8778
        %10480 = vmatpush.bf16.msra.mxu0 %v8774
        %10481 = vmatpush.bf16.msra.mxu0 %v8770
        %10482 = vmatpush.bf16.msra.mxu0 %v8766
        %10483 = vmatpush.bf16.msra.mxu0 %v8762
        %10484 = vmatpush.bf16.msra.mxu0 %v8758
        %10485 = vmatmul.bf16.gmra.mxu0 %v7595
        %v10486 = vpop.f32.mrf.mxu0
        %v10487 = vadd.f32 %v10438, %v10486
        %v10488 = vpop.f32.mrf.mxu0
        %v10489 = vadd.f32 %v10440, %v10488
        %10490 = vmatmul.bf16.gmra.mxu0 %v7603
        %v10491 = vpop.f32.mrf.mxu0
        %v10492 = vadd.f32 %v10443, %v10491
        %v10493 = vpop.f32.mrf.mxu0
        %v10494 = vadd.f32 %v10445, %v10493
        %10495 = vmatmul.bf16.gmra.mxu0 %v7611
        %v10496 = vpop.f32.mrf.mxu0
        %v10497 = vadd.f32 %v10448, %v10496
        %v10498 = vpop.f32.mrf.mxu0
        %v10499 = vadd.f32 %v10450, %v10498
        %10500 = vmatmul.bf16.gmra.mxu0 %v7619
        %v10501 = vpop.f32.mrf.mxu0
        %v10502 = vadd.f32 %v10453, %v10501
        %v10503 = vpop.f32.mrf.mxu0
        %v10504 = vadd.f32 %v10455, %v10503
        %10505 = vmatmul.bf16.gmra.mxu0 %v7627
        %v10506 = vpop.f32.mrf.mxu0
        %v10507 = vadd.f32 %v10458, %v10506
        %v10508 = vpop.f32.mrf.mxu0
        %v10509 = vadd.f32 %v10460, %v10508
        %10510 = vmatmul.bf16.gmra.mxu0 %v7635
        %v10511 = vpop.f32.mrf.mxu0
        %v10512 = vadd.f32 %v10463, %v10511
        %v10513 = vpop.f32.mrf.mxu0
        %v10514 = vadd.f32 %v10465, %v10513
        %10515 = vmatmul.bf16.gmra.mxu0 %v7643
        %v10516 = vpop.f32.mrf.mxu0
        %v10517 = vadd.f32 %v10468, %v10516
        %v10518 = vpop.f32.mrf.mxu0
        %v10519 = vadd.f32 %v10470, %v10518
        %10520 = vmatmul.bf16.gmra.mxu0 %v7651
        %v10521 = vpop.f32.mrf.mxu0
        %v10522 = vadd.f32 %v10473, %v10521
        %v10523 = vpop.f32.mrf.mxu0
        %v10524 = vadd.f32 %v10475, %v10523
        %10525 = vdwg.mxu0
        %10526 = vmatpush.bf16.msra.mxu0 %v8818
        %10527 = vmatpush.bf16.msra.mxu0 %v8814
        %10528 = vmatpush.bf16.msra.mxu0 %v8810
        %10529 = vmatpush.bf16.msra.mxu0 %v8806
        %10530 = vmatpush.bf16.msra.mxu0 %v8802
        %10531 = vmatpush.bf16.msra.mxu0 %v8798
        %10532 = vmatpush.bf16.msra.mxu0 %v8794
        %10533 = vmatpush.bf16.msra.mxu0 %v8790
        %10534 = vmatmul.bf16.gmra.mxu0 %v7596
        %v10535 = vpop.f32.mrf.mxu0
        %v10536 = vadd.f32 %v10487, %v10535
        %v10537 = vpop.f32.mrf.mxu0
        %v10538 = vadd.f32 %v10489, %v10537
        %10539 = vmatmul.bf16.gmra.mxu0 %v7604
        %v10540 = vpop.f32.mrf.mxu0
        %v10541 = vadd.f32 %v10492, %v10540
        %v10542 = vpop.f32.mrf.mxu0
        %v10543 = vadd.f32 %v10494, %v10542
        %10544 = vmatmul.bf16.gmra.mxu0 %v7612
        %v10545 = vpop.f32.mrf.mxu0
        %v10546 = vadd.f32 %v10497, %v10545
        %v10547 = vpop.f32.mrf.mxu0
        %v10548 = vadd.f32 %v10499, %v10547
        %10549 = vmatmul.bf16.gmra.mxu0 %v7620
        %v10550 = vpop.f32.mrf.mxu0
        %v10551 = vadd.f32 %v10502, %v10550
        %v10552 = vpop.f32.mrf.mxu0
        %v10553 = vadd.f32 %v10504, %v10552
        %10554 = vmatmul.bf16.gmra.mxu0 %v7628
        %v10555 = vpop.f32.mrf.mxu0
        %v10556 = vadd.f32 %v10507, %v10555
        %v10557 = vpop.f32.mrf.mxu0
        %v10558 = vadd.f32 %v10509, %v10557
        %10559 = vmatmul.bf16.gmra.mxu0 %v7636
        %v10560 = vpop.f32.mrf.mxu0
        %v10561 = vadd.f32 %v10512, %v10560
        %v10562 = vpop.f32.mrf.mxu0
        %v10563 = vadd.f32 %v10514, %v10562
        %10564 = vmatmul.bf16.gmra.mxu0 %v7644
        %v10565 = vpop.f32.mrf.mxu0
        %v10566 = vadd.f32 %v10517, %v10565
        %v10567 = vpop.f32.mrf.mxu0
        %v10568 = vadd.f32 %v10519, %v10567
        %10569 = vmatmul.bf16.gmra.mxu0 %v7652
        %v10570 = vpop.f32.mrf.mxu0
        %v10571 = vadd.f32 %v10522, %v10570
        %v10572 = vpop.f32.mrf.mxu0
        %v10573 = vadd.f32 %v10524, %v10572
        %10574 = vdwg.mxu0
        %10575 = vmatpush.bf16.msra.mxu0 %v8850
        %10576 = vmatpush.bf16.msra.mxu0 %v8846
        %10577 = vmatpush.bf16.msra.mxu0 %v8842
        %10578 = vmatpush.bf16.msra.mxu0 %v8838
        %10579 = vmatpush.bf16.msra.mxu0 %v8834
        %10580 = vmatpush.bf16.msra.mxu0 %v8830
        %10581 = vmatpush.bf16.msra.mxu0 %v8826
        %10582 = vmatpush.bf16.msra.mxu0 %v8822
        %10583 = vmatmul.bf16.gmra.mxu0 %v7597
        %v10584 = vpop.f32.mrf.mxu0
        %v10585 = vadd.f32 %v10536, %v10584
        %v10586 = vpop.f32.mrf.mxu0
        %v10587 = vadd.f32 %v10538, %v10586
        %10588 = vmatmul.bf16.gmra.mxu0 %v7605
        %v10589 = vpop.f32.mrf.mxu0
        %v10590 = vadd.f32 %v10541, %v10589
        %v10591 = vpop.f32.mrf.mxu0
        %v10592 = vadd.f32 %v10543, %v10591
        %10593 = vmatmul.bf16.gmra.mxu0 %v7613
        %v10594 = vpop.f32.mrf.mxu0
        %v10595 = vadd.f32 %v10546, %v10594
        %v10596 = vpop.f32.mrf.mxu0
        %v10597 = vadd.f32 %v10548, %v10596
        %10598 = vmatmul.bf16.gmra.mxu0 %v7621
        %v10599 = vpop.f32.mrf.mxu0
        %v10600 = vadd.f32 %v10551, %v10599
        %v10601 = vpop.f32.mrf.mxu0
        %v10602 = vadd.f32 %v10553, %v10601
        %10603 = vmatmul.bf16.gmra.mxu0 %v7629
        %v10604 = vpop.f32.mrf.mxu0
        %v10605 = vadd.f32 %v10556, %v10604
        %v10606 = vpop.f32.mrf.mxu0
        %v10607 = vadd.f32 %v10558, %v10606
        %10608 = vmatmul.bf16.gmra.mxu0 %v7637
        %v10609 = vpop.f32.mrf.mxu0
        %v10610 = vadd.f32 %v10561, %v10609
        %v10611 = vpop.f32.mrf.mxu0
        %v10612 = vadd.f32 %v10563, %v10611
        %10613 = vmatmul.bf16.gmra.mxu0 %v7645
        %v10614 = vpop.f32.mrf.mxu0
        %v10615 = vadd.f32 %v10566, %v10614
        %v10616 = vpop.f32.mrf.mxu0
        %v10617 = vadd.f32 %v10568, %v10616
        %10618 = vmatmul.bf16.gmra.mxu0 %v7653
        %v10619 = vpop.f32.mrf.mxu0
        %v10620 = vadd.f32 %v10571, %v10619
        %v10621 = vpop.f32.mrf.mxu0
        %v10622 = vadd.f32 %v10573, %v10621
        %10623 = vdwg.mxu0
        %10624 = vmatpush.bf16.msra.mxu0 %v8882
        %10625 = vmatpush.bf16.msra.mxu0 %v8878
        %10626 = vmatpush.bf16.msra.mxu0 %v8874
        %10627 = vmatpush.bf16.msra.mxu0 %v8870
        %10628 = vmatpush.bf16.msra.mxu0 %v8866
        %10629 = vmatpush.bf16.msra.mxu0 %v8862
        %10630 = vmatpush.bf16.msra.mxu0 %v8858
        %10631 = vmatpush.bf16.msra.mxu0 %v8854
        %10632 = vmatmul.bf16.gmra.mxu0 %v7598
        %v10633 = vpop.f32.mrf.mxu0
        %v10634 = vadd.f32 %v10585, %v10633
        %v10635 = vpop.f32.mrf.mxu0
        %v10636 = vadd.f32 %v10587, %v10635
        %10637 = vmatmul.bf16.gmra.mxu0 %v7606
        %v10638 = vpop.f32.mrf.mxu0
        %v10639 = vadd.f32 %v10590, %v10638
        %v10640 = vpop.f32.mrf.mxu0
        %v10641 = vadd.f32 %v10592, %v10640
        %10642 = vmatmul.bf16.gmra.mxu0 %v7614
        %v10643 = vpop.f32.mrf.mxu0
        %v10644 = vadd.f32 %v10595, %v10643
        %v10645 = vpop.f32.mrf.mxu0
        %v10646 = vadd.f32 %v10597, %v10645
        %10647 = vmatmul.bf16.gmra.mxu0 %v7622
        %v10648 = vpop.f32.mrf.mxu0
        %v10649 = vadd.f32 %v10600, %v10648
        %v10650 = vpop.f32.mrf.mxu0
        %v10651 = vadd.f32 %v10602, %v10650
        %10652 = vmatmul.bf16.gmra.mxu0 %v7630
        %v10653 = vpop.f32.mrf.mxu0
        %v10654 = vadd.f32 %v10605, %v10653
        %v10655 = vpop.f32.mrf.mxu0
        %v10656 = vadd.f32 %v10607, %v10655
        %10657 = vmatmul.bf16.gmra.mxu0 %v7638
        %v10658 = vpop.f32.mrf.mxu0
        %v10659 = vadd.f32 %v10610, %v10658
        %v10660 = vpop.f32.mrf.mxu0
        %v10661 = vadd.f32 %v10612, %v10660
        %10662 = vmatmul.bf16.gmra.mxu0 %v7646
        %v10663 = vpop.f32.mrf.mxu0
        %v10664 = vadd.f32 %v10615, %v10663
        %v10665 = vpop.f32.mrf.mxu0
        %v10666 = vadd.f32 %v10617, %v10665
        %10667 = vmatmul.bf16.gmra.mxu0 %v7654
        %v10668 = vpop.f32.mrf.mxu0
        %v10669 = vadd.f32 %v10620, %v10668
        %v10670 = vpop.f32.mrf.mxu0
        %v10671 = vadd.f32 %v10622, %v10670
        %10672 = vdwg.mxu0
        %10673 = vmatpush.bf16.msra.mxu0 %v8914
        %10674 = vmatpush.bf16.msra.mxu0 %v8910
        %10675 = vmatpush.bf16.msra.mxu0 %v8906
        %10676 = vmatpush.bf16.msra.mxu0 %v8902
        %10677 = vmatpush.bf16.msra.mxu0 %v8898
        %10678 = vmatpush.bf16.msra.mxu0 %v8894
        %10679 = vmatpush.bf16.msra.mxu0 %v8890
        %10680 = vmatpush.bf16.msra.mxu0 %v8886
        %10681 = vmatmul.bf16.gmra.mxu0 %v7599
        %v10682 = vpop.f32.mrf.mxu0
        %v10683 = vadd.f32 %v10634, %v10682
        %v10684 = vpop.f32.mrf.mxu0
        %v10685 = vadd.f32 %v10636, %v10684
        %10686 = vmatmul.bf16.gmra.mxu0 %v7607
        %v10687 = vpop.f32.mrf.mxu0
        %v10688 = vadd.f32 %v10639, %v10687
        %v10689 = vpop.f32.mrf.mxu0
        %v10690 = vadd.f32 %v10641, %v10689
        %10691 = vmatmul.bf16.gmra.mxu0 %v7615
        %v10692 = vpop.f32.mrf.mxu0
        %v10693 = vadd.f32 %v10644, %v10692
        %v10694 = vpop.f32.mrf.mxu0
        %v10695 = vadd.f32 %v10646, %v10694
        %10696 = vmatmul.bf16.gmra.mxu0 %v7623
        %v10697 = vpop.f32.mrf.mxu0
        %v10698 = vadd.f32 %v10649, %v10697
        %v10699 = vpop.f32.mrf.mxu0
        %v10700 = vadd.f32 %v10651, %v10699
        %10701 = vmatmul.bf16.gmra.mxu0 %v7631
        %v10702 = vpop.f32.mrf.mxu0
        %v10703 = vadd.f32 %v10654, %v10702
        %v10704 = vpop.f32.mrf.mxu0
        %v10705 = vadd.f32 %v10656, %v10704
        %10706 = vmatmul.bf16.gmra.mxu0 %v7639
        %v10707 = vpop.f32.mrf.mxu0
        %v10708 = vadd.f32 %v10659, %v10707
        %v10709 = vpop.f32.mrf.mxu0
        %v10710 = vadd.f32 %v10661, %v10709
        %10711 = vmatmul.bf16.gmra.mxu0 %v7647
        %v10712 = vpop.f32.mrf.mxu0
        %v10713 = vadd.f32 %v10664, %v10712
        %v10714 = vpop.f32.mrf.mxu0
        %v10715 = vadd.f32 %v10666, %v10714
        %10716 = vmatmul.bf16.gmra.mxu0 %v7655
        %v10717 = vpop.f32.mrf.mxu0
        %v10718 = vadd.f32 %v10669, %v10717
        %v10719 = vpop.f32.mrf.mxu0
        %v10720 = vadd.f32 %v10671, %v10719
        %10721 = vdwg.mxu0
        %10722 = vmatpush.bf16.msra.mxu0 %v8946
        %10723 = vmatpush.bf16.msra.mxu0 %v8942
        %10724 = vmatpush.bf16.msra.mxu0 %v8938
        %10725 = vmatpush.bf16.msra.mxu0 %v8934
        %10726 = vmatpush.bf16.msra.mxu0 %v8930
        %10727 = vmatpush.bf16.msra.mxu0 %v8926
        %10728 = vmatpush.bf16.msra.mxu0 %v8922
        %10729 = vmatpush.bf16.msra.mxu0 %v8918
        %10730 = vmatmul.bf16.gmra.mxu0 %v7600
        %v10731 = vpop.f32.mrf.mxu0
        %v10732 = vadd.f32 %v10683, %v10731
        %v10733 = vpop.f32.mrf.mxu0
        %v10734 = vadd.f32 %v10685, %v10733
        %10735 = vmatmul.bf16.gmra.mxu0 %v7608
        %v10736 = vpop.f32.mrf.mxu0
        %v10737 = vadd.f32 %v10688, %v10736
        %v10738 = vpop.f32.mrf.mxu0
        %v10739 = vadd.f32 %v10690, %v10738
        %10740 = vmatmul.bf16.gmra.mxu0 %v7616
        %v10741 = vpop.f32.mrf.mxu0
        %v10742 = vadd.f32 %v10693, %v10741
        %v10743 = vpop.f32.mrf.mxu0
        %v10744 = vadd.f32 %v10695, %v10743
        %10745 = vmatmul.bf16.gmra.mxu0 %v7624
        %v10746 = vpop.f32.mrf.mxu0
        %v10747 = vadd.f32 %v10698, %v10746
        %v10748 = vpop.f32.mrf.mxu0
        %v10749 = vadd.f32 %v10700, %v10748
        %10750 = vmatmul.bf16.gmra.mxu0 %v7632
        %v10751 = vpop.f32.mrf.mxu0
        %v10752 = vadd.f32 %v10703, %v10751
        %v10753 = vpop.f32.mrf.mxu0
        %v10754 = vadd.f32 %v10705, %v10753
        %10755 = vmatmul.bf16.gmra.mxu0 %v7640
        %v10756 = vpop.f32.mrf.mxu0
        %v10757 = vadd.f32 %v10708, %v10756
        %v10758 = vpop.f32.mrf.mxu0
        %v10759 = vadd.f32 %v10710, %v10758
        %10760 = vmatmul.bf16.gmra.mxu0 %v7648
        %v10761 = vpop.f32.mrf.mxu0
        %v10762 = vadd.f32 %v10713, %v10761
        %v10763 = vpop.f32.mrf.mxu0
        %v10764 = vadd.f32 %v10715, %v10763
        %10765 = vmatmul.bf16.gmra.mxu0 %v7656
        %v10766 = vpop.f32.mrf.mxu0
        %v10767 = vadd.f32 %v10718, %v10766
        %v10768 = vpop.f32.mrf.mxu0
        %v10769 = vadd.f32 %v10720, %v10768
        %10770 = vdwg.mxu0
        %v10771 = vmax.f32 %v9556, 0.0
        %v10772 = vmax.f32 %v9948, 0.0
        %v10773 = vmax.f32 %v10340, 0.0
        %v10774 = vmax.f32 %v10732, 0.0
        %v10775 = vmax.f32 %v9558, 0.0
        %v10776 = vmax.f32 %v9950, 0.0
        %v10777 = vmax.f32 %v10342, 0.0
        %v10778 = vmax.f32 %v10734, 0.0
        %v10779 = vmax.f32 %v9561, 0.0
        %v10780 = vmax.f32 %v9953, 0.0
        %v10781 = vmax.f32 %v10345, 0.0
        %v10782 = vmax.f32 %v10737, 0.0
        %v10783 = vmax.f32 %v9563, 0.0
        %v10784 = vmax.f32 %v9955, 0.0
        %v10785 = vmax.f32 %v10347, 0.0
        %v10786 = vmax.f32 %v10739, 0.0
        %v10787 = vmax.f32 %v9566, 0.0
        %v10788 = vmax.f32 %v9958, 0.0
        %v10789 = vmax.f32 %v10350, 0.0
        %v10790 = vmax.f32 %v10742, 0.0
        %v10791 = vmax.f32 %v9568, 0.0
        %v10792 = vmax.f32 %v9960, 0.0
        %v10793 = vmax.f32 %v10352, 0.0
        %v10794 = vmax.f32 %v10744, 0.0
        %v10795 = vmax.f32 %v9571, 0.0
        %v10796 = vmax.f32 %v9963, 0.0
        %v10797 = vmax.f32 %v10355, 0.0
        %v10798 = vmax.f32 %v10747, 0.0
        %v10799 = vmax.f32 %v9573, 0.0
        %v10800 = vmax.f32 %v9965, 0.0
        %v10801 = vmax.f32 %v10357, 0.0
        %v10802 = vmax.f32 %v10749, 0.0
        %v10803 = vmax.f32 %v9576, 0.0
        %v10804 = vmax.f32 %v9968, 0.0
        %v10805 = vmax.f32 %v10360, 0.0
        %v10806 = vmax.f32 %v10752, 0.0
        %v10807 = vmax.f32 %v9578, 0.0
        %v10808 = vmax.f32 %v9970, 0.0
        %v10809 = vmax.f32 %v10362, 0.0
        %v10810 = vmax.f32 %v10754, 0.0
        %v10811 = vmax.f32 %v9581, 0.0
        %v10812 = vmax.f32 %v9973, 0.0
        %v10813 = vmax.f32 %v10365, 0.0
        %v10814 = vmax.f32 %v10757, 0.0
        %v10815 = vmax.f32 %v9583, 0.0
        %v10816 = vmax.f32 %v9975, 0.0
        %v10817 = vmax.f32 %v10367, 0.0
        %v10818 = vmax.f32 %v10759, 0.0
        %v10819 = vmax.f32 %v9586, 0.0
        %v10820 = vmax.f32 %v9978, 0.0
        %v10821 = vmax.f32 %v10370, 0.0
        %v10822 = vmax.f32 %v10762, 0.0
        %v10823 = vmax.f32 %v9588, 0.0
        %v10824 = vmax.f32 %v9980, 0.0
        %v10825 = vmax.f32 %v10372, 0.0
        %v10826 = vmax.f32 %v10764, 0.0
        %v10827 = vmax.f32 %v9591, 0.0
        %v10828 = vmax.f32 %v9983, 0.0
        %v10829 = vmax.f32 %v10375, 0.0
        %v10830 = vmax.f32 %v10767, 0.0
        %v10831 = vmax.f32 %v9593, 0.0
        %v10832 = vmax.f32 %v9985, 0.0
        %v10833 = vmax.f32 %v10377, 0.0
        %v10834 = vmax.f32 %v10769, 0.0
        %v10835 = vpack.c.bf16 %v10775, %v10771
        %v10836 = vpack.c.bf16 %v10776, %v10772
        %v10837 = vpack.c.bf16 %v10777, %v10773
        %v10838 = vpack.c.bf16 %v10778, %v10774
        %v10839 = vpack.c.bf16 %v10783, %v10779
        %v10840 = vpack.c.bf16 %v10784, %v10780
        %v10841 = vpack.c.bf16 %v10785, %v10781
        %v10842 = vpack.c.bf16 %v10786, %v10782
        %v10843 = vpack.c.bf16 %v10791, %v10787
        %v10844 = vpack.c.bf16 %v10792, %v10788
        %v10845 = vpack.c.bf16 %v10793, %v10789
        %v10846 = vpack.c.bf16 %v10794, %v10790
        %v10847 = vpack.c.bf16 %v10799, %v10795
        %v10848 = vpack.c.bf16 %v10800, %v10796
        %v10849 = vpack.c.bf16 %v10801, %v10797
        %v10850 = vpack.c.bf16 %v10802, %v10798
        %v10851 = vpack.c.bf16 %v10807, %v10803
        %v10852 = vpack.c.bf16 %v10808, %v10804
        %v10853 = vpack.c.bf16 %v10809, %v10805
        %v10854 = vpack.c.bf16 %v10810, %v10806
        %v10855 = vpack.c.bf16 %v10815, %v10811
        %v10856 = vpack.c.bf16 %v10816, %v10812
        %v10857 = vpack.c.bf16 %v10817, %v10813
        %v10858 = vpack.c.bf16 %v10818, %v10814
        %v10859 = vpack.c.bf16 %v10823, %v10819
        %v10860 = vpack.c.bf16 %v10824, %v10820
        %v10861 = vpack.c.bf16 %v10825, %v10821
        %v10862 = vpack.c.bf16 %v10826, %v10822
        %v10863 = vpack.c.bf16 %v10831, %v10827
        %v10864 = vpack.c.bf16 %v10832, %v10828
        %v10865 = vpack.c.bf16 %v10833, %v10829
        %v10866 = vpack.c.bf16 %v10834, %v10830
        %v10867 = vld [vmem:[#allocation13] sm:$0xf]
        %v10868 = vld [vmem:[#allocation13 + $0x4] sm:$0xf]
        %v10869 = vld [vmem:[#allocation13 + $0x8] sm:$0xf]
        %v10870 = vld [vmem:[#allocation13 + $0xc] sm:$0xf]
        %v10871 = vld [vmem:[#allocation13 + $0x10] sm:$0xf]
        %v10872 = vld [vmem:[#allocation13 + $0x14] sm:$0xf]
        %v10873 = vld [vmem:[#allocation13 + $0x18] sm:$0xf]
        %v10874 = vld [vmem:[#allocation13 + $0x1c] sm:$0xf]
        %v10875 = vld [vmem:[#allocation13 + $0x20] sm:$0xf]
        %v10876 = vld [vmem:[#allocation13 + $0x24] sm:$0xf]
        %v10877 = vld [vmem:[#allocation13 + $0x28] sm:$0xf]
        %v10878 = vld [vmem:[#allocation13 + $0x2c] sm:$0xf]
        %v10879 = vld [vmem:[#allocation13 + $0x30] sm:$0xf]
        %v10880 = vld [vmem:[#allocation13 + $0x34] sm:$0xf]
        %v10881 = vld [vmem:[#allocation13 + $0x38] sm:$0xf]
        %v10882 = vld [vmem:[#allocation13 + $0x3c] sm:$0xf]
        %v10883 = vld [vmem:[#allocation13 + $0x40] sm:$0xf]
        %v10884 = vld [vmem:[#allocation13 + $0x44] sm:$0xf]
        %v10885 = vld [vmem:[#allocation13 + $0x48] sm:$0xf]
        %v10886 = vld [vmem:[#allocation13 + $0x4c] sm:$0xf]
        %v10887 = vld [vmem:[#allocation13 + $0x50] sm:$0xf]
        %v10888 = vld [vmem:[#allocation13 + $0x54] sm:$0xf]
        %v10889 = vld [vmem:[#allocation13 + $0x58] sm:$0xf]
        %v10890 = vld [vmem:[#allocation13 + $0x5c] sm:$0xf]
        %v10891 = vld [vmem:[#allocation13 + $0x60] sm:$0xf]
        %v10892 = vld [vmem:[#allocation13 + $0x64] sm:$0xf]
        %v10893 = vld [vmem:[#allocation13 + $0x68] sm:$0xf]
        %v10894 = vld [vmem:[#allocation13 + $0x6c] sm:$0xf]
        %v10895 = vld [vmem:[#allocation13 + $0x70] sm:$0xf]
        %v10896 = vld [vmem:[#allocation13 + $0x74] sm:$0xf]
        %v10897 = vld [vmem:[#allocation13 + $0x78] sm:$0xf]
        %v10898 = vld [vmem:[#allocation13 + $0x7c] sm:$0xf]
        %v10899 = vld [vmem:[#allocation13 + $0x80] sm:$0xf]
        %v10900 = vld [vmem:[#allocation13 + $0x84] sm:$0xf]
        %v10901 = vld [vmem:[#allocation13 + $0x88] sm:$0xf]
        %v10902 = vld [vmem:[#allocation13 + $0x8c] sm:$0xf]
        %v10903 = vld [vmem:[#allocation13 + $0x90] sm:$0xf]
        %v10904 = vld [vmem:[#allocation13 + $0x94] sm:$0xf]
        %v10905 = vld [vmem:[#allocation13 + $0x98] sm:$0xf]
        %v10906 = vld [vmem:[#allocation13 + $0x9c] sm:$0xf]
        %v10907 = vld [vmem:[#allocation13 + $0xa0] sm:$0xf]
        %v10908 = vld [vmem:[#allocation13 + $0xa4] sm:$0xf]
        %v10909 = vld [vmem:[#allocation13 + $0xa8] sm:$0xf]
        %v10910 = vld [vmem:[#allocation13 + $0xac] sm:$0xf]
        %v10911 = vld [vmem:[#allocation13 + $0xb0] sm:$0xf]
        %v10912 = vld [vmem:[#allocation13 + $0xb4] sm:$0xf]
        %v10913 = vld [vmem:[#allocation13 + $0xb8] sm:$0xf]
        %v10914 = vld [vmem:[#allocation13 + $0xbc] sm:$0xf]
        %v10915 = vld [vmem:[#allocation13 + $0xc0] sm:$0xf]
        %v10916 = vld [vmem:[#allocation13 + $0xc4] sm:$0xf]
        %v10917 = vld [vmem:[#allocation13 + $0xc8] sm:$0xf]
        %v10918 = vld [vmem:[#allocation13 + $0xcc] sm:$0xf]
        %v10919 = vld [vmem:[#allocation13 + $0xd0] sm:$0xf]
        %v10920 = vld [vmem:[#allocation13 + $0xd4] sm:$0xf]
        %v10921 = vld [vmem:[#allocation13 + $0xd8] sm:$0xf]
        %v10922 = vld [vmem:[#allocation13 + $0xdc] sm:$0xf]
        %v10923 = vld [vmem:[#allocation13 + $0xe0] sm:$0xf]
        %v10924 = vld [vmem:[#allocation13 + $0xe4] sm:$0xf]
        %v10925 = vld [vmem:[#allocation13 + $0xe8] sm:$0xf]
        %v10926 = vld [vmem:[#allocation13 + $0xec] sm:$0xf]
        %v10927 = vld [vmem:[#allocation13 + $0xf0] sm:$0xf]
        %v10928 = vld [vmem:[#allocation13 + $0xf4] sm:$0xf]
        %v10929 = vld [vmem:[#allocation13 + $0xf8] sm:$0xf]
        %v10930 = vld [vmem:[#allocation13 + $0xfc] sm:$0xf]
        %v10931 = vld [vmem:[#allocation14] sm:$0x1]
        %v10933 = vperm.slane %v10931, 0
        %v10999 = vunpack.c.l.b16 %v10867
        %v11000 = vunpack.c.l.b16 %v10868
        %v11001 = vunpack.c.l.b16 %v10869
        %v11002 = vunpack.c.l.b16 %v10870
        %v11003 = vunpack.c.l.b16 %v10871
        %v11004 = vunpack.c.l.b16 %v10872
        %v11005 = vunpack.c.l.b16 %v10873
        %v11006 = vunpack.c.l.b16 %v10874
        %v11007 = vunpack.c.l.b16 %v10875
        %v11008 = vunpack.c.l.b16 %v10876
        %v11009 = vunpack.c.l.b16 %v10877
        %v11010 = vunpack.c.l.b16 %v10878
        %v11011 = vunpack.c.l.b16 %v10879
        %v11012 = vunpack.c.l.b16 %v10880
        %v11013 = vunpack.c.l.b16 %v10881
        %v11014 = vunpack.c.l.b16 %v10882
        %v11015 = vunpack.c.l.b16 %v10883
        %v11016 = vunpack.c.l.b16 %v10884
        %v11017 = vunpack.c.l.b16 %v10885
        %v11018 = vunpack.c.l.b16 %v10886
        %v11019 = vunpack.c.l.b16 %v10887
        %v11020 = vunpack.c.l.b16 %v10888
        %v11021 = vunpack.c.l.b16 %v10889
        %v11022 = vunpack.c.l.b16 %v10890
        %v11023 = vunpack.c.l.b16 %v10891
        %v11024 = vunpack.c.l.b16 %v10892
        %v11025 = vunpack.c.l.b16 %v10893
        %v11026 = vunpack.c.l.b16 %v10894
        %v11027 = vunpack.c.l.b16 %v10895
        %v11028 = vunpack.c.l.b16 %v10896
        %v11029 = vunpack.c.l.b16 %v10897
        %v11030 = vunpack.c.l.b16 %v10898
        %v11031 = vunpack.c.l.b16 %v10899
        %v11032 = vunpack.c.l.b16 %v10900
        %v11033 = vunpack.c.l.b16 %v10901
        %v11034 = vunpack.c.l.b16 %v10902
        %v11035 = vunpack.c.l.b16 %v10903
        %v11036 = vunpack.c.l.b16 %v10904
        %v11037 = vunpack.c.l.b16 %v10905
        %v11038 = vunpack.c.l.b16 %v10906
        %v11039 = vunpack.c.l.b16 %v10907
        %v11040 = vunpack.c.l.b16 %v10908
        %v11041 = vunpack.c.l.b16 %v10909
        %v11042 = vunpack.c.l.b16 %v10910
        %v11043 = vunpack.c.l.b16 %v10911
        %v11044 = vunpack.c.l.b16 %v10912
        %v11045 = vunpack.c.l.b16 %v10913
        %v11046 = vunpack.c.l.b16 %v10914
        %v11047 = vunpack.c.l.b16 %v10915
        %v11048 = vunpack.c.l.b16 %v10916
        %v11049 = vunpack.c.l.b16 %v10917
        %v11050 = vunpack.c.l.b16 %v10918
        %v11051 = vunpack.c.l.b16 %v10919
        %v11052 = vunpack.c.l.b16 %v10920
        %v11053 = vunpack.c.l.b16 %v10921
        %v11054 = vunpack.c.l.b16 %v10922
        %v11055 = vunpack.c.l.b16 %v10923
        %v11056 = vunpack.c.l.b16 %v10924
        %v11057 = vunpack.c.l.b16 %v10925
        %v11058 = vunpack.c.l.b16 %v10926
        %v11059 = vunpack.c.l.b16 %v10927
        %v11060 = vunpack.c.l.b16 %v10928
        %v11061 = vunpack.c.l.b16 %v10929
        %v11062 = vunpack.c.l.b16 %v10930
        %v11063 = vpack.c.b16 %v11000, %v10999
        %v11064 = vpack.c.b16 %v11002, %v11001
        %v11065 = vpack.c.b16 %v11004, %v11003
        %v11066 = vpack.c.b16 %v11006, %v11005
        %v11067 = vpack.c.b16 %v11008, %v11007
        %v11068 = vpack.c.b16 %v11010, %v11009
        %v11069 = vpack.c.b16 %v11012, %v11011
        %v11070 = vpack.c.b16 %v11014, %v11013
        %v11071 = vpack.c.b16 %v11016, %v11015
        %v11072 = vpack.c.b16 %v11018, %v11017
        %v11073 = vpack.c.b16 %v11020, %v11019
        %v11074 = vpack.c.b16 %v11022, %v11021
        %v11075 = vpack.c.b16 %v11024, %v11023
        %v11076 = vpack.c.b16 %v11026, %v11025
        %v11077 = vpack.c.b16 %v11028, %v11027
        %v11078 = vpack.c.b16 %v11030, %v11029
        %v11079 = vpack.c.b16 %v11032, %v11031
        %v11080 = vpack.c.b16 %v11034, %v11033
        %v11081 = vpack.c.b16 %v11036, %v11035
        %v11082 = vpack.c.b16 %v11038, %v11037
        %v11083 = vpack.c.b16 %v11040, %v11039
        %v11084 = vpack.c.b16 %v11042, %v11041
        %v11085 = vpack.c.b16 %v11044, %v11043
        %v11086 = vpack.c.b16 %v11046, %v11045
        %v11087 = vpack.c.b16 %v11048, %v11047
        %v11088 = vpack.c.b16 %v11050, %v11049
        %v11089 = vpack.c.b16 %v11052, %v11051
        %v11090 = vpack.c.b16 %v11054, %v11053
        %v11091 = vpack.c.b16 %v11056, %v11055
        %v11092 = vpack.c.b16 %v11058, %v11057
        %v11093 = vpack.c.b16 %v11060, %v11059
        %v11094 = vpack.c.b16 %v11062, %v11061
        %11127 = vmatpush.bf16.msra.mxu0 %v11070
        %11128 = vmatpush.bf16.msra.mxu0 %v11069
        %11129 = vmatpush.bf16.msra.mxu0 %v11068
        %11130 = vmatpush.bf16.msra.mxu0 %v11067
        %11131 = vmatpush.bf16.msra.mxu0 %v11066
        %11132 = vmatpush.bf16.msra.mxu0 %v11065
        %11133 = vmatpush.bf16.msra.mxu0 %v11064
        %11134 = vmatpush.bf16.msra.mxu0 %v11063
        %11135 = vmatmul.bf16.gmra.mxu0 %v10835
        %v11136 = vpop.f32.mrf.mxu0
        %v11137 = vadd.f32 %v10933, %v11136
        %v11138 = vpop.f32.mrf.mxu0
        %v11139 = vadd.f32 %v10933, %v11138
        %11140 = vmatmul.bf16.gmra.mxu0 %v10839
        %v11141 = vpop.f32.mrf.mxu0
        %v11142 = vadd.f32 %v10933, %v11141
        %v11143 = vpop.f32.mrf.mxu0
        %v11144 = vadd.f32 %v10933, %v11143
        %11145 = vmatmul.bf16.gmra.mxu0 %v10843
        %v11146 = vpop.f32.mrf.mxu0
        %v11147 = vadd.f32 %v10933, %v11146
        %v11148 = vpop.f32.mrf.mxu0
        %v11149 = vadd.f32 %v10933, %v11148
        %11150 = vmatmul.bf16.gmra.mxu0 %v10847
        %v11151 = vpop.f32.mrf.mxu0
        %v11152 = vadd.f32 %v10933, %v11151
        %v11153 = vpop.f32.mrf.mxu0
        %v11154 = vadd.f32 %v10933, %v11153
        %11155 = vmatmul.bf16.gmra.mxu0 %v10851
        %v11156 = vpop.f32.mrf.mxu0
        %v11157 = vadd.f32 %v10933, %v11156
        %v11158 = vpop.f32.mrf.mxu0
        %v11159 = vadd.f32 %v10933, %v11158
        %11160 = vmatmul.bf16.gmra.mxu0 %v10855
        %v11161 = vpop.f32.mrf.mxu0
        %v11162 = vadd.f32 %v10933, %v11161
        %v11163 = vpop.f32.mrf.mxu0
        %v11164 = vadd.f32 %v10933, %v11163
        %11165 = vmatmul.bf16.gmra.mxu0 %v10859
        %v11166 = vpop.f32.mrf.mxu0
        %v11167 = vadd.f32 %v10933, %v11166
        %v11168 = vpop.f32.mrf.mxu0
        %v11169 = vadd.f32 %v10933, %v11168
        %11170 = vmatmul.bf16.gmra.mxu0 %v10863
        %v11171 = vpop.f32.mrf.mxu0
        %v11172 = vadd.f32 %v10933, %v11171
        %v11173 = vpop.f32.mrf.mxu0
        %v11174 = vadd.f32 %v10933, %v11173
        %11175 = vdwg.mxu0
        %11176 = vmatpush.bf16.msra.mxu0 %v11078
        %11177 = vmatpush.bf16.msra.mxu0 %v11077
        %11178 = vmatpush.bf16.msra.mxu0 %v11076
        %11179 = vmatpush.bf16.msra.mxu0 %v11075
        %11180 = vmatpush.bf16.msra.mxu0 %v11074
        %11181 = vmatpush.bf16.msra.mxu0 %v11073
        %11182 = vmatpush.bf16.msra.mxu0 %v11072
        %11183 = vmatpush.bf16.msra.mxu0 %v11071
        %11184 = vmatmul.bf16.gmra.mxu0 %v10836
        %v11185 = vpop.f32.mrf.mxu0
        %v11186 = vadd.f32 %v11137, %v11185
        %v11187 = vpop.f32.mrf.mxu0
        %v11188 = vadd.f32 %v11139, %v11187
        %11189 = vmatmul.bf16.gmra.mxu0 %v10840
        %v11190 = vpop.f32.mrf.mxu0
        %v11191 = vadd.f32 %v11142, %v11190
        %v11192 = vpop.f32.mrf.mxu0
        %v11193 = vadd.f32 %v11144, %v11192
        %11194 = vmatmul.bf16.gmra.mxu0 %v10844
        %v11195 = vpop.f32.mrf.mxu0
        %v11196 = vadd.f32 %v11147, %v11195
        %v11197 = vpop.f32.mrf.mxu0
        %v11198 = vadd.f32 %v11149, %v11197
        %11199 = vmatmul.bf16.gmra.mxu0 %v10848
        %v11200 = vpop.f32.mrf.mxu0
        %v11201 = vadd.f32 %v11152, %v11200
        %v11202 = vpop.f32.mrf.mxu0
        %v11203 = vadd.f32 %v11154, %v11202
        %11204 = vmatmul.bf16.gmra.mxu0 %v10852
        %v11205 = vpop.f32.mrf.mxu0
        %v11206 = vadd.f32 %v11157, %v11205
        %v11207 = vpop.f32.mrf.mxu0
        %v11208 = vadd.f32 %v11159, %v11207
        %11209 = vmatmul.bf16.gmra.mxu0 %v10856
        %v11210 = vpop.f32.mrf.mxu0
        %v11211 = vadd.f32 %v11162, %v11210
        %v11212 = vpop.f32.mrf.mxu0
        %v11213 = vadd.f32 %v11164, %v11212
        %11214 = vmatmul.bf16.gmra.mxu0 %v10860
        %v11215 = vpop.f32.mrf.mxu0
        %v11216 = vadd.f32 %v11167, %v11215
        %v11217 = vpop.f32.mrf.mxu0
        %v11218 = vadd.f32 %v11169, %v11217
        %11219 = vmatmul.bf16.gmra.mxu0 %v10864
        %v11220 = vpop.f32.mrf.mxu0
        %v11221 = vadd.f32 %v11172, %v11220
        %v11222 = vpop.f32.mrf.mxu0
        %v11223 = vadd.f32 %v11174, %v11222
        %11224 = vdwg.mxu0
        %11225 = vmatpush.bf16.msra.mxu0 %v11086
        %11226 = vmatpush.bf16.msra.mxu0 %v11085
        %11227 = vmatpush.bf16.msra.mxu0 %v11084
        %11228 = vmatpush.bf16.msra.mxu0 %v11083
        %11229 = vmatpush.bf16.msra.mxu0 %v11082
        %11230 = vmatpush.bf16.msra.mxu0 %v11081
        %11231 = vmatpush.bf16.msra.mxu0 %v11080
        %11232 = vmatpush.bf16.msra.mxu0 %v11079
        %11233 = vmatmul.bf16.gmra.mxu0 %v10837
        %v11234 = vpop.f32.mrf.mxu0
        %v11235 = vadd.f32 %v11186, %v11234
        %v11236 = vpop.f32.mrf.mxu0
        %v11237 = vadd.f32 %v11188, %v11236
        %11238 = vmatmul.bf16.gmra.mxu0 %v10841
        %v11239 = vpop.f32.mrf.mxu0
        %v11240 = vadd.f32 %v11191, %v11239
        %v11241 = vpop.f32.mrf.mxu0
        %v11242 = vadd.f32 %v11193, %v11241
        %11243 = vmatmul.bf16.gmra.mxu0 %v10845
        %v11244 = vpop.f32.mrf.mxu0
        %v11245 = vadd.f32 %v11196, %v11244
        %v11246 = vpop.f32.mrf.mxu0
        %v11247 = vadd.f32 %v11198, %v11246
        %11248 = vmatmul.bf16.gmra.mxu0 %v10849
        %v11249 = vpop.f32.mrf.mxu0
        %v11250 = vadd.f32 %v11201, %v11249
        %v11251 = vpop.f32.mrf.mxu0
        %v11252 = vadd.f32 %v11203, %v11251
        %11253 = vmatmul.bf16.gmra.mxu0 %v10853
        %v11254 = vpop.f32.mrf.mxu0
        %v11255 = vadd.f32 %v11206, %v11254
        %v11256 = vpop.f32.mrf.mxu0
        %v11257 = vadd.f32 %v11208, %v11256
        %11258 = vmatmul.bf16.gmra.mxu0 %v10857
        %v11259 = vpop.f32.mrf.mxu0
        %v11260 = vadd.f32 %v11211, %v11259
        %v11261 = vpop.f32.mrf.mxu0
        %v11262 = vadd.f32 %v11213, %v11261
        %11263 = vmatmul.bf16.gmra.mxu0 %v10861
        %v11264 = vpop.f32.mrf.mxu0
        %v11265 = vadd.f32 %v11216, %v11264
        %v11266 = vpop.f32.mrf.mxu0
        %v11267 = vadd.f32 %v11218, %v11266
        %11268 = vmatmul.bf16.gmra.mxu0 %v10865
        %v11269 = vpop.f32.mrf.mxu0
        %v11270 = vadd.f32 %v11221, %v11269
        %v11271 = vpop.f32.mrf.mxu0
        %v11272 = vadd.f32 %v11223, %v11271
        %11273 = vdwg.mxu0
        %11274 = vmatpush.bf16.msra.mxu0 %v11094
        %11275 = vmatpush.bf16.msra.mxu0 %v11093
        %11276 = vmatpush.bf16.msra.mxu0 %v11092
        %11277 = vmatpush.bf16.msra.mxu0 %v11091
        %11278 = vmatpush.bf16.msra.mxu0 %v11090
        %11279 = vmatpush.bf16.msra.mxu0 %v11089
        %11280 = vmatpush.bf16.msra.mxu0 %v11088
        %11281 = vmatpush.bf16.msra.mxu0 %v11087
        %11282 = vmatmul.bf16.gmra.mxu0 %v10838
        %v11283 = vpop.f32.mrf.mxu0
        %v11284 = vadd.f32 %v11235, %v11283
        %v11285 = vpop.f32.mrf.mxu0
        %v11286 = vadd.f32 %v11237, %v11285
        %11287 = vmatmul.bf16.gmra.mxu0 %v10842
        %v11288 = vpop.f32.mrf.mxu0
        %v11289 = vadd.f32 %v11240, %v11288
        %v11290 = vpop.f32.mrf.mxu0
        %v11291 = vadd.f32 %v11242, %v11290
        %11292 = vmatmul.bf16.gmra.mxu0 %v10846
        %v11293 = vpop.f32.mrf.mxu0
        %v11294 = vadd.f32 %v11245, %v11293
        %v11295 = vpop.f32.mrf.mxu0
        %v11296 = vadd.f32 %v11247, %v11295
        %11297 = vmatmul.bf16.gmra.mxu0 %v10850
        %v11298 = vpop.f32.mrf.mxu0
        %v11299 = vadd.f32 %v11250, %v11298
        %v11300 = vpop.f32.mrf.mxu0
        %v11301 = vadd.f32 %v11252, %v11300
        %11302 = vmatmul.bf16.gmra.mxu0 %v10854
        %v11303 = vpop.f32.mrf.mxu0
        %v11304 = vadd.f32 %v11255, %v11303
        %v11305 = vpop.f32.mrf.mxu0
        %v11306 = vadd.f32 %v11257, %v11305
        %11307 = vmatmul.bf16.gmra.mxu0 %v10858
        %v11308 = vpop.f32.mrf.mxu0
        %v11309 = vadd.f32 %v11260, %v11308
        %v11310 = vpop.f32.mrf.mxu0
        %v11311 = vadd.f32 %v11262, %v11310
        %11312 = vmatmul.bf16.gmra.mxu0 %v10862
        %v11313 = vpop.f32.mrf.mxu0
        %v11314 = vadd.f32 %v11265, %v11313
        %v11315 = vpop.f32.mrf.mxu0
        %v11316 = vadd.f32 %v11267, %v11315
        %11317 = vmatmul.bf16.gmra.mxu0 %v10866
        %v11318 = vpop.f32.mrf.mxu0
        %v11319 = vadd.f32 %v11270, %v11318
        %v11320 = vpop.f32.mrf.mxu0
        %v11321 = vadd.f32 %v11272, %v11320
        %11322 = vdwg.mxu0
        %v11323 = vtanh.pop %v11284
        %v11324 = vtanh.pop %v11286
        %v11325 = vtanh.pop %v11289
        %v11326 = vtanh.pop %v11291
        %v11327 = vtanh.pop %v11294
        %v11328 = vtanh.pop %v11296
        %v11329 = vtanh.pop %v11299
        %v11330 = vtanh.pop %v11301
        %v11331 = vtanh.pop %v11304
        %v11332 = vtanh.pop %v11306
        %v11333 = vtanh.pop %v11309
        %v11334 = vtanh.pop %v11311
        %v11335 = vtanh.pop %v11314
        %v11336 = vtanh.pop %v11316
        %v11337 = vtanh.pop %v11319
        %v11338 = vtanh.pop %v11321
        %11339 = vst [vmem:[%s451] sm:$0xff] %v11323
        %11340 = vst [vmem:[%s451 + $0x8] sm:$0xff] %v11324
        %11341 = vst [vmem:[%s451 + $0x10] sm:$0xff] %v11325
        %11342 = vst [vmem:[%s451 + $0x18] sm:$0xff] %v11326
        %11343 = vst [vmem:[%s451 + $0x20] sm:$0xff] %v11327
        %11344 = vst [vmem:[%s451 + $0x28] sm:$0xff] %v11328
        %11345 = vst [vmem:[%s451 + $0x30] sm:$0xff] %v11329
        %11346 = vst [vmem:[%s451 + $0x38] sm:$0xff] %v11330
        %11347 = vst [vmem:[%s451 + $0x40] sm:$0xff] %v11331
        %11348 = vst [vmem:[%s451 + $0x48] sm:$0xff] %v11332
        %11349 = vst [vmem:[%s451 + $0x50] sm:$0xff] %v11333
        %11350 = vst [vmem:[%s451 + $0x58] sm:$0xff] %v11334
        %11351 = vst [vmem:[%s451 + $0x60] sm:$0xff] %v11335
        %11352 = vst [vmem:[%s451 + $0x68] sm:$0xff] %v11336
        %11353 = vst [vmem:[%s451 + $0x70] sm:$0xff] %v11337
        %11354 = vst [vmem:[%s451 + $0x78] sm:$0xff] %v11338
        %s11355 = sand.u32 %s230, 1
        %s11356 = scalar_lea.sflag [#allocation4], %s11355
        %s11357 = sand.u32 %s230, 1
        %s11358 = smul.addr %s11357, 128
        %s11359 = scalar_lea.vmem [#allocation16], %s11358
        // Predicated region
        $region89: #{tpu_custom_call.1} parent=55 // pred_check
          %p11360 = pneg %p240
        $region90: #{tpu_custom_call.1} parent=55 // pred_check_branch
          %11362 = sbr.rel (%p11360) target = $region92
        $region91: #{tpu_custom_call.1} parent=55 // pred_region
          %s11363 = smul.u32 16, %s28
          %11365 = vsyncadd %s11356, 0
          %s11366 = smul.addr %s11363, 8
          %s11367 = scalar_lea.hbm %s9, %s11366
          %s11368 = sshll.u32 %s11359, 4
          %s11369 = int_to_ptr.vmem [resolvable:$true] %s11368
          %s11370 = sshll.u32 %s11367, 4
          %s11371 = int_to_ptr.hbm [resolvable:$true] %s11370
          %11376 = dma.vmem_to_hbm [thread:$0]  %s11369, 2048, %s11371, %s11356, 128, 128, 8
        $region92: #{tpu_custom_call.1} parent=55 // pred_fallthru
          _
      $region56: #{tpu_custom_call.1} parent=5 // pred_fallthru
        _
      %p11377 = scmp.le.s32.totalorder 2, %s23
      // Predicated region
      $region93: #{tpu_custom_call.1} parent=5 // pred_check
        %p11378 = pneg %p11377
      $region94: #{tpu_custom_call.1} parent=5 // pred_check_branch
        %11380 = sbr.rel (%p11378) target = $region96
      $region95: #{tpu_custom_call.1} parent=5 // pred_region
        %s11381 = ssub.s32 %s23, 2
        // Predicated region
        $region97: #{tpu_custom_call.1} parent=95 // pred_check
          %p11382 = pneg %p246
        $region98: #{tpu_custom_call.1} parent=95 // pred_check_branch
          %11384 = sbr.rel (%p11382) target = $region100
        $region99: #{tpu_custom_call.1} parent=95 // pred_region
          %s11385 = sand.u32 %s231, 1
          %s11386 = scalar_lea.sflag [#allocation4], %s11385
          %s11387 = sand.u32 %s231, 1
          %s11388 = smul.addr %s11387, 128
          %s11389 = scalar_lea.vmem [#allocation16], %s11388
          %11391 = dma.done %s11386, 2048
        $region100: #{tpu_custom_call.1} parent=95 // pred_fallthru
          _
      $region96: #{tpu_custom_call.1} parent=5 // pred_fallthru
        _
    $region6: #{tpu_custom_call.1} parent=1 // loop_footer
      %s27 = sadd.s32 1, %s23
    $region7: #{tpu_custom_call.1} parent=1 // loop_footer_branch
      %22 = sbr.rel target = $region3
    $region8: #{tpu_custom_call.1} parent=1 // loop_exit
      _
    %11392 = vsyncpa [#allocation3], 1
    %s11393 = scalar_lea.sflag [#allocation3], 1
    %11394 = vsyncpa %s11393, 1
    %11395 = vsyncpa [#allocation6], 1
    %11396 = vsyncpa [#allocation9], 1
    %11397 = vsyncpa [#allocation12], 1
    %11398 = vsyncpa [#allocation15], 1
    %11399 = vsyncpa [#allocation4], 1
    %s11400 = scalar_lea.sflag [#allocation4], 1
    %11401 = vsyncpa %s11400, 1

</llo_original>
